<compile_context>
chip_gen: v7x
topology: tpu7x:2x2x1
jax: 0.10.0
libtpu: 0.0.40
codegen_flags: <defaults>
</compile_context>

<pallas_src>
import math
import functools

import jax
import jax.numpy as jnp
from jax.experimental import pallas as pl
from jax.experimental.pallas import tpu as pltpu


# ----------------------------- small helpers -----------------------------

def _pick_tile(dim, target, align):
    """Largest tile <= target that is a multiple of `align` and divides `dim`;
    falls back to the full dimension (always a legal, full-extent block)."""
    if dim <= target:
        return dim
    t = (target // align) * align
    while t >= align:
        if dim % t == 0:
            return t
        t -= align
    return dim


def _vmem_limit(block_bytes, scratch_bytes=0):
    """Scoped-VMEM limit derived from the double-buffered tile working set plus
    headroom instead of a blanket cap (v7x only has 64 MiB per TensorCore)."""
    est = 2 * int(block_bytes) + int(scratch_bytes)
    est = 2 * est + (4 << 20)
    return max(16 << 20, min(est, 64 << 20))


# ----------------------------- tiled linear (matmul + bias [+ relu]) -----------------------------

def _linear_kernel(x_ref, w_ref, b_ref, o_ref, acc_ref, *, relu):
    @pl.when(pl.program_id(2) == 0)
    def _():
        acc_ref[...] = jnp.zeros_like(acc_ref)

    acc_ref[...] += jnp.dot(x_ref[...], w_ref[...],
                            preferred_element_type=jnp.float32)

    @pl.when(pl.program_id(2) == pl.num_programs(2) - 1)
    def _():
        y = acc_ref[...] + b_ref[...]
        if relu:
            y = jnp.maximum(y, 0.0)
        o_ref[...] = y.astype(o_ref.dtype)


def linear(x2d, w_t, b, relu=False, out_dtype=jnp.bfloat16):
    """x2d: [M, K] bf16; w_t: [K, N] bf16 (pre-transposed vs PyTorch's [N, K]); b: [N].
    bf16 MXU inputs, f32 accumulation, bias + optional ReLU fused on the last K step."""
    M, K = x2d.shape
    N = w_t.shape[1]
    x2d = x2d.astype(jnp.bfloat16)      # no-op when already bf16
    w_t = w_t.astype(jnp.bfloat16)
    tm = _pick_tile(M, 256, 16)         # 16-aligned M tiles for bf16 sublane packing
    tn = _pick_tile(N, 512, 128)
    tk = _pick_tile(K, 512, 128)
    grid = (M // tm, N // tn, K // tk)

    out_b = 2 if out_dtype == jnp.bfloat16 else 4
    block_bytes = tm * tk * 2 + tk * tn * 2 + tn * 4 + tm * tn * out_b
    scratch_bytes = tm * tn * 4

    return pl.pallas_call(
        functools.partial(_linear_kernel, relu=relu),
        out_shape=jax.ShapeDtypeStruct((M, N), out_dtype),
        grid=grid,
        in_specs=[
            pl.BlockSpec((tm, tk), lambda i, j, k: (i, k)),
            pl.BlockSpec((tk, tn), lambda i, j, k: (k, j)),
            pl.BlockSpec((1, tn), lambda i, j, k: (0, j)),
        ],
        out_specs=pl.BlockSpec((tm, tn), lambda i, j, k: (i, j)),
        scratch_shapes=[pltpu.VMEM((tm, tn), jnp.float32)],
        compiler_params=pltpu.CompilerParams(
            dimension_semantics=("parallel", "parallel", "arbitrary"),
            vmem_limit_bytes=_vmem_limit(block_bytes, scratch_bytes)),
        cost_estimate=pl.CostEstimate(
            flops=2 * M * N * K, transcendentals=0,
            bytes_accessed=M * K * 2 + K * N * 2 + M * N * out_b + N * 4),
    )(x2d, w_t, b.reshape(1, N).astype(jnp.float32))


# ----------------------------- linear with fused residual-add + LayerNorm epilogue -----------------------------

def _linear_add_ln_kernel(x_ref, w_ref, b_ref, r_ref, g_ref, beta_ref, o_ref, acc_ref):
    @pl.when(pl.program_id(1) == 0)
    def _():
        acc_ref[...] = jnp.zeros_like(acc_ref)

    acc_ref[...] += jnp.dot(x_ref[...], w_ref[...],
                            preferred_element_type=jnp.float32)

    @pl.when(pl.program_id(1) == pl.num_programs(1) - 1)
    def _():
        y = acc_ref[...] + b_ref[...] + r_ref[...].astype(jnp.float32)
        mean = jnp.mean(y, axis=-1, keepdims=True)
        yc = y - mean
        var = jnp.mean(yc * yc, axis=-1, keepdims=True)
        o_ref[...] = (yc * jax.lax.rsqrt(var + 1e-5) * g_ref[...]
                      + beta_ref[...]).astype(o_ref.dtype)


def linear_add_ln(x2d, w_t, b, residual, gamma, beta):
    """LayerNorm(residual + x2d @ w_t + b) with the add+LN fused into the matmul
    epilogue (post-norm residual path). Full-N row per block (N = d_model)."""
    M, K = x2d.shape
    N = w_t.shape[1]
    x2d = x2d.astype(jnp.bfloat16)
    w_t = w_t.astype(jnp.bfloat16)
    residual = residual.astype(jnp.bfloat16)
    tm = _pick_tile(M, 256, 16)
    tk = _pick_tile(K, 512, 128)
    grid = (M // tm, K // tk)

    block_bytes = (tm * tk * 2 + tk * N * 2 + N * 4 + tm * N * 2
                   + 2 * N * 4 + tm * N * 2)
    scratch_bytes = tm * N * 4

    return pl.pallas_call(
        _linear_add_ln_kernel,
        out_shape=jax.ShapeDtypeStruct((M, N), jnp.bfloat16),
        grid=grid,
        in_specs=[
            pl.BlockSpec((tm, tk), lambda i, k: (i, k)),
            pl.BlockSpec((tk, N), lambda i, k: (k, 0)),
            pl.BlockSpec((1, N), lambda i, k: (0, 0)),
            pl.BlockSpec((tm, N), lambda i, k: (i, 0)),
            pl.BlockSpec((1, N), lambda i, k: (0, 0)),
            pl.BlockSpec((1, N), lambda i, k: (0, 0)),
        ],
        out_specs=pl.BlockSpec((tm, N), lambda i, k: (i, 0)),
        scratch_shapes=[pltpu.VMEM((tm, N), jnp.float32)],
        compiler_params=pltpu.CompilerParams(
            dimension_semantics=("parallel", "arbitrary"),
            vmem_limit_bytes=_vmem_limit(block_bytes, scratch_bytes)),
        cost_estimate=pl.CostEstimate(
            flops=2 * M * N * K + 8 * M * N, transcendentals=M,
            bytes_accessed=M * K * 2 + K * N * 2 + 2 * M * N * 2 + 3 * N * 4),
    )(x2d, w_t, b.reshape(1, N).astype(jnp.float32), residual,
      gamma.reshape(1, N).astype(jnp.float32),
      beta.reshape(1, N).astype(jnp.float32))


# ----------------------------- standalone LayerNorm (final enc/dec norms) -----------------------------

def _ln_kernel(x_ref, g_ref, b_ref, o_ref):
    x = x_ref[...].astype(jnp.float32)
    mean = jnp.mean(x, axis=-1, keepdims=True)
    xc = x - mean
    var = jnp.mean(xc * xc, axis=-1, keepdims=True)
    o_ref[...] = (xc * jax.lax.rsqrt(var + 1e-5) * g_ref[...]
                  + b_ref[...]).astype(o_ref.dtype)


def layernorm(x2d, gamma, beta):
    M, D = x2d.shape
    tm = _pick_tile(M, 512, 16)
    grid = (M // tm,)
    x_spec = pl.BlockSpec((tm, D), lambda i: (i, 0))
    gb_spec = pl.BlockSpec((1, D), lambda i: (0, 0))
    return pl.pallas_call(
        _ln_kernel,
        out_shape=jax.ShapeDtypeStruct((M, D), jnp.bfloat16),
        grid=grid,
        in_specs=[x_spec, gb_spec, gb_spec],
        out_specs=x_spec,
        compiler_params=pltpu.CompilerParams(
            dimension_semantics=("parallel",),
            vmem_limit_bytes=_vmem_limit(2 * tm * D * 2 + 2 * D * 4)),
        cost_estimate=pl.CostEstimate(
            flops=8 * M * D, transcendentals=M,
            bytes_accessed=2 * M * D * 2 + 2 * D * 4),
    )(x2d.astype(jnp.bfloat16), gamma.reshape(1, D).astype(jnp.float32),
      beta.reshape(1, D).astype(jnp.float32))


# ----------------------------- multi-head attention (flash-style over Lk blocks) -----------------------------

def _mha_body(q, k, v, kbias, o_ref, m_sc, l_sc, acc_sc, *, scale, causal, heads, dh):
    """q: [Lq, gw], k/v: [tkk, gw] bf16 head-group slices; kbias: [1, tkk] f32 or None.
    Online softmax over the Lk-block grid axis (axis 2); per-head m/l/acc scratch."""
    kb = pl.program_id(2)

    @pl.when(kb == 0)
    def _():
        m_sc[...] = jnp.full_like(m_sc, -jnp.inf)
        l_sc[...] = jnp.zeros_like(l_sc)
        acc_sc[...] = jnp.zeros_like(acc_sc)

    Lq = q.shape[0]
    tkk = k.shape[0]
    # fold 1/sqrt(Dh) into q once (touches Lq*gw elements, not Lq*Lk)
    q16 = (q.astype(jnp.float32) * scale).astype(jnp.bfloat16)

    if causal:
        rows = jax.lax.broadcasted_iota(jnp.int32, (Lq, tkk), 0)
        cols = kb * tkk + jax.lax.broadcasted_iota(jnp.int32, (Lq, tkk), 1)
        causal_ok = cols <= rows

    for h in range(heads):
        sl = slice(h * dh, (h + 1) * dh)
        # QK^T without an explicit transpose (contract the Dh axes)
        s = jax.lax.dot_general(q16[:, sl], k[:, sl],
                                (((1,), (1,)), ((), ())),
                                preferred_element_type=jnp.float32)
        if kbias is not None:
            s = s + kbias                       # [1, tkk] broadcast, finite -1e9
        if causal:
            s = jnp.where(causal_ok, s, -1e9)   # finite mask -> no NaN rows
        m_prev = m_sc[h]
        m_new = jnp.maximum(m_prev, jnp.max(s, axis=-1, keepdims=True))
        alpha = jnp.exp(m_prev - m_new)
        p = jnp.exp(s - m_new)
        l_sc[h] = alpha * l_sc[h] + jnp.sum(p, axis=-1, keepdims=True)
        acc_sc[h] = alpha * acc_sc[h] + jnp.dot(p.astype(jnp.bfloat16), v[:, sl],
                                                preferred_element_type=jnp.float32)
        m_sc[h] = m_new

    @pl.when(kb == pl.num_programs(2) - 1)
    def _():
        # normalize AFTER the PV matmul: Lq*Dh multiplies per head, not Lq*Lk
        ctx = [acc_sc[h] * pl.reciprocal(l_sc[h], approx=True) for h in range(heads)]
        o_ref[0] = jnp.concatenate(ctx, axis=-1).astype(o_ref.dtype)


def _mha_kernel(q_ref, k_ref, v_ref, o_ref, m_sc, l_sc, acc_sc, *,
                scale, causal, heads, dh):
    _mha_body(q_ref[0], k_ref[0], v_ref[0], None, o_ref, m_sc, l_sc, acc_sc,
              scale=scale, causal=causal, heads=heads, dh=dh)


def _mha_kernel_kb(q_ref, k_ref, v_ref, kb_ref, o_ref, m_sc, l_sc, acc_sc, *,
                   scale, causal, heads, dh):
    _mha_body(q_ref[0], k_ref[0], v_ref[0], kb_ref[0], o_ref, m_sc, l_sc, acc_sc,
              scale=scale, causal=causal, heads=heads, dh=dh)


def mha_attention(q_arr, kv_arr, *, num_heads, d_model,
                  q_col=0, k_col=0, v_col=0, key_bias=None, causal=False,
                  lk_tile=512):
    """q_arr: [B, Lq, Wq] bf16; kv_arr: [B, Lk, Wk] bf16 (may be the same packed
    projection slab as q_arr).  q/k/v occupy columns starting at q_col/k_col/v_col.
    Grid = (batch, 128-lane head group, Lk block); online softmax across Lk blocks.
    key_bias: [B, 1, Lk] additive f32 bias or None."""
    B, Lq, _ = q_arr.shape
    Lk = kv_arr.shape[1]
    D, H = d_model, num_heads
    dh = D // H
    # 128-lane head groups when Dh packs evenly; otherwise all heads in one block
    gw = 128 if (dh <= 128 and 128 % dh == 0 and D % 128 == 0) else D
    hg = D // gw                 # head groups (grid dim)
    hpb = gw // dh               # heads per block
    qo, ko, vo = q_col // gw, k_col // gw, v_col // gw
    # TODO(synk): ragged Lk without a 128-aligned divisor falls back to a single K/V block.
    tkk = _pick_tile(Lk, lk_tile, 128)
    nkb = Lk // tkk
    scale = 1.0 / math.sqrt(dh)

    in_specs = [
        pl.BlockSpec((1, Lq, gw), lambda b, g, kb: (b, 0, qo + g)),
        pl.BlockSpec((1, tkk, gw), lambda b, g, kb: (b, kb, ko + g)),
        pl.BlockSpec((1, tkk, gw), lambda b, g, kb: (b, kb, vo + g)),
    ]
    args = [q_arr.astype(jnp.bfloat16), kv_arr.astype(jnp.bfloat16),
            kv_arr.astype(jnp.bfloat16)]
    if key_bias is not None:
        in_specs.append(pl.BlockSpec((1, 1, tkk), lambda b, g, kb: (b, 0, kb)))
        args.append(key_bias.astype(jnp.float32))
        kern = functools.partial(_mha_kernel_kb, scale=scale, causal=causal,
                                 heads=hpb, dh=dh)
    else:
        kern = functools.partial(_mha_kernel, scale=scale, causal=causal,
                                 heads=hpb, dh=dh)

    block_bytes = (2 * Lq * gw + 2 * tkk * gw) * 2 + tkk * 4
    scratch_bytes = hpb * Lq * (dh + 2) * 4
    flops = 4 * B * H * Lq * Lk * dh
    bytes_accessed = (B * Lq * D * 2) * 2 + 2 * B * Lk * D * 2 + B * Lk * 4

    return pl.pallas_call(
        kern,
        out_shape=jax.ShapeDtypeStruct((B, Lq, D), jnp.bfloat16),
        grid=(B, hg, nkb),
        in_specs=in_specs,
        out_specs=pl.BlockSpec((1, Lq, gw), lambda b, g, kb: (b, 0, g)),
        scratch_shapes=[pltpu.VMEM((hpb, Lq, 1), jnp.float32),
                        pltpu.VMEM((hpb, Lq, 1), jnp.float32),
                        pltpu.VMEM((hpb, Lq, dh), jnp.float32)],
        compiler_params=pltpu.CompilerParams(
            dimension_semantics=("parallel", "parallel", "arbitrary"),
            vmem_limit_bytes=_vmem_limit(block_bytes, scratch_bytes)),
        cost_estimate=pl.CostEstimate(flops=flops,
                                      transcendentals=B * H * Lq * Lk,
                                      bytes_accessed=bytes_accessed),
    )(*args)


# ----------------------------- Transformer blocks -----------------------------

def encoder_layer(x2, p, key_bias, H, Ls, B, D):
    sa = p["self_attn"]
    qkv = linear(x2, sa["in_proj_wt"], sa["in_proj_b"])           # fused QKV [B*Ls, 3D]
    qkv3 = qkv.reshape(B, Ls, 3 * D)
    ctx = mha_attention(qkv3, qkv3, num_heads=H, d_model=D,
                        q_col=0, k_col=D, v_col=2 * D,
                        key_bias=key_bias, causal=False)          # [B, Ls, D]
    # post-norm: LN(x + out_proj(ctx)) fused into the out_proj epilogue
    x2 = linear_add_ln(ctx.reshape(B * Ls, D), sa["out_proj_wt"], sa["out_proj_b"],
                       x2, p["ln1_g"], p["ln1_b"])
    h = linear(x2, p["lin1_wt"], p["lin1_b"], relu=True)          # [B*Ls, FF_pad]
    x2 = linear_add_ln(h, p["lin2_wt"], p["lin2_b"],
                       x2, p["ln2_g"], p["ln2_b"])
    return x2


def decoder_layer(y2, memory2, p, H, Lt, Ls, B, D):
    sa = p["self_attn"]
    qkv = linear(y2, sa["in_proj_wt"], sa["in_proj_b"])           # fused QKV [B*Lt, 3D]
    qkv3 = qkv.reshape(B, Lt, 3 * D)
    ctx = mha_attention(qkv3, qkv3, num_heads=H, d_model=D,
                        q_col=0, k_col=D, v_col=2 * D, causal=True)
    y2 = linear_add_ln(ctx.reshape(B * Lt, D), sa["out_proj_wt"], sa["out_proj_b"],
                       y2, p["ln1_g"], p["ln1_b"])

    ca = p["cross_attn"]
    q = linear(y2, ca["q_wt"], ca["q_b"])                         # [B*Lt, D]
    kv = linear(memory2, ca["kv_wt"], ca["kv_b"])                 # fused K|V [B*Ls, 2D]
    # no memory_key_padding_mask (matches nn.Transformer default of None)
    ctx = mha_attention(q.reshape(B, Lt, D), kv.reshape(B, Ls, 2 * D),
                        num_heads=H, d_model=D, q_col=0, k_col=0, v_col=D,
                        causal=False)
    y2 = linear_add_ln(ctx.reshape(B * Lt, D), ca["out_proj_wt"], ca["out_proj_b"],
                       y2, p["ln2_g"], p["ln2_b"])

    h = linear(y2, p["lin1_wt"], p["lin1_b"], relu=True)
    y2 = linear_add_ln(h, p["lin2_wt"], p["lin2_b"],
                       y2, p["ln3_g"], p["ln3_b"])
    return y2


def transformer_forward(params, source, target, *, num_heads, pad_idx, tgt_vocab):
    source = source.astype(jnp.int32)   # mirrors source.long()
    target = target.astype(jnp.int32)
    Ls, B = source.shape
    Lt, _ = target.shape
    D = params["src_tok_emb"].shape[1]
    H = num_heads

    # batch-major embeddings (gathers stay in XLA); one bf16 cast total per stream
    src_emb = (jnp.take(params["src_tok_emb"], source.T, axis=0)
               + params["src_pos_emb"][None, :Ls, :]).astype(jnp.bfloat16)   # [B, Ls, D]
    tgt_emb = (jnp.take(params["tgt_tok_emb"], target.T, axis=0)
               + params["tgt_pos_emb"][None, :Lt, :]).astype(jnp.bfloat16)   # [B, Lt, D]

    # source key-padding mask -> tiny additive bias [B, 1, Ls] (finite, avoids NaN)
    key_bias = jnp.where((source == pad_idx).T[:, None, :],
                         jnp.float32(-1e9), jnp.float32(0.0))

    x2 = src_emb.reshape(B * Ls, D)
    for p in params["encoder_layers"]:
        x2 = encoder_layer(x2, p, key_bias, H, Ls, B, D)
    memory2 = layernorm(x2, params["enc_norm_g"], params["enc_norm_b"])

    y2 = tgt_emb.reshape(B * Lt, D)
    for p in params["decoder_layers"]:
        y2 = decoder_layer(y2, memory2, p, H, Lt, Ls, B, D)
    y2 = layernorm(y2, params["dec_norm_g"], params["dec_norm_b"])

    # lane-dense padded-vocab projection, f32 logits, slice back to the true vocab
    logits = linear(y2, params["fc_out_wt"], params["fc_out_b"], out_dtype=jnp.float32)
    logits = logits.reshape(B, Lt, -1)[:, :, :tgt_vocab]
    return jnp.transpose(logits, (1, 0, 2))       # [Lt, B, V] (PyTorch seq-first)


# ----------------------------- deterministic parameter init -----------------------------
# Weights are stored pre-transposed ([in_features, out_features]) relative to PyTorch
# and pre-cast to bf16, so no wrapper-side transposes/casts feed the Pallas matmuls.
# "in_proj_wt" is the packed [D, 3D] (q|k|v columns) transpose of in_proj_weight;
# cross-attention weights are pre-split into q ([D,D]) and packed k|v ([D,2D]).
# dim_feedforward and the fc_out vocab are zero-padded up to multiples of 128 so
# every kernel output is lane-dense; the padding is mathematically inert.

def init_params(key, *, d_model, num_enc, num_dec, dim_ff, src_vocab, tgt_vocab, max_len):
    ff_pad = max(128, ((dim_ff + 127) // 128) * 128)
    v_pad = max(128, ((tgt_vocab + 127) // 128) * 128)
    keys = iter(jax.random.split(key, 4096))

    def w(shape, scale=0.02, dtype=jnp.bfloat16):
        return (scale * jax.random.normal(next(keys), shape, jnp.float32)).astype(dtype)

    def zeros(shape):
        return jnp.zeros(shape, jnp.float32)

    def ones(shape):
        return jnp.ones(shape, jnp.float32)

    def attn_params(split_kv=False):
        if split_kv:
            return {"q_wt": w((d_model, d_model)), "q_b": zeros((d_model,)),
                    "kv_wt": w((d_model, 2 * d_model)), "kv_b": zeros((2 * d_model,)),
                    "out_proj_wt": w((d_model, d_model)), "out_proj_b": zeros((d_model,))}
        return {"in_proj_wt": w((d_model, 3 * d_model)), "in_proj_b": zeros((3 * d_model,)),
                "out_proj_wt": w((d_model, d_model)), "out_proj_b": zeros((d_model,))}

    def ffn_weights():
        w1 = jnp.zeros((d_model, ff_pad), jnp.float32).at[:, :dim_ff].set(
            0.02 * jax.random.normal(next(keys), (d_model, dim_ff), jnp.float32))
        w2 = jnp.zeros((ff_pad, d_model), jnp.float32).at[:dim_ff, :].set(
            0.02 * jax.random.normal(next(keys), (dim_ff, d_model), jnp.float32))
        return w1.astype(jnp.bfloat16), w2.astype(jnp.bfloat16)

    def enc_layer():
        w1, w2 = ffn_weights()
        return {
            "self_attn": attn_params(),
            "lin1_wt": w1, "lin1_b": zeros((ff_pad,)),
            "lin2_wt": w2, "lin2_b": zeros((d_model,)),
            "ln1_g": ones((d_model,)), "ln1_b": zeros((d_model,)),
            "ln2_g": ones((d_model,)), "ln2_b": zeros((d_model,)),
        }

    def dec_layer():
        d = enc_layer()
        d["cross_attn"] = attn_params(split_kv=True)
        d["ln3_g"] = ones((d_model,))
        d["ln3_b"] = zeros((d_model,))
        return d

    fc_w = jnp.zeros((d_model, v_pad), jnp.float32).at[:, :tgt_vocab].set(
        0.02 * jax.random.normal(next(keys), (d_model, tgt_vocab), jnp.float32))

    return {
        "src_tok_emb": 1.0 * jax.random.normal(next(keys), (src_vocab, d_model), jnp.float32),
        "src_pos_emb": 1.0 * jax.random.normal(next(keys), (max_len, d_model), jnp.float32),
        "tgt_tok_emb": 1.0 * jax.random.normal(next(keys), (tgt_vocab, d_model), jnp.float32),
        "tgt_pos_emb": 1.0 * jax.random.normal(next(keys), (max_len, d_model), jnp.float32),
        "encoder_layers": [enc_layer() for _ in range(num_enc)],
        "decoder_layers": [dec_layer() for _ in range(num_dec)],
        "enc_norm_g": ones((d_model,)), "enc_norm_b": zeros((d_model,)),
        "dec_norm_g": ones((d_model,)), "dec_norm_b": zeros((d_model,)),
        "fc_out_wt": fc_w.astype(jnp.bfloat16),
        "fc_out_b": zeros((v_pad,)),
    }


# ----------------------------- main -----------------------------

if __name__ == "__main__":
    # Small but forward-consistent hyperparameters (d_model kept lane-width friendly)
    D_MODEL = 128         # embedding_dimension (512 in original)
    NUM_HEADS = 4         # num_heads (8 in original)
    NUM_ENC = 2           # num_encoder_layers (6 in original)
    NUM_DEC = 2           # num_decoder_layers (6 in original)
    DIM_FF = 4            # dim_feedforward = forward_expansion (literally 4 in source)
    SRC_VOCAB = 50
    TGT_VOCAB = 60
    MAX_LEN = 16
    PAD_IDX = 1
    LS, LT, B = 10, 8, 2  # source seq, target seq, batch

    key = jax.random.PRNGKey(0)
    kp, ks, kt = jax.random.split(key, 3)
    params = init_params(kp, d_model=D_MODEL, num_enc=NUM_ENC, num_dec=NUM_DEC,
                         dim_ff=DIM_FF, src_vocab=SRC_VOCAB, tgt_vocab=TGT_VOCAB,
                         max_len=MAX_LEN)

    source = jax.random.randint(ks, (LS, B), 2, SRC_VOCAB, dtype=jnp.int32)
    source = source.at[-3:, 0].set(PAD_IDX)   # pad the tail of batch element 0
    target = jax.random.randint(kt, (LT, B), 2, TGT_VOCAB, dtype=jnp.int32)

    fwd = jax.jit(functools.partial(transformer_forward, num_heads=NUM_HEADS,
                                    pad_idx=PAD_IDX, tgt_vocab=TGT_VOCAB))
    out = jax.block_until_ready(fwd(params, source, target))

    assert out.shape == (LT, B, TGT_VOCAB), out.shape
    assert bool(jnp.all(jnp.isfinite(out)))
    print("KERNEL_OK")
</pallas_src>

<mosaic_0001>
module attributes {stable_mosaic.version = 11 : i64} {
  func.func @_linear_kernel(%arg0: i32, %arg1: i32, %arg2: i32, %arg3: memref<20x128xbf16, #tpu.memory_space<vmem>>, %arg4: memref<128x384xbf16, #tpu.memory_space<vmem>>, %arg5: memref<1x384xf32, #tpu.memory_space<vmem>>, %arg6: memref<20x384xbf16, #tpu.memory_space<vmem>>, %arg7: memref<20x384xf32, #tpu.memory_space<vmem>>) attributes {dimension_semantics = [#tpu.dimension_semantics<parallel>, #tpu.dimension_semantics<parallel>, #tpu.dimension_semantics<arbitrary>], iteration_bounds = array<i64: 1, 1, 1>, scalar_prefetch = 0 : i64, scratch_operands = 1 : i64, tpu.core_type = #tpu.core_type<tc>, window_params = [{transform_indices = @transform_0, window_bounds = array<i64: 20, 128>}, {transform_indices = @transform_1, window_bounds = array<i64: 128, 384>}, {transform_indices = @transform_2, window_bounds = array<i64: 1, 384>}, {transform_indices = @transform_3, window_bounds = array<i64: 20, 384>}]} {
    %c0_i32 = arith.constant 0 : i32
    %0 = arith.cmpi eq, %arg2, %c0_i32 : i32
    %1 = arith.extui %0 : i1 to i32
    %c0_i32_0 = arith.constant 0 : i32
    %2 = arith.cmpi ne, %1, %c0_i32_0 : i32
    scf.if %2 {
      %cst_10 = arith.constant 0.000000e+00 : f32
      %12 = vector.broadcast %cst_10 : f32 to vector<20x384xf32>
      %c0_11 = arith.constant 0 : index
      %c0_12 = arith.constant 0 : index
      %13 = vector.load %arg7[%c0_11, %c0_12] : memref<20x384xf32, #tpu.memory_space<vmem>>, vector<20x384xf32>
      tpu.vector_store %arg7[%c0_11, %c0_12], %12 {strides = array<i32>} : memref<20x384xf32, #tpu.memory_space<vmem>>, vector<20x384xf32>,
    } else {
    }
    %c0 = arith.constant 0 : index
    %c0_1 = arith.constant 0 : index
    %3 = vector.load %arg7[%c0, %c0_1] : memref<20x384xf32, #tpu.memory_space<vmem>>, vector<20x384xf32>
    %c0_2 = arith.constant 0 : index
    %c0_3 = arith.constant 0 : index
    %4 = vector.load %arg3[%c0_2, %c0_3] : memref<20x128xbf16, #tpu.memory_space<vmem>>, vector<20x128xbf16>
    %c0_4 = arith.constant 0 : index
    %c0_5 = arith.constant 0 : index
    %5 = vector.load %arg4[%c0_4, %c0_5] : memref<128x384xbf16, #tpu.memory_space<vmem>>, vector<128x384xbf16>
    %cst = arith.constant dense<0.000000e+00> : vector<20x384xf32>
    %6 = tpu.matmul %4, %5, %cst {dimension_numbers = #tpu.dot_dimension_numbers<[1], [0], [0], [1], [0, 0, 1, 1], [], []>} : vector<20x128xbf16>, vector<128x384xbf16>, vector<20x384xf32> -> vector<20x384xf32>
    %7 = arith.addf %3, %6 : vector<20x384xf32>
    %c0_6 = arith.constant 0 : index
    %c0_7 = arith.constant 0 : index
    %8 = vector.load %arg7[%c0_6, %c0_7] : memref<20x384xf32, #tpu.memory_space<vmem>>, vector<20x384xf32>
    tpu.vector_store %arg7[%c0_6, %c0_7], %7 {strides = array<i32>} : memref<20x384xf32, #tpu.memory_space<vmem>>, vector<20x384xf32>,
    %c0_i32_8 = arith.constant 0 : i32
    %9 = arith.cmpi eq, %arg2, %c0_i32_8 : i32
    %10 = arith.extui %9 : i1 to i32
    %c0_i32_9 = arith.constant 0 : i32
    %11 = arith.cmpi ne, %10, %c0_i32_9 : i32
    scf.if %11 {
      %c0_10 = arith.constant 0 : index
      %c0_11 = arith.constant 0 : index
      %12 = vector.load %arg7[%c0_10, %c0_11] : memref<20x384xf32, #tpu.memory_space<vmem>>, vector<20x384xf32>
      %c0_12 = arith.constant 0 : index
      %c0_13 = arith.constant 0 : index
      %13 = vector.load %arg5[%c0_12, %c0_13] : memref<1x384xf32, #tpu.memory_space<vmem>>, vector<1x384xf32>
      %14 = vector.broadcast %13 : vector<1x384xf32> to vector<20x384xf32>
      %15 = arith.addf %12, %14 : vector<20x384xf32>
      %16 = arith.truncf %15 : vector<20x384xf32> to vector<20x384xbf16>
      %c0_14 = arith.constant 0 : index
      %c0_15 = arith.constant 0 : index
      %17 = vector.load %arg6[%c0_14, %c0_15] : memref<20x384xbf16, #tpu.memory_space<vmem>>, vector<20x384xbf16>
      tpu.vector_store %arg6[%c0_14, %c0_15], %16 {strides = array<i32>} : memref<20x384xbf16, #tpu.memory_space<vmem>>, vector<20x384xbf16>,
    } else {
    }
    return
  }
  func.func @transform_0(%arg0: i32, %arg1: i32, %arg2: i32) -> (i32, i32) {
    %c0_i32 = arith.constant 0 : i32
    return %arg0, %arg2 : i32, i32
  }
  func.func @transform_1(%arg0: i32, %arg1: i32, %arg2: i32) -> (i32, i32) {
    %c0_i32 = arith.constant 0 : i32
    return %arg2, %arg1 : i32, i32
  }
  func.func @transform_2(%arg0: i32, %arg1: i32, %arg2: i32) -> (i32, i32) {
    %c0_i32 = arith.constant 0 : i32
    %c0_i32_0 = arith.constant 0 : i32
    return %c0_i32, %arg1 : i32, i32
  }
  func.func @transform_3(%arg0: i32, %arg1: i32, %arg2: i32) -> (i32, i32) {
    %c0_i32 = arith.constant 0 : i32
    return %arg0, %arg1 : i32, i32
  }
}

module attributes {stable_mosaic.version = 11 : i64} {
  func.func @_linear_add_ln_kernel(%arg0: i32, %arg1: i32, %arg2: memref<20x128xbf16, #tpu.memory_space<vmem>>, %arg3: memref<128x128xbf16, #tpu.memory_space<vmem>>, %arg4: memref<1x128xf32, #tpu.memory_space<vmem>>, %arg5: memref<20x128xbf16, #tpu.memory_space<vmem>>, %arg6: memref<1x128xf32, #tpu.memory_space<vmem>>, %arg7: memref<1x128xf32, #tpu.memory_space<vmem>>, %arg8: memref<20x128xbf16, #tpu.memory_space<vmem>>, %arg9: memref<20x128xf32, #tpu.memory_space<vmem>>) attributes {dimension_semantics = [#tpu.dimension_semantics<parallel>, #tpu.dimension_semantics<arbitrary>], iteration_bounds = array<i64: 1, 1>, scalar_prefetch = 0 : i64, scratch_operands = 1 : i64, tpu.core_type = #tpu.core_type<tc>, window_params = [{transform_indices = @transform_0, window_bounds = array<i64: 20, 128>}, {transform_indices = @transform_1, window_bounds = array<i64: 128, 128>}, {pipeline_mode = #tpu.pipeline_mode<synchronous>, transform_indices = @transform_2, window_bounds = array<i64: 1, 128>}, {transform_indices = @transform_3, window_bounds = array<i64: 20, 128>}, {pipeline_mode = #tpu.pipeline_mode<synchronous>, transform_indices = @transform_4, window_bounds = array<i64: 1, 128>}, {pipeline_mode = #tpu.pipeline_mode<synchronous>, transform_indices = @transform_5, window_bounds = array<i64: 1, 128>}, {transform_indices = @transform_6, window_bounds = array<i64: 20, 128>}]} {
    %c0_i32 = arith.constant 0 : i32
    %0 = arith.cmpi eq, %arg1, %c0_i32 : i32
    %1 = arith.extui %0 : i1 to i32
    %c0_i32_0 = arith.constant 0 : i32
    %2 = arith.cmpi ne, %1, %c0_i32_0 : i32
    scf.if %2 {
      %cst_10 = arith.constant 0.000000e+00 : f32
      %12 = vector.broadcast %cst_10 : f32 to vector<20x128xf32>
      %c0_11 = arith.constant 0 : index
      %c0_12 = arith.constant 0 : index
      %13 = vector.load %arg9[%c0_11, %c0_12] : memref<20x128xf32, #tpu.memory_space<vmem>>, vector<20x128xf32>
      tpu.vector_store %arg9[%c0_11, %c0_12], %12 {strides = array<i32>} : memref<20x128xf32, #tpu.memory_space<vmem>>, vector<20x128xf32>,
    } else {
    }
    %c0 = arith.constant 0 : index
    %c0_1 = arith.constant 0 : index
    %3 = vector.load %arg9[%c0, %c0_1] : memref<20x128xf32, #tpu.memory_space<vmem>>, vector<20x128xf32>
    %c0_2 = arith.constant 0 : index
    %c0_3 = arith.constant 0 : index
    %4 = vector.load %arg2[%c0_2, %c0_3] : memref<20x128xbf16, #tpu.memory_space<vmem>>, vector<20x128xbf16>
    %c0_4 = arith.constant 0 : index
    %c0_5 = arith.constant 0 : index
    %5 = vector.load %arg3[%c0_4, %c0_5] : memref<128x128xbf16, #tpu.memory_space<vmem>>, vector<128x128xbf16>
    %cst = arith.constant dense<0.000000e+00> : vector<20x128xf32>
    %6 = tpu.matmul %4, %5, %cst {dimension_numbers = #tpu.dot_dimension_numbers<[1], [0], [0], [1], [0, 0, 1, 1], [], []>} : vector<20x128xbf16>, vector<128x128xbf16>, vector<20x128xf32> -> vector<20x128xf32>
    %7 = arith.addf %3, %6 : vector<20x128xf32>
    %c0_6 = arith.constant 0 : index
    %c0_7 = arith.constant 0 : index
    %8 = vector.load %arg9[%c0_6, %c0_7] : memref<20x128xf32, #tpu.memory_space<vmem>>, vector<20x128xf32>
    tpu.vector_store %arg9[%c0_6, %c0_7], %7 {strides = array<i32>} : memref<20x128xf32, #tpu.memory_space<vmem>>, vector<20x128xf32>,
    %c0_i32_8 = arith.constant 0 : i32
    %9 = arith.cmpi eq, %arg1, %c0_i32_8 : i32
    %10 = arith.extui %9 : i1 to i32
    %c0_i32_9 = arith.constant 0 : i32
    %11 = arith.cmpi ne, %10, %c0_i32_9 : i32
    scf.if %11 {
      %c0_10 = arith.constant 0 : index
      %c0_11 = arith.constant 0 : index
      %12 = vector.load %arg9[%c0_10, %c0_11] : memref<20x128xf32, #tpu.memory_space<vmem>>, vector<20x128xf32>
      %c0_12 = arith.constant 0 : index
      %c0_13 = arith.constant 0 : index
      %13 = vector.load %arg4[%c0_12, %c0_13] : memref<1x128xf32, #tpu.memory_space<vmem>>, vector<1x128xf32>
      %14 = vector.broadcast %13 : vector<1x128xf32> to vector<20x128xf32>
      %15 = arith.addf %12, %14 : vector<20x128xf32>
      %c0_14 = arith.constant 0 : index
      %c0_15 = arith.constant 0 : index
      %16 = vector.load %arg5[%c0_14, %c0_15] : memref<20x128xbf16, #tpu.memory_space<vmem>>, vector<20x128xbf16>
      %17 = arith.extf %16 : vector<20x128xbf16> to vector<20x128xf32>
      %18 = arith.addf %15, %17 : vector<20x128xf32>
      %cst_16 = arith.constant dense<0.000000e+00> : vector<20xf32>
      %19 = vector.multi_reduction <add>, %18, %cst_16 [1] : vector<20x128xf32> to vector<20xf32>
      %20 = vector.shape_cast %19 : vector<20xf32> to vector<20x1xf32>
      %cst_17 = arith.constant 1.280000e+02 : f32
      %21 = vector.broadcast %cst_17 : f32 to vector<20x1xf32>
      %22 = arith.divf %20, %21 : vector<20x1xf32>
      %23 = vector.broadcast %22 : vector<20x1xf32> to vector<20x128xf32>
      %24 = arith.subf %18, %23 : vector<20x128xf32>
      %25 = arith.mulf %24, %24 : vector<20x128xf32>
      %cst_18 = arith.constant dense<0.000000e+00> : vector<20xf32>
      %26 = vector.multi_reduction <add>, %25, %cst_18 [1] : vector<20x128xf32> to vector<20xf32>
      %27 = vector.shape_cast %26 : vector<20xf32> to vector<20x1xf32>
      %cst_19 = arith.constant 1.280000e+02 : f32
      %28 = vector.broadcast %cst_19 : f32 to vector<20x1xf32>
      %29 = arith.divf %27, %28 : vector<20x1xf32>
      %cst_20 = arith.constant 9.99999974E-6 : f32
      %30 = vector.broadcast %cst_20 : f32 to vector<20x1xf32>
      %31 = arith.addf %29, %30 : vector<20x1xf32>
      %32 = math.rsqrt %31 : vector<20x1xf32>
      %33 = vector.broadcast %32 : vector<20x1xf32> to vector<20x128xf32>
      %34 = arith.mulf %24, %33 : vector<20x128xf32>
      %c0_21 = arith.constant 0 : index
      %c0_22 = arith.constant 0 : index
      %35 = vector.load %arg6[%c0_21, %c0_22] : memref<1x128xf32, #tpu.memory_space<vmem>>, vector<1x128xf32>
      %36 = vector.broadcast %35 : vector<1x128xf32> to vector<20x128xf32>
      %37 = arith.mulf %34, %36 : vector<20x128xf32>
      %c0_23 = arith.constant 0 : index
      %c0_24 = arith.constant 0 : index
      %38 = vector.load %arg7[%c0_23, %c0_24] : memref<1x128xf32, #tpu.memory_space<vmem>>, vector<1x128xf32>
      %39 = vector.broadcast %38 : vector<1x128xf32> to vector<20x128xf32>
      %40 = arith.addf %37, %39 : vector<20x128xf32>
      %41 = arith.truncf %40 : vector<20x128xf32> to vector<20x128xbf16>
      %c0_25 = arith.constant 0 : index
      %c0_26 = arith.constant 0 : index
      %42 = vector.load %arg8[%c0_25, %c0_26] : memref<20x128xbf16, #tpu.memory_space<vmem>>, vector<20x128xbf16>
      tpu.vector_store %arg8[%c0_25, %c0_26], %41 {strides = array<i32>} : memref<20x128xbf16, #tpu.memory_space<vmem>>, vector<20x128xbf16>,
    } else {
    }
    return
  }
  func.func @transform_0(%arg0: i32, %arg1: i32) -> (i32, i32) {
    %c0_i32 = arith.constant 0 : i32
    return %arg0, %arg1 : i32, i32
  }
  func.func @transform_1(%arg0: i32, %arg1: i32) -> (i32, i32) {
    %c0_i32 = arith.constant 0 : i32
    %c0_i32_0 = arith.constant 0 : i32
    return %arg1, %c0_i32 : i32, i32
  }
  func.func @transform_2(%arg0: i32, %arg1: i32) -> (i32, i32) {
    %c0_i32 = arith.constant 0 : i32
    %c0_i32_0 = arith.constant 0 : i32
    %c0_i32_1 = arith.constant 0 : i32
    return %c0_i32, %c0_i32_0 : i32, i32
  }
  func.func @transform_3(%arg0: i32, %arg1: i32) -> (i32, i32) {
    %c0_i32 = arith.constant 0 : i32
    %c0_i32_0 = arith.constant 0 : i32
    return %arg0, %c0_i32 : i32, i32
  }
  func.func @transform_4(%arg0: i32, %arg1: i32) -> (i32, i32) {
    %c0_i32 = arith.constant 0 : i32
    %c0_i32_0 = arith.constant 0 : i32
    %c0_i32_1 = arith.constant 0 : i32
    return %c0_i32, %c0_i32_0 : i32, i32
  }
  func.func @transform_5(%arg0: i32, %arg1: i32) -> (i32, i32) {
    %c0_i32 = arith.constant 0 : i32
    %c0_i32_0 = arith.constant 0 : i32
    %c0_i32_1 = arith.constant 0 : i32
    return %c0_i32, %c0_i32_0 : i32, i32
  }
  func.func @transform_6(%arg0: i32, %arg1: i32) -> (i32, i32) {
    %c0_i32 = arith.constant 0 : i32
    %c0_i32_0 = arith.constant 0 : i32
    return %arg0, %c0_i32 : i32, i32
  }
}

module attributes {stable_mosaic.version = 11 : i64} {
  func.func @_linear_kernel(%arg0: i32, %arg1: i32, %arg2: i32, %arg3: memref<20x128xbf16, #tpu.memory_space<vmem>>, %arg4: memref<128x128xbf16, #tpu.memory_space<vmem>>, %arg5: memref<1x128xf32, #tpu.memory_space<vmem>>, %arg6: memref<20x128xbf16, #tpu.memory_space<vmem>>, %arg7: memref<20x128xf32, #tpu.memory_space<vmem>>) attributes {dimension_semantics = [#tpu.dimension_semantics<parallel>, #tpu.dimension_semantics<parallel>, #tpu.dimension_semantics<arbitrary>], iteration_bounds = array<i64: 1, 1, 1>, scalar_prefetch = 0 : i64, scratch_operands = 1 : i64, tpu.core_type = #tpu.core_type<tc>, window_params = [{transform_indices = @transform_0, window_bounds = array<i64: 20, 128>}, {transform_indices = @transform_1, window_bounds = array<i64: 128, 128>}, {transform_indices = @transform_2, window_bounds = array<i64: 1, 128>}, {transform_indices = @transform_3, window_bounds = array<i64: 20, 128>}]} {
    %c0_i32 = arith.constant 0 : i32
    %0 = arith.cmpi eq, %arg2, %c0_i32 : i32
    %1 = arith.extui %0 : i1 to i32
    %c0_i32_0 = arith.constant 0 : i32
    %2 = arith.cmpi ne, %1, %c0_i32_0 : i32
    scf.if %2 {
      %cst_10 = arith.constant 0.000000e+00 : f32
      %12 = vector.broadcast %cst_10 : f32 to vector<20x128xf32>
      %c0_11 = arith.constant 0 : index
      %c0_12 = arith.constant 0 : index
      %13 = vector.load %arg7[%c0_11, %c0_12] : memref<20x128xf32, #tpu.memory_space<vmem>>, vector<20x128xf32>
      tpu.vector_store %arg7[%c0_11, %c0_12], %12 {strides = array<i32>} : memref<20x128xf32, #tpu.memory_space<vmem>>, vector<20x128xf32>,
    } else {
    }
    %c0 = arith.constant 0 : index
    %c0_1 = arith.constant 0 : index
    %3 = vector.load %arg7[%c0, %c0_1] : memref<20x128xf32, #tpu.memory_space<vmem>>, vector<20x128xf32>
    %c0_2 = arith.constant 0 : index
    %c0_3 = arith.constant 0 : index
    %4 = vector.load %arg3[%c0_2, %c0_3] : memref<20x128xbf16, #tpu.memory_space<vmem>>, vector<20x128xbf16>
    %c0_4 = arith.constant 0 : index
    %c0_5 = arith.constant 0 : index
    %5 = vector.load %arg4[%c0_4, %c0_5] : memref<128x128xbf16, #tpu.memory_space<vmem>>, vector<128x128xbf16>
    %cst = arith.constant dense<0.000000e+00> : vector<20x128xf32>
    %6 = tpu.matmul %4, %5, %cst {dimension_numbers = #tpu.dot_dimension_numbers<[1], [0], [0], [1], [0, 0, 1, 1], [], []>} : vector<20x128xbf16>, vector<128x128xbf16>, vector<20x128xf32> -> vector<20x128xf32>
    %7 = arith.addf %3, %6 : vector<20x128xf32>
    %c0_6 = arith.constant 0 : index
    %c0_7 = arith.constant 0 : index
    %8 = vector.load %arg7[%c0_6, %c0_7] : memref<20x128xf32, #tpu.memory_space<vmem>>, vector<20x128xf32>
    tpu.vector_store %arg7[%c0_6, %c0_7], %7 {strides = array<i32>} : memref<20x128xf32, #tpu.memory_space<vmem>>, vector<20x128xf32>,
    %c0_i32_8 = arith.constant 0 : i32
    %9 = arith.cmpi eq, %arg2, %c0_i32_8 : i32
    %10 = arith.extui %9 : i1 to i32
    %c0_i32_9 = arith.constant 0 : i32
    %11 = arith.cmpi ne, %10, %c0_i32_9 : i32
    scf.if %11 {
      %c0_10 = arith.constant 0 : index
      %c0_11 = arith.constant 0 : index
      %12 = vector.load %arg7[%c0_10, %c0_11] : memref<20x128xf32, #tpu.memory_space<vmem>>, vector<20x128xf32>
      %c0_12 = arith.constant 0 : index
      %c0_13 = arith.constant 0 : index
      %13 = vector.load %arg5[%c0_12, %c0_13] : memref<1x128xf32, #tpu.memory_space<vmem>>, vector<1x128xf32>
      %14 = vector.broadcast %13 : vector<1x128xf32> to vector<20x128xf32>
      %15 = arith.addf %12, %14 : vector<20x128xf32>
      %cst_14 = arith.constant 0.000000e+00 : f32
      %16 = vector.broadcast %cst_14 : f32 to vector<20x128xf32>
      %17 = arith.maximumf %15, %16 : vector<20x128xf32>
      %18 = arith.truncf %17 : vector<20x128xf32> to vector<20x128xbf16>
      %c0_15 = arith.constant 0 : index
      %c0_16 = arith.constant 0 : index
      %19 = vector.load %arg6[%c0_15, %c0_16] : memref<20x128xbf16, #tpu.memory_space<vmem>>, vector<20x128xbf16>
      tpu.vector_store %arg6[%c0_15, %c0_16], %18 {strides = array<i32>} : memref<20x128xbf16, #tpu.memory_space<vmem>>, vector<20x128xbf16>,
    } else {
    }
    return
  }
  func.func @transform_0(%arg0: i32, %arg1: i32, %arg2: i32) -> (i32, i32) {
    %c0_i32 = arith.constant 0 : i32
    return %arg0, %arg2 : i32, i32
  }
  func.func @transform_1(%arg0: i32, %arg1: i32, %arg2: i32) -> (i32, i32) {
    %c0_i32 = arith.constant 0 : i32
    return %arg2, %arg1 : i32, i32
  }
  func.func @transform_2(%arg0: i32, %arg1: i32, %arg2: i32) -> (i32, i32) {
    %c0_i32 = arith.constant 0 : i32
    %c0_i32_0 = arith.constant 0 : i32
    return %c0_i32, %arg1 : i32, i32
  }
  func.func @transform_3(%arg0: i32, %arg1: i32, %arg2: i32) -> (i32, i32) {
    %c0_i32 = arith.constant 0 : i32
    return %arg0, %arg1 : i32, i32
  }
}

module attributes {stable_mosaic.version = 11 : i64} {
  func.func @_mha_kernel_kb(%arg0: i32, %arg1: i32, %arg2: i32, %arg3: memref<1x10x128xbf16, #tpu.memory_space<vmem>>, %arg4: memref<1x10x128xbf16, #tpu.memory_space<vmem>>, %arg5: memref<1x10x128xbf16, #tpu.memory_space<vmem>>, %arg6: memref<1x1x10xf32, #tpu.memory_space<vmem>>, %arg7: memref<1x10x128xbf16, #tpu.memory_space<vmem>>, %arg8: memref<4x10x1xf32, #tpu.memory_space<vmem>>, %arg9: memref<4x10x1xf32, #tpu.memory_space<vmem>>, %arg10: memref<4x10x32xf32, #tpu.memory_space<vmem>>) attributes {dimension_semantics = [#tpu.dimension_semantics<parallel>, #tpu.dimension_semantics<parallel>, #tpu.dimension_semantics<arbitrary>], iteration_bounds = array<i64: 2, 1, 1>, scalar_prefetch = 0 : i64, scratch_operands = 3 : i64, tpu.core_type = #tpu.core_type<tc>, window_params = [{transform_indices = @transform_0, window_bounds = array<i64: 1, 10, 128>}, {transform_indices = @transform_1, window_bounds = array<i64: 1, 10, 128>}, {transform_indices = @transform_2, window_bounds = array<i64: 1, 10, 128>}, {transform_indices = @transform_3, window_bounds = array<i64: 1, 1, 10>}, {transform_indices = @transform_4, window_bounds = array<i64: 1, 10, 128>}]} {
    %c0 = arith.constant 0 : index
    %c0_0 = arith.constant 0 : index
    %c0_1 = arith.constant 0 : index
    %0 = vector.load %arg3[%c0, %c0_0, %c0_1] : memref<1x10x128xbf16, #tpu.memory_space<vmem>>, vector<1x10x128xbf16>
    %1 = vector.shape_cast %0 : vector<1x10x128xbf16> to vector<10x128xbf16>
    %c0_2 = arith.constant 0 : index
    %c0_3 = arith.constant 0 : index
    %c0_4 = arith.constant 0 : index
    %2 = vector.load %arg4[%c0_2, %c0_3, %c0_4] : memref<1x10x128xbf16, #tpu.memory_space<vmem>>, vector<1x10x128xbf16>
    %3 = vector.shape_cast %2 : vector<1x10x128xbf16> to vector<10x128xbf16>
    %c0_5 = arith.constant 0 : index
    %c0_6 = arith.constant 0 : index
    %c0_7 = arith.constant 0 : index
    %4 = vector.load %arg5[%c0_5, %c0_6, %c0_7] : memref<1x10x128xbf16, #tpu.memory_space<vmem>>, vector<1x10x128xbf16>
    %5 = vector.shape_cast %4 : vector<1x10x128xbf16> to vector<10x128xbf16>
    %c0_8 = arith.constant 0 : index
    %c0_9 = arith.constant 0 : index
    %c0_10 = arith.constant 0 : index
    %6 = vector.load %arg6[%c0_8, %c0_9, %c0_10] : memref<1x1x10xf32, #tpu.memory_space<vmem>>, vector<1x1x10xf32>
    %7 = vector.shape_cast %6 : vector<1x1x10xf32> to vector<1x10xf32>
    %c0_i32 = arith.constant 0 : i32
    %8 = arith.cmpi eq, %arg2, %c0_i32 : i32
    %9 = arith.extui %8 : i1 to i32
    %c0_i32_11 = arith.constant 0 : i32
    %10 = arith.cmpi ne, %9, %c0_i32_11 : i32
    scf.if %10 {
      %cst_99 = arith.constant 0xFF800000 : f32
      %170 = vector.broadcast %cst_99 : f32 to vector<4x10x1xf32>
      %c0_100 = arith.constant 0 : index
      %c0_101 = arith.constant 0 : index
      %c0_102 = arith.constant 0 : index
      %171 = vector.load %arg8[%c0_100, %c0_101, %c0_102] : memref<4x10x1xf32, #tpu.memory_space<vmem>>, vector<4x10x1xf32>
      tpu.vector_store %arg8[%c0_100, %c0_101, %c0_102], %170 {strides = array<i32>} : memref<4x10x1xf32, #tpu.memory_space<vmem>>, vector<4x10x1xf32>,
      %cst_103 = arith.constant 0.000000e+00 : f32
      %172 = vector.broadcast %cst_103 : f32 to vector<4x10x1xf32>
      %c0_104 = arith.constant 0 : index
      %c0_105 = arith.constant 0 : index
      %c0_106 = arith.constant 0 : index
      %173 = vector.load %arg9[%c0_104, %c0_105, %c0_106] : memref<4x10x1xf32, #tpu.memory_space<vmem>>, vector<4x10x1xf32>
      tpu.vector_store %arg9[%c0_104, %c0_105, %c0_106], %172 {strides = array<i32>} : memref<4x10x1xf32, #tpu.memory_space<vmem>>, vector<4x10x1xf32>,
      %cst_107 = arith.constant 0.000000e+00 : f32
      %174 = vector.broadcast %cst_107 : f32 to vector<4x10x32xf32>
      %c0_108 = arith.constant 0 : index
      %c0_109 = arith.constant 0 : index
      %c0_110 = arith.constant 0 : index
      %175 = vector.load %arg10[%c0_108, %c0_109, %c0_110] : memref<4x10x32xf32, #tpu.memory_space<vmem>>, vector<4x10x32xf32>
      tpu.vector_store %arg10[%c0_108, %c0_109, %c0_110], %174 {strides = array<i32>} : memref<4x10x32xf32, #tpu.memory_space<vmem>>, vector<4x10x32xf32>,
    } else {
    }
    %11 = arith.extf %1 : vector<10x128xbf16> to vector<10x128xf32>
    %cst = arith.constant 0.176776692 : f32
    %12 = vector.broadcast %cst : f32 to vector<10x128xf32>
    %13 = arith.mulf %11, %12 : vector<10x128xf32>
    %14 = arith.truncf %13 : vector<10x128xf32> to vector<10x128xbf16>
    %15 = vector.extract_strided_slice %14 {offsets = [0, 0], sizes = [10, 32], strides = [1, 1]} : vector<10x128xbf16> to vector<10x32xbf16>
    %16 = vector.extract_strided_slice %3 {offsets = [0, 0], sizes = [10, 32], strides = [1, 1]} : vector<10x128xbf16> to vector<10x32xbf16>
    %cst_12 = arith.constant dense<0.000000e+00> : vector<10x10xf32>
    %17 = tpu.matmul %15, %16, %cst_12 {dimension_numbers = #tpu.dot_dimension_numbers<[1], [1], [0], [0], [0, 0, 1, 0], [], []>} : vector<10x32xbf16>, vector<10x32xbf16>, vector<10x10xf32> -> vector<10x10xf32>
    %18 = vector.broadcast %7 : vector<1x10xf32> to vector<10x10xf32>
    %19 = arith.addf %17, %18 : vector<10x10xf32>
    %c0_13 = arith.constant 0 : index
    %c0_14 = arith.constant 0 : index
    %c0_15 = arith.constant 0 : index
    %20 = vector.load %arg8[%c0_13, %c0_14, %c0_15] : memref<4x10x1xf32, #tpu.memory_space<vmem>>, vector<1x10x1xf32>
    %21 = vector.shape_cast %20 : vector<1x10x1xf32> to vector<10x1xf32>
    %cst_16 = arith.constant dense<0xFF800000> : vector<10xf32>
    %22 = vector.multi_reduction <maximumf>, %19, %cst_16 [1] : vector<10x10xf32> to vector<10xf32>
    %23 = vector.shape_cast %22 : vector<10xf32> to vector<10x1xf32>
    %24 = arith.maximumf %21, %23 : vector<10x1xf32>
    %25 = arith.subf %21, %24 : vector<10x1xf32>
    %26 = math.exp %25 : vector<10x1xf32>
    %27 = vector.broadcast %24 : vector<10x1xf32> to vector<10x10xf32>
    %28 = arith.subf %19, %27 : vector<10x10xf32>
    %29 = math.exp %28 : vector<10x10xf32>
    %c0_17 = arith.constant 0 : index
    %c0_18 = arith.constant 0 : index
    %c0_19 = arith.constant 0 : index
    %30 = vector.load %arg9[%c0_17, %c0_18, %c0_19] : memref<4x10x1xf32, #tpu.memory_space<vmem>>, vector<1x10x1xf32>
    %31 = vector.shape_cast %30 : vector<1x10x1xf32> to vector<10x1xf32>
    %32 = arith.mulf %26, %31 : vector<10x1xf32>
    %cst_20 = arith.constant dense<0.000000e+00> : vector<10xf32>
    %33 = vector.multi_reduction <add>, %29, %cst_20 [1] : vector<10x10xf32> to vector<10xf32>
    %34 = vector.shape_cast %33 : vector<10xf32> to vector<10x1xf32>
    %35 = arith.addf %32, %34 : vector<10x1xf32>
    %c0_21 = arith.constant 0 : index
    %c0_22 = arith.constant 0 : index
    %c0_23 = arith.constant 0 : index
    %36 = vector.load %arg9[%c0_21, %c0_22, %c0_23] : memref<4x10x1xf32, #tpu.memory_space<vmem>>, vector<1x10x1xf32>
    %37 = vector.shape_cast %36 : vector<1x10x1xf32> to vector<10x1xf32>
    %38 = vector.shape_cast %35 : vector<10x1xf32> to vector<1x10x1xf32>
    tpu.vector_store %arg9[%c0_21, %c0_22, %c0_23], %38 {strides = array<i32>} : memref<4x10x1xf32, #tpu.memory_space<vmem>>, vector<1x10x1xf32>,
    %c0_24 = arith.constant 0 : index
    %c0_25 = arith.constant 0 : index
    %c0_26 = arith.constant 0 : index
    %39 = vector.load %arg10[%c0_24, %c0_25, %c0_26] : memref<4x10x32xf32, #tpu.memory_space<vmem>>, vector<1x10x32xf32>
    %40 = vector.shape_cast %39 : vector<1x10x32xf32> to vector<10x32xf32>
    %41 = vector.broadcast %26 : vector<10x1xf32> to vector<10x32xf32>
    %42 = arith.mulf %41, %40 : vector<10x32xf32>
    %43 = arith.truncf %29 : vector<10x10xf32> to vector<10x10xbf16>
    %44 = vector.extract_strided_slice %5 {offsets = [0, 0], sizes = [10, 32], strides = [1, 1]} : vector<10x128xbf16> to vector<10x32xbf16>
    %cst_27 = arith.constant dense<0.000000e+00> : vector<10x32xf32>
    %45 = tpu.matmul %43, %44, %cst_27 {dimension_numbers = #tpu.dot_dimension_numbers<[1], [0], [0], [1], [0, 0, 1, 1], [], []>} : vector<10x10xbf16>, vector<10x32xbf16>, vector<10x32xf32> -> vector<10x32xf32>
    %46 = arith.addf %42, %45 : vector<10x32xf32>
    %c0_28 = arith.constant 0 : index
    %c0_29 = arith.constant 0 : index
    %c0_30 = arith.constant 0 : index
    %47 = vector.load %arg10[%c0_28, %c0_29, %c0_30] : memref<4x10x32xf32, #tpu.memory_space<vmem>>, vector<1x10x32xf32>
    %48 = vector.shape_cast %47 : vector<1x10x32xf32> to vector<10x32xf32>
    %49 = vector.shape_cast %46 : vector<10x32xf32> to vector<1x10x32xf32>
    tpu.vector_store %arg10[%c0_28, %c0_29, %c0_30], %49 {strides = array<i32>} : memref<4x10x32xf32, #tpu.memory_space<vmem>>, vector<1x10x32xf32>,
    %c0_31 = arith.constant 0 : index
    %c0_32 = arith.constant 0 : index
    %c0_33 = arith.constant 0 : index
    %50 = vector.load %arg8[%c0_31, %c0_32, %c0_33] : memref<4x10x1xf32, #tpu.memory_space<vmem>>, vector<1x10x1xf32>
    %51 = vector.shape_cast %50 : vector<1x10x1xf32> to vector<10x1xf32>
    %52 = vector.shape_cast %24 : vector<10x1xf32> to vector<1x10x1xf32>
    tpu.vector_store %arg8[%c0_31, %c0_32, %c0_33], %52 {strides = array<i32>} : memref<4x10x1xf32, #tpu.memory_space<vmem>>, vector<1x10x1xf32>,
    %53 = vector.extract_strided_slice %14 {offsets = [0, 32], sizes = [10, 32], strides = [1, 1]} : vector<10x128xbf16> to vector<10x32xbf16>
    %54 = vector.extract_strided_slice %3 {offsets = [0, 32], sizes = [10, 32], strides = [1, 1]} : vector<10x128xbf16> to vector<10x32xbf16>
    %cst_34 = arith.constant dense<0.000000e+00> : vector<10x10xf32>
    %55 = tpu.matmul %53, %54, %cst_34 {dimension_numbers = #tpu.dot_dimension_numbers<[1], [1], [0], [0], [0, 0, 1, 0], [], []>} : vector<10x32xbf16>, vector<10x32xbf16>, vector<10x10xf32> -> vector<10x10xf32>
    %56 = vector.broadcast %7 : vector<1x10xf32> to vector<10x10xf32>
    %57 = arith.addf %55, %56 : vector<10x10xf32>
    %c1 = arith.constant 1 : index
    %c0_35 = arith.constant 0 : index
    %c0_36 = arith.constant 0 : index
    %58 = vector.load %arg8[%c1, %c0_35, %c0_36] : memref<4x10x1xf32, #tpu.memory_space<vmem>>, vector<1x10x1xf32>
    %59 = vector.shape_cast %58 : vector<1x10x1xf32> to vector<10x1xf32>
    %cst_37 = arith.constant dense<0xFF800000> : vector<10xf32>
    %60 = vector.multi_reduction <maximumf>, %57, %cst_37 [1] : vector<10x10xf32> to vector<10xf32>
    %61 = vector.shape_cast %60 : vector<10xf32> to vector<10x1xf32>
    %62 = arith.maximumf %59, %61 : vector<10x1xf32>
    %63 = arith.subf %59, %62 : vector<10x1xf32>
    %64 = math.exp %63 : vector<10x1xf32>
    %65 = vector.broadcast %62 : vector<10x1xf32> to vector<10x10xf32>
    %66 = arith.subf %57, %65 : vector<10x10xf32>
    %67 = math.exp %66 : vector<10x10xf32>
    %c1_38 = arith.constant 1 : index
    %c0_39 = arith.constant 0 : index
    %c0_40 = arith.constant 0 : index
    %68 = vector.load %arg9[%c1_38, %c0_39, %c0_40] : memref<4x10x1xf32, #tpu.memory_space<vmem>>, vector<1x10x1xf32>
    %69 = vector.shape_cast %68 : vector<1x10x1xf32> to vector<10x1xf32>
    %70 = arith.mulf %64, %69 : vector<10x1xf32>
    %cst_41 = arith.constant dense<0.000000e+00> : vector<10xf32>
    %71 = vector.multi_reduction <add>, %67, %cst_41 [1] : vector<10x10xf32> to vector<10xf32>
    %72 = vector.shape_cast %71 : vector<10xf32> to vector<10x1xf32>
    %73 = arith.addf %70, %72 : vector<10x1xf32>
    %c1_42 = arith.constant 1 : index
    %c0_43 = arith.constant 0 : index
    %c0_44 = arith.constant 0 : index
    %74 = vector.load %arg9[%c1_42, %c0_43, %c0_44] : memref<4x10x1xf32, #tpu.memory_space<vmem>>, vector<1x10x1xf32>
    %75 = vector.shape_cast %74 : vector<1x10x1xf32> to vector<10x1xf32>
    %76 = vector.shape_cast %73 : vector<10x1xf32> to vector<1x10x1xf32>
    tpu.vector_store %arg9[%c1_42, %c0_43, %c0_44], %76 {strides = array<i32>} : memref<4x10x1xf32, #tpu.memory_space<vmem>>, vector<1x10x1xf32>,
    %c1_45 = arith.constant 1 : index
    %c0_46 = arith.constant 0 : index
    %c0_47 = arith.constant 0 : index
    %77 = vector.load %arg10[%c1_45, %c0_46, %c0_47] : memref<4x10x32xf32, #tpu.memory_space<vmem>>, vector<1x10x32xf32>
    %78 = vector.shape_cast %77 : vector<1x10x32xf32> to vector<10x32xf32>
    %79 = vector.broadcast %64 : vector<10x1xf32> to vector<10x32xf32>
    %80 = arith.mulf %79, %78 : vector<10x32xf32>
    %81 = arith.truncf %67 : vector<10x10xf32> to vector<10x10xbf16>
    %82 = vector.extract_strided_slice %5 {offsets = [0, 32], sizes = [10, 32], strides = [1, 1]} : vector<10x128xbf16> to vector<10x32xbf16>
    %cst_48 = arith.constant dense<0.000000e+00> : vector<10x32xf32>
    %83 = tpu.matmul %81, %82, %cst_48 {dimension_numbers = #tpu.dot_dimension_numbers<[1], [0], [0], [1], [0, 0, 1, 1], [], []>} : vector<10x10xbf16>, vector<10x32xbf16>, vector<10x32xf32> -> vector<10x32xf32>
    %84 = arith.addf %80, %83 : vector<10x32xf32>
    %c1_49 = arith.constant 1 : index
    %c0_50 = arith.constant 0 : index
    %c0_51 = arith.constant 0 : index
    %85 = vector.load %arg10[%c1_49, %c0_50, %c0_51] : memref<4x10x32xf32, #tpu.memory_space<vmem>>, vector<1x10x32xf32>
    %86 = vector.shape_cast %85 : vector<1x10x32xf32> to vector<10x32xf32>
    %87 = vector.shape_cast %84 : vector<10x32xf32> to vector<1x10x32xf32>
    tpu.vector_store %arg10[%c1_49, %c0_50, %c0_51], %87 {strides = array<i32>} : memref<4x10x32xf32, #tpu.memory_space<vmem>>, vector<1x10x32xf32>,
    %c1_52 = arith.constant 1 : index
    %c0_53 = arith.constant 0 : index
    %c0_54 = arith.constant 0 : index
    %88 = vector.load %arg8[%c1_52, %c0_53, %c0_54] : memref<4x10x1xf32, #tpu.memory_space<vmem>>, vector<1x10x1xf32>
    %89 = vector.shape_cast %88 : vector<1x10x1xf32> to vector<10x1xf32>
    %90 = vector.shape_cast %62 : vector<10x1xf32> to vector<1x10x1xf32>
    tpu.vector_store %arg8[%c1_52, %c0_53, %c0_54], %90 {strides = array<i32>} : memref<4x10x1xf32, #tpu.memory_space<vmem>>, vector<1x10x1xf32>,
    %91 = vector.extract_strided_slice %14 {offsets = [0, 64], sizes = [10, 32], strides = [1, 1]} : vector<10x128xbf16> to vector<10x32xbf16>
    %92 = vector.extract_strided_slice %3 {offsets = [0, 64], sizes = [10, 32], strides = [1, 1]} : vector<10x128xbf16> to vector<10x32xbf16>
    %cst_55 = arith.constant dense<0.000000e+00> : vector<10x10xf32>
    %93 = tpu.matmul %91, %92, %cst_55 {dimension_numbers = #tpu.dot_dimension_numbers<[1], [1], [0], [0], [0, 0, 1, 0], [], []>} : vector<10x32xbf16>, vector<10x32xbf16>, vector<10x10xf32> -> vector<10x10xf32>
    %94 = vector.broadcast %7 : vector<1x10xf32> to vector<10x10xf32>
    %95 = arith.addf %93, %94 : vector<10x10xf32>
    %c2 = arith.constant 2 : index
    %c0_56 = arith.constant 0 : index
    %c0_57 = arith.constant 0 : index
    %96 = vector.load %arg8[%c2, %c0_56, %c0_57] : memref<4x10x1xf32, #tpu.memory_space<vmem>>, vector<1x10x1xf32>
    %97 = vector.shape_cast %96 : vector<1x10x1xf32> to vector<10x1xf32>
    %cst_58 = arith.constant dense<0xFF800000> : vector<10xf32>
    %98 = vector.multi_reduction <maximumf>, %95, %cst_58 [1] : vector<10x10xf32> to vector<10xf32>
    %99 = vector.shape_cast %98 : vector<10xf32> to vector<10x1xf32>
    %100 = arith.maximumf %97, %99 : vector<10x1xf32>
    %101 = arith.subf %97, %100 : vector<10x1xf32>
    %102 = math.exp %101 : vector<10x1xf32>
    %103 = vector.broadcast %100 : vector<10x1xf32> to vector<10x10xf32>
    %104 = arith.subf %95, %103 : vector<10x10xf32>
    %105 = math.exp %104 : vector<10x10xf32>
    %c2_59 = arith.constant 2 : index
    %c0_60 = arith.constant 0 : index
    %c0_61 = arith.constant 0 : index
    %106 = vector.load %arg9[%c2_59, %c0_60, %c0_61] : memref<4x10x1xf32, #tpu.memory_space<vmem>>, vector<1x10x1xf32>
    %107 = vector.shape_cast %106 : vector<1x10x1xf32> to vector<10x1xf32>
    %108 = arith.mulf %102, %107 : vector<10x1xf32>
    %cst_62 = arith.constant dense<0.000000e+00> : vector<10xf32>
    %109 = vector.multi_reduction <add>, %105, %cst_62 [1] : vector<10x10xf32> to vector<10xf32>
    %110 = vector.shape_cast %109 : vector<10xf32> to vector<10x1xf32>
    %111 = arith.addf %108, %110 : vector<10x1xf32>
    %c2_63 = arith.constant 2 : index
    %c0_64 = arith.constant 0 : index
    %c0_65 = arith.constant 0 : index
    %112 = vector.load %arg9[%c2_63, %c0_64, %c0_65] : memref<4x10x1xf32, #tpu.memory_space<vmem>>, vector<1x10x1xf32>
    %113 = vector.shape_cast %112 : vector<1x10x1xf32> to vector<10x1xf32>
    %114 = vector.shape_cast %111 : vector<10x1xf32> to vector<1x10x1xf32>
    tpu.vector_store %arg9[%c2_63, %c0_64, %c0_65], %114 {strides = array<i32>} : memref<4x10x1xf32, #tpu.memory_space<vmem>>, vector<1x10x1xf32>,
    %c2_66 = arith.constant 2 : index
    %c0_67 = arith.constant 0 : index
    %c0_68 = arith.constant 0 : index
    %115 = vector.load %arg10[%c2_66, %c0_67, %c0_68] : memref<4x10x32xf32, #tpu.memory_space<vmem>>, vector<1x10x32xf32>
    %116 = vector.shape_cast %115 : vector<1x10x32xf32> to vector<10x32xf32>
    %117 = vector.broadcast %102 : vector<10x1xf32> to vector<10x32xf32>
    %118 = arith.mulf %117, %116 : vector<10x32xf32>
    %119 = arith.truncf %105 : vector<10x10xf32> to vector<10x10xbf16>
    %120 = vector.extract_strided_slice %5 {offsets = [0, 64], sizes = [10, 32], strides = [1, 1]} : vector<10x128xbf16> to vector<10x32xbf16>
    %cst_69 = arith.constant dense<0.000000e+00> : vector<10x32xf32>
    %121 = tpu.matmul %119, %120, %cst_69 {dimension_numbers = #tpu.dot_dimension_numbers<[1], [0], [0], [1], [0, 0, 1, 1], [], []>} : vector<10x10xbf16>, vector<10x32xbf16>, vector<10x32xf32> -> vector<10x32xf32>
    %122 = arith.addf %118, %121 : vector<10x32xf32>
    %c2_70 = arith.constant 2 : index
    %c0_71 = arith.constant 0 : index
    %c0_72 = arith.constant 0 : index
    %123 = vector.load %arg10[%c2_70, %c0_71, %c0_72] : memref<4x10x32xf32, #tpu.memory_space<vmem>>, vector<1x10x32xf32>
    %124 = vector.shape_cast %123 : vector<1x10x32xf32> to vector<10x32xf32>
    %125 = vector.shape_cast %122 : vector<10x32xf32> to vector<1x10x32xf32>
    tpu.vector_store %arg10[%c2_70, %c0_71, %c0_72], %125 {strides = array<i32>} : memref<4x10x32xf32, #tpu.memory_space<vmem>>, vector<1x10x32xf32>,
    %c2_73 = arith.constant 2 : index
    %c0_74 = arith.constant 0 : index
    %c0_75 = arith.constant 0 : index
    %126 = vector.load %arg8[%c2_73, %c0_74, %c0_75] : memref<4x10x1xf32, #tpu.memory_space<vmem>>, vector<1x10x1xf32>
    %127 = vector.shape_cast %126 : vector<1x10x1xf32> to vector<10x1xf32>
    %128 = vector.shape_cast %100 : vector<10x1xf32> to vector<1x10x1xf32>
    tpu.vector_store %arg8[%c2_73, %c0_74, %c0_75], %128 {strides = array<i32>} : memref<4x10x1xf32, #tpu.memory_space<vmem>>, vector<1x10x1xf32>,
    %129 = vector.extract_strided_slice %14 {offsets = [0, 96], sizes = [10, 32], strides = [1, 1]} : vector<10x128xbf16> to vector<10x32xbf16>
    %130 = vector.extract_strided_slice %3 {offsets = [0, 96], sizes = [10, 32], strides = [1, 1]} : vector<10x128xbf16> to vector<10x32xbf16>
    %cst_76 = arith.constant dense<0.000000e+00> : vector<10x10xf32>
    %131 = tpu.matmul %129, %130, %cst_76 {dimension_numbers = #tpu.dot_dimension_numbers<[1], [1], [0], [0], [0, 0, 1, 0], [], []>} : vector<10x32xbf16>, vector<10x32xbf16>, vector<10x10xf32> -> vector<10x10xf32>
    %132 = vector.broadcast %7 : vector<1x10xf32> to vector<10x10xf32>
    %133 = arith.addf %131, %132 : vector<10x10xf32>
    %c3 = arith.constant 3 : index
    %c0_77 = arith.constant 0 : index
    %c0_78 = arith.constant 0 : index
    %134 = vector.load %arg8[%c3, %c0_77, %c0_78] : memref<4x10x1xf32, #tpu.memory_space<vmem>>, vector<1x10x1xf32>
    %135 = vector.shape_cast %134 : vector<1x10x1xf32> to vector<10x1xf32>
    %cst_79 = arith.constant dense<0xFF800000> : vector<10xf32>
    %136 = vector.multi_reduction <maximumf>, %133, %cst_79 [1] : vector<10x10xf32> to vector<10xf32>
    %137 = vector.shape_cast %136 : vector<10xf32> to vector<10x1xf32>
    %138 = arith.maximumf %135, %137 : vector<10x1xf32>
    %139 = arith.subf %135, %138 : vector<10x1xf32>
    %140 = math.exp %139 : vector<10x1xf32>
    %141 = vector.broadcast %138 : vector<10x1xf32> to vector<10x10xf32>
    %142 = arith.subf %133, %141 : vector<10x10xf32>
    %143 = math.exp %142 : vector<10x10xf32>
    %c3_80 = arith.constant 3 : index
    %c0_81 = arith.constant 0 : index
    %c0_82 = arith.constant 0 : index
    %144 = vector.load %arg9[%c3_80, %c0_81, %c0_82] : memref<4x10x1xf32, #tpu.memory_space<vmem>>, vector<1x10x1xf32>
    %145 = vector.shape_cast %144 : vector<1x10x1xf32> to vector<10x1xf32>
    %146 = arith.mulf %140, %145 : vector<10x1xf32>
    %cst_83 = arith.constant dense<0.000000e+00> : vector<10xf32>
    %147 = vector.multi_reduction <add>, %143, %cst_83 [1] : vector<10x10xf32> to vector<10xf32>
    %148 = vector.shape_cast %147 : vector<10xf32> to vector<10x1xf32>
    %149 = arith.addf %146, %148 : vector<10x1xf32>
    %c3_84 = arith.constant 3 : index
    %c0_85 = arith.constant 0 : index
    %c0_86 = arith.constant 0 : index
    %150 = vector.load %arg9[%c3_84, %c0_85, %c0_86] : memref<4x10x1xf32, #tpu.memory_space<vmem>>, vector<1x10x1xf32>
    %151 = vector.shape_cast %150 : vector<1x10x1xf32> to vector<10x1xf32>
    %152 = vector.shape_cast %149 : vector<10x1xf32> to vector<1x10x1xf32>
    tpu.vector_store %arg9[%c3_84, %c0_85, %c0_86], %152 {strides = array<i32>} : memref<4x10x1xf32, #tpu.memory_space<vmem>>, vector<1x10x1xf32>,
    %c3_87 = arith.constant 3 : index
    %c0_88 = arith.constant 0 : index
    %c0_89 = arith.constant 0 : index
    %153 = vector.load %arg10[%c3_87, %c0_88, %c0_89] : memref<4x10x32xf32, #tpu.memory_space<vmem>>, vector<1x10x32xf32>
    %154 = vector.shape_cast %153 : vector<1x10x32xf32> to vector<10x32xf32>
    %155 = vector.broadcast %140 : vector<10x1xf32> to vector<10x32xf32>
    %156 = arith.mulf %155, %154 : vector<10x32xf32>
    %157 = arith.truncf %143 : vector<10x10xf32> to vector<10x10xbf16>
    %158 = vector.extract_strided_slice %5 {offsets = [0, 96], sizes = [10, 32], strides = [1, 1]} : vector<10x128xbf16> to vector<10x32xbf16>
    %cst_90 = arith.constant dense<0.000000e+00> : vector<10x32xf32>
    %159 = tpu.matmul %157, %158, %cst_90 {dimension_numbers = #tpu.dot_dimension_numbers<[1], [0], [0], [1], [0, 0, 1, 1], [], []>} : vector<10x10xbf16>, vector<10x32xbf16>, vector<10x32xf32> -> vector<10x32xf32>
    %160 = arith.addf %156, %159 : vector<10x32xf32>
    %c3_91 = arith.constant 3 : index
    %c0_92 = arith.constant 0 : index
    %c0_93 = arith.constant 0 : index
    %161 = vector.load %arg10[%c3_91, %c0_92, %c0_93] : memref<4x10x32xf32, #tpu.memory_space<vmem>>, vector<1x10x32xf32>
    %162 = vector.shape_cast %161 : vector<1x10x32xf32> to vector<10x32xf32>
    %163 = vector.shape_cast %160 : vector<10x32xf32> to vector<1x10x32xf32>
    tpu.vector_store %arg10[%c3_91, %c0_92, %c0_93], %163 {strides = array<i32>} : memref<4x10x32xf32, #tpu.memory_space<vmem>>, vector<1x10x32xf32>,
    %c3_94 = arith.constant 3 : index
    %c0_95 = arith.constant 0 : index
    %c0_96 = arith.constant 0 : index
    %164 = vector.load %arg8[%c3_94, %c0_95, %c0_96] : memref<4x10x1xf32, #tpu.memory_space<vmem>>, vector<1x10x1xf32>
    %165 = vector.shape_cast %164 : vector<1x10x1xf32> to vector<10x1xf32>
    %166 = vector.shape_cast %138 : vector<10x1xf32> to vector<1x10x1xf32>
    tpu.vector_store %arg8[%c3_94, %c0_95, %c0_96], %166 {strides = array<i32>} : memref<4x10x1xf32, #tpu.memory_space<vmem>>, vector<1x10x1xf32>,
    %c0_i32_97 = arith.constant 0 : i32
    %167 = arith.cmpi eq, %arg2, %c0_i32_97 : i32
    %168 = arith.extui %167 : i1 to i32
    %c0_i32_98 = arith.constant 0 : i32
    %169 = arith.cmpi ne, %168, %c0_i32_98 : i32
    scf.if %169 {
      %c0_99 = arith.constant 0 : index
      %c0_100 = arith.constant 0 : index
      %c0_101 = arith.constant 0 : index
      %170 = vector.load %arg10[%c0_99, %c0_100, %c0_101] : memref<4x10x32xf32, #tpu.memory_space<vmem>>, vector<1x10x32xf32>
      %171 = vector.shape_cast %170 : vector<1x10x32xf32> to vector<10x32xf32>
      %c0_102 = arith.constant 0 : index
      %c0_103 = arith.constant 0 : index
      %c0_104 = arith.constant 0 : index
      %172 = vector.load %arg9[%c0_102, %c0_103, %c0_104] : memref<4x10x1xf32, #tpu.memory_space<vmem>>, vector<1x10x1xf32>
      %173 = vector.shape_cast %172 : vector<1x10x1xf32> to vector<10x1xf32>
      %174 = tpu.reciprocal %173 {approx = true} : vector<10x1xf32> -> vector<10x1xf32>
      %175 = vector.broadcast %174 : vector<10x1xf32> to vector<10x32xf32>
      %176 = arith.mulf %171, %175 : vector<10x32xf32>
      %c1_105 = arith.constant 1 : index
      %c0_106 = arith.constant 0 : index
      %c0_107 = arith.constant 0 : index
      %177 = vector.load %arg10[%c1_105, %c0_106, %c0_107] : memref<4x10x32xf32, #tpu.memory_space<vmem>>, vector<1x10x32xf32>
      %178 = vector.shape_cast %177 : vector<1x10x32xf32> to vector<10x32xf32>
      %c1_108 = arith.constant 1 : index
      %c0_109 = arith.constant 0 : index
      %c0_110 = arith.constant 0 : index
      %179 = vector.load %arg9[%c1_108, %c0_109, %c0_110] : memref<4x10x1xf32, #tpu.memory_space<vmem>>, vector<1x10x1xf32>
      %180 = vector.shape_cast %179 : vector<1x10x1xf32> to vector<10x1xf32>
      %181 = tpu.reciprocal %180 {approx = true} : vector<10x1xf32> -> vector<10x1xf32>
      %182 = vector.broadcast %181 : vector<10x1xf32> to vector<10x32xf32>
      %183 = arith.mulf %178, %182 : vector<10x32xf32>
      %c2_111 = arith.constant 2 : index
      %c0_112 = arith.constant 0 : index
      %c0_113 = arith.constant 0 : index
      %184 = vector.load %arg10[%c2_111, %c0_112, %c0_113] : memref<4x10x32xf32, #tpu.memory_space<vmem>>, vector<1x10x32xf32>
      %185 = vector.shape_cast %184 : vector<1x10x32xf32> to vector<10x32xf32>
      %c2_114 = arith.constant 2 : index
      %c0_115 = arith.constant 0 : index
      %c0_116 = arith.constant 0 : index
      %186 = vector.load %arg9[%c2_114, %c0_115, %c0_116] : memref<4x10x1xf32, #tpu.memory_space<vmem>>, vector<1x10x1xf32>
      %187 = vector.shape_cast %186 : vector<1x10x1xf32> to vector<10x1xf32>
      %188 = tpu.reciprocal %187 {approx = true} : vector<10x1xf32> -> vector<10x1xf32>
      %189 = vector.broadcast %188 : vector<10x1xf32> to vector<10x32xf32>
      %190 = arith.mulf %185, %189 : vector<10x32xf32>
      %c3_117 = arith.constant 3 : index
      %c0_118 = arith.constant 0 : index
      %c0_119 = arith.constant 0 : index
      %191 = vector.load %arg10[%c3_117, %c0_118, %c0_119] : memref<4x10x32xf32, #tpu.memory_space<vmem>>, vector<1x10x32xf32>
      %192 = vector.shape_cast %191 : vector<1x10x32xf32> to vector<10x32xf32>
      %c3_120 = arith.constant 3 : index
      %c0_121 = arith.constant 0 : index
      %c0_122 = arith.constant 0 : index
      %193 = vector.load %arg9[%c3_120, %c0_121, %c0_122] : memref<4x10x1xf32, #tpu.memory_space<vmem>>, vector<1x10x1xf32>
      %194 = vector.shape_cast %193 : vector<1x10x1xf32> to vector<10x1xf32>
      %195 = tpu.reciprocal %194 {approx = true} : vector<10x1xf32> -> vector<10x1xf32>
      %196 = vector.broadcast %195 : vector<10x1xf32> to vector<10x32xf32>
      %197 = arith.mulf %192, %196 : vector<10x32xf32>
      %198 = tpu.concatenate %176, %183, %190, %197 in 1 : vector<10x32xf32>, vector<10x32xf32>, vector<10x32xf32>, vector<10x32xf32> -> vector<10x128xf32>
      %199 = arith.truncf %198 : vector<10x128xf32> to vector<10x128xbf16>
      %c0_123 = arith.constant 0 : index
      %c0_124 = arith.constant 0 : index
      %c0_125 = arith.constant 0 : index
      %200 = vector.load %arg7[%c0_123, %c0_124, %c0_125] : memref<1x10x128xbf16, #tpu.memory_space<vmem>>, vector<1x10x128xbf16>
      %201 = vector.shape_cast %200 : vector<1x10x128xbf16> to vector<10x128xbf16>
      %202 = vector.shape_cast %199 : vector<10x128xbf16> to vector<1x10x128xbf16>
      tpu.vector_store %arg7[%c0_123, %c0_124, %c0_125], %202 {strides = array<i32>} : memref<1x10x128xbf16, #tpu.memory_space<vmem>>, vector<1x10x128xbf16>,
    } else {
    }
    return
  }
  func.func @transform_0(%arg0: i32, %arg1: i32, %arg2: i32) -> (i32, i32, i32) {
    %c0_i32 = arith.constant 0 : i32
    %0 = arith.addi %c0_i32, %arg1 : i32
    %c0_i32_0 = arith.constant 0 : i32
    %c0_i32_1 = arith.constant 0 : i32
    return %arg0, %c0_i32_0, %0 : i32, i32, i32
  }
  func.func @transform_1(%arg0: i32, %arg1: i32, %arg2: i32) -> (i32, i32, i32) {
    %c1_i32 = arith.constant 1 : i32
    %0 = arith.addi %c1_i32, %arg1 : i32
    %c0_i32 = arith.constant 0 : i32
    return %arg0, %arg2, %0 : i32, i32, i32
  }
  func.func @transform_2(%arg0: i32, %arg1: i32, %arg2: i32) -> (i32, i32, i32) {
    %c2_i32 = arith.constant 2 : i32
    %0 = arith.addi %c2_i32, %arg1 : i32
    %c0_i32 = arith.constant 0 : i32
    return %arg0, %arg2, %0 : i32, i32, i32
  }
  func.func @transform_3(%arg0: i32, %arg1: i32, %arg2: i32) -> (i32, i32, i32) {
    %c0_i32 = arith.constant 0 : i32
    %c0_i32_0 = arith.constant 0 : i32
    return %arg0, %c0_i32, %arg2 : i32, i32, i32
  }
  func.func @transform_4(%arg0: i32, %arg1: i32, %arg2: i32) -> (i32, i32, i32) {
    %c0_i32 = arith.constant 0 : i32
    %c0_i32_0 = arith.constant 0 : i32
    return %arg0, %c0_i32, %arg1 : i32, i32, i32
  }
}

module attributes {stable_mosaic.version = 11 : i64} {
  func.func @_ln_kernel(%arg0: i32, %arg1: memref<20x128xbf16, #tpu.memory_space<vmem>>, %arg2: memref<1x128xf32, #tpu.memory_space<vmem>>, %arg3: memref<1x128xf32, #tpu.memory_space<vmem>>, %arg4: memref<20x128xbf16, #tpu.memory_space<vmem>>) attributes {dimension_semantics = [#tpu.dimension_semantics<parallel>], iteration_bounds = array<i64: 1>, scalar_prefetch = 0 : i64, scratch_operands = 0 : i64, tpu.core_type = #tpu.core_type<tc>, window_params = [{transform_indices = @transform_0, window_bounds = array<i64: 20, 128>}, {pipeline_mode = #tpu.pipeline_mode<synchronous>, transform_indices = @transform_1, window_bounds = array<i64: 1, 128>}, {pipeline_mode = #tpu.pipeline_mode<synchronous>, transform_indices = @transform_2, window_bounds = array<i64: 1, 128>}, {transform_indices = @transform_3, window_bounds = array<i64: 20, 128>}]} {
    %c0 = arith.constant 0 : index
    %c0_0 = arith.constant 0 : index
    %0 = vector.load %arg1[%c0, %c0_0] : memref<20x128xbf16, #tpu.memory_space<vmem>>, vector<20x128xbf16>
    %1 = arith.extf %0 : vector<20x128xbf16> to vector<20x128xf32>
    %cst = arith.constant dense<0.000000e+00> : vector<20xf32>
    %2 = vector.multi_reduction <add>, %1, %cst [1] : vector<20x128xf32> to vector<20xf32>
    %3 = vector.shape_cast %2 : vector<20xf32> to vector<20x1xf32>
    %cst_1 = arith.constant 1.280000e+02 : f32
    %4 = vector.broadcast %cst_1 : f32 to vector<20x1xf32>
    %5 = arith.divf %3, %4 : vector<20x1xf32>
    %6 = vector.broadcast %5 : vector<20x1xf32> to vector<20x128xf32>
    %7 = arith.subf %1, %6 : vector<20x128xf32>
    %8 = arith.mulf %7, %7 : vector<20x128xf32>
    %cst_2 = arith.constant dense<0.000000e+00> : vector<20xf32>
    %9 = vector.multi_reduction <add>, %8, %cst_2 [1] : vector<20x128xf32> to vector<20xf32>
    %10 = vector.shape_cast %9 : vector<20xf32> to vector<20x1xf32>
    %cst_3 = arith.constant 1.280000e+02 : f32
    %11 = vector.broadcast %cst_3 : f32 to vector<20x1xf32>
    %12 = arith.divf %10, %11 : vector<20x1xf32>
    %cst_4 = arith.constant 9.99999974E-6 : f32
    %13 = vector.broadcast %cst_4 : f32 to vector<20x1xf32>
    %14 = arith.addf %12, %13 : vector<20x1xf32>
    %15 = math.rsqrt %14 : vector<20x1xf32>
    %16 = vector.broadcast %15 : vector<20x1xf32> to vector<20x128xf32>
    %17 = arith.mulf %7, %16 : vector<20x128xf32>
    %c0_5 = arith.constant 0 : index
    %c0_6 = arith.constant 0 : index
    %18 = vector.load %arg2[%c0_5, %c0_6] : memref<1x128xf32, #tpu.memory_space<vmem>>, vector<1x128xf32>
    %19 = vector.broadcast %18 : vector<1x128xf32> to vector<20x128xf32>
    %20 = arith.mulf %17, %19 : vector<20x128xf32>
    %c0_7 = arith.constant 0 : index
    %c0_8 = arith.constant 0 : index
    %21 = vector.load %arg3[%c0_7, %c0_8] : memref<1x128xf32, #tpu.memory_space<vmem>>, vector<1x128xf32>
    %22 = vector.broadcast %21 : vector<1x128xf32> to vector<20x128xf32>
    %23 = arith.addf %20, %22 : vector<20x128xf32>
    %24 = arith.truncf %23 : vector<20x128xf32> to vector<20x128xbf16>
    %c0_9 = arith.constant 0 : index
    %c0_10 = arith.constant 0 : index
    %25 = vector.load %arg4[%c0_9, %c0_10] : memref<20x128xbf16, #tpu.memory_space<vmem>>, vector<20x128xbf16>
    tpu.vector_store %arg4[%c0_9, %c0_10], %24 {strides = array<i32>} : memref<20x128xbf16, #tpu.memory_space<vmem>>, vector<20x128xbf16>,
    return
  }
  func.func @transform_0(%arg0: i32) -> (i32, i32) {
    %c0_i32 = arith.constant 0 : i32
    %c0_i32_0 = arith.constant 0 : i32
    return %arg0, %c0_i32 : i32, i32
  }
  func.func @transform_1(%arg0: i32) -> (i32, i32) {
    %c0_i32 = arith.constant 0 : i32
    %c0_i32_0 = arith.constant 0 : i32
    %c0_i32_1 = arith.constant 0 : i32
    return %c0_i32, %c0_i32_0 : i32, i32
  }
  func.func @transform_2(%arg0: i32) -> (i32, i32) {
    %c0_i32 = arith.constant 0 : i32
    %c0_i32_0 = arith.constant 0 : i32
    %c0_i32_1 = arith.constant 0 : i32
    return %c0_i32, %c0_i32_0 : i32, i32
  }
  func.func @transform_3(%arg0: i32) -> (i32, i32) {
    %c0_i32 = arith.constant 0 : i32
    %c0_i32_0 = arith.constant 0 : i32
    return %arg0, %c0_i32 : i32, i32
  }
}

module attributes {stable_mosaic.version = 11 : i64} {
  func.func @_linear_kernel(%arg0: i32, %arg1: i32, %arg2: i32, %arg3: memref<20x128xbf16, #tpu.memory_space<vmem>>, %arg4: memref<128x256xbf16, #tpu.memory_space<vmem>>, %arg5: memref<1x256xf32, #tpu.memory_space<vmem>>, %arg6: memref<20x256xbf16, #tpu.memory_space<vmem>>, %arg7: memref<20x256xf32, #tpu.memory_space<vmem>>) attributes {dimension_semantics = [#tpu.dimension_semantics<parallel>, #tpu.dimension_semantics<parallel>, #tpu.dimension_semantics<arbitrary>], iteration_bounds = array<i64: 1, 1, 1>, scalar_prefetch = 0 : i64, scratch_operands = 1 : i64, tpu.core_type = #tpu.core_type<tc>, window_params = [{transform_indices = @transform_0, window_bounds = array<i64: 20, 128>}, {transform_indices = @transform_1, window_bounds = array<i64: 128, 256>}, {transform_indices = @transform_2, window_bounds = array<i64: 1, 256>}, {transform_indices = @transform_3, window_bounds = array<i64: 20, 256>}]} {
    %c0_i32 = arith.constant 0 : i32
    %0 = arith.cmpi eq, %arg2, %c0_i32 : i32
    %1 = arith.extui %0 : i1 to i32
    %c0_i32_0 = arith.constant 0 : i32
    %2 = arith.cmpi ne, %1, %c0_i32_0 : i32
    scf.if %2 {
      %cst_10 = arith.constant 0.000000e+00 : f32
      %12 = vector.broadcast %cst_10 : f32 to vector<20x256xf32>
      %c0_11 = arith.constant 0 : index
      %c0_12 = arith.constant 0 : index
      %13 = vector.load %arg7[%c0_11, %c0_12] : memref<20x256xf32, #tpu.memory_space<vmem>>, vector<20x256xf32>
      tpu.vector_store %arg7[%c0_11, %c0_12], %12 {strides = array<i32>} : memref<20x256xf32, #tpu.memory_space<vmem>>, vector<20x256xf32>,
    } else {
    }
    %c0 = arith.constant 0 : index
    %c0_1 = arith.constant 0 : index
    %3 = vector.load %arg7[%c0, %c0_1] : memref<20x256xf32, #tpu.memory_space<vmem>>, vector<20x256xf32>
    %c0_2 = arith.constant 0 : index
    %c0_3 = arith.constant 0 : index
    %4 = vector.load %arg3[%c0_2, %c0_3] : memref<20x128xbf16, #tpu.memory_space<vmem>>, vector<20x128xbf16>
    %c0_4 = arith.constant 0 : index
    %c0_5 = arith.constant 0 : index
    %5 = vector.load %arg4[%c0_4, %c0_5] : memref<128x256xbf16, #tpu.memory_space<vmem>>, vector<128x256xbf16>
    %cst = arith.constant dense<0.000000e+00> : vector<20x256xf32>
    %6 = tpu.matmul %4, %5, %cst {dimension_numbers = #tpu.dot_dimension_numbers<[1], [0], [0], [1], [0, 0, 1, 1], [], []>} : vector<20x128xbf16>, vector<128x256xbf16>, vector<20x256xf32> -> vector<20x256xf32>
    %7 = arith.addf %3, %6 : vector<20x256xf32>
    %c0_6 = arith.constant 0 : index
    %c0_7 = arith.constant 0 : index
    %8 = vector.load %arg7[%c0_6, %c0_7] : memref<20x256xf32, #tpu.memory_space<vmem>>, vector<20x256xf32>
    tpu.vector_store %arg7[%c0_6, %c0_7], %7 {strides = array<i32>} : memref<20x256xf32, #tpu.memory_space<vmem>>, vector<20x256xf32>,
    %c0_i32_8 = arith.constant 0 : i32
    %9 = arith.cmpi eq, %arg2, %c0_i32_8 : i32
    %10 = arith.extui %9 : i1 to i32
    %c0_i32_9 = arith.constant 0 : i32
    %11 = arith.cmpi ne, %10, %c0_i32_9 : i32
    scf.if %11 {
      %c0_10 = arith.constant 0 : index
      %c0_11 = arith.constant 0 : index
      %12 = vector.load %arg7[%c0_10, %c0_11] : memref<20x256xf32, #tpu.memory_space<vmem>>, vector<20x256xf32>
      %c0_12 = arith.constant 0 : index
      %c0_13 = arith.constant 0 : index
      %13 = vector.load %arg5[%c0_12, %c0_13] : memref<1x256xf32, #tpu.memory_space<vmem>>, vector<1x256xf32>
      %14 = vector.broadcast %13 : vector<1x256xf32> to vector<20x256xf32>
      %15 = arith.addf %12, %14 : vector<20x256xf32>
      %16 = arith.truncf %15 : vector<20x256xf32> to vector<20x256xbf16>
      %c0_14 = arith.constant 0 : index
      %c0_15 = arith.constant 0 : index
      %17 = vector.load %arg6[%c0_14, %c0_15] : memref<20x256xbf16, #tpu.memory_space<vmem>>, vector<20x256xbf16>
      tpu.vector_store %arg6[%c0_14, %c0_15], %16 {strides = array<i32>} : memref<20x256xbf16, #tpu.memory_space<vmem>>, vector<20x256xbf16>,
    } else {
    }
    return
  }
  func.func @transform_0(%arg0: i32, %arg1: i32, %arg2: i32) -> (i32, i32) {
    %c0_i32 = arith.constant 0 : i32
    return %arg0, %arg2 : i32, i32
  }
  func.func @transform_1(%arg0: i32, %arg1: i32, %arg2: i32) -> (i32, i32) {
    %c0_i32 = arith.constant 0 : i32
    return %arg2, %arg1 : i32, i32
  }
  func.func @transform_2(%arg0: i32, %arg1: i32, %arg2: i32) -> (i32, i32) {
    %c0_i32 = arith.constant 0 : i32
    %c0_i32_0 = arith.constant 0 : i32
    return %c0_i32, %arg1 : i32, i32
  }
  func.func @transform_3(%arg0: i32, %arg1: i32, %arg2: i32) -> (i32, i32) {
    %c0_i32 = arith.constant 0 : i32
    return %arg0, %arg1 : i32, i32
  }
}

module attributes {stable_mosaic.version = 11 : i64} {
  func.func @_linear_kernel(%arg0: i32, %arg1: i32, %arg2: i32, %arg3: memref<16x128xbf16, #tpu.memory_space<vmem>>, %arg4: memref<128x384xbf16, #tpu.memory_space<vmem>>, %arg5: memref<1x384xf32, #tpu.memory_space<vmem>>, %arg6: memref<16x384xbf16, #tpu.memory_space<vmem>>, %arg7: memref<16x384xf32, #tpu.memory_space<vmem>>) attributes {dimension_semantics = [#tpu.dimension_semantics<parallel>, #tpu.dimension_semantics<parallel>, #tpu.dimension_semantics<arbitrary>], iteration_bounds = array<i64: 1, 1, 1>, scalar_prefetch = 0 : i64, scratch_operands = 1 : i64, tpu.core_type = #tpu.core_type<tc>, window_params = [{transform_indices = @transform_0, window_bounds = array<i64: 16, 128>}, {transform_indices = @transform_1, window_bounds = array<i64: 128, 384>}, {transform_indices = @transform_2, window_bounds = array<i64: 1, 384>}, {transform_indices = @transform_3, window_bounds = array<i64: 16, 384>}]} {
    %c0_i32 = arith.constant 0 : i32
    %0 = arith.cmpi eq, %arg2, %c0_i32 : i32
    %1 = arith.extui %0 : i1 to i32
    %c0_i32_0 = arith.constant 0 : i32
    %2 = arith.cmpi ne, %1, %c0_i32_0 : i32
    scf.if %2 {
      %cst_10 = arith.constant 0.000000e+00 : f32
      %12 = vector.broadcast %cst_10 : f32 to vector<16x384xf32>
      %c0_11 = arith.constant 0 : index
      %c0_12 = arith.constant 0 : index
      %13 = vector.load %arg7[%c0_11, %c0_12] : memref<16x384xf32, #tpu.memory_space<vmem>>, vector<16x384xf32>
      tpu.vector_store %arg7[%c0_11, %c0_12], %12 {strides = array<i32>} : memref<16x384xf32, #tpu.memory_space<vmem>>, vector<16x384xf32>,
    } else {
    }
    %c0 = arith.constant 0 : index
    %c0_1 = arith.constant 0 : index
    %3 = vector.load %arg7[%c0, %c0_1] : memref<16x384xf32, #tpu.memory_space<vmem>>, vector<16x384xf32>
    %c0_2 = arith.constant 0 : index
    %c0_3 = arith.constant 0 : index
    %4 = vector.load %arg3[%c0_2, %c0_3] : memref<16x128xbf16, #tpu.memory_space<vmem>>, vector<16x128xbf16>
    %c0_4 = arith.constant 0 : index
    %c0_5 = arith.constant 0 : index
    %5 = vector.load %arg4[%c0_4, %c0_5] : memref<128x384xbf16, #tpu.memory_space<vmem>>, vector<128x384xbf16>
    %cst = arith.constant dense<0.000000e+00> : vector<16x384xf32>
    %6 = tpu.matmul %4, %5, %cst {dimension_numbers = #tpu.dot_dimension_numbers<[1], [0], [0], [1], [0, 0, 1, 1], [], []>} : vector<16x128xbf16>, vector<128x384xbf16>, vector<16x384xf32> -> vector<16x384xf32>
    %7 = arith.addf %3, %6 : vector<16x384xf32>
    %c0_6 = arith.constant 0 : index
    %c0_7 = arith.constant 0 : index
    %8 = vector.load %arg7[%c0_6, %c0_7] : memref<16x384xf32, #tpu.memory_space<vmem>>, vector<16x384xf32>
    tpu.vector_store %arg7[%c0_6, %c0_7], %7 {strides = array<i32>} : memref<16x384xf32, #tpu.memory_space<vmem>>, vector<16x384xf32>,
    %c0_i32_8 = arith.constant 0 : i32
    %9 = arith.cmpi eq, %arg2, %c0_i32_8 : i32
    %10 = arith.extui %9 : i1 to i32
    %c0_i32_9 = arith.constant 0 : i32
    %11 = arith.cmpi ne, %10, %c0_i32_9 : i32
    scf.if %11 {
      %c0_10 = arith.constant 0 : index
      %c0_11 = arith.constant 0 : index
      %12 = vector.load %arg7[%c0_10, %c0_11] : memref<16x384xf32, #tpu.memory_space<vmem>>, vector<16x384xf32>
      %c0_12 = arith.constant 0 : index
      %c0_13 = arith.constant 0 : index
      %13 = vector.load %arg5[%c0_12, %c0_13] : memref<1x384xf32, #tpu.memory_space<vmem>>, vector<1x384xf32>
      %14 = vector.broadcast %13 : vector<1x384xf32> to vector<16x384xf32>
      %15 = arith.addf %12, %14 : vector<16x384xf32>
      %16 = arith.truncf %15 : vector<16x384xf32> to vector<16x384xbf16>
      %c0_14 = arith.constant 0 : index
      %c0_15 = arith.constant 0 : index
      %17 = vector.load %arg6[%c0_14, %c0_15] : memref<16x384xbf16, #tpu.memory_space<vmem>>, vector<16x384xbf16>
      tpu.vector_store %arg6[%c0_14, %c0_15], %16 {strides = array<i32>} : memref<16x384xbf16, #tpu.memory_space<vmem>>, vector<16x384xbf16>,
    } else {
    }
    return
  }
  func.func @transform_0(%arg0: i32, %arg1: i32, %arg2: i32) -> (i32, i32) {
    %c0_i32 = arith.constant 0 : i32
    return %arg0, %arg2 : i32, i32
  }
  func.func @transform_1(%arg0: i32, %arg1: i32, %arg2: i32) -> (i32, i32) {
    %c0_i32 = arith.constant 0 : i32
    return %arg2, %arg1 : i32, i32
  }
  func.func @transform_2(%arg0: i32, %arg1: i32, %arg2: i32) -> (i32, i32) {
    %c0_i32 = arith.constant 0 : i32
    %c0_i32_0 = arith.constant 0 : i32
    return %c0_i32, %arg1 : i32, i32
  }
  func.func @transform_3(%arg0: i32, %arg1: i32, %arg2: i32) -> (i32, i32) {
    %c0_i32 = arith.constant 0 : i32
    return %arg0, %arg1 : i32, i32
  }
}

module attributes {stable_mosaic.version = 11 : i64} {
  func.func @_mha_kernel(%arg0: i32, %arg1: i32, %arg2: i32, %arg3: memref<1x8x128xbf16, #tpu.memory_space<vmem>>, %arg4: memref<1x8x128xbf16, #tpu.memory_space<vmem>>, %arg5: memref<1x8x128xbf16, #tpu.memory_space<vmem>>, %arg6: memref<1x8x128xbf16, #tpu.memory_space<vmem>>, %arg7: memref<4x8x1xf32, #tpu.memory_space<vmem>>, %arg8: memref<4x8x1xf32, #tpu.memory_space<vmem>>, %arg9: memref<4x8x32xf32, #tpu.memory_space<vmem>>) attributes {dimension_semantics = [#tpu.dimension_semantics<parallel>, #tpu.dimension_semantics<parallel>, #tpu.dimension_semantics<arbitrary>], iteration_bounds = array<i64: 2, 1, 1>, scalar_prefetch = 0 : i64, scratch_operands = 3 : i64, tpu.core_type = #tpu.core_type<tc>, window_params = [{transform_indices = @transform_0, window_bounds = array<i64: 1, 8, 128>}, {transform_indices = @transform_1, window_bounds = array<i64: 1, 8, 128>}, {transform_indices = @transform_2, window_bounds = array<i64: 1, 8, 128>}, {transform_indices = @transform_3, window_bounds = array<i64: 1, 8, 128>}]} {
    %c0 = arith.constant 0 : index
    %c0_0 = arith.constant 0 : index
    %c0_1 = arith.constant 0 : index
    %0 = vector.load %arg3[%c0, %c0_0, %c0_1] : memref<1x8x128xbf16, #tpu.memory_space<vmem>>, vector<1x8x128xbf16>
    %1 = vector.shape_cast %0 : vector<1x8x128xbf16> to vector<8x128xbf16>
    %c0_2 = arith.constant 0 : index
    %c0_3 = arith.constant 0 : index
    %c0_4 = arith.constant 0 : index
    %2 = vector.load %arg4[%c0_2, %c0_3, %c0_4] : memref<1x8x128xbf16, #tpu.memory_space<vmem>>, vector<1x8x128xbf16>
    %3 = vector.shape_cast %2 : vector<1x8x128xbf16> to vector<8x128xbf16>
    %c0_5 = arith.constant 0 : index
    %c0_6 = arith.constant 0 : index
    %c0_7 = arith.constant 0 : index
    %4 = vector.load %arg5[%c0_5, %c0_6, %c0_7] : memref<1x8x128xbf16, #tpu.memory_space<vmem>>, vector<1x8x128xbf16>
    %5 = vector.shape_cast %4 : vector<1x8x128xbf16> to vector<8x128xbf16>
    %c0_i32 = arith.constant 0 : i32
    %6 = arith.cmpi eq, %arg2, %c0_i32 : i32
    %7 = arith.extui %6 : i1 to i32
    %c0_i32_8 = arith.constant 0 : i32
    %8 = arith.cmpi ne, %7, %c0_i32_8 : i32
    scf.if %8 {
      %cst_100 = arith.constant 0xFF800000 : f32
      %174 = vector.broadcast %cst_100 : f32 to vector<4x8x1xf32>
      %c0_101 = arith.constant 0 : index
      %c0_102 = arith.constant 0 : index
      %c0_103 = arith.constant 0 : index
      %175 = vector.load %arg7[%c0_101, %c0_102, %c0_103] : memref<4x8x1xf32, #tpu.memory_space<vmem>>, vector<4x8x1xf32>
      tpu.vector_store %arg7[%c0_101, %c0_102, %c0_103], %174 {strides = array<i32>} : memref<4x8x1xf32, #tpu.memory_space<vmem>>, vector<4x8x1xf32>,
      %cst_104 = arith.constant 0.000000e+00 : f32
      %176 = vector.broadcast %cst_104 : f32 to vector<4x8x1xf32>
      %c0_105 = arith.constant 0 : index
      %c0_106 = arith.constant 0 : index
      %c0_107 = arith.constant 0 : index
      %177 = vector.load %arg8[%c0_105, %c0_106, %c0_107] : memref<4x8x1xf32, #tpu.memory_space<vmem>>, vector<4x8x1xf32>
      tpu.vector_store %arg8[%c0_105, %c0_106, %c0_107], %176 {strides = array<i32>} : memref<4x8x1xf32, #tpu.memory_space<vmem>>, vector<4x8x1xf32>,
      %cst_108 = arith.constant 0.000000e+00 : f32
      %178 = vector.broadcast %cst_108 : f32 to vector<4x8x32xf32>
      %c0_109 = arith.constant 0 : index
      %c0_110 = arith.constant 0 : index
      %c0_111 = arith.constant 0 : index
      %179 = vector.load %arg9[%c0_109, %c0_110, %c0_111] : memref<4x8x32xf32, #tpu.memory_space<vmem>>, vector<4x8x32xf32>
      tpu.vector_store %arg9[%c0_109, %c0_110, %c0_111], %178 {strides = array<i32>} : memref<4x8x32xf32, #tpu.memory_space<vmem>>, vector<4x8x32xf32>,
    } else {
    }
    %9 = arith.extf %1 : vector<8x128xbf16> to vector<8x128xf32>
    %cst = arith.constant 0.176776692 : f32
    %10 = vector.broadcast %cst : f32 to vector<8x128xf32>
    %11 = arith.mulf %9, %10 : vector<8x128xf32>
    %12 = arith.truncf %11 : vector<8x128xf32> to vector<8x128xbf16>
    %13 = tpu.iota {dimensions = array<i32: 0>} : vector<8x8xi32>
    %c8_i32 = arith.constant 8 : i32
    %14 = arith.muli %arg2, %c8_i32 : i32
    %15 = tpu.iota {dimensions = array<i32: 1>} : vector<8x8xi32>
    %16 = vector.broadcast %14 : i32 to vector<8x8xi32>
    %17 = arith.addi %16, %15 : vector<8x8xi32>
    %18 = arith.cmpi sle, %17, %13 : vector<8x8xi32>
    %19 = vector.extract_strided_slice %12 {offsets = [0, 0], sizes = [8, 32], strides = [1, 1]} : vector<8x128xbf16> to vector<8x32xbf16>
    %20 = vector.extract_strided_slice %3 {offsets = [0, 0], sizes = [8, 32], strides = [1, 1]} : vector<8x128xbf16> to vector<8x32xbf16>
    %cst_9 = arith.constant dense<0.000000e+00> : vector<8x8xf32>
    %21 = tpu.matmul %19, %20, %cst_9 {dimension_numbers = #tpu.dot_dimension_numbers<[1], [1], [0], [0], [0, 0, 1, 0], [], []>} : vector<8x32xbf16>, vector<8x32xbf16>, vector<8x8xf32> -> vector<8x8xf32>
    %cst_10 = arith.constant -1.000000e+09 : f32
    %22 = vector.broadcast %cst_10 : f32 to vector<8x8xf32>
    %23 = arith.select %18, %21, %22 : vector<8x8xi1>, vector<8x8xf32>
    %c0_11 = arith.constant 0 : index
    %c0_12 = arith.constant 0 : index
    %c0_13 = arith.constant 0 : index
    %24 = vector.load %arg7[%c0_11, %c0_12, %c0_13] : memref<4x8x1xf32, #tpu.memory_space<vmem>>, vector<1x8x1xf32>
    %25 = vector.shape_cast %24 : vector<1x8x1xf32> to vector<8x1xf32>
    %cst_14 = arith.constant dense<0xFF800000> : vector<8xf32>
    %26 = vector.multi_reduction <maximumf>, %23, %cst_14 [1] : vector<8x8xf32> to vector<8xf32>
    %27 = vector.shape_cast %26 : vector<8xf32> to vector<8x1xf32>
    %28 = arith.maximumf %25, %27 : vector<8x1xf32>
    %29 = arith.subf %25, %28 : vector<8x1xf32>
    %30 = math.exp %29 : vector<8x1xf32>
    %31 = vector.broadcast %28 : vector<8x1xf32> to vector<8x8xf32>
    %32 = arith.subf %23, %31 : vector<8x8xf32>
    %33 = math.exp %32 : vector<8x8xf32>
    %c0_15 = arith.constant 0 : index
    %c0_16 = arith.constant 0 : index
    %c0_17 = arith.constant 0 : index
    %34 = vector.load %arg8[%c0_15, %c0_16, %c0_17] : memref<4x8x1xf32, #tpu.memory_space<vmem>>, vector<1x8x1xf32>
    %35 = vector.shape_cast %34 : vector<1x8x1xf32> to vector<8x1xf32>
    %36 = arith.mulf %30, %35 : vector<8x1xf32>
    %cst_18 = arith.constant dense<0.000000e+00> : vector<8xf32>
    %37 = vector.multi_reduction <add>, %33, %cst_18 [1] : vector<8x8xf32> to vector<8xf32>
    %38 = vector.shape_cast %37 : vector<8xf32> to vector<8x1xf32>
    %39 = arith.addf %36, %38 : vector<8x1xf32>
    %c0_19 = arith.constant 0 : index
    %c0_20 = arith.constant 0 : index
    %c0_21 = arith.constant 0 : index
    %40 = vector.load %arg8[%c0_19, %c0_20, %c0_21] : memref<4x8x1xf32, #tpu.memory_space<vmem>>, vector<1x8x1xf32>
    %41 = vector.shape_cast %40 : vector<1x8x1xf32> to vector<8x1xf32>
    %42 = vector.shape_cast %39 : vector<8x1xf32> to vector<1x8x1xf32>
    tpu.vector_store %arg8[%c0_19, %c0_20, %c0_21], %42 {strides = array<i32>} : memref<4x8x1xf32, #tpu.memory_space<vmem>>, vector<1x8x1xf32>,
    %c0_22 = arith.constant 0 : index
    %c0_23 = arith.constant 0 : index
    %c0_24 = arith.constant 0 : index
    %43 = vector.load %arg9[%c0_22, %c0_23, %c0_24] : memref<4x8x32xf32, #tpu.memory_space<vmem>>, vector<1x8x32xf32>
    %44 = vector.shape_cast %43 : vector<1x8x32xf32> to vector<8x32xf32>
    %45 = vector.broadcast %30 : vector<8x1xf32> to vector<8x32xf32>
    %46 = arith.mulf %45, %44 : vector<8x32xf32>
    %47 = arith.truncf %33 : vector<8x8xf32> to vector<8x8xbf16>
    %48 = vector.extract_strided_slice %5 {offsets = [0, 0], sizes = [8, 32], strides = [1, 1]} : vector<8x128xbf16> to vector<8x32xbf16>
    %cst_25 = arith.constant dense<0.000000e+00> : vector<8x32xf32>
    %49 = tpu.matmul %47, %48, %cst_25 {dimension_numbers = #tpu.dot_dimension_numbers<[1], [0], [0], [1], [0, 0, 1, 1], [], []>} : vector<8x8xbf16>, vector<8x32xbf16>, vector<8x32xf32> -> vector<8x32xf32>
    %50 = arith.addf %46, %49 : vector<8x32xf32>
    %c0_26 = arith.constant 0 : index
    %c0_27 = arith.constant 0 : index
    %c0_28 = arith.constant 0 : index
    %51 = vector.load %arg9[%c0_26, %c0_27, %c0_28] : memref<4x8x32xf32, #tpu.memory_space<vmem>>, vector<1x8x32xf32>
    %52 = vector.shape_cast %51 : vector<1x8x32xf32> to vector<8x32xf32>
    %53 = vector.shape_cast %50 : vector<8x32xf32> to vector<1x8x32xf32>
    tpu.vector_store %arg9[%c0_26, %c0_27, %c0_28], %53 {strides = array<i32>} : memref<4x8x32xf32, #tpu.memory_space<vmem>>, vector<1x8x32xf32>,
    %c0_29 = arith.constant 0 : index
    %c0_30 = arith.constant 0 : index
    %c0_31 = arith.constant 0 : index
    %54 = vector.load %arg7[%c0_29, %c0_30, %c0_31] : memref<4x8x1xf32, #tpu.memory_space<vmem>>, vector<1x8x1xf32>
    %55 = vector.shape_cast %54 : vector<1x8x1xf32> to vector<8x1xf32>
    %56 = vector.shape_cast %28 : vector<8x1xf32> to vector<1x8x1xf32>
    tpu.vector_store %arg7[%c0_29, %c0_30, %c0_31], %56 {strides = array<i32>} : memref<4x8x1xf32, #tpu.memory_space<vmem>>, vector<1x8x1xf32>,
    %57 = vector.extract_strided_slice %12 {offsets = [0, 32], sizes = [8, 32], strides = [1, 1]} : vector<8x128xbf16> to vector<8x32xbf16>
    %58 = vector.extract_strided_slice %3 {offsets = [0, 32], sizes = [8, 32], strides = [1, 1]} : vector<8x128xbf16> to vector<8x32xbf16>
    %cst_32 = arith.constant dense<0.000000e+00> : vector<8x8xf32>
    %59 = tpu.matmul %57, %58, %cst_32 {dimension_numbers = #tpu.dot_dimension_numbers<[1], [1], [0], [0], [0, 0, 1, 0], [], []>} : vector<8x32xbf16>, vector<8x32xbf16>, vector<8x8xf32> -> vector<8x8xf32>
    %cst_33 = arith.constant -1.000000e+09 : f32
    %60 = vector.broadcast %cst_33 : f32 to vector<8x8xf32>
    %61 = arith.select %18, %59, %60 : vector<8x8xi1>, vector<8x8xf32>
    %c1 = arith.constant 1 : index
    %c0_34 = arith.constant 0 : index
    %c0_35 = arith.constant 0 : index
    %62 = vector.load %arg7[%c1, %c0_34, %c0_35] : memref<4x8x1xf32, #tpu.memory_space<vmem>>, vector<1x8x1xf32>
    %63 = vector.shape_cast %62 : vector<1x8x1xf32> to vector<8x1xf32>
    %cst_36 = arith.constant dense<0xFF800000> : vector<8xf32>
    %64 = vector.multi_reduction <maximumf>, %61, %cst_36 [1] : vector<8x8xf32> to vector<8xf32>
    %65 = vector.shape_cast %64 : vector<8xf32> to vector<8x1xf32>
    %66 = arith.maximumf %63, %65 : vector<8x1xf32>
    %67 = arith.subf %63, %66 : vector<8x1xf32>
    %68 = math.exp %67 : vector<8x1xf32>
    %69 = vector.broadcast %66 : vector<8x1xf32> to vector<8x8xf32>
    %70 = arith.subf %61, %69 : vector<8x8xf32>
    %71 = math.exp %70 : vector<8x8xf32>
    %c1_37 = arith.constant 1 : index
    %c0_38 = arith.constant 0 : index
    %c0_39 = arith.constant 0 : index
    %72 = vector.load %arg8[%c1_37, %c0_38, %c0_39] : memref<4x8x1xf32, #tpu.memory_space<vmem>>, vector<1x8x1xf32>
    %73 = vector.shape_cast %72 : vector<1x8x1xf32> to vector<8x1xf32>
    %74 = arith.mulf %68, %73 : vector<8x1xf32>
    %cst_40 = arith.constant dense<0.000000e+00> : vector<8xf32>
    %75 = vector.multi_reduction <add>, %71, %cst_40 [1] : vector<8x8xf32> to vector<8xf32>
    %76 = vector.shape_cast %75 : vector<8xf32> to vector<8x1xf32>
    %77 = arith.addf %74, %76 : vector<8x1xf32>
    %c1_41 = arith.constant 1 : index
    %c0_42 = arith.constant 0 : index
    %c0_43 = arith.constant 0 : index
    %78 = vector.load %arg8[%c1_41, %c0_42, %c0_43] : memref<4x8x1xf32, #tpu.memory_space<vmem>>, vector<1x8x1xf32>
    %79 = vector.shape_cast %78 : vector<1x8x1xf32> to vector<8x1xf32>
    %80 = vector.shape_cast %77 : vector<8x1xf32> to vector<1x8x1xf32>
    tpu.vector_store %arg8[%c1_41, %c0_42, %c0_43], %80 {strides = array<i32>} : memref<4x8x1xf32, #tpu.memory_space<vmem>>, vector<1x8x1xf32>,
    %c1_44 = arith.constant 1 : index
    %c0_45 = arith.constant 0 : index
    %c0_46 = arith.constant 0 : index
    %81 = vector.load %arg9[%c1_44, %c0_45, %c0_46] : memref<4x8x32xf32, #tpu.memory_space<vmem>>, vector<1x8x32xf32>
    %82 = vector.shape_cast %81 : vector<1x8x32xf32> to vector<8x32xf32>
    %83 = vector.broadcast %68 : vector<8x1xf32> to vector<8x32xf32>
    %84 = arith.mulf %83, %82 : vector<8x32xf32>
    %85 = arith.truncf %71 : vector<8x8xf32> to vector<8x8xbf16>
    %86 = vector.extract_strided_slice %5 {offsets = [0, 32], sizes = [8, 32], strides = [1, 1]} : vector<8x128xbf16> to vector<8x32xbf16>
    %cst_47 = arith.constant dense<0.000000e+00> : vector<8x32xf32>
    %87 = tpu.matmul %85, %86, %cst_47 {dimension_numbers = #tpu.dot_dimension_numbers<[1], [0], [0], [1], [0, 0, 1, 1], [], []>} : vector<8x8xbf16>, vector<8x32xbf16>, vector<8x32xf32> -> vector<8x32xf32>
    %88 = arith.addf %84, %87 : vector<8x32xf32>
    %c1_48 = arith.constant 1 : index
    %c0_49 = arith.constant 0 : index
    %c0_50 = arith.constant 0 : index
    %89 = vector.load %arg9[%c1_48, %c0_49, %c0_50] : memref<4x8x32xf32, #tpu.memory_space<vmem>>, vector<1x8x32xf32>
    %90 = vector.shape_cast %89 : vector<1x8x32xf32> to vector<8x32xf32>
    %91 = vector.shape_cast %88 : vector<8x32xf32> to vector<1x8x32xf32>
    tpu.vector_store %arg9[%c1_48, %c0_49, %c0_50], %91 {strides = array<i32>} : memref<4x8x32xf32, #tpu.memory_space<vmem>>, vector<1x8x32xf32>,
    %c1_51 = arith.constant 1 : index
    %c0_52 = arith.constant 0 : index
    %c0_53 = arith.constant 0 : index
    %92 = vector.load %arg7[%c1_51, %c0_52, %c0_53] : memref<4x8x1xf32, #tpu.memory_space<vmem>>, vector<1x8x1xf32>
    %93 = vector.shape_cast %92 : vector<1x8x1xf32> to vector<8x1xf32>
    %94 = vector.shape_cast %66 : vector<8x1xf32> to vector<1x8x1xf32>
    tpu.vector_store %arg7[%c1_51, %c0_52, %c0_53], %94 {strides = array<i32>} : memref<4x8x1xf32, #tpu.memory_space<vmem>>, vector<1x8x1xf32>,
    %95 = vector.extract_strided_slice %12 {offsets = [0, 64], sizes = [8, 32], strides = [1, 1]} : vector<8x128xbf16> to vector<8x32xbf16>
    %96 = vector.extract_strided_slice %3 {offsets = [0, 64], sizes = [8, 32], strides = [1, 1]} : vector<8x128xbf16> to vector<8x32xbf16>
    %cst_54 = arith.constant dense<0.000000e+00> : vector<8x8xf32>
    %97 = tpu.matmul %95, %96, %cst_54 {dimension_numbers = #tpu.dot_dimension_numbers<[1], [1], [0], [0], [0, 0, 1, 0], [], []>} : vector<8x32xbf16>, vector<8x32xbf16>, vector<8x8xf32> -> vector<8x8xf32>
    %cst_55 = arith.constant -1.000000e+09 : f32
    %98 = vector.broadcast %cst_55 : f32 to vector<8x8xf32>
    %99 = arith.select %18, %97, %98 : vector<8x8xi1>, vector<8x8xf32>
    %c2 = arith.constant 2 : index
    %c0_56 = arith.constant 0 : index
    %c0_57 = arith.constant 0 : index
    %100 = vector.load %arg7[%c2, %c0_56, %c0_57] : memref<4x8x1xf32, #tpu.memory_space<vmem>>, vector<1x8x1xf32>
    %101 = vector.shape_cast %100 : vector<1x8x1xf32> to vector<8x1xf32>
    %cst_58 = arith.constant dense<0xFF800000> : vector<8xf32>
    %102 = vector.multi_reduction <maximumf>, %99, %cst_58 [1] : vector<8x8xf32> to vector<8xf32>
    %103 = vector.shape_cast %102 : vector<8xf32> to vector<8x1xf32>
    %104 = arith.maximumf %101, %103 : vector<8x1xf32>
    %105 = arith.subf %101, %104 : vector<8x1xf32>
    %106 = math.exp %105 : vector<8x1xf32>
    %107 = vector.broadcast %104 : vector<8x1xf32> to vector<8x8xf32>
    %108 = arith.subf %99, %107 : vector<8x8xf32>
    %109 = math.exp %108 : vector<8x8xf32>
    %c2_59 = arith.constant 2 : index
    %c0_60 = arith.constant 0 : index
    %c0_61 = arith.constant 0 : index
    %110 = vector.load %arg8[%c2_59, %c0_60, %c0_61] : memref<4x8x1xf32, #tpu.memory_space<vmem>>, vector<1x8x1xf32>
    %111 = vector.shape_cast %110 : vector<1x8x1xf32> to vector<8x1xf32>
    %112 = arith.mulf %106, %111 : vector<8x1xf32>
    %cst_62 = arith.constant dense<0.000000e+00> : vector<8xf32>
    %113 = vector.multi_reduction <add>, %109, %cst_62 [1] : vector<8x8xf32> to vector<8xf32>
    %114 = vector.shape_cast %113 : vector<8xf32> to vector<8x1xf32>
    %115 = arith.addf %112, %114 : vector<8x1xf32>
    %c2_63 = arith.constant 2 : index
    %c0_64 = arith.constant 0 : index
    %c0_65 = arith.constant 0 : index
    %116 = vector.load %arg8[%c2_63, %c0_64, %c0_65] : memref<4x8x1xf32, #tpu.memory_space<vmem>>, vector<1x8x1xf32>
    %117 = vector.shape_cast %116 : vector<1x8x1xf32> to vector<8x1xf32>
    %118 = vector.shape_cast %115 : vector<8x1xf32> to vector<1x8x1xf32>
    tpu.vector_store %arg8[%c2_63, %c0_64, %c0_65], %118 {strides = array<i32>} : memref<4x8x1xf32, #tpu.memory_space<vmem>>, vector<1x8x1xf32>,
    %c2_66 = arith.constant 2 : index
    %c0_67 = arith.constant 0 : index
    %c0_68 = arith.constant 0 : index
    %119 = vector.load %arg9[%c2_66, %c0_67, %c0_68] : memref<4x8x32xf32, #tpu.memory_space<vmem>>, vector<1x8x32xf32>
    %120 = vector.shape_cast %119 : vector<1x8x32xf32> to vector<8x32xf32>
    %121 = vector.broadcast %106 : vector<8x1xf32> to vector<8x32xf32>
    %122 = arith.mulf %121, %120 : vector<8x32xf32>
    %123 = arith.truncf %109 : vector<8x8xf32> to vector<8x8xbf16>
    %124 = vector.extract_strided_slice %5 {offsets = [0, 64], sizes = [8, 32], strides = [1, 1]} : vector<8x128xbf16> to vector<8x32xbf16>
    %cst_69 = arith.constant dense<0.000000e+00> : vector<8x32xf32>
    %125 = tpu.matmul %123, %124, %cst_69 {dimension_numbers = #tpu.dot_dimension_numbers<[1], [0], [0], [1], [0, 0, 1, 1], [], []>} : vector<8x8xbf16>, vector<8x32xbf16>, vector<8x32xf32> -> vector<8x32xf32>
    %126 = arith.addf %122, %125 : vector<8x32xf32>
    %c2_70 = arith.constant 2 : index
    %c0_71 = arith.constant 0 : index
    %c0_72 = arith.constant 0 : index
    %127 = vector.load %arg9[%c2_70, %c0_71, %c0_72] : memref<4x8x32xf32, #tpu.memory_space<vmem>>, vector<1x8x32xf32>
    %128 = vector.shape_cast %127 : vector<1x8x32xf32> to vector<8x32xf32>
    %129 = vector.shape_cast %126 : vector<8x32xf32> to vector<1x8x32xf32>
    tpu.vector_store %arg9[%c2_70, %c0_71, %c0_72], %129 {strides = array<i32>} : memref<4x8x32xf32, #tpu.memory_space<vmem>>, vector<1x8x32xf32>,
    %c2_73 = arith.constant 2 : index
    %c0_74 = arith.constant 0 : index
    %c0_75 = arith.constant 0 : index
    %130 = vector.load %arg7[%c2_73, %c0_74, %c0_75] : memref<4x8x1xf32, #tpu.memory_space<vmem>>, vector<1x8x1xf32>
    %131 = vector.shape_cast %130 : vector<1x8x1xf32> to vector<8x1xf32>
    %132 = vector.shape_cast %104 : vector<8x1xf32> to vector<1x8x1xf32>
    tpu.vector_store %arg7[%c2_73, %c0_74, %c0_75], %132 {strides = array<i32>} : memref<4x8x1xf32, #tpu.memory_space<vmem>>, vector<1x8x1xf32>,
    %133 = vector.extract_strided_slice %12 {offsets = [0, 96], sizes = [8, 32], strides = [1, 1]} : vector<8x128xbf16> to vector<8x32xbf16>
    %134 = vector.extract_strided_slice %3 {offsets = [0, 96], sizes = [8, 32], strides = [1, 1]} : vector<8x128xbf16> to vector<8x32xbf16>
    %cst_76 = arith.constant dense<0.000000e+00> : vector<8x8xf32>
    %135 = tpu.matmul %133, %134, %cst_76 {dimension_numbers = #tpu.dot_dimension_numbers<[1], [1], [0], [0], [0, 0, 1, 0], [], []>} : vector<8x32xbf16>, vector<8x32xbf16>, vector<8x8xf32> -> vector<8x8xf32>
    %cst_77 = arith.constant -1.000000e+09 : f32
    %136 = vector.broadcast %cst_77 : f32 to vector<8x8xf32>
    %137 = arith.select %18, %135, %136 : vector<8x8xi1>, vector<8x8xf32>
    %c3 = arith.constant 3 : index
    %c0_78 = arith.constant 0 : index
    %c0_79 = arith.constant 0 : index
    %138 = vector.load %arg7[%c3, %c0_78, %c0_79] : memref<4x8x1xf32, #tpu.memory_space<vmem>>, vector<1x8x1xf32>
    %139 = vector.shape_cast %138 : vector<1x8x1xf32> to vector<8x1xf32>
    %cst_80 = arith.constant dense<0xFF800000> : vector<8xf32>
    %140 = vector.multi_reduction <maximumf>, %137, %cst_80 [1] : vector<8x8xf32> to vector<8xf32>
    %141 = vector.shape_cast %140 : vector<8xf32> to vector<8x1xf32>
    %142 = arith.maximumf %139, %141 : vector<8x1xf32>
    %143 = arith.subf %139, %142 : vector<8x1xf32>
    %144 = math.exp %143 : vector<8x1xf32>
    %145 = vector.broadcast %142 : vector<8x1xf32> to vector<8x8xf32>
    %146 = arith.subf %137, %145 : vector<8x8xf32>
    %147 = math.exp %146 : vector<8x8xf32>
    %c3_81 = arith.constant 3 : index
    %c0_82 = arith.constant 0 : index
    %c0_83 = arith.constant 0 : index
    %148 = vector.load %arg8[%c3_81, %c0_82, %c0_83] : memref<4x8x1xf32, #tpu.memory_space<vmem>>, vector<1x8x1xf32>
    %149 = vector.shape_cast %148 : vector<1x8x1xf32> to vector<8x1xf32>
    %150 = arith.mulf %144, %149 : vector<8x1xf32>
    %cst_84 = arith.constant dense<0.000000e+00> : vector<8xf32>
    %151 = vector.multi_reduction <add>, %147, %cst_84 [1] : vector<8x8xf32> to vector<8xf32>
    %152 = vector.shape_cast %151 : vector<8xf32> to vector<8x1xf32>
    %153 = arith.addf %150, %152 : vector<8x1xf32>
    %c3_85 = arith.constant 3 : index
    %c0_86 = arith.constant 0 : index
    %c0_87 = arith.constant 0 : index
    %154 = vector.load %arg8[%c3_85, %c0_86, %c0_87] : memref<4x8x1xf32, #tpu.memory_space<vmem>>, vector<1x8x1xf32>
    %155 = vector.shape_cast %154 : vector<1x8x1xf32> to vector<8x1xf32>
    %156 = vector.shape_cast %153 : vector<8x1xf32> to vector<1x8x1xf32>
    tpu.vector_store %arg8[%c3_85, %c0_86, %c0_87], %156 {strides = array<i32>} : memref<4x8x1xf32, #tpu.memory_space<vmem>>, vector<1x8x1xf32>,
    %c3_88 = arith.constant 3 : index
    %c0_89 = arith.constant 0 : index
    %c0_90 = arith.constant 0 : index
    %157 = vector.load %arg9[%c3_88, %c0_89, %c0_90] : memref<4x8x32xf32, #tpu.memory_space<vmem>>, vector<1x8x32xf32>
    %158 = vector.shape_cast %157 : vector<1x8x32xf32> to vector<8x32xf32>
    %159 = vector.broadcast %144 : vector<8x1xf32> to vector<8x32xf32>
    %160 = arith.mulf %159, %158 : vector<8x32xf32>
    %161 = arith.truncf %147 : vector<8x8xf32> to vector<8x8xbf16>
    %162 = vector.extract_strided_slice %5 {offsets = [0, 96], sizes = [8, 32], strides = [1, 1]} : vector<8x128xbf16> to vector<8x32xbf16>
    %cst_91 = arith.constant dense<0.000000e+00> : vector<8x32xf32>
    %163 = tpu.matmul %161, %162, %cst_91 {dimension_numbers = #tpu.dot_dimension_numbers<[1], [0], [0], [1], [0, 0, 1, 1], [], []>} : vector<8x8xbf16>, vector<8x32xbf16>, vector<8x32xf32> -> vector<8x32xf32>
    %164 = arith.addf %160, %163 : vector<8x32xf32>
    %c3_92 = arith.constant 3 : index
    %c0_93 = arith.constant 0 : index
    %c0_94 = arith.constant 0 : index
    %165 = vector.load %arg9[%c3_92, %c0_93, %c0_94] : memref<4x8x32xf32, #tpu.memory_space<vmem>>, vector<1x8x32xf32>
    %166 = vector.shape_cast %165 : vector<1x8x32xf32> to vector<8x32xf32>
    %167 = vector.shape_cast %164 : vector<8x32xf32> to vector<1x8x32xf32>
    tpu.vector_store %arg9[%c3_92, %c0_93, %c0_94], %167 {strides = array<i32>} : memref<4x8x32xf32, #tpu.memory_space<vmem>>, vector<1x8x32xf32>,
    %c3_95 = arith.constant 3 : index
    %c0_96 = arith.constant 0 : index
    %c0_97 = arith.constant 0 : index
    %168 = vector.load %arg7[%c3_95, %c0_96, %c0_97] : memref<4x8x1xf32, #tpu.memory_space<vmem>>, vector<1x8x1xf32>
    %169 = vector.shape_cast %168 : vector<1x8x1xf32> to vector<8x1xf32>
    %170 = vector.shape_cast %142 : vector<8x1xf32> to vector<1x8x1xf32>
    tpu.vector_store %arg7[%c3_95, %c0_96, %c0_97], %170 {strides = array<i32>} : memref<4x8x1xf32, #tpu.memory_space<vmem>>, vector<1x8x1xf32>,
    %c0_i32_98 = arith.constant 0 : i32
    %171 = arith.cmpi eq, %arg2, %c0_i32_98 : i32
    %172 = arith.extui %171 : i1 to i32
    %c0_i32_99 = arith.constant 0 : i32
    %173 = arith.cmpi ne, %172, %c0_i32_99 : i32
    scf.if %173 {
      %c0_100 = arith.constant 0 : index
      %c0_101 = arith.constant 0 : index
      %c0_102 = arith.constant 0 : index
      %174 = vector.load %arg9[%c0_100, %c0_101, %c0_102] : memref<4x8x32xf32, #tpu.memory_space<vmem>>, vector<1x8x32xf32>
      %175 = vector.shape_cast %174 : vector<1x8x32xf32> to vector<8x32xf32>
      %c0_103 = arith.constant 0 : index
      %c0_104 = arith.constant 0 : index
      %c0_105 = arith.constant 0 : index
      %176 = vector.load %arg8[%c0_103, %c0_104, %c0_105] : memref<4x8x1xf32, #tpu.memory_space<vmem>>, vector<1x8x1xf32>
      %177 = vector.shape_cast %176 : vector<1x8x1xf32> to vector<8x1xf32>
      %178 = tpu.reciprocal %177 {approx = true} : vector<8x1xf32> -> vector<8x1xf32>
      %179 = vector.broadcast %178 : vector<8x1xf32> to vector<8x32xf32>
      %180 = arith.mulf %175, %179 : vector<8x32xf32>
      %c1_106 = arith.constant 1 : index
      %c0_107 = arith.constant 0 : index
      %c0_108 = arith.constant 0 : index
      %181 = vector.load %arg9[%c1_106, %c0_107, %c0_108] : memref<4x8x32xf32, #tpu.memory_space<vmem>>, vector<1x8x32xf32>
      %182 = vector.shape_cast %181 : vector<1x8x32xf32> to vector<8x32xf32>
      %c1_109 = arith.constant 1 : index
      %c0_110 = arith.constant 0 : index
      %c0_111 = arith.constant 0 : index
      %183 = vector.load %arg8[%c1_109, %c0_110, %c0_111] : memref<4x8x1xf32, #tpu.memory_space<vmem>>, vector<1x8x1xf32>
      %184 = vector.shape_cast %183 : vector<1x8x1xf32> to vector<8x1xf32>
      %185 = tpu.reciprocal %184 {approx = true} : vector<8x1xf32> -> vector<8x1xf32>
      %186 = vector.broadcast %185 : vector<8x1xf32> to vector<8x32xf32>
      %187 = arith.mulf %182, %186 : vector<8x32xf32>
      %c2_112 = arith.constant 2 : index
      %c0_113 = arith.constant 0 : index
      %c0_114 = arith.constant 0 : index
      %188 = vector.load %arg9[%c2_112, %c0_113, %c0_114] : memref<4x8x32xf32, #tpu.memory_space<vmem>>, vector<1x8x32xf32>
      %189 = vector.shape_cast %188 : vector<1x8x32xf32> to vector<8x32xf32>
      %c2_115 = arith.constant 2 : index
      %c0_116 = arith.constant 0 : index
      %c0_117 = arith.constant 0 : index
      %190 = vector.load %arg8[%c2_115, %c0_116, %c0_117] : memref<4x8x1xf32, #tpu.memory_space<vmem>>, vector<1x8x1xf32>
      %191 = vector.shape_cast %190 : vector<1x8x1xf32> to vector<8x1xf32>
      %192 = tpu.reciprocal %191 {approx = true} : vector<8x1xf32> -> vector<8x1xf32>
      %193 = vector.broadcast %192 : vector<8x1xf32> to vector<8x32xf32>
      %194 = arith.mulf %189, %193 : vector<8x32xf32>
      %c3_118 = arith.constant 3 : index
      %c0_119 = arith.constant 0 : index
      %c0_120 = arith.constant 0 : index
      %195 = vector.load %arg9[%c3_118, %c0_119, %c0_120] : memref<4x8x32xf32, #tpu.memory_space<vmem>>, vector<1x8x32xf32>
      %196 = vector.shape_cast %195 : vector<1x8x32xf32> to vector<8x32xf32>
      %c3_121 = arith.constant 3 : index
      %c0_122 = arith.constant 0 : index
      %c0_123 = arith.constant 0 : index
      %197 = vector.load %arg8[%c3_121, %c0_122, %c0_123] : memref<4x8x1xf32, #tpu.memory_space<vmem>>, vector<1x8x1xf32>
      %198 = vector.shape_cast %197 : vector<1x8x1xf32> to vector<8x1xf32>
      %199 = tpu.reciprocal %198 {approx = true} : vector<8x1xf32> -> vector<8x1xf32>
      %200 = vector.broadcast %199 : vector<8x1xf32> to vector<8x32xf32>
      %201 = arith.mulf %196, %200 : vector<8x32xf32>
      %202 = tpu.concatenate %180, %187, %194, %201 in 1 : vector<8x32xf32>, vector<8x32xf32>, vector<8x32xf32>, vector<8x32xf32> -> vector<8x128xf32>
      %203 = arith.truncf %202 : vector<8x128xf32> to vector<8x128xbf16>
      %c0_124 = arith.constant 0 : index
      %c0_125 = arith.constant 0 : index
      %c0_126 = arith.constant 0 : index
      %204 = vector.load %arg6[%c0_124, %c0_125, %c0_126] : memref<1x8x128xbf16, #tpu.memory_space<vmem>>, vector<1x8x128xbf16>
      %205 = vector.shape_cast %204 : vector<1x8x128xbf16> to vector<8x128xbf16>
      %206 = vector.shape_cast %203 : vector<8x128xbf16> to vector<1x8x128xbf16>
      tpu.vector_store %arg6[%c0_124, %c0_125, %c0_126], %206 {strides = array<i32>} : memref<1x8x128xbf16, #tpu.memory_space<vmem>>, vector<1x8x128xbf16>,
    } else {
    }
    return
  }
  func.func @transform_0(%arg0: i32, %arg1: i32, %arg2: i32) -> (i32, i32, i32) {
    %c0_i32 = arith.constant 0 : i32
    %0 = arith.addi %c0_i32, %arg1 : i32
    %c0_i32_0 = arith.constant 0 : i32
    %c0_i32_1 = arith.constant 0 : i32
    return %arg0, %c0_i32_0, %0 : i32, i32, i32
  }
  func.func @transform_1(%arg0: i32, %arg1: i32, %arg2: i32) -> (i32, i32, i32) {
    %c1_i32 = arith.constant 1 : i32
    %0 = arith.addi %c1_i32, %arg1 : i32
    %c0_i32 = arith.constant 0 : i32
    return %arg0, %arg2, %0 : i32, i32, i32
  }
  func.func @transform_2(%arg0: i32, %arg1: i32, %arg2: i32) -> (i32, i32, i32) {
    %c2_i32 = arith.constant 2 : i32
    %0 = arith.addi %c2_i32, %arg1 : i32
    %c0_i32 = arith.constant 0 : i32
    return %arg0, %arg2, %0 : i32, i32, i32
  }
  func.func @transform_3(%arg0: i32, %arg1: i32, %arg2: i32) -> (i32, i32, i32) {
    %c0_i32 = arith.constant 0 : i32
    %c0_i32_0 = arith.constant 0 : i32
    return %arg0, %c0_i32, %arg1 : i32, i32, i32
  }
}

module attributes {stable_mosaic.version = 11 : i64} {
  func.func @_linear_add_ln_kernel(%arg0: i32, %arg1: i32, %arg2: memref<16x128xbf16, #tpu.memory_space<vmem>>, %arg3: memref<128x128xbf16, #tpu.memory_space<vmem>>, %arg4: memref<1x128xf32, #tpu.memory_space<vmem>>, %arg5: memref<16x128xbf16, #tpu.memory_space<vmem>>, %arg6: memref<1x128xf32, #tpu.memory_space<vmem>>, %arg7: memref<1x128xf32, #tpu.memory_space<vmem>>, %arg8: memref<16x128xbf16, #tpu.memory_space<vmem>>, %arg9: memref<16x128xf32, #tpu.memory_space<vmem>>) attributes {dimension_semantics = [#tpu.dimension_semantics<parallel>, #tpu.dimension_semantics<arbitrary>], iteration_bounds = array<i64: 1, 1>, scalar_prefetch = 0 : i64, scratch_operands = 1 : i64, tpu.core_type = #tpu.core_type<tc>, window_params = [{transform_indices = @transform_0, window_bounds = array<i64: 16, 128>}, {transform_indices = @transform_1, window_bounds = array<i64: 128, 128>}, {pipeline_mode = #tpu.pipeline_mode<synchronous>, transform_indices = @transform_2, window_bounds = array<i64: 1, 128>}, {transform_indices = @transform_3, window_bounds = array<i64: 16, 128>}, {pipeline_mode = #tpu.pipeline_mode<synchronous>, transform_indices = @transform_4, window_bounds = array<i64: 1, 128>}, {pipeline_mode = #tpu.pipeline_mode<synchronous>, transform_indices = @transform_5, window_bounds = array<i64: 1, 128>}, {transform_indices = @transform_6, window_bounds = array<i64: 16, 128>}]} {
    %c0_i32 = arith.constant 0 : i32
    %0 = arith.cmpi eq, %arg1, %c0_i32 : i32
    %1 = arith.extui %0 : i1 to i32
    %c0_i32_0 = arith.constant 0 : i32
    %2 = arith.cmpi ne, %1, %c0_i32_0 : i32
    scf.if %2 {
      %cst_10 = arith.constant 0.000000e+00 : f32
      %12 = vector.broadcast %cst_10 : f32 to vector<16x128xf32>
      %c0_11 = arith.constant 0 : index
      %c0_12 = arith.constant 0 : index
      %13 = vector.load %arg9[%c0_11, %c0_12] : memref<16x128xf32, #tpu.memory_space<vmem>>, vector<16x128xf32>
      tpu.vector_store %arg9[%c0_11, %c0_12], %12 {strides = array<i32>} : memref<16x128xf32, #tpu.memory_space<vmem>>, vector<16x128xf32>,
    } else {
    }
    %c0 = arith.constant 0 : index
    %c0_1 = arith.constant 0 : index
    %3 = vector.load %arg9[%c0, %c0_1] : memref<16x128xf32, #tpu.memory_space<vmem>>, vector<16x128xf32>
    %c0_2 = arith.constant 0 : index
    %c0_3 = arith.constant 0 : index
    %4 = vector.load %arg2[%c0_2, %c0_3] : memref<16x128xbf16, #tpu.memory_space<vmem>>, vector<16x128xbf16>
    %c0_4 = arith.constant 0 : index
    %c0_5 = arith.constant 0 : index
    %5 = vector.load %arg3[%c0_4, %c0_5] : memref<128x128xbf16, #tpu.memory_space<vmem>>, vector<128x128xbf16>
    %cst = arith.constant dense<0.000000e+00> : vector<16x128xf32>
    %6 = tpu.matmul %4, %5, %cst {dimension_numbers = #tpu.dot_dimension_numbers<[1], [0], [0], [1], [0, 0, 1, 1], [], []>} : vector<16x128xbf16>, vector<128x128xbf16>, vector<16x128xf32> -> vector<16x128xf32>
    %7 = arith.addf %3, %6 : vector<16x128xf32>
    %c0_6 = arith.constant 0 : index
    %c0_7 = arith.constant 0 : index
    %8 = vector.load %arg9[%c0_6, %c0_7] : memref<16x128xf32, #tpu.memory_space<vmem>>, vector<16x128xf32>
    tpu.vector_store %arg9[%c0_6, %c0_7], %7 {strides = array<i32>} : memref<16x128xf32, #tpu.memory_space<vmem>>, vector<16x128xf32>,
    %c0_i32_8 = arith.constant 0 : i32
    %9 = arith.cmpi eq, %arg1, %c0_i32_8 : i32
    %10 = arith.extui %9 : i1 to i32
    %c0_i32_9 = arith.constant 0 : i32
    %11 = arith.cmpi ne, %10, %c0_i32_9 : i32
    scf.if %11 {
      %c0_10 = arith.constant 0 : index
      %c0_11 = arith.constant 0 : index
      %12 = vector.load %arg9[%c0_10, %c0_11] : memref<16x128xf32, #tpu.memory_space<vmem>>, vector<16x128xf32>
      %c0_12 = arith.constant 0 : index
      %c0_13 = arith.constant 0 : index
      %13 = vector.load %arg4[%c0_12, %c0_13] : memref<1x128xf32, #tpu.memory_space<vmem>>, vector<1x128xf32>
      %14 = vector.broadcast %13 : vector<1x128xf32> to vector<16x128xf32>
      %15 = arith.addf %12, %14 : vector<16x128xf32>
      %c0_14 = arith.constant 0 : index
      %c0_15 = arith.constant 0 : index
      %16 = vector.load %arg5[%c0_14, %c0_15] : memref<16x128xbf16, #tpu.memory_space<vmem>>, vector<16x128xbf16>
      %17 = arith.extf %16 : vector<16x128xbf16> to vector<16x128xf32>
      %18 = arith.addf %15, %17 : vector<16x128xf32>
      %cst_16 = arith.constant dense<0.000000e+00> : vector<16xf32>
      %19 = vector.multi_reduction <add>, %18, %cst_16 [1] : vector<16x128xf32> to vector<16xf32>
      %20 = vector.shape_cast %19 : vector<16xf32> to vector<16x1xf32>
      %cst_17 = arith.constant 1.280000e+02 : f32
      %21 = vector.broadcast %cst_17 : f32 to vector<16x1xf32>
      %22 = arith.divf %20, %21 : vector<16x1xf32>
      %23 = vector.broadcast %22 : vector<16x1xf32> to vector<16x128xf32>
      %24 = arith.subf %18, %23 : vector<16x128xf32>
      %25 = arith.mulf %24, %24 : vector<16x128xf32>
      %cst_18 = arith.constant dense<0.000000e+00> : vector<16xf32>
      %26 = vector.multi_reduction <add>, %25, %cst_18 [1] : vector<16x128xf32> to vector<16xf32>
      %27 = vector.shape_cast %26 : vector<16xf32> to vector<16x1xf32>
      %cst_19 = arith.constant 1.280000e+02 : f32
      %28 = vector.broadcast %cst_19 : f32 to vector<16x1xf32>
      %29 = arith.divf %27, %28 : vector<16x1xf32>
      %cst_20 = arith.constant 9.99999974E-6 : f32
      %30 = vector.broadcast %cst_20 : f32 to vector<16x1xf32>
      %31 = arith.addf %29, %30 : vector<16x1xf32>
      %32 = math.rsqrt %31 : vector<16x1xf32>
      %33 = vector.broadcast %32 : vector<16x1xf32> to vector<16x128xf32>
      %34 = arith.mulf %24, %33 : vector<16x128xf32>
      %c0_21 = arith.constant 0 : index
      %c0_22 = arith.constant 0 : index
      %35 = vector.load %arg6[%c0_21, %c0_22] : memref<1x128xf32, #tpu.memory_space<vmem>>, vector<1x128xf32>
      %36 = vector.broadcast %35 : vector<1x128xf32> to vector<16x128xf32>
      %37 = arith.mulf %34, %36 : vector<16x128xf32>
      %c0_23 = arith.constant 0 : index
      %c0_24 = arith.constant 0 : index
      %38 = vector.load %arg7[%c0_23, %c0_24] : memref<1x128xf32, #tpu.memory_space<vmem>>, vector<1x128xf32>
      %39 = vector.broadcast %38 : vector<1x128xf32> to vector<16x128xf32>
      %40 = arith.addf %37, %39 : vector<16x128xf32>
      %41 = arith.truncf %40 : vector<16x128xf32> to vector<16x128xbf16>
      %c0_25 = arith.constant 0 : index
      %c0_26 = arith.constant 0 : index
      %42 = vector.load %arg8[%c0_25, %c0_26] : memref<16x128xbf16, #tpu.memory_space<vmem>>, vector<16x128xbf16>
      tpu.vector_store %arg8[%c0_25, %c0_26], %41 {strides = array<i32>} : memref<16x128xbf16, #tpu.memory_space<vmem>>, vector<16x128xbf16>,
    } else {
    }
    return
  }
  func.func @transform_0(%arg0: i32, %arg1: i32) -> (i32, i32) {
    %c0_i32 = arith.constant 0 : i32
    return %arg0, %arg1 : i32, i32
  }
  func.func @transform_1(%arg0: i32, %arg1: i32) -> (i32, i32) {
    %c0_i32 = arith.constant 0 : i32
    %c0_i32_0 = arith.constant 0 : i32
    return %arg1, %c0_i32 : i32, i32
  }
  func.func @transform_2(%arg0: i32, %arg1: i32) -> (i32, i32) {
    %c0_i32 = arith.constant 0 : i32
    %c0_i32_0 = arith.constant 0 : i32
    %c0_i32_1 = arith.constant 0 : i32
    return %c0_i32, %c0_i32_0 : i32, i32
  }
  func.func @transform_3(%arg0: i32, %arg1: i32) -> (i32, i32) {
    %c0_i32 = arith.constant 0 : i32
    %c0_i32_0 = arith.constant 0 : i32
    return %arg0, %c0_i32 : i32, i32
  }
  func.func @transform_4(%arg0: i32, %arg1: i32) -> (i32, i32) {
    %c0_i32 = arith.constant 0 : i32
    %c0_i32_0 = arith.constant 0 : i32
    %c0_i32_1 = arith.constant 0 : i32
    return %c0_i32, %c0_i32_0 : i32, i32
  }
  func.func @transform_5(%arg0: i32, %arg1: i32) -> (i32, i32) {
    %c0_i32 = arith.constant 0 : i32
    %c0_i32_0 = arith.constant 0 : i32
    %c0_i32_1 = arith.constant 0 : i32
    return %c0_i32, %c0_i32_0 : i32, i32
  }
  func.func @transform_6(%arg0: i32, %arg1: i32) -> (i32, i32) {
    %c0_i32 = arith.constant 0 : i32
    %c0_i32_0 = arith.constant 0 : i32
    return %arg0, %c0_i32 : i32, i32
  }
}

module attributes {stable_mosaic.version = 11 : i64} {
  func.func @_mha_kernel(%arg0: i32, %arg1: i32, %arg2: i32, %arg3: memref<1x8x128xbf16, #tpu.memory_space<vmem>>, %arg4: memref<1x10x128xbf16, #tpu.memory_space<vmem>>, %arg5: memref<1x10x128xbf16, #tpu.memory_space<vmem>>, %arg6: memref<1x8x128xbf16, #tpu.memory_space<vmem>>, %arg7: memref<4x8x1xf32, #tpu.memory_space<vmem>>, %arg8: memref<4x8x1xf32, #tpu.memory_space<vmem>>, %arg9: memref<4x8x32xf32, #tpu.memory_space<vmem>>) attributes {dimension_semantics = [#tpu.dimension_semantics<parallel>, #tpu.dimension_semantics<parallel>, #tpu.dimension_semantics<arbitrary>], iteration_bounds = array<i64: 2, 1, 1>, scalar_prefetch = 0 : i64, scratch_operands = 3 : i64, tpu.core_type = #tpu.core_type<tc>, window_params = [{transform_indices = @transform_0, window_bounds = array<i64: 1, 8, 128>}, {transform_indices = @transform_1, window_bounds = array<i64: 1, 10, 128>}, {transform_indices = @transform_2, window_bounds = array<i64: 1, 10, 128>}, {transform_indices = @transform_3, window_bounds = array<i64: 1, 8, 128>}]} {
    %c0 = arith.constant 0 : index
    %c0_0 = arith.constant 0 : index
    %c0_1 = arith.constant 0 : index
    %0 = vector.load %arg3[%c0, %c0_0, %c0_1] : memref<1x8x128xbf16, #tpu.memory_space<vmem>>, vector<1x8x128xbf16>
    %1 = vector.shape_cast %0 : vector<1x8x128xbf16> to vector<8x128xbf16>
    %c0_2 = arith.constant 0 : index
    %c0_3 = arith.constant 0 : index
    %c0_4 = arith.constant 0 : index
    %2 = vector.load %arg4[%c0_2, %c0_3, %c0_4] : memref<1x10x128xbf16, #tpu.memory_space<vmem>>, vector<1x10x128xbf16>
    %3 = vector.shape_cast %2 : vector<1x10x128xbf16> to vector<10x128xbf16>
    %c0_5 = arith.constant 0 : index
    %c0_6 = arith.constant 0 : index
    %c0_7 = arith.constant 0 : index
    %4 = vector.load %arg5[%c0_5, %c0_6, %c0_7] : memref<1x10x128xbf16, #tpu.memory_space<vmem>>, vector<1x10x128xbf16>
    %5 = vector.shape_cast %4 : vector<1x10x128xbf16> to vector<10x128xbf16>
    %c0_i32 = arith.constant 0 : i32
    %6 = arith.cmpi eq, %arg2, %c0_i32 : i32
    %7 = arith.extui %6 : i1 to i32
    %c0_i32_8 = arith.constant 0 : i32
    %8 = arith.cmpi ne, %7, %c0_i32_8 : i32
    scf.if %8 {
      %cst_96 = arith.constant 0xFF800000 : f32
      %160 = vector.broadcast %cst_96 : f32 to vector<4x8x1xf32>
      %c0_97 = arith.constant 0 : index
      %c0_98 = arith.constant 0 : index
      %c0_99 = arith.constant 0 : index
      %161 = vector.load %arg7[%c0_97, %c0_98, %c0_99] : memref<4x8x1xf32, #tpu.memory_space<vmem>>, vector<4x8x1xf32>
      tpu.vector_store %arg7[%c0_97, %c0_98, %c0_99], %160 {strides = array<i32>} : memref<4x8x1xf32, #tpu.memory_space<vmem>>, vector<4x8x1xf32>,
      %cst_100 = arith.constant 0.000000e+00 : f32
      %162 = vector.broadcast %cst_100 : f32 to vector<4x8x1xf32>
      %c0_101 = arith.constant 0 : index
      %c0_102 = arith.constant 0 : index
      %c0_103 = arith.constant 0 : index
      %163 = vector.load %arg8[%c0_101, %c0_102, %c0_103] : memref<4x8x1xf32, #tpu.memory_space<vmem>>, vector<4x8x1xf32>
      tpu.vector_store %arg8[%c0_101, %c0_102, %c0_103], %162 {strides = array<i32>} : memref<4x8x1xf32, #tpu.memory_space<vmem>>, vector<4x8x1xf32>,
      %cst_104 = arith.constant 0.000000e+00 : f32
      %164 = vector.broadcast %cst_104 : f32 to vector<4x8x32xf32>
      %c0_105 = arith.constant 0 : index
      %c0_106 = arith.constant 0 : index
      %c0_107 = arith.constant 0 : index
      %165 = vector.load %arg9[%c0_105, %c0_106, %c0_107] : memref<4x8x32xf32, #tpu.memory_space<vmem>>, vector<4x8x32xf32>
      tpu.vector_store %arg9[%c0_105, %c0_106, %c0_107], %164 {strides = array<i32>} : memref<4x8x32xf32, #tpu.memory_space<vmem>>, vector<4x8x32xf32>,
    } else {
    }
    %9 = arith.extf %1 : vector<8x128xbf16> to vector<8x128xf32>
    %cst = arith.constant 0.176776692 : f32
    %10 = vector.broadcast %cst : f32 to vector<8x128xf32>
    %11 = arith.mulf %9, %10 : vector<8x128xf32>
    %12 = arith.truncf %11 : vector<8x128xf32> to vector<8x128xbf16>
    %13 = vector.extract_strided_slice %12 {offsets = [0, 0], sizes = [8, 32], strides = [1, 1]} : vector<8x128xbf16> to vector<8x32xbf16>
    %14 = vector.extract_strided_slice %3 {offsets = [0, 0], sizes = [10, 32], strides = [1, 1]} : vector<10x128xbf16> to vector<10x32xbf16>
    %cst_9 = arith.constant dense<0.000000e+00> : vector<8x10xf32>
    %15 = tpu.matmul %13, %14, %cst_9 {dimension_numbers = #tpu.dot_dimension_numbers<[1], [1], [0], [0], [0, 0, 1, 0], [], []>} : vector<8x32xbf16>, vector<10x32xbf16>, vector<8x10xf32> -> vector<8x10xf32>
    %c0_10 = arith.constant 0 : index
    %c0_11 = arith.constant 0 : index
    %c0_12 = arith.constant 0 : index
    %16 = vector.load %arg7[%c0_10, %c0_11, %c0_12] : memref<4x8x1xf32, #tpu.memory_space<vmem>>, vector<1x8x1xf32>
    %17 = vector.shape_cast %16 : vector<1x8x1xf32> to vector<8x1xf32>
    %cst_13 = arith.constant dense<0xFF800000> : vector<8xf32>
    %18 = vector.multi_reduction <maximumf>, %15, %cst_13 [1] : vector<8x10xf32> to vector<8xf32>
    %19 = vector.shape_cast %18 : vector<8xf32> to vector<8x1xf32>
    %20 = arith.maximumf %17, %19 : vector<8x1xf32>
    %21 = arith.subf %17, %20 : vector<8x1xf32>
    %22 = math.exp %21 : vector<8x1xf32>
    %23 = vector.broadcast %20 : vector<8x1xf32> to vector<8x10xf32>
    %24 = arith.subf %15, %23 : vector<8x10xf32>
    %25 = math.exp %24 : vector<8x10xf32>
    %c0_14 = arith.constant 0 : index
    %c0_15 = arith.constant 0 : index
    %c0_16 = arith.constant 0 : index
    %26 = vector.load %arg8[%c0_14, %c0_15, %c0_16] : memref<4x8x1xf32, #tpu.memory_space<vmem>>, vector<1x8x1xf32>
    %27 = vector.shape_cast %26 : vector<1x8x1xf32> to vector<8x1xf32>
    %28 = arith.mulf %22, %27 : vector<8x1xf32>
    %cst_17 = arith.constant dense<0.000000e+00> : vector<8xf32>
    %29 = vector.multi_reduction <add>, %25, %cst_17 [1] : vector<8x10xf32> to vector<8xf32>
    %30 = vector.shape_cast %29 : vector<8xf32> to vector<8x1xf32>
    %31 = arith.addf %28, %30 : vector<8x1xf32>
    %c0_18 = arith.constant 0 : index
    %c0_19 = arith.constant 0 : index
    %c0_20 = arith.constant 0 : index
    %32 = vector.load %arg8[%c0_18, %c0_19, %c0_20] : memref<4x8x1xf32, #tpu.memory_space<vmem>>, vector<1x8x1xf32>
    %33 = vector.shape_cast %32 : vector<1x8x1xf32> to vector<8x1xf32>
    %34 = vector.shape_cast %31 : vector<8x1xf32> to vector<1x8x1xf32>
    tpu.vector_store %arg8[%c0_18, %c0_19, %c0_20], %34 {strides = array<i32>} : memref<4x8x1xf32, #tpu.memory_space<vmem>>, vector<1x8x1xf32>,
    %c0_21 = arith.constant 0 : index
    %c0_22 = arith.constant 0 : index
    %c0_23 = arith.constant 0 : index
    %35 = vector.load %arg9[%c0_21, %c0_22, %c0_23] : memref<4x8x32xf32, #tpu.memory_space<vmem>>, vector<1x8x32xf32>
    %36 = vector.shape_cast %35 : vector<1x8x32xf32> to vector<8x32xf32>
    %37 = vector.broadcast %22 : vector<8x1xf32> to vector<8x32xf32>
    %38 = arith.mulf %37, %36 : vector<8x32xf32>
    %39 = arith.truncf %25 : vector<8x10xf32> to vector<8x10xbf16>
    %40 = vector.extract_strided_slice %5 {offsets = [0, 0], sizes = [10, 32], strides = [1, 1]} : vector<10x128xbf16> to vector<10x32xbf16>
    %cst_24 = arith.constant dense<0.000000e+00> : vector<8x32xf32>
    %41 = tpu.matmul %39, %40, %cst_24 {dimension_numbers = #tpu.dot_dimension_numbers<[1], [0], [0], [1], [0, 0, 1, 1], [], []>} : vector<8x10xbf16>, vector<10x32xbf16>, vector<8x32xf32> -> vector<8x32xf32>
    %42 = arith.addf %38, %41 : vector<8x32xf32>
    %c0_25 = arith.constant 0 : index
    %c0_26 = arith.constant 0 : index
    %c0_27 = arith.constant 0 : index
    %43 = vector.load %arg9[%c0_25, %c0_26, %c0_27] : memref<4x8x32xf32, #tpu.memory_space<vmem>>, vector<1x8x32xf32>
    %44 = vector.shape_cast %43 : vector<1x8x32xf32> to vector<8x32xf32>
    %45 = vector.shape_cast %42 : vector<8x32xf32> to vector<1x8x32xf32>
    tpu.vector_store %arg9[%c0_25, %c0_26, %c0_27], %45 {strides = array<i32>} : memref<4x8x32xf32, #tpu.memory_space<vmem>>, vector<1x8x32xf32>,
    %c0_28 = arith.constant 0 : index
    %c0_29 = arith.constant 0 : index
    %c0_30 = arith.constant 0 : index
    %46 = vector.load %arg7[%c0_28, %c0_29, %c0_30] : memref<4x8x1xf32, #tpu.memory_space<vmem>>, vector<1x8x1xf32>
    %47 = vector.shape_cast %46 : vector<1x8x1xf32> to vector<8x1xf32>
    %48 = vector.shape_cast %20 : vector<8x1xf32> to vector<1x8x1xf32>
    tpu.vector_store %arg7[%c0_28, %c0_29, %c0_30], %48 {strides = array<i32>} : memref<4x8x1xf32, #tpu.memory_space<vmem>>, vector<1x8x1xf32>,
    %49 = vector.extract_strided_slice %12 {offsets = [0, 32], sizes = [8, 32], strides = [1, 1]} : vector<8x128xbf16> to vector<8x32xbf16>
    %50 = vector.extract_strided_slice %3 {offsets = [0, 32], sizes = [10, 32], strides = [1, 1]} : vector<10x128xbf16> to vector<10x32xbf16>
    %cst_31 = arith.constant dense<0.000000e+00> : vector<8x10xf32>
    %51 = tpu.matmul %49, %50, %cst_31 {dimension_numbers = #tpu.dot_dimension_numbers<[1], [1], [0], [0], [0, 0, 1, 0], [], []>} : vector<8x32xbf16>, vector<10x32xbf16>, vector<8x10xf32> -> vector<8x10xf32>
    %c1 = arith.constant 1 : index
    %c0_32 = arith.constant 0 : index
    %c0_33 = arith.constant 0 : index
    %52 = vector.load %arg7[%c1, %c0_32, %c0_33] : memref<4x8x1xf32, #tpu.memory_space<vmem>>, vector<1x8x1xf32>
    %53 = vector.shape_cast %52 : vector<1x8x1xf32> to vector<8x1xf32>
    %cst_34 = arith.constant dense<0xFF800000> : vector<8xf32>
    %54 = vector.multi_reduction <maximumf>, %51, %cst_34 [1] : vector<8x10xf32> to vector<8xf32>
    %55 = vector.shape_cast %54 : vector<8xf32> to vector<8x1xf32>
    %56 = arith.maximumf %53, %55 : vector<8x1xf32>
    %57 = arith.subf %53, %56 : vector<8x1xf32>
    %58 = math.exp %57 : vector<8x1xf32>
    %59 = vector.broadcast %56 : vector<8x1xf32> to vector<8x10xf32>
    %60 = arith.subf %51, %59 : vector<8x10xf32>
    %61 = math.exp %60 : vector<8x10xf32>
    %c1_35 = arith.constant 1 : index
    %c0_36 = arith.constant 0 : index
    %c0_37 = arith.constant 0 : index
    %62 = vector.load %arg8[%c1_35, %c0_36, %c0_37] : memref<4x8x1xf32, #tpu.memory_space<vmem>>, vector<1x8x1xf32>
    %63 = vector.shape_cast %62 : vector<1x8x1xf32> to vector<8x1xf32>
    %64 = arith.mulf %58, %63 : vector<8x1xf32>
    %cst_38 = arith.constant dense<0.000000e+00> : vector<8xf32>
    %65 = vector.multi_reduction <add>, %61, %cst_38 [1] : vector<8x10xf32> to vector<8xf32>
    %66 = vector.shape_cast %65 : vector<8xf32> to vector<8x1xf32>
    %67 = arith.addf %64, %66 : vector<8x1xf32>
    %c1_39 = arith.constant 1 : index
    %c0_40 = arith.constant 0 : index
    %c0_41 = arith.constant 0 : index
    %68 = vector.load %arg8[%c1_39, %c0_40, %c0_41] : memref<4x8x1xf32, #tpu.memory_space<vmem>>, vector<1x8x1xf32>
    %69 = vector.shape_cast %68 : vector<1x8x1xf32> to vector<8x1xf32>
    %70 = vector.shape_cast %67 : vector<8x1xf32> to vector<1x8x1xf32>
    tpu.vector_store %arg8[%c1_39, %c0_40, %c0_41], %70 {strides = array<i32>} : memref<4x8x1xf32, #tpu.memory_space<vmem>>, vector<1x8x1xf32>,
    %c1_42 = arith.constant 1 : index
    %c0_43 = arith.constant 0 : index
    %c0_44 = arith.constant 0 : index
    %71 = vector.load %arg9[%c1_42, %c0_43, %c0_44] : memref<4x8x32xf32, #tpu.memory_space<vmem>>, vector<1x8x32xf32>
    %72 = vector.shape_cast %71 : vector<1x8x32xf32> to vector<8x32xf32>
    %73 = vector.broadcast %58 : vector<8x1xf32> to vector<8x32xf32>
    %74 = arith.mulf %73, %72 : vector<8x32xf32>
    %75 = arith.truncf %61 : vector<8x10xf32> to vector<8x10xbf16>
    %76 = vector.extract_strided_slice %5 {offsets = [0, 32], sizes = [10, 32], strides = [1, 1]} : vector<10x128xbf16> to vector<10x32xbf16>
    %cst_45 = arith.constant dense<0.000000e+00> : vector<8x32xf32>
    %77 = tpu.matmul %75, %76, %cst_45 {dimension_numbers = #tpu.dot_dimension_numbers<[1], [0], [0], [1], [0, 0, 1, 1], [], []>} : vector<8x10xbf16>, vector<10x32xbf16>, vector<8x32xf32> -> vector<8x32xf32>
    %78 = arith.addf %74, %77 : vector<8x32xf32>
    %c1_46 = arith.constant 1 : index
    %c0_47 = arith.constant 0 : index
    %c0_48 = arith.constant 0 : index
    %79 = vector.load %arg9[%c1_46, %c0_47, %c0_48] : memref<4x8x32xf32, #tpu.memory_space<vmem>>, vector<1x8x32xf32>
    %80 = vector.shape_cast %79 : vector<1x8x32xf32> to vector<8x32xf32>
    %81 = vector.shape_cast %78 : vector<8x32xf32> to vector<1x8x32xf32>
    tpu.vector_store %arg9[%c1_46, %c0_47, %c0_48], %81 {strides = array<i32>} : memref<4x8x32xf32, #tpu.memory_space<vmem>>, vector<1x8x32xf32>,
    %c1_49 = arith.constant 1 : index
    %c0_50 = arith.constant 0 : index
    %c0_51 = arith.constant 0 : index
    %82 = vector.load %arg7[%c1_49, %c0_50, %c0_51] : memref<4x8x1xf32, #tpu.memory_space<vmem>>, vector<1x8x1xf32>
    %83 = vector.shape_cast %82 : vector<1x8x1xf32> to vector<8x1xf32>
    %84 = vector.shape_cast %56 : vector<8x1xf32> to vector<1x8x1xf32>
    tpu.vector_store %arg7[%c1_49, %c0_50, %c0_51], %84 {strides = array<i32>} : memref<4x8x1xf32, #tpu.memory_space<vmem>>, vector<1x8x1xf32>,
    %85 = vector.extract_strided_slice %12 {offsets = [0, 64], sizes = [8, 32], strides = [1, 1]} : vector<8x128xbf16> to vector<8x32xbf16>
    %86 = vector.extract_strided_slice %3 {offsets = [0, 64], sizes = [10, 32], strides = [1, 1]} : vector<10x128xbf16> to vector<10x32xbf16>
    %cst_52 = arith.constant dense<0.000000e+00> : vector<8x10xf32>
    %87 = tpu.matmul %85, %86, %cst_52 {dimension_numbers = #tpu.dot_dimension_numbers<[1], [1], [0], [0], [0, 0, 1, 0], [], []>} : vector<8x32xbf16>, vector<10x32xbf16>, vector<8x10xf32> -> vector<8x10xf32>
    %c2 = arith.constant 2 : index
    %c0_53 = arith.constant 0 : index
    %c0_54 = arith.constant 0 : index
    %88 = vector.load %arg7[%c2, %c0_53, %c0_54] : memref<4x8x1xf32, #tpu.memory_space<vmem>>, vector<1x8x1xf32>
    %89 = vector.shape_cast %88 : vector<1x8x1xf32> to vector<8x1xf32>
    %cst_55 = arith.constant dense<0xFF800000> : vector<8xf32>
    %90 = vector.multi_reduction <maximumf>, %87, %cst_55 [1] : vector<8x10xf32> to vector<8xf32>
    %91 = vector.shape_cast %90 : vector<8xf32> to vector<8x1xf32>
    %92 = arith.maximumf %89, %91 : vector<8x1xf32>
    %93 = arith.subf %89, %92 : vector<8x1xf32>
    %94 = math.exp %93 : vector<8x1xf32>
    %95 = vector.broadcast %92 : vector<8x1xf32> to vector<8x10xf32>
    %96 = arith.subf %87, %95 : vector<8x10xf32>
    %97 = math.exp %96 : vector<8x10xf32>
    %c2_56 = arith.constant 2 : index
    %c0_57 = arith.constant 0 : index
    %c0_58 = arith.constant 0 : index
    %98 = vector.load %arg8[%c2_56, %c0_57, %c0_58] : memref<4x8x1xf32, #tpu.memory_space<vmem>>, vector<1x8x1xf32>
    %99 = vector.shape_cast %98 : vector<1x8x1xf32> to vector<8x1xf32>
    %100 = arith.mulf %94, %99 : vector<8x1xf32>
    %cst_59 = arith.constant dense<0.000000e+00> : vector<8xf32>
    %101 = vector.multi_reduction <add>, %97, %cst_59 [1] : vector<8x10xf32> to vector<8xf32>
    %102 = vector.shape_cast %101 : vector<8xf32> to vector<8x1xf32>
    %103 = arith.addf %100, %102 : vector<8x1xf32>
    %c2_60 = arith.constant 2 : index
    %c0_61 = arith.constant 0 : index
    %c0_62 = arith.constant 0 : index
    %104 = vector.load %arg8[%c2_60, %c0_61, %c0_62] : memref<4x8x1xf32, #tpu.memory_space<vmem>>, vector<1x8x1xf32>
    %105 = vector.shape_cast %104 : vector<1x8x1xf32> to vector<8x1xf32>
    %106 = vector.shape_cast %103 : vector<8x1xf32> to vector<1x8x1xf32>
    tpu.vector_store %arg8[%c2_60, %c0_61, %c0_62], %106 {strides = array<i32>} : memref<4x8x1xf32, #tpu.memory_space<vmem>>, vector<1x8x1xf32>,
    %c2_63 = arith.constant 2 : index
    %c0_64 = arith.constant 0 : index
    %c0_65 = arith.constant 0 : index
    %107 = vector.load %arg9[%c2_63, %c0_64, %c0_65] : memref<4x8x32xf32, #tpu.memory_space<vmem>>, vector<1x8x32xf32>
    %108 = vector.shape_cast %107 : vector<1x8x32xf32> to vector<8x32xf32>
    %109 = vector.broadcast %94 : vector<8x1xf32> to vector<8x32xf32>
    %110 = arith.mulf %109, %108 : vector<8x32xf32>
    %111 = arith.truncf %97 : vector<8x10xf32> to vector<8x10xbf16>
    %112 = vector.extract_strided_slice %5 {offsets = [0, 64], sizes = [10, 32], strides = [1, 1]} : vector<10x128xbf16> to vector<10x32xbf16>
    %cst_66 = arith.constant dense<0.000000e+00> : vector<8x32xf32>
    %113 = tpu.matmul %111, %112, %cst_66 {dimension_numbers = #tpu.dot_dimension_numbers<[1], [0], [0], [1], [0, 0, 1, 1], [], []>} : vector<8x10xbf16>, vector<10x32xbf16>, vector<8x32xf32> -> vector<8x32xf32>
    %114 = arith.addf %110, %113 : vector<8x32xf32>
    %c2_67 = arith.constant 2 : index
    %c0_68 = arith.constant 0 : index
    %c0_69 = arith.constant 0 : index
    %115 = vector.load %arg9[%c2_67, %c0_68, %c0_69] : memref<4x8x32xf32, #tpu.memory_space<vmem>>, vector<1x8x32xf32>
    %116 = vector.shape_cast %115 : vector<1x8x32xf32> to vector<8x32xf32>
    %117 = vector.shape_cast %114 : vector<8x32xf32> to vector<1x8x32xf32>
    tpu.vector_store %arg9[%c2_67, %c0_68, %c0_69], %117 {strides = array<i32>} : memref<4x8x32xf32, #tpu.memory_space<vmem>>, vector<1x8x32xf32>,
    %c2_70 = arith.constant 2 : index
    %c0_71 = arith.constant 0 : index
    %c0_72 = arith.constant 0 : index
    %118 = vector.load %arg7[%c2_70, %c0_71, %c0_72] : memref<4x8x1xf32, #tpu.memory_space<vmem>>, vector<1x8x1xf32>
    %119 = vector.shape_cast %118 : vector<1x8x1xf32> to vector<8x1xf32>
    %120 = vector.shape_cast %92 : vector<8x1xf32> to vector<1x8x1xf32>
    tpu.vector_store %arg7[%c2_70, %c0_71, %c0_72], %120 {strides = array<i32>} : memref<4x8x1xf32, #tpu.memory_space<vmem>>, vector<1x8x1xf32>,
    %121 = vector.extract_strided_slice %12 {offsets = [0, 96], sizes = [8, 32], strides = [1, 1]} : vector<8x128xbf16> to vector<8x32xbf16>
    %122 = vector.extract_strided_slice %3 {offsets = [0, 96], sizes = [10, 32], strides = [1, 1]} : vector<10x128xbf16> to vector<10x32xbf16>
    %cst_73 = arith.constant dense<0.000000e+00> : vector<8x10xf32>
    %123 = tpu.matmul %121, %122, %cst_73 {dimension_numbers = #tpu.dot_dimension_numbers<[1], [1], [0], [0], [0, 0, 1, 0], [], []>} : vector<8x32xbf16>, vector<10x32xbf16>, vector<8x10xf32> -> vector<8x10xf32>
    %c3 = arith.constant 3 : index
    %c0_74 = arith.constant 0 : index
    %c0_75 = arith.constant 0 : index
    %124 = vector.load %arg7[%c3, %c0_74, %c0_75] : memref<4x8x1xf32, #tpu.memory_space<vmem>>, vector<1x8x1xf32>
    %125 = vector.shape_cast %124 : vector<1x8x1xf32> to vector<8x1xf32>
    %cst_76 = arith.constant dense<0xFF800000> : vector<8xf32>
    %126 = vector.multi_reduction <maximumf>, %123, %cst_76 [1] : vector<8x10xf32> to vector<8xf32>
    %127 = vector.shape_cast %126 : vector<8xf32> to vector<8x1xf32>
    %128 = arith.maximumf %125, %127 : vector<8x1xf32>
    %129 = arith.subf %125, %128 : vector<8x1xf32>
    %130 = math.exp %129 : vector<8x1xf32>
    %131 = vector.broadcast %128 : vector<8x1xf32> to vector<8x10xf32>
    %132 = arith.subf %123, %131 : vector<8x10xf32>
    %133 = math.exp %132 : vector<8x10xf32>
    %c3_77 = arith.constant 3 : index
    %c0_78 = arith.constant 0 : index
    %c0_79 = arith.constant 0 : index
    %134 = vector.load %arg8[%c3_77, %c0_78, %c0_79] : memref<4x8x1xf32, #tpu.memory_space<vmem>>, vector<1x8x1xf32>
    %135 = vector.shape_cast %134 : vector<1x8x1xf32> to vector<8x1xf32>
    %136 = arith.mulf %130, %135 : vector<8x1xf32>
    %cst_80 = arith.constant dense<0.000000e+00> : vector<8xf32>
    %137 = vector.multi_reduction <add>, %133, %cst_80 [1] : vector<8x10xf32> to vector<8xf32>
    %138 = vector.shape_cast %137 : vector<8xf32> to vector<8x1xf32>
    %139 = arith.addf %136, %138 : vector<8x1xf32>
    %c3_81 = arith.constant 3 : index
    %c0_82 = arith.constant 0 : index
    %c0_83 = arith.constant 0 : index
    %140 = vector.load %arg8[%c3_81, %c0_82, %c0_83] : memref<4x8x1xf32, #tpu.memory_space<vmem>>, vector<1x8x1xf32>
    %141 = vector.shape_cast %140 : vector<1x8x1xf32> to vector<8x1xf32>
    %142 = vector.shape_cast %139 : vector<8x1xf32> to vector<1x8x1xf32>
    tpu.vector_store %arg8[%c3_81, %c0_82, %c0_83], %142 {strides = array<i32>} : memref<4x8x1xf32, #tpu.memory_space<vmem>>, vector<1x8x1xf32>,
    %c3_84 = arith.constant 3 : index
    %c0_85 = arith.constant 0 : index
    %c0_86 = arith.constant 0 : index
    %143 = vector.load %arg9[%c3_84, %c0_85, %c0_86] : memref<4x8x32xf32, #tpu.memory_space<vmem>>, vector<1x8x32xf32>
    %144 = vector.shape_cast %143 : vector<1x8x32xf32> to vector<8x32xf32>
    %145 = vector.broadcast %130 : vector<8x1xf32> to vector<8x32xf32>
    %146 = arith.mulf %145, %144 : vector<8x32xf32>
    %147 = arith.truncf %133 : vector<8x10xf32> to vector<8x10xbf16>
    %148 = vector.extract_strided_slice %5 {offsets = [0, 96], sizes = [10, 32], strides = [1, 1]} : vector<10x128xbf16> to vector<10x32xbf16>
    %cst_87 = arith.constant dense<0.000000e+00> : vector<8x32xf32>
    %149 = tpu.matmul %147, %148, %cst_87 {dimension_numbers = #tpu.dot_dimension_numbers<[1], [0], [0], [1], [0, 0, 1, 1], [], []>} : vector<8x10xbf16>, vector<10x32xbf16>, vector<8x32xf32> -> vector<8x32xf32>
    %150 = arith.addf %146, %149 : vector<8x32xf32>
    %c3_88 = arith.constant 3 : index
    %c0_89 = arith.constant 0 : index
    %c0_90 = arith.constant 0 : index
    %151 = vector.load %arg9[%c3_88, %c0_89, %c0_90] : memref<4x8x32xf32, #tpu.memory_space<vmem>>, vector<1x8x32xf32>
    %152 = vector.shape_cast %151 : vector<1x8x32xf32> to vector<8x32xf32>
    %153 = vector.shape_cast %150 : vector<8x32xf32> to vector<1x8x32xf32>
    tpu.vector_store %arg9[%c3_88, %c0_89, %c0_90], %153 {strides = array<i32>} : memref<4x8x32xf32, #tpu.memory_space<vmem>>, vector<1x8x32xf32>,
    %c3_91 = arith.constant 3 : index
    %c0_92 = arith.constant 0 : index
    %c0_93 = arith.constant 0 : index
    %154 = vector.load %arg7[%c3_91, %c0_92, %c0_93] : memref<4x8x1xf32, #tpu.memory_space<vmem>>, vector<1x8x1xf32>
    %155 = vector.shape_cast %154 : vector<1x8x1xf32> to vector<8x1xf32>
    %156 = vector.shape_cast %128 : vector<8x1xf32> to vector<1x8x1xf32>
    tpu.vector_store %arg7[%c3_91, %c0_92, %c0_93], %156 {strides = array<i32>} : memref<4x8x1xf32, #tpu.memory_space<vmem>>, vector<1x8x1xf32>,
    %c0_i32_94 = arith.constant 0 : i32
    %157 = arith.cmpi eq, %arg2, %c0_i32_94 : i32
    %158 = arith.extui %157 : i1 to i32
    %c0_i32_95 = arith.constant 0 : i32
    %159 = arith.cmpi ne, %158, %c0_i32_95 : i32
    scf.if %159 {
      %c0_96 = arith.constant 0 : index
      %c0_97 = arith.constant 0 : index
      %c0_98 = arith.constant 0 : index
      %160 = vector.load %arg9[%c0_96, %c0_97, %c0_98] : memref<4x8x32xf32, #tpu.memory_space<vmem>>, vector<1x8x32xf32>
      %161 = vector.shape_cast %160 : vector<1x8x32xf32> to vector<8x32xf32>
      %c0_99 = arith.constant 0 : index
      %c0_100 = arith.constant 0 : index
      %c0_101 = arith.constant 0 : index
      %162 = vector.load %arg8[%c0_99, %c0_100, %c0_101] : memref<4x8x1xf32, #tpu.memory_space<vmem>>, vector<1x8x1xf32>
      %163 = vector.shape_cast %162 : vector<1x8x1xf32> to vector<8x1xf32>
      %164 = tpu.reciprocal %163 {approx = true} : vector<8x1xf32> -> vector<8x1xf32>
      %165 = vector.broadcast %164 : vector<8x1xf32> to vector<8x32xf32>
      %166 = arith.mulf %161, %165 : vector<8x32xf32>
      %c1_102 = arith.constant 1 : index
      %c0_103 = arith.constant 0 : index
      %c0_104 = arith.constant 0 : index
      %167 = vector.load %arg9[%c1_102, %c0_103, %c0_104] : memref<4x8x32xf32, #tpu.memory_space<vmem>>, vector<1x8x32xf32>
      %168 = vector.shape_cast %167 : vector<1x8x32xf32> to vector<8x32xf32>
      %c1_105 = arith.constant 1 : index
      %c0_106 = arith.constant 0 : index
      %c0_107 = arith.constant 0 : index
      %169 = vector.load %arg8[%c1_105, %c0_106, %c0_107] : memref<4x8x1xf32, #tpu.memory_space<vmem>>, vector<1x8x1xf32>
      %170 = vector.shape_cast %169 : vector<1x8x1xf32> to vector<8x1xf32>
      %171 = tpu.reciprocal %170 {approx = true} : vector<8x1xf32> -> vector<8x1xf32>
      %172 = vector.broadcast %171 : vector<8x1xf32> to vector<8x32xf32>
      %173 = arith.mulf %168, %172 : vector<8x32xf32>
      %c2_108 = arith.constant 2 : index
      %c0_109 = arith.constant 0 : index
      %c0_110 = arith.constant 0 : index
      %174 = vector.load %arg9[%c2_108, %c0_109, %c0_110] : memref<4x8x32xf32, #tpu.memory_space<vmem>>, vector<1x8x32xf32>
      %175 = vector.shape_cast %174 : vector<1x8x32xf32> to vector<8x32xf32>
      %c2_111 = arith.constant 2 : index
      %c0_112 = arith.constant 0 : index
      %c0_113 = arith.constant 0 : index
      %176 = vector.load %arg8[%c2_111, %c0_112, %c0_113] : memref<4x8x1xf32, #tpu.memory_space<vmem>>, vector<1x8x1xf32>
      %177 = vector.shape_cast %176 : vector<1x8x1xf32> to vector<8x1xf32>
      %178 = tpu.reciprocal %177 {approx = true} : vector<8x1xf32> -> vector<8x1xf32>
      %179 = vector.broadcast %178 : vector<8x1xf32> to vector<8x32xf32>
      %180 = arith.mulf %175, %179 : vector<8x32xf32>
      %c3_114 = arith.constant 3 : index
      %c0_115 = arith.constant 0 : index
      %c0_116 = arith.constant 0 : index
      %181 = vector.load %arg9[%c3_114, %c0_115, %c0_116] : memref<4x8x32xf32, #tpu.memory_space<vmem>>, vector<1x8x32xf32>
      %182 = vector.shape_cast %181 : vector<1x8x32xf32> to vector<8x32xf32>
      %c3_117 = arith.constant 3 : index
      %c0_118 = arith.constant 0 : index
      %c0_119 = arith.constant 0 : index
      %183 = vector.load %arg8[%c3_117, %c0_118, %c0_119] : memref<4x8x1xf32, #tpu.memory_space<vmem>>, vector<1x8x1xf32>
      %184 = vector.shape_cast %183 : vector<1x8x1xf32> to vector<8x1xf32>
      %185 = tpu.reciprocal %184 {approx = true} : vector<8x1xf32> -> vector<8x1xf32>
      %186 = vector.broadcast %185 : vector<8x1xf32> to vector<8x32xf32>
      %187 = arith.mulf %182, %186 : vector<8x32xf32>
      %188 = tpu.concatenate %166, %173, %180, %187 in 1 : vector<8x32xf32>, vector<8x32xf32>, vector<8x32xf32>, vector<8x32xf32> -> vector<8x128xf32>
      %189 = arith.truncf %188 : vector<8x128xf32> to vector<8x128xbf16>
      %c0_120 = arith.constant 0 : index
      %c0_121 = arith.constant 0 : index
      %c0_122 = arith.constant 0 : index
      %190 = vector.load %arg6[%c0_120, %c0_121, %c0_122] : memref<1x8x128xbf16, #tpu.memory_space<vmem>>, vector<1x8x128xbf16>
      %191 = vector.shape_cast %190 : vector<1x8x128xbf16> to vector<8x128xbf16>
      %192 = vector.shape_cast %189 : vector<8x128xbf16> to vector<1x8x128xbf16>
      tpu.vector_store %arg6[%c0_120, %c0_121, %c0_122], %192 {strides = array<i32>} : memref<1x8x128xbf16, #tpu.memory_space<vmem>>, vector<1x8x128xbf16>,
    } else {
    }
    return
  }
  func.func @transform_0(%arg0: i32, %arg1: i32, %arg2: i32) -> (i32, i32, i32) {
    %c0_i32 = arith.constant 0 : i32
    %0 = arith.addi %c0_i32, %arg1 : i32
    %c0_i32_0 = arith.constant 0 : i32
    %c0_i32_1 = arith.constant 0 : i32
    return %arg0, %c0_i32_0, %0 : i32, i32, i32
  }
  func.func @transform_1(%arg0: i32, %arg1: i32, %arg2: i32) -> (i32, i32, i32) {
    %c0_i32 = arith.constant 0 : i32
    %0 = arith.addi %c0_i32, %arg1 : i32
    %c0_i32_0 = arith.constant 0 : i32
    return %arg0, %arg2, %0 : i32, i32, i32
  }
  func.func @transform_2(%arg0: i32, %arg1: i32, %arg2: i32) -> (i32, i32, i32) {
    %c1_i32 = arith.constant 1 : i32
    %0 = arith.addi %c1_i32, %arg1 : i32
    %c0_i32 = arith.constant 0 : i32
    return %arg0, %arg2, %0 : i32, i32, i32
  }
  func.func @transform_3(%arg0: i32, %arg1: i32, %arg2: i32) -> (i32, i32, i32) {
    %c0_i32 = arith.constant 0 : i32
    %c0_i32_0 = arith.constant 0 : i32
    return %arg0, %c0_i32, %arg1 : i32, i32, i32
  }
}

module attributes {stable_mosaic.version = 11 : i64} {
  func.func @_linear_kernel(%arg0: i32, %arg1: i32, %arg2: i32, %arg3: memref<16x128xbf16, #tpu.memory_space<vmem>>, %arg4: memref<128x128xbf16, #tpu.memory_space<vmem>>, %arg5: memref<1x128xf32, #tpu.memory_space<vmem>>, %arg6: memref<16x128xbf16, #tpu.memory_space<vmem>>, %arg7: memref<16x128xf32, #tpu.memory_space<vmem>>) attributes {dimension_semantics = [#tpu.dimension_semantics<parallel>, #tpu.dimension_semantics<parallel>, #tpu.dimension_semantics<arbitrary>], iteration_bounds = array<i64: 1, 1, 1>, scalar_prefetch = 0 : i64, scratch_operands = 1 : i64, tpu.core_type = #tpu.core_type<tc>, window_params = [{transform_indices = @transform_0, window_bounds = array<i64: 16, 128>}, {transform_indices = @transform_1, window_bounds = array<i64: 128, 128>}, {transform_indices = @transform_2, window_bounds = array<i64: 1, 128>}, {transform_indices = @transform_3, window_bounds = array<i64: 16, 128>}]} {
    %c0_i32 = arith.constant 0 : i32
    %0 = arith.cmpi eq, %arg2, %c0_i32 : i32
    %1 = arith.extui %0 : i1 to i32
    %c0_i32_0 = arith.constant 0 : i32
    %2 = arith.cmpi ne, %1, %c0_i32_0 : i32
    scf.if %2 {
      %cst_10 = arith.constant 0.000000e+00 : f32
      %12 = vector.broadcast %cst_10 : f32 to vector<16x128xf32>
      %c0_11 = arith.constant 0 : index
      %c0_12 = arith.constant 0 : index
      %13 = vector.load %arg7[%c0_11, %c0_12] : memref<16x128xf32, #tpu.memory_space<vmem>>, vector<16x128xf32>
      tpu.vector_store %arg7[%c0_11, %c0_12], %12 {strides = array<i32>} : memref<16x128xf32, #tpu.memory_space<vmem>>, vector<16x128xf32>,
    } else {
    }
    %c0 = arith.constant 0 : index
    %c0_1 = arith.constant 0 : index
    %3 = vector.load %arg7[%c0, %c0_1] : memref<16x128xf32, #tpu.memory_space<vmem>>, vector<16x128xf32>
    %c0_2 = arith.constant 0 : index
    %c0_3 = arith.constant 0 : index
    %4 = vector.load %arg3[%c0_2, %c0_3] : memref<16x128xbf16, #tpu.memory_space<vmem>>, vector<16x128xbf16>
    %c0_4 = arith.constant 0 : index
    %c0_5 = arith.constant 0 : index
    %5 = vector.load %arg4[%c0_4, %c0_5] : memref<128x128xbf16, #tpu.memory_space<vmem>>, vector<128x128xbf16>
    %cst = arith.constant dense<0.000000e+00> : vector<16x128xf32>
    %6 = tpu.matmul %4, %5, %cst {dimension_numbers = #tpu.dot_dimension_numbers<[1], [0], [0], [1], [0, 0, 1, 1], [], []>} : vector<16x128xbf16>, vector<128x128xbf16>, vector<16x128xf32> -> vector<16x128xf32>
    %7 = arith.addf %3, %6 : vector<16x128xf32>
    %c0_6 = arith.constant 0 : index
    %c0_7 = arith.constant 0 : index
    %8 = vector.load %arg7[%c0_6, %c0_7] : memref<16x128xf32, #tpu.memory_space<vmem>>, vector<16x128xf32>
    tpu.vector_store %arg7[%c0_6, %c0_7], %7 {strides = array<i32>} : memref<16x128xf32, #tpu.memory_space<vmem>>, vector<16x128xf32>,
    %c0_i32_8 = arith.constant 0 : i32
    %9 = arith.cmpi eq, %arg2, %c0_i32_8 : i32
    %10 = arith.extui %9 : i1 to i32
    %c0_i32_9 = arith.constant 0 : i32
    %11 = arith.cmpi ne, %10, %c0_i32_9 : i32
    scf.if %11 {
      %c0_10 = arith.constant 0 : index
      %c0_11 = arith.constant 0 : index
      %12 = vector.load %arg7[%c0_10, %c0_11] : memref<16x128xf32, #tpu.memory_space<vmem>>, vector<16x128xf32>
      %c0_12 = arith.constant 0 : index
      %c0_13 = arith.constant 0 : index
      %13 = vector.load %arg5[%c0_12, %c0_13] : memref<1x128xf32, #tpu.memory_space<vmem>>, vector<1x128xf32>
      %14 = vector.broadcast %13 : vector<1x128xf32> to vector<16x128xf32>
      %15 = arith.addf %12, %14 : vector<16x128xf32>
      %16 = arith.truncf %15 : vector<16x128xf32> to vector<16x128xbf16>
      %c0_14 = arith.constant 0 : index
      %c0_15 = arith.constant 0 : index
      %17 = vector.load %arg6[%c0_14, %c0_15] : memref<16x128xbf16, #tpu.memory_space<vmem>>, vector<16x128xbf16>
      tpu.vector_store %arg6[%c0_14, %c0_15], %16 {strides = array<i32>} : memref<16x128xbf16, #tpu.memory_space<vmem>>, vector<16x128xbf16>,
    } else {
    }
    return
  }
  func.func @transform_0(%arg0: i32, %arg1: i32, %arg2: i32) -> (i32, i32) {
    %c0_i32 = arith.constant 0 : i32
    return %arg0, %arg2 : i32, i32
  }
  func.func @transform_1(%arg0: i32, %arg1: i32, %arg2: i32) -> (i32, i32) {
    %c0_i32 = arith.constant 0 : i32
    return %arg2, %arg1 : i32, i32
  }
  func.func @transform_2(%arg0: i32, %arg1: i32, %arg2: i32) -> (i32, i32) {
    %c0_i32 = arith.constant 0 : i32
    %c0_i32_0 = arith.constant 0 : i32
    return %c0_i32, %arg1 : i32, i32
  }
  func.func @transform_3(%arg0: i32, %arg1: i32, %arg2: i32) -> (i32, i32) {
    %c0_i32 = arith.constant 0 : i32
    return %arg0, %arg1 : i32, i32
  }
}

module attributes {stable_mosaic.version = 11 : i64} {
  func.func @_linear_kernel(%arg0: i32, %arg1: i32, %arg2: i32, %arg3: memref<16x128xbf16, #tpu.memory_space<vmem>>, %arg4: memref<128x128xbf16, #tpu.memory_space<vmem>>, %arg5: memref<1x128xf32, #tpu.memory_space<vmem>>, %arg6: memref<16x128xbf16, #tpu.memory_space<vmem>>, %arg7: memref<16x128xf32, #tpu.memory_space<vmem>>) attributes {dimension_semantics = [#tpu.dimension_semantics<parallel>, #tpu.dimension_semantics<parallel>, #tpu.dimension_semantics<arbitrary>], iteration_bounds = array<i64: 1, 1, 1>, scalar_prefetch = 0 : i64, scratch_operands = 1 : i64, tpu.core_type = #tpu.core_type<tc>, window_params = [{transform_indices = @transform_0, window_bounds = array<i64: 16, 128>}, {transform_indices = @transform_1, window_bounds = array<i64: 128, 128>}, {transform_indices = @transform_2, window_bounds = array<i64: 1, 128>}, {transform_indices = @transform_3, window_bounds = array<i64: 16, 128>}]} {
    %c0_i32 = arith.constant 0 : i32
    %0 = arith.cmpi eq, %arg2, %c0_i32 : i32
    %1 = arith.extui %0 : i1 to i32
    %c0_i32_0 = arith.constant 0 : i32
    %2 = arith.cmpi ne, %1, %c0_i32_0 : i32
    scf.if %2 {
      %cst_10 = arith.constant 0.000000e+00 : f32
      %12 = vector.broadcast %cst_10 : f32 to vector<16x128xf32>
      %c0_11 = arith.constant 0 : index
      %c0_12 = arith.constant 0 : index
      %13 = vector.load %arg7[%c0_11, %c0_12] : memref<16x128xf32, #tpu.memory_space<vmem>>, vector<16x128xf32>
      tpu.vector_store %arg7[%c0_11, %c0_12], %12 {strides = array<i32>} : memref<16x128xf32, #tpu.memory_space<vmem>>, vector<16x128xf32>,
    } else {
    }
    %c0 = arith.constant 0 : index
    %c0_1 = arith.constant 0 : index
    %3 = vector.load %arg7[%c0, %c0_1] : memref<16x128xf32, #tpu.memory_space<vmem>>, vector<16x128xf32>
    %c0_2 = arith.constant 0 : index
    %c0_3 = arith.constant 0 : index
    %4 = vector.load %arg3[%c0_2, %c0_3] : memref<16x128xbf16, #tpu.memory_space<vmem>>, vector<16x128xbf16>
    %c0_4 = arith.constant 0 : index
    %c0_5 = arith.constant 0 : index
    %5 = vector.load %arg4[%c0_4, %c0_5] : memref<128x128xbf16, #tpu.memory_space<vmem>>, vector<128x128xbf16>
    %cst = arith.constant dense<0.000000e+00> : vector<16x128xf32>
    %6 = tpu.matmul %4, %5, %cst {dimension_numbers = #tpu.dot_dimension_numbers<[1], [0], [0], [1], [0, 0, 1, 1], [], []>} : vector<16x128xbf16>, vector<128x128xbf16>, vector<16x128xf32> -> vector<16x128xf32>
    %7 = arith.addf %3, %6 : vector<16x128xf32>
    %c0_6 = arith.constant 0 : index
    %c0_7 = arith.constant 0 : index
    %8 = vector.load %arg7[%c0_6, %c0_7] : memref<16x128xf32, #tpu.memory_space<vmem>>, vector<16x128xf32>
    tpu.vector_store %arg7[%c0_6, %c0_7], %7 {strides = array<i32>} : memref<16x128xf32, #tpu.memory_space<vmem>>, vector<16x128xf32>,
    %c0_i32_8 = arith.constant 0 : i32
    %9 = arith.cmpi eq, %arg2, %c0_i32_8 : i32
    %10 = arith.extui %9 : i1 to i32
    %c0_i32_9 = arith.constant 0 : i32
    %11 = arith.cmpi ne, %10, %c0_i32_9 : i32
    scf.if %11 {
      %c0_10 = arith.constant 0 : index
      %c0_11 = arith.constant 0 : index
      %12 = vector.load %arg7[%c0_10, %c0_11] : memref<16x128xf32, #tpu.memory_space<vmem>>, vector<16x128xf32>
      %c0_12 = arith.constant 0 : index
      %c0_13 = arith.constant 0 : index
      %13 = vector.load %arg5[%c0_12, %c0_13] : memref<1x128xf32, #tpu.memory_space<vmem>>, vector<1x128xf32>
      %14 = vector.broadcast %13 : vector<1x128xf32> to vector<16x128xf32>
      %15 = arith.addf %12, %14 : vector<16x128xf32>
      %cst_14 = arith.constant 0.000000e+00 : f32
      %16 = vector.broadcast %cst_14 : f32 to vector<16x128xf32>
      %17 = arith.maximumf %15, %16 : vector<16x128xf32>
      %18 = arith.truncf %17 : vector<16x128xf32> to vector<16x128xbf16>
      %c0_15 = arith.constant 0 : index
      %c0_16 = arith.constant 0 : index
      %19 = vector.load %arg6[%c0_15, %c0_16] : memref<16x128xbf16, #tpu.memory_space<vmem>>, vector<16x128xbf16>
      tpu.vector_store %arg6[%c0_15, %c0_16], %18 {strides = array<i32>} : memref<16x128xbf16, #tpu.memory_space<vmem>>, vector<16x128xbf16>,
    } else {
    }
    return
  }
  func.func @transform_0(%arg0: i32, %arg1: i32, %arg2: i32) -> (i32, i32) {
    %c0_i32 = arith.constant 0 : i32
    return %arg0, %arg2 : i32, i32
  }
  func.func @transform_1(%arg0: i32, %arg1: i32, %arg2: i32) -> (i32, i32) {
    %c0_i32 = arith.constant 0 : i32
    return %arg2, %arg1 : i32, i32
  }
  func.func @transform_2(%arg0: i32, %arg1: i32, %arg2: i32) -> (i32, i32) {
    %c0_i32 = arith.constant 0 : i32
    %c0_i32_0 = arith.constant 0 : i32
    return %c0_i32, %arg1 : i32, i32
  }
  func.func @transform_3(%arg0: i32, %arg1: i32, %arg2: i32) -> (i32, i32) {
    %c0_i32 = arith.constant 0 : i32
    return %arg0, %arg1 : i32, i32
  }
}

module attributes {stable_mosaic.version = 11 : i64} {
  func.func @_ln_kernel(%arg0: i32, %arg1: memref<16x128xbf16, #tpu.memory_space<vmem>>, %arg2: memref<1x128xf32, #tpu.memory_space<vmem>>, %arg3: memref<1x128xf32, #tpu.memory_space<vmem>>, %arg4: memref<16x128xbf16, #tpu.memory_space<vmem>>) attributes {dimension_semantics = [#tpu.dimension_semantics<parallel>], iteration_bounds = array<i64: 1>, scalar_prefetch = 0 : i64, scratch_operands = 0 : i64, tpu.core_type = #tpu.core_type<tc>, window_params = [{transform_indices = @transform_0, window_bounds = array<i64: 16, 128>}, {pipeline_mode = #tpu.pipeline_mode<synchronous>, transform_indices = @transform_1, window_bounds = array<i64: 1, 128>}, {pipeline_mode = #tpu.pipeline_mode<synchronous>, transform_indices = @transform_2, window_bounds = array<i64: 1, 128>}, {transform_indices = @transform_3, window_bounds = array<i64: 16, 128>}]} {
    %c0 = arith.constant 0 : index
    %c0_0 = arith.constant 0 : index
    %0 = vector.load %arg1[%c0, %c0_0] : memref<16x128xbf16, #tpu.memory_space<vmem>>, vector<16x128xbf16>
    %1 = arith.extf %0 : vector<16x128xbf16> to vector<16x128xf32>
    %cst = arith.constant dense<0.000000e+00> : vector<16xf32>
    %2 = vector.multi_reduction <add>, %1, %cst [1] : vector<16x128xf32> to vector<16xf32>
    %3 = vector.shape_cast %2 : vector<16xf32> to vector<16x1xf32>
    %cst_1 = arith.constant 1.280000e+02 : f32
    %4 = vector.broadcast %cst_1 : f32 to vector<16x1xf32>
    %5 = arith.divf %3, %4 : vector<16x1xf32>
    %6 = vector.broadcast %5 : vector<16x1xf32> to vector<16x128xf32>
    %7 = arith.subf %1, %6 : vector<16x128xf32>
    %8 = arith.mulf %7, %7 : vector<16x128xf32>
    %cst_2 = arith.constant dense<0.000000e+00> : vector<16xf32>
    %9 = vector.multi_reduction <add>, %8, %cst_2 [1] : vector<16x128xf32> to vector<16xf32>
    %10 = vector.shape_cast %9 : vector<16xf32> to vector<16x1xf32>
    %cst_3 = arith.constant 1.280000e+02 : f32
    %11 = vector.broadcast %cst_3 : f32 to vector<16x1xf32>
    %12 = arith.divf %10, %11 : vector<16x1xf32>
    %cst_4 = arith.constant 9.99999974E-6 : f32
    %13 = vector.broadcast %cst_4 : f32 to vector<16x1xf32>
    %14 = arith.addf %12, %13 : vector<16x1xf32>
    %15 = math.rsqrt %14 : vector<16x1xf32>
    %16 = vector.broadcast %15 : vector<16x1xf32> to vector<16x128xf32>
    %17 = arith.mulf %7, %16 : vector<16x128xf32>
    %c0_5 = arith.constant 0 : index
    %c0_6 = arith.constant 0 : index
    %18 = vector.load %arg2[%c0_5, %c0_6] : memref<1x128xf32, #tpu.memory_space<vmem>>, vector<1x128xf32>
    %19 = vector.broadcast %18 : vector<1x128xf32> to vector<16x128xf32>
    %20 = arith.mulf %17, %19 : vector<16x128xf32>
    %c0_7 = arith.constant 0 : index
    %c0_8 = arith.constant 0 : index
    %21 = vector.load %arg3[%c0_7, %c0_8] : memref<1x128xf32, #tpu.memory_space<vmem>>, vector<1x128xf32>
    %22 = vector.broadcast %21 : vector<1x128xf32> to vector<16x128xf32>
    %23 = arith.addf %20, %22 : vector<16x128xf32>
    %24 = arith.truncf %23 : vector<16x128xf32> to vector<16x128xbf16>
    %c0_9 = arith.constant 0 : index
    %c0_10 = arith.constant 0 : index
    %25 = vector.load %arg4[%c0_9, %c0_10] : memref<16x128xbf16, #tpu.memory_space<vmem>>, vector<16x128xbf16>
    tpu.vector_store %arg4[%c0_9, %c0_10], %24 {strides = array<i32>} : memref<16x128xbf16, #tpu.memory_space<vmem>>, vector<16x128xbf16>,
    return
  }
  func.func @transform_0(%arg0: i32) -> (i32, i32) {
    %c0_i32 = arith.constant 0 : i32
    %c0_i32_0 = arith.constant 0 : i32
    return %arg0, %c0_i32 : i32, i32
  }
  func.func @transform_1(%arg0: i32) -> (i32, i32) {
    %c0_i32 = arith.constant 0 : i32
    %c0_i32_0 = arith.constant 0 : i32
    %c0_i32_1 = arith.constant 0 : i32
    return %c0_i32, %c0_i32_0 : i32, i32
  }
  func.func @transform_2(%arg0: i32) -> (i32, i32) {
    %c0_i32 = arith.constant 0 : i32
    %c0_i32_0 = arith.constant 0 : i32
    %c0_i32_1 = arith.constant 0 : i32
    return %c0_i32, %c0_i32_0 : i32, i32
  }
  func.func @transform_3(%arg0: i32) -> (i32, i32) {
    %c0_i32 = arith.constant 0 : i32
    %c0_i32_0 = arith.constant 0 : i32
    return %arg0, %c0_i32 : i32, i32
  }
}

module attributes {stable_mosaic.version = 11 : i64} {
  func.func @_linear_kernel(%arg0: i32, %arg1: i32, %arg2: i32, %arg3: memref<16x128xbf16, #tpu.memory_space<vmem>>, %arg4: memref<128x128xbf16, #tpu.memory_space<vmem>>, %arg5: memref<1x128xf32, #tpu.memory_space<vmem>>, %arg6: memref<16x128xf32, #tpu.memory_space<vmem>>, %arg7: memref<16x128xf32, #tpu.memory_space<vmem>>) attributes {dimension_semantics = [#tpu.dimension_semantics<parallel>, #tpu.dimension_semantics<parallel>, #tpu.dimension_semantics<arbitrary>], iteration_bounds = array<i64: 1, 1, 1>, scalar_prefetch = 0 : i64, scratch_operands = 1 : i64, tpu.core_type = #tpu.core_type<tc>, window_params = [{transform_indices = @transform_0, window_bounds = array<i64: 16, 128>}, {transform_indices = @transform_1, window_bounds = array<i64: 128, 128>}, {transform_indices = @transform_2, window_bounds = array<i64: 1, 128>}, {transform_indices = @transform_3, window_bounds = array<i64: 16, 128>}]} {
    %c0_i32 = arith.constant 0 : i32
    %0 = arith.cmpi eq, %arg2, %c0_i32 : i32
    %1 = arith.extui %0 : i1 to i32
    %c0_i32_0 = arith.constant 0 : i32
    %2 = arith.cmpi ne, %1, %c0_i32_0 : i32
    scf.if %2 {
      %cst_10 = arith.constant 0.000000e+00 : f32
      %12 = vector.broadcast %cst_10 : f32 to vector<16x128xf32>
      %c0_11 = arith.constant 0 : index
      %c0_12 = arith.constant 0 : index
      %13 = vector.load %arg7[%c0_11, %c0_12] : memref<16x128xf32, #tpu.memory_space<vmem>>, vector<16x128xf32>
      tpu.vector_store %arg7[%c0_11, %c0_12], %12 {strides = array<i32>} : memref<16x128xf32, #tpu.memory_space<vmem>>, vector<16x128xf32>,
    } else {
    }
    %c0 = arith.constant 0 : index
    %c0_1 = arith.constant 0 : index
    %3 = vector.load %arg7[%c0, %c0_1] : memref<16x128xf32, #tpu.memory_space<vmem>>, vector<16x128xf32>
    %c0_2 = arith.constant 0 : index
    %c0_3 = arith.constant 0 : index
    %4 = vector.load %arg3[%c0_2, %c0_3] : memref<16x128xbf16, #tpu.memory_space<vmem>>, vector<16x128xbf16>
    %c0_4 = arith.constant 0 : index
    %c0_5 = arith.constant 0 : index
    %5 = vector.load %arg4[%c0_4, %c0_5] : memref<128x128xbf16, #tpu.memory_space<vmem>>, vector<128x128xbf16>
    %cst = arith.constant dense<0.000000e+00> : vector<16x128xf32>
    %6 = tpu.matmul %4, %5, %cst {dimension_numbers = #tpu.dot_dimension_numbers<[1], [0], [0], [1], [0, 0, 1, 1], [], []>} : vector<16x128xbf16>, vector<128x128xbf16>, vector<16x128xf32> -> vector<16x128xf32>
    %7 = arith.addf %3, %6 : vector<16x128xf32>
    %c0_6 = arith.constant 0 : index
    %c0_7 = arith.constant 0 : index
    %8 = vector.load %arg7[%c0_6, %c0_7] : memref<16x128xf32, #tpu.memory_space<vmem>>, vector<16x128xf32>
    tpu.vector_store %arg7[%c0_6, %c0_7], %7 {strides = array<i32>} : memref<16x128xf32, #tpu.memory_space<vmem>>, vector<16x128xf32>,
    %c0_i32_8 = arith.constant 0 : i32
    %9 = arith.cmpi eq, %arg2, %c0_i32_8 : i32
    %10 = arith.extui %9 : i1 to i32
    %c0_i32_9 = arith.constant 0 : i32
    %11 = arith.cmpi ne, %10, %c0_i32_9 : i32
    scf.if %11 {
      %c0_10 = arith.constant 0 : index
      %c0_11 = arith.constant 0 : index
      %12 = vector.load %arg7[%c0_10, %c0_11] : memref<16x128xf32, #tpu.memory_space<vmem>>, vector<16x128xf32>
      %c0_12 = arith.constant 0 : index
      %c0_13 = arith.constant 0 : index
      %13 = vector.load %arg5[%c0_12, %c0_13] : memref<1x128xf32, #tpu.memory_space<vmem>>, vector<1x128xf32>
      %14 = vector.broadcast %13 : vector<1x128xf32> to vector<16x128xf32>
      %15 = arith.addf %12, %14 : vector<16x128xf32>
      %c0_14 = arith.constant 0 : index
      %c0_15 = arith.constant 0 : index
      %16 = vector.load %arg6[%c0_14, %c0_15] : memref<16x128xf32, #tpu.memory_space<vmem>>, vector<16x128xf32>
      tpu.vector_store %arg6[%c0_14, %c0_15], %15 {strides = array<i32>} : memref<16x128xf32, #tpu.memory_space<vmem>>, vector<16x128xf32>,
    } else {
    }
    return
  }
  func.func @transform_0(%arg0: i32, %arg1: i32, %arg2: i32) -> (i32, i32) {
    %c0_i32 = arith.constant 0 : i32
    return %arg0, %arg2 : i32, i32
  }
  func.func @transform_1(%arg0: i32, %arg1: i32, %arg2: i32) -> (i32, i32) {
    %c0_i32 = arith.constant 0 : i32
    return %arg2, %arg1 : i32, i32
  }
  func.func @transform_2(%arg0: i32, %arg1: i32, %arg2: i32) -> (i32, i32) {
    %c0_i32 = arith.constant 0 : i32
    %c0_i32_0 = arith.constant 0 : i32
    return %c0_i32, %arg1 : i32, i32
  }
  func.func @transform_3(%arg0: i32, %arg1: i32, %arg2: i32) -> (i32, i32) {
    %c0_i32 = arith.constant 0 : i32
    return %arg0, %arg1 : i32, i32
  }
}

</mosaic_0001>

<llo_original>
// kernel: transformer_forward.34
$region0: #{transformer_forward.34}
  #allocation0 [shape = 'u32[]', space=smem, size = 0x4, offset = 0x4, fixed_abs, tag = 'smem constant byte address 0x4 - core index']
  #allocation1 [shape = 'u32[144,128]{1,0:T(1,128)}', space=vmem, size = 0x12000, scoped, tag = 'internal scratch']
  #allocation2 [shape = 'f32[20,128]{1,0:T(8,128)}', space=vmem, size = 0x3000, scoped, tag = 'scratch operand']
  %s0 = inlined_call_operand.vmem [shape: bf16[20,128], index: 0, kind: input, shape index: {}]
  %s1 = inlined_call_operand.vmem [shape: bf16[128,128], index: 1, kind: input, shape index: {}]
  %s2 = inlined_call_operand.vmem [shape: f32[1,128], index: 2, kind: input, shape index: {}]
  %s3 = inlined_call_operand.vmem [shape: bf16[20,128], index: 3, kind: output, shape index: {}]
  %s4 = sld [smem:[#allocation0]]
  $region30: #{transformer_forward.34} parent=0
    _
  %s6 = ssub.s32 1, %s4
  %s7 = scalar_select 0, %s6, %s4
  // Predicated region
  $region2: #{transformer_forward.34} parent=0 // pred_check
    _
  $region3: #{transformer_forward.34} parent=0 // pred_check_branch
    %9 = sbr.rel (0) target = $region5
  $region4: #{transformer_forward.34} parent=0 // pred_region
    _
  $region5: #{transformer_forward.34} parent=0 // pred_fallthru
    _
  // Predicated region
  $region6: #{transformer_forward.34} parent=0 // pred_check
    _
  $region7: #{transformer_forward.34} parent=0 // pred_check_branch
    %11 = sbr.rel (0) target = $region9
  $region8: #{transformer_forward.34} parent=0 // pred_region
    _
  $region9: #{transformer_forward.34} parent=0 // pred_fallthru
    _
  // Predicated region
  $region10: #{transformer_forward.34} parent=0 // pred_check
    _
  $region11: #{transformer_forward.34} parent=0 // pred_check_branch
    %13 = sbr.rel (0) target = $region13
  $region12: #{transformer_forward.34} parent=0 // pred_region
    _
  $region13: #{transformer_forward.34} parent=0 // pred_fallthru
    _
  %p15 = scmp.eq.s32.totalorder 0, 0
  // Predicated region
  $region14: #{transformer_forward.34} parent=0 // pred_check
    %p16 = pneg %p15
  $region15: #{transformer_forward.34} parent=0 // pred_check_branch
    %18 = sbr.rel (%p16) target = $region17
  $region16: #{transformer_forward.34} parent=0 // pred_region
    %19 = vst [vmem:[#allocation2] sm:$0xff] 0.0
    %20 = vst [vmem:[#allocation2 + $0x8] sm:$0xff] 0.0
    %21 = vst [vmem:[#allocation2 + $0x10] sm:$0xf] 0.0
  $region17: #{transformer_forward.34} parent=0 // pred_fallthru
    _
  %v22 = vld [vmem:[#allocation2] sm:$0xff]
  %v23 = vld [vmem:[#allocation2 + $0x8] sm:$0xff]
  %v24 = vld [vmem:[#allocation2 + $0x10] sm:$0xf]
  %v25 = vld [vmem:[%s0] sm:$0xf]
  %v26 = vld [vmem:[%s0 + $0x4] sm:$0xf]
  %v27 = vld [vmem:[%s0 + $0x8] sm:$0x3]
  %v28 = vld [vmem:[%s1] sm:$0xf]
  %v29 = vld [vmem:[%s1 + $0x4] sm:$0xf]
  %v30 = vld [vmem:[%s1 + $0x8] sm:$0xf]
  %v31 = vld [vmem:[%s1 + $0xc] sm:$0xf]
  %v32 = vld [vmem:[%s1 + $0x10] sm:$0xf]
  %v33 = vld [vmem:[%s1 + $0x14] sm:$0xf]
  %v34 = vld [vmem:[%s1 + $0x18] sm:$0xf]
  %v35 = vld [vmem:[%s1 + $0x1c] sm:$0xf]
  %v36 = vld [vmem:[%s1 + $0x20] sm:$0xf]
  %v37 = vld [vmem:[%s1 + $0x24] sm:$0xf]
  %v38 = vld [vmem:[%s1 + $0x28] sm:$0xf]
  %v39 = vld [vmem:[%s1 + $0x2c] sm:$0xf]
  %v40 = vld [vmem:[%s1 + $0x30] sm:$0xf]
  %v41 = vld [vmem:[%s1 + $0x34] sm:$0xf]
  %v42 = vld [vmem:[%s1 + $0x38] sm:$0xf]
  %v43 = vld [vmem:[%s1 + $0x3c] sm:$0xf]
  %v47 = vunpack.c.l.b16 %v25
  %v48 = vunpack.c.l.b16 %v26
  %v49 = vunpack.c.l.b16 %v27
  %v50 = vpack.c.b16 %v48, %v47
  %v51 = vpack.c.b16 %v49, %v49
  %v70 = vunpack.c.l.b16 %v28
  %v71 = vunpack.c.l.b16 %v29
  %v72 = vunpack.c.l.b16 %v30
  %v73 = vunpack.c.l.b16 %v31
  %v74 = vunpack.c.l.b16 %v32
  %v75 = vunpack.c.l.b16 %v33
  %v76 = vunpack.c.l.b16 %v34
  %v77 = vunpack.c.l.b16 %v35
  %v78 = vunpack.c.l.b16 %v36
  %v79 = vunpack.c.l.b16 %v37
  %v80 = vunpack.c.l.b16 %v38
  %v81 = vunpack.c.l.b16 %v39
  %v82 = vunpack.c.l.b16 %v40
  %v83 = vunpack.c.l.b16 %v41
  %v84 = vunpack.c.l.b16 %v42
  %v85 = vunpack.c.l.b16 %v43
  %v86 = vpack.c.b16 %v71, %v70
  %v87 = vpack.c.b16 %v73, %v72
  %v88 = vpack.c.b16 %v75, %v74
  %v89 = vpack.c.b16 %v77, %v76
  %v90 = vpack.c.b16 %v79, %v78
  %v91 = vpack.c.b16 %v81, %v80
  %v92 = vpack.c.b16 %v83, %v82
  %v93 = vpack.c.b16 %v85, %v84
  %102 = vmatprep.subr.bf16.mxu0 0
  %103 = vmatpush1.bf16.msra.mxu0 %v86
  %104 = vmatprep.subr.bf16.mxu0 0
  %105 = vmatpush1.bf16.msra.mxu0 %v87
  %106 = vmatprep.subr.bf16.mxu0 0
  %107 = vmatpush1.bf16.msra.mxu0 %v88
  %108 = vmatprep.subr.bf16.mxu0 0
  %109 = vmatpush1.bf16.msra.mxu0 %v89
  %110 = vmatprep.subr.bf16.mxu0 0
  %111 = vmatpush1.bf16.msra.mxu0 %v90
  %112 = vmatprep.subr.bf16.mxu0 0
  %113 = vmatpush1.bf16.msra.mxu0 %v91
  %114 = vmatprep.subr.bf16.mxu0 0
  %115 = vmatpush1.bf16.msra.mxu0 %v92
  %116 = vmatprep.subr.bf16.mxu0 0
  %117 = vmatpush1.bf16.msra.mxu0 %v93
  %118 = vmatprep.subr.bf16.mxu0 0
  %119 = vmatpush1.bf16.msra.mxu0 0
  %120 = vmatprep.subr.bf16.mxu0 0
  %121 = vmatpush1.bf16.msra.mxu0 0
  %122 = vmatprep.subr.bf16.mxu0 0
  %123 = vmatpush1.bf16.msra.mxu0 0
  %124 = vmatprep.subr.bf16.mxu0 0
  %125 = vmatpush1.bf16.msra.mxu0 0
  %126 = vmatprep.subr.bf16.mxu0 0
  %127 = vmatpush1.bf16.msra.mxu0 0
  %128 = vmatprep.subr.bf16.mxu0 0
  %129 = vmatpush1.bf16.msra.mxu0 0
  %130 = vmatprep.subr.bf16.mxu0 0
  %131 = vmatpush1.bf16.msra.mxu0 0
  %132 = vmatprep.subr.bf16.mxu0 0
  %133 = vmatpush1.bf16.msra.mxu0 0
  %134 = vmatprep.mubr.bf16.mxu0 0
  %135 = vmatmul.mubr.bf16.gmra.mrb[0].mxu0 %v50
  %v136 = vpop.f32.mrb[0].mxu0
  %v137 = vadd.f32 0.0, %v136
  %v138 = vpop.f32.mrb[0].mxu0
  %v139 = vpop.f32.mrb[0].mxu0
  %v140 = vadd.f32 0.0, %v139
  %v141 = vpop.f32.mrb[0].mxu0
  %142 = vmatprep.mubr.bf16.mxu0 0
  %143 = vmatmul.mubr.bf16.gmra.mrb[0].mxu0 %v51
  %v144 = vpop.f32.mrb[0].mxu0
  %v145 = vadd.f32 0.0, %v144
  %v146 = vpop.f32.mrb[0].mxu0
  %v147 = vpop.f32.mrb[0].mxu0
  %v148 = vpop.f32.mrb[0].mxu0
  %149 = vdwg.mxu0
  %v150 = vadd.f32 %v22, %v137
  %v151 = vadd.f32 %v23, %v140
  %v152 = vadd.f32 %v24, %v145
  %153 = vst [vmem:[#allocation2] sm:$0xff] %v150
  %154 = vst [vmem:[#allocation2 + $0x8] sm:$0xff] %v151
  %155 = vst [vmem:[#allocation2 + $0x10] sm:$0xf] %v152
  // Predicated region
  $region18: #{transformer_forward.34} parent=0 // pred_check
    %p156 = pneg %p15
  $region19: #{transformer_forward.34} parent=0 // pred_check_branch
    %158 = sbr.rel (%p156) target = $region21
  $region20: #{transformer_forward.34} parent=0 // pred_region
    %v159 = vld [vmem:[#allocation2] sm:$0xff]
    %v160 = vld [vmem:[#allocation2 + $0x8] sm:$0xff]
    %v161 = vld [vmem:[#allocation2 + $0x10] sm:$0xf]
    %v162 = vld [vmem:[%s2] sm:$0x1]
    %v164 = vlaneseq
    %v165 = vshrl.u32 %v164, 7
    %v166 = vsub.s32 0, %v165
    %v167 = vrot.slane %v162, %v166
    %v169 = vadd.f32 %v159, %v167
    %v170 = vadd.f32 %v160, %v167
    %v171 = vadd.f32 %v161, %v167
    %v172 = vmax.f32 %v169, 0.0
    %v173 = vmax.f32 %v170, 0.0
    %v174 = vmax.f32 %v171, 0.0
    %v175 = vpack.c.bf16 %v173, %v172
    %v176 = vpack.c.bf16 %v174, %v174
    %v179 = vunpack.c.l.b16 %v175
    %v180 = vunpack.c.h.b16 %v175
    %v181 = vunpack.c.l.b16 %v176
    %v182 = vpack.c.b16 %v179, %v179
    %v183 = vpack.c.b16 %v180, %v180
    %v184 = vpack.c.b16 %v181, %v181
    %188 = vst [vmem:[%s3] sm:$0xf] %v182
    %189 = vst [vmem:[%s3 + $0x4] sm:$0xf] %v183
    %190 = vst [vmem:[%s3 + $0x8] sm:$0x3] %v184
  $region21: #{transformer_forward.34} parent=0 // pred_fallthru
    _
  // Predicated region
  $region22: #{transformer_forward.34} parent=0 // pred_check
    _
  $region23: #{transformer_forward.34} parent=0 // pred_check_branch
    %192 = sbr.rel (0) target = $region25
  $region24: #{transformer_forward.34} parent=0 // pred_region
    _
  $region25: #{transformer_forward.34} parent=0 // pred_fallthru
    _
  // Predicated region
  $region26: #{transformer_forward.34} parent=0 // pred_check
    _
  $region27: #{transformer_forward.34} parent=0 // pred_check_branch
    %194 = sbr.rel (0) target = $region29
  $region28: #{transformer_forward.34} parent=0 // pred_region
    _
  $region29: #{transformer_forward.34} parent=0 // pred_fallthru
    _

// kernel: transformer_forward.33
$region0: #{transformer_forward.33}
  #allocation0 [shape = 'u32[]', space=smem, size = 0x4, offset = 0x4, fixed_abs, tag = 'smem constant byte address 0x4 - core index']
  #allocation1 [shape = 'u32[144,128]{1,0:T(1,128)}', space=vmem, size = 0x12000, scoped, tag = 'internal scratch']
  #allocation2 [shape = 'f32[20,128]{1,0:T(8,128)}', space=vmem, size = 0x3000, scoped, tag = 'scratch operand']
  %s0 = inlined_call_operand.vmem [shape: bf16[20,128], index: 0, kind: input, shape index: {}]
  %s1 = inlined_call_operand.vmem [shape: bf16[128,128], index: 1, kind: input, shape index: {}]
  %s2 = inlined_call_operand.vmem [shape: f32[1,128], index: 2, kind: input, shape index: {}]
  %s3 = inlined_call_operand.vmem [shape: bf16[20,128], index: 3, kind: input, shape index: {}]
  %s4 = inlined_call_operand.vmem [shape: f32[1,128], index: 4, kind: input, shape index: {}]
  %s5 = inlined_call_operand.vmem [shape: f32[1,128], index: 5, kind: input, shape index: {}]
  %s6 = inlined_call_operand.vmem [shape: bf16[20,128], index: 6, kind: output, shape index: {}]
  %s7 = sld [smem:[#allocation0]]
  $region42: #{transformer_forward.33} parent=0
    _
  %s9 = ssub.s32 1, %s7
  %s10 = scalar_select 0, %s9, %s7
  // Predicated region
  $region2: #{transformer_forward.33} parent=0 // pred_check
    _
  $region3: #{transformer_forward.33} parent=0 // pred_check_branch
    %12 = sbr.rel (0) target = $region5
  $region4: #{transformer_forward.33} parent=0 // pred_region
    _
  $region5: #{transformer_forward.33} parent=0 // pred_fallthru
    _
  // Predicated region
  $region6: #{transformer_forward.33} parent=0 // pred_check
    _
  $region7: #{transformer_forward.33} parent=0 // pred_check_branch
    %14 = sbr.rel (0) target = $region9
  $region8: #{transformer_forward.33} parent=0 // pred_region
    _
  $region9: #{transformer_forward.33} parent=0 // pred_fallthru
    _
  // Predicated region
  $region10: #{transformer_forward.33} parent=0 // pred_check
    _
  $region11: #{transformer_forward.33} parent=0 // pred_check_branch
    %16 = sbr.rel (0) target = $region13
  $region12: #{transformer_forward.33} parent=0 // pred_region
    _
  $region13: #{transformer_forward.33} parent=0 // pred_fallthru
    _
  // Predicated region
  $region14: #{transformer_forward.33} parent=0 // pred_check
    _
  $region15: #{transformer_forward.33} parent=0 // pred_check_branch
    %18 = sbr.rel (0) target = $region17
  $region16: #{transformer_forward.33} parent=0 // pred_region
    _
  $region17: #{transformer_forward.33} parent=0 // pred_fallthru
    _
  // Predicated region
  $region18: #{transformer_forward.33} parent=0 // pred_check
    _
  $region19: #{transformer_forward.33} parent=0 // pred_check_branch
    %20 = sbr.rel (0) target = $region21
  $region20: #{transformer_forward.33} parent=0 // pred_region
    _
  $region21: #{transformer_forward.33} parent=0 // pred_fallthru
    _
  // Predicated region
  $region22: #{transformer_forward.33} parent=0 // pred_check
    _
  $region23: #{transformer_forward.33} parent=0 // pred_check_branch
    %22 = sbr.rel (0) target = $region25
  $region24: #{transformer_forward.33} parent=0 // pred_region
    _
  $region25: #{transformer_forward.33} parent=0 // pred_fallthru
    _
  %p24 = scmp.eq.s32.totalorder 0, 0
  // Predicated region
  $region26: #{transformer_forward.33} parent=0 // pred_check
    %p25 = pneg %p24
  $region27: #{transformer_forward.33} parent=0 // pred_check_branch
    %27 = sbr.rel (%p25) target = $region29
  $region28: #{transformer_forward.33} parent=0 // pred_region
    %28 = vst [vmem:[#allocation2] sm:$0xff] 0.0
    %29 = vst [vmem:[#allocation2 + $0x8] sm:$0xff] 0.0
    %30 = vst [vmem:[#allocation2 + $0x10] sm:$0xf] 0.0
  $region29: #{transformer_forward.33} parent=0 // pred_fallthru
    _
  %v31 = vld [vmem:[#allocation2] sm:$0xff]
  %v32 = vld [vmem:[#allocation2 + $0x8] sm:$0xff]
  %v33 = vld [vmem:[#allocation2 + $0x10] sm:$0xf]
  %v34 = vld [vmem:[%s0] sm:$0xf]
  %v35 = vld [vmem:[%s0 + $0x4] sm:$0xf]
  %v36 = vld [vmem:[%s0 + $0x8] sm:$0x3]
  %v37 = vld [vmem:[%s1] sm:$0xf]
  %v38 = vld [vmem:[%s1 + $0x4] sm:$0xf]
  %v39 = vld [vmem:[%s1 + $0x8] sm:$0xf]
  %v40 = vld [vmem:[%s1 + $0xc] sm:$0xf]
  %v41 = vld [vmem:[%s1 + $0x10] sm:$0xf]
  %v42 = vld [vmem:[%s1 + $0x14] sm:$0xf]
  %v43 = vld [vmem:[%s1 + $0x18] sm:$0xf]
  %v44 = vld [vmem:[%s1 + $0x1c] sm:$0xf]
  %v45 = vld [vmem:[%s1 + $0x20] sm:$0xf]
  %v46 = vld [vmem:[%s1 + $0x24] sm:$0xf]
  %v47 = vld [vmem:[%s1 + $0x28] sm:$0xf]
  %v48 = vld [vmem:[%s1 + $0x2c] sm:$0xf]
  %v49 = vld [vmem:[%s1 + $0x30] sm:$0xf]
  %v50 = vld [vmem:[%s1 + $0x34] sm:$0xf]
  %v51 = vld [vmem:[%s1 + $0x38] sm:$0xf]
  %v52 = vld [vmem:[%s1 + $0x3c] sm:$0xf]
  %v56 = vunpack.c.l.b16 %v34
  %v57 = vunpack.c.l.b16 %v35
  %v58 = vunpack.c.l.b16 %v36
  %v59 = vpack.c.b16 %v57, %v56
  %v60 = vpack.c.b16 %v58, %v58
  %v79 = vunpack.c.l.b16 %v37
  %v80 = vunpack.c.l.b16 %v38
  %v81 = vunpack.c.l.b16 %v39
  %v82 = vunpack.c.l.b16 %v40
  %v83 = vunpack.c.l.b16 %v41
  %v84 = vunpack.c.l.b16 %v42
  %v85 = vunpack.c.l.b16 %v43
  %v86 = vunpack.c.l.b16 %v44
  %v87 = vunpack.c.l.b16 %v45
  %v88 = vunpack.c.l.b16 %v46
  %v89 = vunpack.c.l.b16 %v47
  %v90 = vunpack.c.l.b16 %v48
  %v91 = vunpack.c.l.b16 %v49
  %v92 = vunpack.c.l.b16 %v50
  %v93 = vunpack.c.l.b16 %v51
  %v94 = vunpack.c.l.b16 %v52
  %v95 = vpack.c.b16 %v80, %v79
  %v96 = vpack.c.b16 %v82, %v81
  %v97 = vpack.c.b16 %v84, %v83
  %v98 = vpack.c.b16 %v86, %v85
  %v99 = vpack.c.b16 %v88, %v87
  %v100 = vpack.c.b16 %v90, %v89
  %v101 = vpack.c.b16 %v92, %v91
  %v102 = vpack.c.b16 %v94, %v93
  %111 = vmatprep.subr.bf16.mxu0 0
  %112 = vmatpush1.bf16.msra.mxu0 %v95
  %113 = vmatprep.subr.bf16.mxu0 0
  %114 = vmatpush1.bf16.msra.mxu0 %v96
  %115 = vmatprep.subr.bf16.mxu0 0
  %116 = vmatpush1.bf16.msra.mxu0 %v97
  %117 = vmatprep.subr.bf16.mxu0 0
  %118 = vmatpush1.bf16.msra.mxu0 %v98
  %119 = vmatprep.subr.bf16.mxu0 0
  %120 = vmatpush1.bf16.msra.mxu0 %v99
  %121 = vmatprep.subr.bf16.mxu0 0
  %122 = vmatpush1.bf16.msra.mxu0 %v100
  %123 = vmatprep.subr.bf16.mxu0 0
  %124 = vmatpush1.bf16.msra.mxu0 %v101
  %125 = vmatprep.subr.bf16.mxu0 0
  %126 = vmatpush1.bf16.msra.mxu0 %v102
  %127 = vmatprep.subr.bf16.mxu0 0
  %128 = vmatpush1.bf16.msra.mxu0 0
  %129 = vmatprep.subr.bf16.mxu0 0
  %130 = vmatpush1.bf16.msra.mxu0 0
  %131 = vmatprep.subr.bf16.mxu0 0
  %132 = vmatpush1.bf16.msra.mxu0 0
  %133 = vmatprep.subr.bf16.mxu0 0
  %134 = vmatpush1.bf16.msra.mxu0 0
  %135 = vmatprep.subr.bf16.mxu0 0
  %136 = vmatpush1.bf16.msra.mxu0 0
  %137 = vmatprep.subr.bf16.mxu0 0
  %138 = vmatpush1.bf16.msra.mxu0 0
  %139 = vmatprep.subr.bf16.mxu0 0
  %140 = vmatpush1.bf16.msra.mxu0 0
  %141 = vmatprep.subr.bf16.mxu0 0
  %142 = vmatpush1.bf16.msra.mxu0 0
  %143 = vmatprep.mubr.bf16.mxu0 0
  %144 = vmatmul.mubr.bf16.gmra.mrb[0].mxu0 %v59
  %v145 = vpop.f32.mrb[0].mxu0
  %v146 = vadd.f32 0.0, %v145
  %v147 = vpop.f32.mrb[0].mxu0
  %v148 = vpop.f32.mrb[0].mxu0
  %v149 = vadd.f32 0.0, %v148
  %v150 = vpop.f32.mrb[0].mxu0
  %151 = vmatprep.mubr.bf16.mxu0 0
  %152 = vmatmul.mubr.bf16.gmra.mrb[0].mxu0 %v60
  %v153 = vpop.f32.mrb[0].mxu0
  %v154 = vadd.f32 0.0, %v153
  %v155 = vpop.f32.mrb[0].mxu0
  %v156 = vpop.f32.mrb[0].mxu0
  %v157 = vpop.f32.mrb[0].mxu0
  %158 = vdwg.mxu0
  %v159 = vadd.f32 %v31, %v146
  %v160 = vadd.f32 %v32, %v149
  %v161 = vadd.f32 %v33, %v154
  %162 = vst [vmem:[#allocation2] sm:$0xff] %v159
  %163 = vst [vmem:[#allocation2 + $0x8] sm:$0xff] %v160
  %164 = vst [vmem:[#allocation2 + $0x10] sm:$0xf] %v161
  // Predicated region
  $region30: #{transformer_forward.33} parent=0 // pred_check
    %p165 = pneg %p24
  $region31: #{transformer_forward.33} parent=0 // pred_check_branch
    %167 = sbr.rel (%p165) target = $region33
  $region32: #{transformer_forward.33} parent=0 // pred_region
    %v168 = vld [vmem:[#allocation2] sm:$0xff]
    %v169 = vld [vmem:[#allocation2 + $0x8] sm:$0xff]
    %v170 = vld [vmem:[#allocation2 + $0x10] sm:$0xf]
    %v171 = vld [vmem:[%s2] sm:$0x1]
    %v173 = vlaneseq
    %v174 = vshrl.u32 %v173, 7
    %v175 = vsub.s32 0, %v174
    %v176 = vrot.slane %v171, %v175
    %v178 = vadd.f32 %v168, %v176
    %v179 = vadd.f32 %v169, %v176
    %v180 = vadd.f32 %v170, %v176
    %v181 = vld [vmem:[%s3] sm:$0xf]
    %v182 = vld [vmem:[%s3 + $0x4] sm:$0xf]
    %v183 = vld [vmem:[%s3 + $0x8] sm:$0x3]
    %v184 = vunpack.c.l.bf16 %v181
    %v185 = vunpack.c.l.bf16 %v182
    %v186 = vunpack.c.l.bf16 %v183
    %v187 = vadd.f32 %v178, %v184
    %v188 = vadd.f32 %v179, %v185
    %v189 = vadd.f32 %v180, %v186
    %190 = vadd.xlane.f32.xlu0 %v187
    %v191 = vpop.xlane.xlu0 %190
    %192 = vadd.xlane.f32.xlu0 %v188
    %v193 = vpop.xlane.xlu0 %192
    %vm194 = vcmask 1043456
    %v195 = vsel %vm194, %v189, 0.0
    %196 = vadd.xlane.f32.xlu0 %v195
    %v197 = vpop.xlane.xlu0 %196
    %v198 = vrcp.pop 128.0
    %v199 = vmul.f32 %v191, %v198
    %v200 = vmul.f32 %v193, %v198
    %v201 = vmul.f32 %v197, %v198
    %v202 = vsub.f32 %v187, %v199
    %v203 = vsub.f32 %v188, %v200
    %v204 = vsub.f32 %v189, %v201
    %v205 = vmul.f32 %v202, %v202
    %v206 = vmul.f32 %v203, %v203
    %v207 = vmul.f32 %v204, %v204
    %208 = vadd.xlane.f32.xlu0 %v205
    %v209 = vpop.xlane.xlu0 %208
    %210 = vadd.xlane.f32.xlu0 %v206
    %v211 = vpop.xlane.xlu0 %210
    %v212 = vsel %vm194, %v207, 0.0
    %213 = vadd.xlane.f32.xlu0 %v212
    %v214 = vpop.xlane.xlu0 %213
    %v215 = vmul.f32 %v209, %v198
    %v216 = vmul.f32 %v211, %v198
    %v217 = vmul.f32 %v214, %v198
    %v218 = vadd.f32 %v215, 1e-05
    %v219 = vadd.f32 %v216, 1e-05
    %v220 = vadd.f32 %v217, 1e-05
    %v221 = vrsqrt.pop %v218
    %v222 = vrsqrt.pop %v219
    %v223 = vrsqrt.pop %v220
    %v224 = vmul.f32 %v202, %v221
    %v225 = vmul.f32 %v203, %v222
    %v226 = vmul.f32 %v204, %v223
    %v227 = vld [vmem:[%s4] sm:$0x1]
    %v229 = vlaneseq
    %v230 = vshrl.u32 %v229, 7
    %v231 = vsub.s32 0, %v230
    %v232 = vrot.slane %v227, %v231
    %v234 = vmul.f32 %v224, %v232
    %v235 = vmul.f32 %v225, %v232
    %v236 = vmul.f32 %v226, %v232
    %v237 = vld [vmem:[%s5] sm:$0x1]
    %v239 = vlaneseq
    %v240 = vshrl.u32 %v239, 7
    %v241 = vsub.s32 0, %v240
    %v242 = vrot.slane %v237, %v241
    %v244 = vadd.f32 %v234, %v242
    %v245 = vadd.f32 %v235, %v242
    %v246 = vadd.f32 %v236, %v242
    %v247 = vpack.c.bf16 %v245, %v244
    %v248 = vpack.c.bf16 %v246, %v246
    %v251 = vunpack.c.l.b16 %v247
    %v252 = vunpack.c.h.b16 %v247
    %v253 = vunpack.c.l.b16 %v248
    %v254 = vpack.c.b16 %v251, %v251
    %v255 = vpack.c.b16 %v252, %v252
    %v256 = vpack.c.b16 %v253, %v253
    %260 = vst [vmem:[%s6] sm:$0xf] %v254
    %261 = vst [vmem:[%s6 + $0x4] sm:$0xf] %v255
    %262 = vst [vmem:[%s6 + $0x8] sm:$0x3] %v256
  $region33: #{transformer_forward.33} parent=0 // pred_fallthru
    _
  // Predicated region
  $region34: #{transformer_forward.33} parent=0 // pred_check
    _
  $region35: #{transformer_forward.33} parent=0 // pred_check_branch
    %264 = sbr.rel (0) target = $region37
  $region36: #{transformer_forward.33} parent=0 // pred_region
    _
  $region37: #{transformer_forward.33} parent=0 // pred_fallthru
    _
  // Predicated region
  $region38: #{transformer_forward.33} parent=0 // pred_check
    _
  $region39: #{transformer_forward.33} parent=0 // pred_check_branch
    %266 = sbr.rel (0) target = $region41
  $region40: #{transformer_forward.33} parent=0 // pred_region
    _
  $region41: #{transformer_forward.33} parent=0 // pred_fallthru
    _

// kernel: transformer_forward.32
$region0: #{transformer_forward.32}
  #allocation0 [shape = 'u32[]', space=smem, size = 0x4, offset = 0x4, fixed_abs, tag = 'smem constant byte address 0x4 - core index']
  #allocation1 [shape = 'u32[144,128]{1,0:T(1,128)}', space=vmem, size = 0x12000, scoped, tag = 'internal scratch']
  #allocation2 [shape = 'f32[4,10,1]{2,1,0:T(8,128)}', space=vmem, size = 0x8000, scoped, tag = 'scratch operand']
  #allocation3 [shape = 'f32[4,10,1]{2,1,0:T(8,128)}', space=vmem, size = 0x8000, scoped, tag = 'scratch operand']
  #allocation4 [shape = 'f32[4,10,32]{2,1,0:T(8,128)}', space=vmem, size = 0x8000, scoped, tag = 'scratch operand']
  %s0 = inlined_call_operand.vmem [shape: bf16[2,10,384], index: 0, kind: input, shape index: {}, may-alias: {0,1,2}]
  %s1 = inlined_call_operand.vmem [shape: bf16[2,10,384], index: 1, kind: input, shape index: {}, may-alias: {0,1,2}]
  %s2 = inlined_call_operand.vmem [shape: bf16[2,10,384], index: 2, kind: input, shape index: {}, may-alias: {0,1,2}]
  %s3 = inlined_call_operand.vmem [shape: f32[2,1,10], index: 3, kind: input, shape index: {}]
  %s4 = inlined_call_operand.vmem [shape: bf16[2,10,128], index: 4, kind: output, shape index: {}]
  %s5 = sld [smem:[#allocation0]]
  $region180: #{transformer_forward.32} parent=0
    _
  %s7 = ssub.s32 1, %s5
  %s8 = scalar_select 0, %s7, %s5
  $region1: #{transformer_forward.32} parent=0
    #allocation5 [shape = 'u8[8192]{0}', space=vmem, size = 0x2000, scoped, tag = 'input window, operand 0']
    #allocation6 [shape = 'u8[8192]{0}', space=vmem, size = 0x2000, scoped, tag = 'input window, operand 1']
    #allocation7 [shape = 'u8[8192]{0}', space=vmem, size = 0x2000, scoped, tag = 'input window, operand 2']
    loop: start=0, step=1, limit=4
    $region2: #{transformer_forward.32} parent=1 // loop_pre_header
      _
    $region3: #{transformer_forward.32} parent=1 // loop_header
      %s10 = sphi 0, %s14
      %p11 = scmp.ge.s32.totalorder %s10, 4
      %s17 = sphi 0, %s36
      %s18 = sphi 0, %s32
      %s19 = sphi 0, %s28
      %s20 = sphi 0, %s17
      %s21 = sphi 0, %s18
      %s22 = sphi 0, %s19
      %s23 = sphi 0, %s20
      %s24 = sphi 0, %s21
      %s25 = sphi 0, %s22
      %s41 = sphi 0, %s43
      %s44 = sphi 0, %s41
      %s45 = sphi 0, %s44
      %s61 = sphi 0, %s45
      %s73 = sphi 0, %s75
      %s76 = sphi 0, %s73
      %s77 = sphi 0, %s76
      %s93 = sphi 0, %s77
      %s105 = sphi 0, %s107
      %s108 = sphi 0, %s105
      %s109 = sphi 0, %s108
      %s125 = sphi 0, %s109
      %s133 = sphi 0, %s135
      %s136 = sphi 0, %s133
      %s137 = sphi 0, %s136
      %s153 = sphi 0, %s137
      %s161 = sphi 0, %s163
      %s164 = sphi 0, %s161
      %s165 = sphi 0, %s164
      %s181 = sphi 0, %s165
    $region4: #{transformer_forward.32} parent=1 // loop_header_branch
      %13 = sbr.rel (%p11) target = $region8
    $region5: #{transformer_forward.32} parent=1 // loop_body
      %s15 = ssub.s32 %s10, 1
      %s16 = ssub.s32 %s10, 2
      %s26 = sadd.s32 1, %s19
      %p27 = scmp.ge.s32.totalorder %s26, 1
      %s28 = scalar_select %p27, 0, %s26
      %s29 = sadd.s32 1, %s18
      %s30 = scalar_select %p27, %s29, %s18
      %p31 = scmp.ge.s32.totalorder %s30, 1
      %s32 = scalar_select %p31, 0, %s30
      %s33 = sadd.s32 1, %s17
      %s34 = scalar_select %p31, %s33, %s17
      %p35 = scmp.ge.s32.totalorder %s34, 2
      %s36 = scalar_select %p35, 0, %s34
      %s37 = ssub.s32 %s17, %s36
      %s38 = ssub.s32 %s18, %s32
      %s39 = sor.u32 %s37, %s38
      %p40 = scmp.eq.s32.totalorder %s39, 0
      %s42 = sadd.s32 %s41, 1
      %s43 = scalar_select %p40, %s41, %s42
      %p46 = pneg %p40
      %p47 = scmp.eq.s32.totalorder %s10, 1
      %p48 = por %p46, %p47
      %p49 = scmp.ne.s32.totalorder %s41, %s44
      %p50 = scmp.eq.s32.totalorder %s10, 0
      %p51 = por %p49, %p50
      %p52 = scmp.ne.s32.totalorder %s41, %s44
      %p53 = scmp.eq.s32.totalorder %s15, 1
      %p54 = por %p52, %p53
      %p55 = scmp.ne.s32.totalorder %s44, %s45
      %p56 = scmp.eq.s32.totalorder %s15, 0
      %p57 = por %p55, %p56
      %p58 = scmp.ne.s32.totalorder %s44, %s45
      %p59 = scmp.eq.s32.totalorder %s16, 1
      %p60 = por %p58, %p59
      %p62 = scmp.ne.s32.totalorder %s45, %s61
      %p63 = scmp.eq.s32.totalorder %s16, 0
      %p64 = por %p62, %p63
      %s65 = sadd.s32 %s18, 1
      %s66 = sadd.s32 %s32, 1
      %s67 = ssub.s32 %s17, %s36
      %s68 = ssub.s32 %s19, %s28
      %s69 = sor.u32 %s67, %s68
      %s70 = ssub.s32 %s65, %s66
      %s71 = sor.u32 %s69, %s70
      %p72 = scmp.eq.s32.totalorder %s71, 0
      %s74 = sadd.s32 %s73, 1
      %s75 = scalar_select %p72, %s73, %s74
      %p78 = pneg %p72
      %p79 = scmp.eq.s32.totalorder %s10, 1
      %p80 = por %p78, %p79
      %p81 = scmp.ne.s32.totalorder %s73, %s76
      %p82 = scmp.eq.s32.totalorder %s10, 0
      %p83 = por %p81, %p82
      %p84 = scmp.ne.s32.totalorder %s73, %s76
      %p85 = scmp.eq.s32.totalorder %s15, 1
      %p86 = por %p84, %p85
      %p87 = scmp.ne.s32.totalorder %s76, %s77
      %p88 = scmp.eq.s32.totalorder %s15, 0
      %p89 = por %p87, %p88
      %p90 = scmp.ne.s32.totalorder %s76, %s77
      %p91 = scmp.eq.s32.totalorder %s16, 1
      %p92 = por %p90, %p91
      %p94 = scmp.ne.s32.totalorder %s77, %s93
      %p95 = scmp.eq.s32.totalorder %s16, 0
      %p96 = por %p94, %p95
      %s97 = sadd.s32 %s18, 2
      %s98 = sadd.s32 %s32, 2
      %s99 = ssub.s32 %s17, %s36
      %s100 = ssub.s32 %s19, %s28
      %s101 = sor.u32 %s99, %s100
      %s102 = ssub.s32 %s97, %s98
      %s103 = sor.u32 %s101, %s102
      %p104 = scmp.eq.s32.totalorder %s103, 0
      %s106 = sadd.s32 %s105, 1
      %s107 = scalar_select %p104, %s105, %s106
      %p110 = pneg %p104
      %p111 = scmp.eq.s32.totalorder %s10, 1
      %p112 = por %p110, %p111
      %p113 = scmp.ne.s32.totalorder %s105, %s108
      %p114 = scmp.eq.s32.totalorder %s10, 0
      %p115 = por %p113, %p114
      %p116 = scmp.ne.s32.totalorder %s105, %s108
      %p117 = scmp.eq.s32.totalorder %s15, 1
      %p118 = por %p116, %p117
      %p119 = scmp.ne.s32.totalorder %s108, %s109
      %p120 = scmp.eq.s32.totalorder %s15, 0
      %p121 = por %p119, %p120
      %p122 = scmp.ne.s32.totalorder %s108, %s109
      %p123 = scmp.eq.s32.totalorder %s16, 1
      %p124 = por %p122, %p123
      %p126 = scmp.ne.s32.totalorder %s109, %s125
      %p127 = scmp.eq.s32.totalorder %s16, 0
      %p128 = por %p126, %p127
      %s129 = ssub.s32 %s17, %s36
      %s130 = ssub.s32 %s19, %s28
      %s131 = sor.u32 %s129, %s130
      %p132 = scmp.eq.s32.totalorder %s131, 0
      %s134 = sadd.s32 %s133, 1
      %s135 = scalar_select %p132, %s133, %s134
      %p138 = pneg %p132
      %p139 = scmp.eq.s32.totalorder %s10, 1
      %p140 = por %p138, %p139
      %p141 = scmp.ne.s32.totalorder %s133, %s136
      %p142 = scmp.eq.s32.totalorder %s10, 0
      %p143 = por %p141, %p142
      %p144 = scmp.ne.s32.totalorder %s133, %s136
      %p145 = scmp.eq.s32.totalorder %s15, 1
      %p146 = por %p144, %p145
      %p147 = scmp.ne.s32.totalorder %s136, %s137
      %p148 = scmp.eq.s32.totalorder %s15, 0
      %p149 = por %p147, %p148
      %p150 = scmp.ne.s32.totalorder %s136, %s137
      %p151 = scmp.eq.s32.totalorder %s16, 1
      %p152 = por %p150, %p151
      %p154 = scmp.ne.s32.totalorder %s137, %s153
      %p155 = scmp.eq.s32.totalorder %s16, 0
      %p156 = por %p154, %p155
      %s157 = ssub.s32 %s17, %s36
      %s158 = ssub.s32 %s18, %s32
      %s159 = sor.u32 %s157, %s158
      %p160 = scmp.eq.s32.totalorder %s159, 0
      %s162 = sadd.s32 %s161, 1
      %s163 = scalar_select %p160, %s161, %s162
      %p166 = pneg %p160
      %p167 = scmp.eq.s32.totalorder %s10, 1
      %p168 = por %p166, %p167
      %p169 = scmp.ne.s32.totalorder %s161, %s164
      %p170 = scmp.eq.s32.totalorder %s10, 0
      %p171 = por %p169, %p170
      %p172 = scmp.ne.s32.totalorder %s161, %s164
      %p173 = scmp.eq.s32.totalorder %s15, 1
      %p174 = por %p172, %p173
      %p175 = scmp.ne.s32.totalorder %s164, %s165
      %p176 = scmp.eq.s32.totalorder %s15, 0
      %p177 = por %p175, %p176
      %p178 = scmp.ne.s32.totalorder %s164, %s165
      %p179 = scmp.eq.s32.totalorder %s16, 1
      %p180 = por %p178, %p179
      %p182 = scmp.ne.s32.totalorder %s165, %s181
      %p183 = scmp.eq.s32.totalorder %s16, 0
      %p184 = por %p182, %p183
      %p185 = scmp.le.s32.totalorder 1, %s10
      %p186 = scmp.lt.s32.totalorder %s10, 3
      %p187 = pnand %p185, %p186
      %p188 = pneg %p187
      // Predicated region
      $region9: #{transformer_forward.32} parent=5 // pred_check
        _
      $region10: #{transformer_forward.32} parent=5 // pred_check_branch
        %190 = sbr.rel (%p187) target = $region12
      $region11: #{transformer_forward.32} parent=5 // pred_region
        %s191 = ssub.s32 %s10, 1
      $region12: #{transformer_forward.32} parent=5 // pred_fallthru
        _
      %p192 = scmp.lt.s32.totalorder %s10, 2
      // Predicated region
      $region13: #{transformer_forward.32} parent=5 // pred_check
        %p193 = pneg %p192
      $region14: #{transformer_forward.32} parent=5 // pred_check_branch
        %195 = sbr.rel (%p193) target = $region16
      $region15: #{transformer_forward.32} parent=5 // pred_region
        // Predicated region
        $region17: #{transformer_forward.32} parent=15 // pred_check
          %p196 = pneg %p51
        $region18: #{transformer_forward.32} parent=15 // pred_check_branch
          %198 = sbr.rel (%p196) target = $region20
        $region19: #{transformer_forward.32} parent=15 // pred_region
          %s199 = sand.u32 %s41, 1
          %s200 = sand.u32 %s41, 1
          %s201 = smul.addr %s200, 8
          %s202 = scalar_lea.vmem [#allocation5], %s201
          %s203 = smul.addr %s17, 6
          %s204 = sadd.s32 %s18, %s203
          %s205 = smul.addr %s204, 4
          %s206 = scalar_lea.vmem %s0, %s205
          // Predicated region
          $region21: #{transformer_forward.32} parent=19 // pred_check
            _
          $region22: #{transformer_forward.32} parent=19 // pred_check_branch
            %208 = sbr.rel (0) target = $region24
          $region23: #{transformer_forward.32} parent=19 // pred_region
            // Predicated region
            $region25: #{transformer_forward.32} parent=23 // pred_check
              _
            $region26: #{transformer_forward.32} parent=23 // pred_check_branch
              %210 = sbr.rel target = $region28
            $region27: #{transformer_forward.32} parent=23 // pred_region
              // Predicated region
              $region40: #{transformer_forward.32} parent=27 // pred_check
                _
              $region41: #{transformer_forward.32} parent=27 // pred_check_branch
                %227 = sbr.rel (0) target = $region43
              $region42: #{transformer_forward.32} parent=27 // pred_region
                loop: start=0, step=1, limit=1
                $region44: #{transformer_forward.32} parent=42 // loop_pre_header
                  _
                $region45: #{transformer_forward.32} parent=42 // loop_header
                  %s229 = sphi 0, %s233
                  %p230 = scmp.ge.s32.totalorder %s229, 1
                  %s234 = sphi %s206, %s206
                  %s235 = sphi %s202, %s202
                $region46: #{transformer_forward.32} parent=42 // loop_header_branch
                  %232 = sbr.rel (%p230) target = $region50
                $region47: #{transformer_forward.32} parent=42 // loop_body
                  _
                $region48: #{transformer_forward.32} parent=42 // loop_footer
                  %s233 = sadd.s32 1, %s229
                $region49: #{transformer_forward.32} parent=42 // loop_footer_branch
                  %228 = sbr.rel target = $region45
                $region50: #{transformer_forward.32} parent=42 // loop_exit
                  _
                loop: start=0, step=1, limit=1
                $region51: #{transformer_forward.32} parent=42 // loop_pre_header
                  _
                $region52: #{transformer_forward.32} parent=42 // loop_header
                  %s238 = sphi 0, %s242
                  %p239 = scmp.ge.s32.totalorder %s238, 1
                  %s243 = sphi %s206, %s206
                  %s244 = sphi %s202, %s202
                $region53: #{transformer_forward.32} parent=42 // loop_header_branch
                  %241 = sbr.rel (%p239) target = $region57
                $region54: #{transformer_forward.32} parent=42 // loop_body
                  %v245 = vld [vmem:[%s243] sm:$0xf]
                  %246 = vst [vmem:[%s244] sm:$0xf] %v245
                  %v247 = vld [vmem:[%s243 + $0xc] sm:$0xf]
                  %248 = vst [vmem:[%s244 + $0x4] sm:$0xf] %v247
                $region55: #{transformer_forward.32} parent=42 // loop_footer
                  %s242 = sadd.s32 1, %s238
                $region56: #{transformer_forward.32} parent=42 // loop_footer_branch
                  %237 = sbr.rel target = $region52
                $region57: #{transformer_forward.32} parent=42 // loop_exit
                  _
              $region43: #{transformer_forward.32} parent=27 // pred_fallthru
                _
            $region28: #{transformer_forward.32} parent=23 // pred_fallthru
              _
            // Predicated region
            $region29: #{transformer_forward.32} parent=23 // pred_check
              _
            $region30: #{transformer_forward.32} parent=23 // pred_check_branch
              %212 = sbr.rel (0) target = $region32
            $region31: #{transformer_forward.32} parent=23 // pred_region
              loop: start=0, step=1, limit=1
              $region33: #{transformer_forward.32} parent=31 // loop_pre_header
                _
              $region34: #{transformer_forward.32} parent=31 // loop_header
                %s215 = sphi 0, %s219
                %p216 = scmp.ge.s32.totalorder %s215, 1
                %s220 = sphi %s206, %s206
                %s221 = sphi %s202, %s202
              $region35: #{transformer_forward.32} parent=31 // loop_header_branch
                %218 = sbr.rel (%p216) target = $region39
              $region36: #{transformer_forward.32} parent=31 // loop_body
                %v222 = vld [vmem:[%s220] sm:$0xf]
                %223 = vst [vmem:[%s221] sm:$0xf] %v222
                %v224 = vld [vmem:[%s220 + $0xc] sm:$0xf]
                %225 = vst [vmem:[%s221 + $0x4] sm:$0xf] %v224
              $region37: #{transformer_forward.32} parent=31 // loop_footer
                %s219 = sadd.s32 1, %s215
              $region38: #{transformer_forward.32} parent=31 // loop_footer_branch
                %214 = sbr.rel target = $region34
              $region39: #{transformer_forward.32} parent=31 // loop_exit
                _
            $region32: #{transformer_forward.32} parent=23 // pred_fallthru
              _
          $region24: #{transformer_forward.32} parent=19 // pred_fallthru
            _
          %249 = vnop
        $region20: #{transformer_forward.32} parent=15 // pred_fallthru
          _
        // Predicated region
        $region58: #{transformer_forward.32} parent=15 // pred_check
          %p250 = pneg %p83
        $region59: #{transformer_forward.32} parent=15 // pred_check_branch
          %252 = sbr.rel (%p250) target = $region61
        $region60: #{transformer_forward.32} parent=15 // pred_region
          %s253 = sand.u32 %s73, 1
          %s254 = sand.u32 %s73, 1
          %s255 = smul.addr %s254, 8
          %s256 = scalar_lea.vmem [#allocation6], %s255
          %s257 = sadd.s32 %s18, 1
          %s258 = smul.u32 2, %s19
          %s259 = smul.addr %s258, 3
          %s260 = sadd.s32 %s257, %s259
          %s261 = smul.addr %s17, 6
          %s262 = sadd.s32 %s260, %s261
          %s263 = smul.addr %s262, 4
          %s264 = scalar_lea.vmem %s1, %s263
          // Predicated region
          $region62: #{transformer_forward.32} parent=60 // pred_check
            _
          $region63: #{transformer_forward.32} parent=60 // pred_check_branch
            %266 = sbr.rel (0) target = $region65
          $region64: #{transformer_forward.32} parent=60 // pred_region
            // Predicated region
            $region66: #{transformer_forward.32} parent=64 // pred_check
              _
            $region67: #{transformer_forward.32} parent=64 // pred_check_branch
              %268 = sbr.rel target = $region69
            $region68: #{transformer_forward.32} parent=64 // pred_region
              // Predicated region
              $region81: #{transformer_forward.32} parent=68 // pred_check
                _
              $region82: #{transformer_forward.32} parent=68 // pred_check_branch
                %285 = sbr.rel (0) target = $region84
              $region83: #{transformer_forward.32} parent=68 // pred_region
                loop: start=0, step=1, limit=1
                $region85: #{transformer_forward.32} parent=83 // loop_pre_header
                  _
                $region86: #{transformer_forward.32} parent=83 // loop_header
                  %s287 = sphi 0, %s291
                  %p288 = scmp.ge.s32.totalorder %s287, 1
                  %s292 = sphi %s264, %s264
                  %s293 = sphi %s256, %s256
                $region87: #{transformer_forward.32} parent=83 // loop_header_branch
                  %290 = sbr.rel (%p288) target = $region91
                $region88: #{transformer_forward.32} parent=83 // loop_body
                  _
                $region89: #{transformer_forward.32} parent=83 // loop_footer
                  %s291 = sadd.s32 1, %s287
                $region90: #{transformer_forward.32} parent=83 // loop_footer_branch
                  %286 = sbr.rel target = $region86
                $region91: #{transformer_forward.32} parent=83 // loop_exit
                  _
                loop: start=0, step=1, limit=1
                $region92: #{transformer_forward.32} parent=83 // loop_pre_header
                  _
                $region93: #{transformer_forward.32} parent=83 // loop_header
                  %s296 = sphi 0, %s300
                  %p297 = scmp.ge.s32.totalorder %s296, 1
                  %s301 = sphi %s264, %s264
                  %s302 = sphi %s256, %s256
                $region94: #{transformer_forward.32} parent=83 // loop_header_branch
                  %299 = sbr.rel (%p297) target = $region98
                $region95: #{transformer_forward.32} parent=83 // loop_body
                  %v303 = vld [vmem:[%s301] sm:$0xf]
                  %304 = vst [vmem:[%s302] sm:$0xf] %v303
                  %v305 = vld [vmem:[%s301 + $0xc] sm:$0xf]
                  %306 = vst [vmem:[%s302 + $0x4] sm:$0xf] %v305
                $region96: #{transformer_forward.32} parent=83 // loop_footer
                  %s300 = sadd.s32 1, %s296
                $region97: #{transformer_forward.32} parent=83 // loop_footer_branch
                  %295 = sbr.rel target = $region93
                $region98: #{transformer_forward.32} parent=83 // loop_exit
                  _
              $region84: #{transformer_forward.32} parent=68 // pred_fallthru
                _
            $region69: #{transformer_forward.32} parent=64 // pred_fallthru
              _
            // Predicated region
            $region70: #{transformer_forward.32} parent=64 // pred_check
              _
            $region71: #{transformer_forward.32} parent=64 // pred_check_branch
              %270 = sbr.rel (0) target = $region73
            $region72: #{transformer_forward.32} parent=64 // pred_region
              loop: start=0, step=1, limit=1
              $region74: #{transformer_forward.32} parent=72 // loop_pre_header
                _
              $region75: #{transformer_forward.32} parent=72 // loop_header
                %s273 = sphi 0, %s277
                %p274 = scmp.ge.s32.totalorder %s273, 1
                %s278 = sphi %s264, %s264
                %s279 = sphi %s256, %s256
              $region76: #{transformer_forward.32} parent=72 // loop_header_branch
                %276 = sbr.rel (%p274) target = $region80
              $region77: #{transformer_forward.32} parent=72 // loop_body
                %v280 = vld [vmem:[%s278] sm:$0xf]
                %281 = vst [vmem:[%s279] sm:$0xf] %v280
                %v282 = vld [vmem:[%s278 + $0xc] sm:$0xf]
                %283 = vst [vmem:[%s279 + $0x4] sm:$0xf] %v282
              $region78: #{transformer_forward.32} parent=72 // loop_footer
                %s277 = sadd.s32 1, %s273
              $region79: #{transformer_forward.32} parent=72 // loop_footer_branch
                %272 = sbr.rel target = $region75
              $region80: #{transformer_forward.32} parent=72 // loop_exit
                _
            $region73: #{transformer_forward.32} parent=64 // pred_fallthru
              _
          $region65: #{transformer_forward.32} parent=60 // pred_fallthru
            _
          %307 = vnop
        $region61: #{transformer_forward.32} parent=15 // pred_fallthru
          _
        // Predicated region
        $region99: #{transformer_forward.32} parent=15 // pred_check
          %p308 = pneg %p115
        $region100: #{transformer_forward.32} parent=15 // pred_check_branch
          %310 = sbr.rel (%p308) target = $region102
        $region101: #{transformer_forward.32} parent=15 // pred_region
          %s311 = sand.u32 %s105, 1
          %s312 = sand.u32 %s105, 1
          %s313 = smul.addr %s312, 8
          %s314 = scalar_lea.vmem [#allocation7], %s313
          %s315 = sadd.s32 %s18, 2
          %s316 = smul.u32 2, %s19
          %s317 = smul.addr %s316, 3
          %s318 = sadd.s32 %s315, %s317
          %s319 = smul.addr %s17, 6
          %s320 = sadd.s32 %s318, %s319
          %s321 = smul.addr %s320, 4
          %s322 = scalar_lea.vmem %s2, %s321
          // Predicated region
          $region103: #{transformer_forward.32} parent=101 // pred_check
            _
          $region104: #{transformer_forward.32} parent=101 // pred_check_branch
            %324 = sbr.rel (0) target = $region106
          $region105: #{transformer_forward.32} parent=101 // pred_region
            // Predicated region
            $region107: #{transformer_forward.32} parent=105 // pred_check
              _
            $region108: #{transformer_forward.32} parent=105 // pred_check_branch
              %326 = sbr.rel target = $region110
            $region109: #{transformer_forward.32} parent=105 // pred_region
              // Predicated region
              $region122: #{transformer_forward.32} parent=109 // pred_check
                _
              $region123: #{transformer_forward.32} parent=109 // pred_check_branch
                %343 = sbr.rel (0) target = $region125
              $region124: #{transformer_forward.32} parent=109 // pred_region
                loop: start=0, step=1, limit=1
                $region126: #{transformer_forward.32} parent=124 // loop_pre_header
                  _
                $region127: #{transformer_forward.32} parent=124 // loop_header
                  %s345 = sphi 0, %s349
                  %p346 = scmp.ge.s32.totalorder %s345, 1
                  %s350 = sphi %s322, %s322
                  %s351 = sphi %s314, %s314
                $region128: #{transformer_forward.32} parent=124 // loop_header_branch
                  %348 = sbr.rel (%p346) target = $region132
                $region129: #{transformer_forward.32} parent=124 // loop_body
                  _
                $region130: #{transformer_forward.32} parent=124 // loop_footer
                  %s349 = sadd.s32 1, %s345
                $region131: #{transformer_forward.32} parent=124 // loop_footer_branch
                  %344 = sbr.rel target = $region127
                $region132: #{transformer_forward.32} parent=124 // loop_exit
                  _
                loop: start=0, step=1, limit=1
                $region133: #{transformer_forward.32} parent=124 // loop_pre_header
                  _
                $region134: #{transformer_forward.32} parent=124 // loop_header
                  %s354 = sphi 0, %s358
                  %p355 = scmp.ge.s32.totalorder %s354, 1
                  %s359 = sphi %s322, %s322
                  %s360 = sphi %s314, %s314
                $region135: #{transformer_forward.32} parent=124 // loop_header_branch
                  %357 = sbr.rel (%p355) target = $region139
                $region136: #{transformer_forward.32} parent=124 // loop_body
                  %v361 = vld [vmem:[%s359] sm:$0xf]
                  %362 = vst [vmem:[%s360] sm:$0xf] %v361
                  %v363 = vld [vmem:[%s359 + $0xc] sm:$0xf]
                  %364 = vst [vmem:[%s360 + $0x4] sm:$0xf] %v363
                $region137: #{transformer_forward.32} parent=124 // loop_footer
                  %s358 = sadd.s32 1, %s354
                $region138: #{transformer_forward.32} parent=124 // loop_footer_branch
                  %353 = sbr.rel target = $region134
                $region139: #{transformer_forward.32} parent=124 // loop_exit
                  _
              $region125: #{transformer_forward.32} parent=109 // pred_fallthru
                _
            $region110: #{transformer_forward.32} parent=105 // pred_fallthru
              _
            // Predicated region
            $region111: #{transformer_forward.32} parent=105 // pred_check
              _
            $region112: #{transformer_forward.32} parent=105 // pred_check_branch
              %328 = sbr.rel (0) target = $region114
            $region113: #{transformer_forward.32} parent=105 // pred_region
              loop: start=0, step=1, limit=1
              $region115: #{transformer_forward.32} parent=113 // loop_pre_header
                _
              $region116: #{transformer_forward.32} parent=113 // loop_header
                %s331 = sphi 0, %s335
                %p332 = scmp.ge.s32.totalorder %s331, 1
                %s336 = sphi %s322, %s322
                %s337 = sphi %s314, %s314
              $region117: #{transformer_forward.32} parent=113 // loop_header_branch
                %334 = sbr.rel (%p332) target = $region121
              $region118: #{transformer_forward.32} parent=113 // loop_body
                %v338 = vld [vmem:[%s336] sm:$0xf]
                %339 = vst [vmem:[%s337] sm:$0xf] %v338
                %v340 = vld [vmem:[%s336 + $0xc] sm:$0xf]
                %341 = vst [vmem:[%s337 + $0x4] sm:$0xf] %v340
              $region119: #{transformer_forward.32} parent=113 // loop_footer
                %s335 = sadd.s32 1, %s331
              $region120: #{transformer_forward.32} parent=113 // loop_footer_branch
                %330 = sbr.rel target = $region116
              $region121: #{transformer_forward.32} parent=113 // loop_exit
                _
            $region114: #{transformer_forward.32} parent=105 // pred_fallthru
              _
          $region106: #{transformer_forward.32} parent=101 // pred_fallthru
            _
          %365 = vnop
        $region102: #{transformer_forward.32} parent=15 // pred_fallthru
          _
        // Predicated region
        $region140: #{transformer_forward.32} parent=15 // pred_check
          %p366 = pneg %p143
        $region141: #{transformer_forward.32} parent=15 // pred_check_branch
          %368 = sbr.rel (%p366) target = $region143
        $region142: #{transformer_forward.32} parent=15 // pred_region
          %p369 = scmp.lt.s32.totalorder %s17, 1
          %s370 = scalar_select %p369, %s17, 1
          %p371 = scmp.lt.s32.totalorder %s19, 0
          %s372 = scalar_select %p371, %s19, 0
          %s373 = sadd.s32 %s372, %s370
          %s374 = scalar_lea.vmem %s3, %s373
        $region143: #{transformer_forward.32} parent=15 // pred_fallthru
          _
      $region16: #{transformer_forward.32} parent=5 // pred_fallthru
        _
      %p375 = scmp.le.s32.totalorder 1, %s10
      %p376 = scmp.lt.s32.totalorder %s10, 3
      %p377 = pnand %p375, %p376
      %p378 = pneg %p377
      // Predicated region
      $region144: #{transformer_forward.32} parent=5 // pred_check
        _
      $region145: #{transformer_forward.32} parent=5 // pred_check_branch
        %380 = sbr.rel (%p377) target = $region147
      $region146: #{transformer_forward.32} parent=5 // pred_region
        %s381 = ssub.s32 %s10, 1
        %s382 = sand.u32 %s44, 1
        %s383 = sand.u32 %s44, 1
        %s384 = smul.addr %s383, 8
        %s385 = scalar_lea.vmem [#allocation5], %s384
        // Predicated region
        $region148: #{transformer_forward.32} parent=146 // pred_check
          %p386 = pneg %p57
        $region149: #{transformer_forward.32} parent=146 // pred_check_branch
          %388 = sbr.rel (%p386) target = $region151
        $region150: #{transformer_forward.32} parent=146 // pred_region
          _
        $region151: #{transformer_forward.32} parent=146 // pred_fallthru
          _
        %s389 = sand.u32 %s76, 1
        %s390 = sand.u32 %s76, 1
        %s391 = smul.addr %s390, 8
        %s392 = scalar_lea.vmem [#allocation6], %s391
        // Predicated region
        $region152: #{transformer_forward.32} parent=146 // pred_check
          %p393 = pneg %p89
        $region153: #{transformer_forward.32} parent=146 // pred_check_branch
          %395 = sbr.rel (%p393) target = $region155
        $region154: #{transformer_forward.32} parent=146 // pred_region
          _
        $region155: #{transformer_forward.32} parent=146 // pred_fallthru
          _
        %s396 = sand.u32 %s108, 1
        %s397 = sand.u32 %s108, 1
        %s398 = smul.addr %s397, 8
        %s399 = scalar_lea.vmem [#allocation7], %s398
        // Predicated region
        $region156: #{transformer_forward.32} parent=146 // pred_check
          %p400 = pneg %p121
        $region157: #{transformer_forward.32} parent=146 // pred_check_branch
          %402 = sbr.rel (%p400) target = $region159
        $region158: #{transformer_forward.32} parent=146 // pred_region
          _
        $region159: #{transformer_forward.32} parent=146 // pred_fallthru
          _
        %s403 = sand.u32 %s44, 1
        %s404 = sand.u32 %s44, 1
        %s405 = smul.addr %s404, 8
        %s406 = scalar_lea.vmem [#allocation5], %s405
        %p407 = pneg %p57
        %p408 = pneg %p54
        %s409 = sand.u32 %s76, 1
        %s410 = sand.u32 %s76, 1
        %s411 = smul.addr %s410, 8
        %s412 = scalar_lea.vmem [#allocation6], %s411
        %p413 = pneg %p89
        %p414 = pneg %p86
        %s415 = sand.u32 %s108, 1
        %s416 = sand.u32 %s108, 1
        %s417 = smul.addr %s416, 8
        %s418 = scalar_lea.vmem [#allocation7], %s417
        %p419 = pneg %p121
        %p420 = pneg %p118
        %p421 = scmp.lt.s32.totalorder %s20, 1
        %s422 = scalar_select %p421, %s20, 1
        %p423 = scmp.lt.s32.totalorder %s22, 0
        %s424 = scalar_select %p423, %s22, 0
        %s425 = sadd.s32 %s424, %s422
        %s426 = scalar_lea.vmem %s3, %s425
        %p427 = pneg %p149
        %p428 = pneg %p146
        %p429 = pneg %p177
        %p430 = pneg %p174
        %p431 = scmp.lt.s32.totalorder %s20, 1
        %s432 = scalar_select %p431, %s20, 1
        %p433 = scmp.lt.s32.totalorder %s21, 0
        %s434 = scalar_select %p433, %s21, 0
        %s435 = smul.addr %s432, 2
        %s436 = sadd.s32 %s434, %s435
        %s437 = smul.addr %s436, 4
        %s438 = scalar_lea.vmem %s4, %s437
        %s439 = sadd.s32 %s21, 1
        %s440 = smul.u32 2, %s22
        %s441 = sadd.s32 %s21, 2
        %s442 = smul.u32 2, %s22
        %p443 = scmp.lt.s32.totalorder %s20, 1
        %s444 = scalar_select %p443, %s20, 1
        %p445 = scmp.lt.s32.totalorder %s22, 0
        %s446 = scalar_select %p445, %s22, 0
        %s447 = sadd.s32 %s446, %s444
        %s448 = scalar_lea.vmem %s3, %s447
        %p449 = scmp.lt.s32.totalorder %s20, 1
        %s450 = scalar_select %p449, %s20, 1
        %p451 = scmp.lt.s32.totalorder %s21, 0
        %s452 = scalar_select %p451, %s21, 0
        %s453 = smul.addr %s450, 2
        %s454 = sadd.s32 %s452, %s453
        %s455 = smul.addr %s454, 4
        %s456 = scalar_lea.vmem %s4, %s455
        %v458 = vld [vmem:[%s385] sm:$0xf]
        %v459 = vld [vmem:[%s385 + $0x4] sm:$0x1]
        %v460 = vld [vmem:[%s392] sm:$0xf]
        %v461 = vld [vmem:[%s392 + $0x4] sm:$0x1]
        %v462 = vld [vmem:[%s399] sm:$0xf]
        %v463 = vld [vmem:[%s399 + $0x4] sm:$0x1]
        %v464 = vld [vmem:[%s448] sm:$0x1]
        %p465 = scmp.eq.s32.totalorder %s22, 0
        // Predicated region
        $region160: #{transformer_forward.32} parent=146 // pred_check
          %p466 = pneg %p465
        $region161: #{transformer_forward.32} parent=146 // pred_check_branch
          %468 = sbr.rel (%p466) target = $region163
        $region162: #{transformer_forward.32} parent=146 // pred_region
          %vm469 = vcmask 7168
          %470 = vst.msk [vmem:[#allocation2] sm:$0xff] %vm469, -inf
          %vm471 = vcmask 1024
          %472 = vst.msk [vmem:[#allocation2 + $0x8] sm:$0x3] %vm471, -inf
          %473 = vst.msk [vmem:[#allocation2 + $0x10] sm:$0xff] %vm469, -inf
          %474 = vst.msk [vmem:[#allocation2 + $0x18] sm:$0x3] %vm471, -inf
          %475 = vst.msk [vmem:[#allocation2 + $0x20] sm:$0xff] %vm469, -inf
          %476 = vst.msk [vmem:[#allocation2 + $0x28] sm:$0x3] %vm471, -inf
          %477 = vst.msk [vmem:[#allocation2 + $0x30] sm:$0xff] %vm469, -inf
          %478 = vst.msk [vmem:[#allocation2 + $0x38] sm:$0x3] %vm471, -inf
          %479 = vst.msk [vmem:[#allocation3] sm:$0xff] %vm469, 0.0
          %480 = vst.msk [vmem:[#allocation3 + $0x8] sm:$0x3] %vm471, 0.0
          %481 = vst.msk [vmem:[#allocation3 + $0x10] sm:$0xff] %vm469, 0.0
          %482 = vst.msk [vmem:[#allocation3 + $0x18] sm:$0x3] %vm471, 0.0
          %483 = vst.msk [vmem:[#allocation3 + $0x20] sm:$0xff] %vm469, 0.0
          %484 = vst.msk [vmem:[#allocation3 + $0x28] sm:$0x3] %vm471, 0.0
          %485 = vst.msk [vmem:[#allocation3 + $0x30] sm:$0xff] %vm469, 0.0
          %486 = vst.msk [vmem:[#allocation3 + $0x38] sm:$0x3] %vm471, 0.0
          %vm487 = vcmask 261120
          %488 = vst.msk [vmem:[#allocation4] sm:$0xff] %vm487, 0.0
          %vm489 = vcmask 254976
          %490 = vst.msk [vmem:[#allocation4 + $0x8] sm:$0x3] %vm489, 0.0
          %491 = vst.msk [vmem:[#allocation4 + $0x10] sm:$0xff] %vm487, 0.0
          %492 = vst.msk [vmem:[#allocation4 + $0x18] sm:$0x3] %vm489, 0.0
          %493 = vst.msk [vmem:[#allocation4 + $0x20] sm:$0xff] %vm487, 0.0
          %494 = vst.msk [vmem:[#allocation4 + $0x28] sm:$0x3] %vm489, 0.0
          %495 = vst.msk [vmem:[#allocation4 + $0x30] sm:$0xff] %vm487, 0.0
          %496 = vst.msk [vmem:[#allocation4 + $0x38] sm:$0x3] %vm489, 0.0
        $region163: #{transformer_forward.32} parent=146 // pred_fallthru
          _
        %v497 = vunpack.c.l.bf16 %v458
        %v498 = vunpack.c.l.bf16 %v459
        %v499 = vmul.f32 %v497, 0.17677669
        %v500 = vmul.f32 %v498, 0.17677669
        %v501 = vpack.c.bf16 %v500, %v499
        %v503 = vlaneseq
        %v504 = vshrl.u32 %v503, 7
        %v505 = vsub.s32 0, %v504
        %v506 = vrot.slane %v464, %v505
        %v510 = vunpack.c.l.b16 %v460
        %v511 = vunpack.c.l.b16 %v461
        %v512 = vpack.c.b16 %v511, %v510
        %vm513 = vcmask 261120
        %v515 = vsel %vm513, %v501, 0
        %v518 = vsel %vm513, %v512, 0
        %520 = vmatprep.subr.bf16.mxu0 0
        %521 = vmatpush1.bf16.xpose.msra.mxu0 %v518
        %522 = vmatprep.subr.bf16.mxu0 0
        %523 = vmatpush1.bf16.xpose.msra.mxu0 0
        %524 = vmatprep.subr.bf16.mxu0 0
        %525 = vmatpush1.bf16.xpose.msra.mxu0 0
        %526 = vmatprep.subr.bf16.mxu0 0
        %527 = vmatpush1.bf16.xpose.msra.mxu0 0
        %528 = vmatprep.subr.bf16.mxu0 0
        %529 = vmatpush1.bf16.xpose.msra.mxu0 0
        %530 = vmatprep.subr.bf16.mxu0 0
        %531 = vmatpush1.bf16.xpose.msra.mxu0 0
        %532 = vmatprep.subr.bf16.mxu0 0
        %533 = vmatpush1.bf16.xpose.msra.mxu0 0
        %534 = vmatprep.subr.bf16.mxu0 0
        %535 = vmatpush1.bf16.xpose.msra.mxu0 0
        %536 = vmatprep.subr.bf16.mxu0 0
        %537 = vmatpush1.bf16.xpose.msra.mxu0 0
        %538 = vmatprep.subr.bf16.mxu0 0
        %539 = vmatpush1.bf16.xpose.msra.mxu0 0
        %540 = vmatprep.subr.bf16.mxu0 0
        %541 = vmatpush1.bf16.xpose.msra.mxu0 0
        %542 = vmatprep.subr.bf16.mxu0 0
        %543 = vmatpush1.bf16.xpose.msra.mxu0 0
        %544 = vmatprep.subr.bf16.mxu0 0
        %545 = vmatpush1.bf16.xpose.msra.mxu0 0
        %546 = vmatprep.subr.bf16.mxu0 0
        %547 = vmatpush1.bf16.xpose.msra.mxu0 0
        %548 = vmatprep.subr.bf16.mxu0 0
        %549 = vmatpush1.bf16.xpose.msra.mxu0 0
        %550 = vmatprep.subr.bf16.mxu0 0
        %551 = vmatpush1.bf16.xpose.msra.mxu0 0
        %552 = vmatprep.mubr.bf16.mxu0 0
        %553 = vmatmul.mubr.bf16.gmra.mrb[0].mxu0 %v515
        %v554 = vpop.f32.mrb[0].mxu0
        %v555 = vadd.f32 %v506, %v554
        %v556 = vpop.f32.mrb[0].mxu0
        %v557 = vpop.f32.mrb[0].mxu0
        %v558 = vadd.f32 %v506, %v557
        %v559 = vpop.f32.mrb[0].mxu0
        %560 = vdwg.mxu0
        %v561 = vld [vmem:[#allocation2] sm:$0xff]
        %v562 = vld [vmem:[#allocation2 + $0x8] sm:$0x3]
        %vm563 = vcmask 80896
        %v564 = vsel %vm563, %v555, -inf
        %565 = vmax.xlane.f32.xlu0 %v564
        %v566 = vpop.xlane.xlu0 %565
        %vm567 = vcmask 74752
        %v568 = vsel %vm567, %v558, -inf
        %569 = vmax.xlane.f32.xlu0 %v568
        %v570 = vpop.xlane.xlu0 %569
        %v571 = vmax.f32 %v561, %v566
        %v572 = vmax.f32 %v562, %v570
        %v573 = vsub.f32 %v561, %v571
        %v574 = vsub.f32 %v562, %v572
        %v575 = vmul.f32 %v573, 1.442695
        %v576 = vpow.pop %v575
        %v577 = vmul.f32 %v574, 1.442695
        %v578 = vpow.pop %v577
        %580 = vset.pattern.permute.xlu0 0
        %581 = vperm.xlu0 %580, %v571
        %v582 = vpop.permute.xlu0 %581
        %585 = vset.pattern.permute.xlu0 0
        %586 = vperm.xlu0 %585, %v572
        %v587 = vpop.permute.xlu0 %586
        %v589 = vsub.f32 %v555, %v582
        %v590 = vsub.f32 %v558, %v587
        %v591 = vmul.f32 %v589, 1.442695
        %v592 = vpow.pop %v591
        %v593 = vmul.f32 %v590, 1.442695
        %v594 = vpow.pop %v593
        %v595 = vld [vmem:[#allocation3] sm:$0xff]
        %v596 = vld [vmem:[#allocation3 + $0x8] sm:$0x3]
        %v597 = vmul.f32 %v576, %v595
        %v598 = vmul.f32 %v578, %v596
        %v599 = vsel %vm563, %v592, 0.0
        %600 = vadd.xlane.f32.xlu0 %v599
        %v601 = vpop.xlane.xlu0 %600
        %v602 = vsel %vm567, %v594, 0.0
        %603 = vadd.xlane.f32.xlu0 %v602
        %v604 = vpop.xlane.xlu0 %603
        %v605 = vadd.f32 %v597, %v601
        %v606 = vadd.f32 %v598, %v604
        %vm607 = vcmask 7168
        %608 = vst.msk [vmem:[#allocation3] sm:$0xff] %vm607, %v605
        %vm609 = vcmask 1024
        %610 = vst.msk [vmem:[#allocation3 + $0x8] sm:$0x3] %vm609, %v606
        %v611 = vld [vmem:[#allocation4] sm:$0xff]
        %v612 = vld [vmem:[#allocation4 + $0x8] sm:$0x3]
        %614 = vset.pattern.permute.xlu0 0
        %615 = vperm.xlu0 %614, %v576
        %v616 = vpop.permute.xlu0 %615
        %619 = vset.pattern.permute.xlu0 0
        %620 = vperm.xlu0 %619, %v578
        %v621 = vpop.permute.xlu0 %620
        %v623 = vmul.f32 %v616, %v611
        %v624 = vmul.f32 %v621, %v612
        %v625 = vpack.c.bf16 %v594, %v592
        %v628 = vunpack.c.l.b16 %v462
        %v629 = vunpack.c.l.b16 %v463
        %v630 = vpack.c.b16 %v629, %v628
        %v632 = vsel %vm563, %v625, 0
        %vm634 = vcmask 1044480
        %v636 = vsel %vm634, %v630, 0
        %638 = vmatprep.subr.bf16.mxu0 0
        %639 = vmatpush1.bf16.msra.mxu0 %v636
        %640 = vmatprep.subr.bf16.mxu0 0
        %641 = vmatpush1.bf16.msra.mxu0 0
        %642 = vmatprep.subr.bf16.mxu0 0
        %643 = vmatpush1.bf16.msra.mxu0 0
        %644 = vmatprep.subr.bf16.mxu0 0
        %645 = vmatpush1.bf16.msra.mxu0 0
        %646 = vmatprep.subr.bf16.mxu0 0
        %647 = vmatpush1.bf16.msra.mxu0 0
        %648 = vmatprep.subr.bf16.mxu0 0
        %649 = vmatpush1.bf16.msra.mxu0 0
        %650 = vmatprep.subr.bf16.mxu0 0
        %651 = vmatpush1.bf16.msra.mxu0 0
        %652 = vmatprep.subr.bf16.mxu0 0
        %653 = vmatpush1.bf16.msra.mxu0 0
        %654 = vmatprep.subr.bf16.mxu0 0
        %655 = vmatpush1.bf16.msra.mxu0 0
        %656 = vmatprep.subr.bf16.mxu0 0
        %657 = vmatpush1.bf16.msra.mxu0 0
        %658 = vmatprep.subr.bf16.mxu0 0
        %659 = vmatpush1.bf16.msra.mxu0 0
        %660 = vmatprep.subr.bf16.mxu0 0
        %661 = vmatpush1.bf16.msra.mxu0 0
        %662 = vmatprep.subr.bf16.mxu0 0
        %663 = vmatpush1.bf16.msra.mxu0 0
        %664 = vmatprep.subr.bf16.mxu0 0
        %665 = vmatpush1.bf16.msra.mxu0 0
        %666 = vmatprep.subr.bf16.mxu0 0
        %667 = vmatpush1.bf16.msra.mxu0 0
        %668 = vmatprep.subr.bf16.mxu0 0
        %669 = vmatpush1.bf16.msra.mxu0 0
        %670 = vmatprep.mubr.bf16.mxu0 0
        %671 = vmatmul.mubr.bf16.gmra.mrb[0].mxu0 %v632
        %v672 = vpop.f32.mrb[0].mxu0
        %v673 = vadd.f32 0.0, %v672
        %v674 = vpop.f32.mrb[0].mxu0
        %v675 = vpop.f32.mrb[0].mxu0
        %v676 = vadd.f32 0.0, %v675
        %v677 = vpop.f32.mrb[0].mxu0
        %678 = vdwg.mxu0
        %v679 = vadd.f32 %v623, %v673
        %v680 = vadd.f32 %v624, %v676
        %681 = vst.msk [vmem:[#allocation4] sm:$0xff] %vm513, %v679
        %vm682 = vcmask 254976
        %683 = vst.msk [vmem:[#allocation4 + $0x8] sm:$0x3] %vm682, %v680
        %684 = vst.msk [vmem:[#allocation2] sm:$0xff] %vm607, %v571
        %685 = vst.msk [vmem:[#allocation2 + $0x8] sm:$0x3] %vm609, %v572
        %687 = vrot.lane.b32.xlu0 %v501, 96
        %v688 = vpop.permute.xlu0 %687
        %689 = vrot.lane.b32.xlu0 %v512, 96
        %v690 = vpop.permute.xlu0 %689
        %v692 = vsel %vm513, %v688, 0
        %v695 = vsel %vm513, %v690, 0
        %697 = vmatprep.subr.bf16.mxu0 0
        %698 = vmatpush1.bf16.xpose.msra.mxu0 %v695
        %699 = vmatprep.subr.bf16.mxu0 0
        %700 = vmatpush1.bf16.xpose.msra.mxu0 0
        %701 = vmatprep.subr.bf16.mxu0 0
        %702 = vmatpush1.bf16.xpose.msra.mxu0 0
        %703 = vmatprep.subr.bf16.mxu0 0
        %704 = vmatpush1.bf16.xpose.msra.mxu0 0
        %705 = vmatprep.subr.bf16.mxu0 0
        %706 = vmatpush1.bf16.xpose.msra.mxu0 0
        %707 = vmatprep.subr.bf16.mxu0 0
        %708 = vmatpush1.bf16.xpose.msra.mxu0 0
        %709 = vmatprep.subr.bf16.mxu0 0
        %710 = vmatpush1.bf16.xpose.msra.mxu0 0
        %711 = vmatprep.subr.bf16.mxu0 0
        %712 = vmatpush1.bf16.xpose.msra.mxu0 0
        %713 = vmatprep.subr.bf16.mxu0 0
        %714 = vmatpush1.bf16.xpose.msra.mxu0 0
        %715 = vmatprep.subr.bf16.mxu0 0
        %716 = vmatpush1.bf16.xpose.msra.mxu0 0
        %717 = vmatprep.subr.bf16.mxu0 0
        %718 = vmatpush1.bf16.xpose.msra.mxu0 0
        %719 = vmatprep.subr.bf16.mxu0 0
        %720 = vmatpush1.bf16.xpose.msra.mxu0 0
        %721 = vmatprep.subr.bf16.mxu0 0
        %722 = vmatpush1.bf16.xpose.msra.mxu0 0
        %723 = vmatprep.subr.bf16.mxu0 0
        %724 = vmatpush1.bf16.xpose.msra.mxu0 0
        %725 = vmatprep.subr.bf16.mxu0 0
        %726 = vmatpush1.bf16.xpose.msra.mxu0 0
        %727 = vmatprep.subr.bf16.mxu0 0
        %728 = vmatpush1.bf16.xpose.msra.mxu0 0
        %729 = vmatprep.mubr.bf16.mxu0 0
        %730 = vmatmul.mubr.bf16.gmra.mrb[0].mxu0 %v692
        %v731 = vpop.f32.mrb[0].mxu0
        %v732 = vadd.f32 %v506, %v731
        %v733 = vpop.f32.mrb[0].mxu0
        %v734 = vpop.f32.mrb[0].mxu0
        %v735 = vadd.f32 %v506, %v734
        %v736 = vpop.f32.mrb[0].mxu0
        %737 = vdwg.mxu0
        %s738 = scalar_lea.vmem [#allocation2], 16
        %v739 = vld [vmem:[%s738] sm:$0xff]
        %v740 = vld [vmem:[%s738 + $0x8] sm:$0x3]
        %v741 = vsel %vm563, %v732, -inf
        %742 = vmax.xlane.f32.xlu0 %v741
        %v743 = vpop.xlane.xlu0 %742
        %v744 = vsel %vm567, %v735, -inf
        %745 = vmax.xlane.f32.xlu0 %v744
        %v746 = vpop.xlane.xlu0 %745
        %v747 = vmax.f32 %v739, %v743
        %v748 = vmax.f32 %v740, %v746
        %v749 = vsub.f32 %v739, %v747
        %v750 = vsub.f32 %v740, %v748
        %v751 = vmul.f32 %v749, 1.442695
        %v752 = vpow.pop %v751
        %v753 = vmul.f32 %v750, 1.442695
        %v754 = vpow.pop %v753
        %756 = vset.pattern.permute.xlu0 0
        %757 = vperm.xlu0 %756, %v747
        %v758 = vpop.permute.xlu0 %757
        %761 = vset.pattern.permute.xlu0 0
        %762 = vperm.xlu0 %761, %v748
        %v763 = vpop.permute.xlu0 %762
        %v765 = vsub.f32 %v732, %v758
        %v766 = vsub.f32 %v735, %v763
        %v767 = vmul.f32 %v765, 1.442695
        %v768 = vpow.pop %v767
        %v769 = vmul.f32 %v766, 1.442695
        %v770 = vpow.pop %v769
        %s771 = scalar_lea.vmem [#allocation3], 16
        %v772 = vld [vmem:[%s771] sm:$0xff]
        %v773 = vld [vmem:[%s771 + $0x8] sm:$0x3]
        %v774 = vmul.f32 %v752, %v772
        %v775 = vmul.f32 %v754, %v773
        %v776 = vsel %vm563, %v768, 0.0
        %777 = vadd.xlane.f32.xlu0 %v776
        %v778 = vpop.xlane.xlu0 %777
        %v779 = vsel %vm567, %v770, 0.0
        %780 = vadd.xlane.f32.xlu0 %v779
        %v781 = vpop.xlane.xlu0 %780
        %v782 = vadd.f32 %v774, %v778
        %v783 = vadd.f32 %v775, %v781
        %784 = vst.msk [vmem:[%s771] sm:$0xff] %vm607, %v782
        %785 = vst.msk [vmem:[%s771 + $0x8] sm:$0x3] %vm609, %v783
        %s786 = scalar_lea.vmem [#allocation4], 16
        %v787 = vld [vmem:[%s786] sm:$0xff]
        %v788 = vld [vmem:[%s786 + $0x8] sm:$0x3]
        %790 = vset.pattern.permute.xlu0 0
        %791 = vperm.xlu0 %790, %v752
        %v792 = vpop.permute.xlu0 %791
        %795 = vset.pattern.permute.xlu0 0
        %796 = vperm.xlu0 %795, %v754
        %v797 = vpop.permute.xlu0 %796
        %v799 = vmul.f32 %v792, %v787
        %v800 = vmul.f32 %v797, %v788
        %v801 = vpack.c.bf16 %v770, %v768
        %802 = vrot.lane.b32.xlu0 %v630, 96
        %v803 = vpop.permute.xlu0 %802
        %v805 = vsel %vm563, %v801, 0
        %v808 = vsel %vm634, %v803, 0
        %810 = vmatprep.subr.bf16.mxu0 0
        %811 = vmatpush1.bf16.msra.mxu0 %v808
        %812 = vmatprep.subr.bf16.mxu0 0
        %813 = vmatpush1.bf16.msra.mxu0 0
        %814 = vmatprep.subr.bf16.mxu0 0
        %815 = vmatpush1.bf16.msra.mxu0 0
        %816 = vmatprep.subr.bf16.mxu0 0
        %817 = vmatpush1.bf16.msra.mxu0 0
        %818 = vmatprep.subr.bf16.mxu0 0
        %819 = vmatpush1.bf16.msra.mxu0 0
        %820 = vmatprep.subr.bf16.mxu0 0
        %821 = vmatpush1.bf16.msra.mxu0 0
        %822 = vmatprep.subr.bf16.mxu0 0
        %823 = vmatpush1.bf16.msra.mxu0 0
        %824 = vmatprep.subr.bf16.mxu0 0
        %825 = vmatpush1.bf16.msra.mxu0 0
        %826 = vmatprep.subr.bf16.mxu0 0
        %827 = vmatpush1.bf16.msra.mxu0 0
        %828 = vmatprep.subr.bf16.mxu0 0
        %829 = vmatpush1.bf16.msra.mxu0 0
        %830 = vmatprep.subr.bf16.mxu0 0
        %831 = vmatpush1.bf16.msra.mxu0 0
        %832 = vmatprep.subr.bf16.mxu0 0
        %833 = vmatpush1.bf16.msra.mxu0 0
        %834 = vmatprep.subr.bf16.mxu0 0
        %835 = vmatpush1.bf16.msra.mxu0 0
        %836 = vmatprep.subr.bf16.mxu0 0
        %837 = vmatpush1.bf16.msra.mxu0 0
        %838 = vmatprep.subr.bf16.mxu0 0
        %839 = vmatpush1.bf16.msra.mxu0 0
        %840 = vmatprep.subr.bf16.mxu0 0
        %841 = vmatpush1.bf16.msra.mxu0 0
        %842 = vmatprep.mubr.bf16.mxu0 0
        %843 = vmatmul.mubr.bf16.gmra.mrb[0].mxu0 %v805
        %v844 = vpop.f32.mrb[0].mxu0
        %v845 = vadd.f32 0.0, %v844
        %v846 = vpop.f32.mrb[0].mxu0
        %v847 = vpop.f32.mrb[0].mxu0
        %v848 = vadd.f32 0.0, %v847
        %v849 = vpop.f32.mrb[0].mxu0
        %850 = vdwg.mxu0
        %v851 = vadd.f32 %v799, %v845
        %v852 = vadd.f32 %v800, %v848
        %853 = vst.msk [vmem:[%s786] sm:$0xff] %vm513, %v851
        %854 = vst.msk [vmem:[%s786 + $0x8] sm:$0x3] %vm682, %v852
        %855 = vst.msk [vmem:[%s738] sm:$0xff] %vm607, %v747
        %856 = vst.msk [vmem:[%s738 + $0x8] sm:$0x3] %vm609, %v748
        %857 = vrot.lane.b32.xlu0 %v501, 64
        %v858 = vpop.permute.xlu0 %857
        %859 = vrot.lane.b32.xlu0 %v512, 64
        %v860 = vpop.permute.xlu0 %859
        %v862 = vsel %vm513, %v858, 0
        %v865 = vsel %vm513, %v860, 0
        %867 = vmatprep.subr.bf16.mxu0 0
        %868 = vmatpush1.bf16.xpose.msra.mxu0 %v865
        %869 = vmatprep.subr.bf16.mxu0 0
        %870 = vmatpush1.bf16.xpose.msra.mxu0 0
        %871 = vmatprep.subr.bf16.mxu0 0
        %872 = vmatpush1.bf16.xpose.msra.mxu0 0
        %873 = vmatprep.subr.bf16.mxu0 0
        %874 = vmatpush1.bf16.xpose.msra.mxu0 0
        %875 = vmatprep.subr.bf16.mxu0 0
        %876 = vmatpush1.bf16.xpose.msra.mxu0 0
        %877 = vmatprep.subr.bf16.mxu0 0
        %878 = vmatpush1.bf16.xpose.msra.mxu0 0
        %879 = vmatprep.subr.bf16.mxu0 0
        %880 = vmatpush1.bf16.xpose.msra.mxu0 0
        %881 = vmatprep.subr.bf16.mxu0 0
        %882 = vmatpush1.bf16.xpose.msra.mxu0 0
        %883 = vmatprep.subr.bf16.mxu0 0
        %884 = vmatpush1.bf16.xpose.msra.mxu0 0
        %885 = vmatprep.subr.bf16.mxu0 0
        %886 = vmatpush1.bf16.xpose.msra.mxu0 0
        %887 = vmatprep.subr.bf16.mxu0 0
        %888 = vmatpush1.bf16.xpose.msra.mxu0 0
        %889 = vmatprep.subr.bf16.mxu0 0
        %890 = vmatpush1.bf16.xpose.msra.mxu0 0
        %891 = vmatprep.subr.bf16.mxu0 0
        %892 = vmatpush1.bf16.xpose.msra.mxu0 0
        %893 = vmatprep.subr.bf16.mxu0 0
        %894 = vmatpush1.bf16.xpose.msra.mxu0 0
        %895 = vmatprep.subr.bf16.mxu0 0
        %896 = vmatpush1.bf16.xpose.msra.mxu0 0
        %897 = vmatprep.subr.bf16.mxu0 0
        %898 = vmatpush1.bf16.xpose.msra.mxu0 0
        %899 = vmatprep.mubr.bf16.mxu0 0
        %900 = vmatmul.mubr.bf16.gmra.mrb[0].mxu0 %v862
        %v901 = vpop.f32.mrb[0].mxu0
        %v902 = vadd.f32 %v506, %v901
        %v903 = vpop.f32.mrb[0].mxu0
        %v904 = vpop.f32.mrb[0].mxu0
        %v905 = vadd.f32 %v506, %v904
        %v906 = vpop.f32.mrb[0].mxu0
        %907 = vdwg.mxu0
        %s908 = scalar_lea.vmem [#allocation2], 32
        %v909 = vld [vmem:[%s908] sm:$0xff]
        %v910 = vld [vmem:[%s908 + $0x8] sm:$0x3]
        %v911 = vsel %vm563, %v902, -inf
        %912 = vmax.xlane.f32.xlu0 %v911
        %v913 = vpop.xlane.xlu0 %912
        %v914 = vsel %vm567, %v905, -inf
        %915 = vmax.xlane.f32.xlu0 %v914
        %v916 = vpop.xlane.xlu0 %915
        %v917 = vmax.f32 %v909, %v913
        %v918 = vmax.f32 %v910, %v916
        %v919 = vsub.f32 %v909, %v917
        %v920 = vsub.f32 %v910, %v918
        %v921 = vmul.f32 %v919, 1.442695
        %v922 = vpow.pop %v921
        %v923 = vmul.f32 %v920, 1.442695
        %v924 = vpow.pop %v923
        %926 = vset.pattern.permute.xlu0 0
        %927 = vperm.xlu0 %926, %v917
        %v928 = vpop.permute.xlu0 %927
        %931 = vset.pattern.permute.xlu0 0
        %932 = vperm.xlu0 %931, %v918
        %v933 = vpop.permute.xlu0 %932
        %v935 = vsub.f32 %v902, %v928
        %v936 = vsub.f32 %v905, %v933
        %v937 = vmul.f32 %v935, 1.442695
        %v938 = vpow.pop %v937
        %v939 = vmul.f32 %v936, 1.442695
        %v940 = vpow.pop %v939
        %s941 = scalar_lea.vmem [#allocation3], 32
        %v942 = vld [vmem:[%s941] sm:$0xff]
        %v943 = vld [vmem:[%s941 + $0x8] sm:$0x3]
        %v944 = vmul.f32 %v922, %v942
        %v945 = vmul.f32 %v924, %v943
        %v946 = vsel %vm563, %v938, 0.0
        %947 = vadd.xlane.f32.xlu0 %v946
        %v948 = vpop.xlane.xlu0 %947
        %v949 = vsel %vm567, %v940, 0.0
        %950 = vadd.xlane.f32.xlu0 %v949
        %v951 = vpop.xlane.xlu0 %950
        %v952 = vadd.f32 %v944, %v948
        %v953 = vadd.f32 %v945, %v951
        %954 = vst.msk [vmem:[%s941] sm:$0xff] %vm607, %v952
        %955 = vst.msk [vmem:[%s941 + $0x8] sm:$0x3] %vm609, %v953
        %s956 = scalar_lea.vmem [#allocation4], 32
        %v957 = vld [vmem:[%s956] sm:$0xff]
        %v958 = vld [vmem:[%s956 + $0x8] sm:$0x3]
        %960 = vset.pattern.permute.xlu0 0
        %961 = vperm.xlu0 %960, %v922
        %v962 = vpop.permute.xlu0 %961
        %965 = vset.pattern.permute.xlu0 0
        %966 = vperm.xlu0 %965, %v924
        %v967 = vpop.permute.xlu0 %966
        %v969 = vmul.f32 %v962, %v957
        %v970 = vmul.f32 %v967, %v958
        %v971 = vpack.c.bf16 %v940, %v938
        %972 = vrot.lane.b32.xlu0 %v630, 64
        %v973 = vpop.permute.xlu0 %972
        %v975 = vsel %vm563, %v971, 0
        %v978 = vsel %vm634, %v973, 0
        %980 = vmatprep.subr.bf16.mxu0 0
        %981 = vmatpush1.bf16.msra.mxu0 %v978
        %982 = vmatprep.subr.bf16.mxu0 0
        %983 = vmatpush1.bf16.msra.mxu0 0
        %984 = vmatprep.subr.bf16.mxu0 0
        %985 = vmatpush1.bf16.msra.mxu0 0
        %986 = vmatprep.subr.bf16.mxu0 0
        %987 = vmatpush1.bf16.msra.mxu0 0
        %988 = vmatprep.subr.bf16.mxu0 0
        %989 = vmatpush1.bf16.msra.mxu0 0
        %990 = vmatprep.subr.bf16.mxu0 0
        %991 = vmatpush1.bf16.msra.mxu0 0
        %992 = vmatprep.subr.bf16.mxu0 0
        %993 = vmatpush1.bf16.msra.mxu0 0
        %994 = vmatprep.subr.bf16.mxu0 0
        %995 = vmatpush1.bf16.msra.mxu0 0
        %996 = vmatprep.subr.bf16.mxu0 0
        %997 = vmatpush1.bf16.msra.mxu0 0
        %998 = vmatprep.subr.bf16.mxu0 0
        %999 = vmatpush1.bf16.msra.mxu0 0
        %1000 = vmatprep.subr.bf16.mxu0 0
        %1001 = vmatpush1.bf16.msra.mxu0 0
        %1002 = vmatprep.subr.bf16.mxu0 0
        %1003 = vmatpush1.bf16.msra.mxu0 0
        %1004 = vmatprep.subr.bf16.mxu0 0
        %1005 = vmatpush1.bf16.msra.mxu0 0
        %1006 = vmatprep.subr.bf16.mxu0 0
        %1007 = vmatpush1.bf16.msra.mxu0 0
        %1008 = vmatprep.subr.bf16.mxu0 0
        %1009 = vmatpush1.bf16.msra.mxu0 0
        %1010 = vmatprep.subr.bf16.mxu0 0
        %1011 = vmatpush1.bf16.msra.mxu0 0
        %1012 = vmatprep.mubr.bf16.mxu0 0
        %1013 = vmatmul.mubr.bf16.gmra.mrb[0].mxu0 %v975
        %v1014 = vpop.f32.mrb[0].mxu0
        %v1015 = vadd.f32 0.0, %v1014
        %v1016 = vpop.f32.mrb[0].mxu0
        %v1017 = vpop.f32.mrb[0].mxu0
        %v1018 = vadd.f32 0.0, %v1017
        %v1019 = vpop.f32.mrb[0].mxu0
        %1020 = vdwg.mxu0
        %v1021 = vadd.f32 %v969, %v1015
        %v1022 = vadd.f32 %v970, %v1018
        %1023 = vst.msk [vmem:[%s956] sm:$0xff] %vm513, %v1021
        %1024 = vst.msk [vmem:[%s956 + $0x8] sm:$0x3] %vm682, %v1022
        %1025 = vst.msk [vmem:[%s908] sm:$0xff] %vm607, %v917
        %1026 = vst.msk [vmem:[%s908 + $0x8] sm:$0x3] %vm609, %v918
        %1027 = vrot.lane.b32.xlu0 %v501, 32
        %v1028 = vpop.permute.xlu0 %1027
        %1029 = vrot.lane.b32.xlu0 %v512, 32
        %v1030 = vpop.permute.xlu0 %1029
        %v1032 = vsel %vm513, %v1028, 0
        %v1035 = vsel %vm513, %v1030, 0
        %1037 = vmatprep.subr.bf16.mxu0 0
        %1038 = vmatpush1.bf16.xpose.msra.mxu0 %v1035
        %1039 = vmatprep.subr.bf16.mxu0 0
        %1040 = vmatpush1.bf16.xpose.msra.mxu0 0
        %1041 = vmatprep.subr.bf16.mxu0 0
        %1042 = vmatpush1.bf16.xpose.msra.mxu0 0
        %1043 = vmatprep.subr.bf16.mxu0 0
        %1044 = vmatpush1.bf16.xpose.msra.mxu0 0
        %1045 = vmatprep.subr.bf16.mxu0 0
        %1046 = vmatpush1.bf16.xpose.msra.mxu0 0
        %1047 = vmatprep.subr.bf16.mxu0 0
        %1048 = vmatpush1.bf16.xpose.msra.mxu0 0
        %1049 = vmatprep.subr.bf16.mxu0 0
        %1050 = vmatpush1.bf16.xpose.msra.mxu0 0
        %1051 = vmatprep.subr.bf16.mxu0 0
        %1052 = vmatpush1.bf16.xpose.msra.mxu0 0
        %1053 = vmatprep.subr.bf16.mxu0 0
        %1054 = vmatpush1.bf16.xpose.msra.mxu0 0
        %1055 = vmatprep.subr.bf16.mxu0 0
        %1056 = vmatpush1.bf16.xpose.msra.mxu0 0
        %1057 = vmatprep.subr.bf16.mxu0 0
        %1058 = vmatpush1.bf16.xpose.msra.mxu0 0
        %1059 = vmatprep.subr.bf16.mxu0 0
        %1060 = vmatpush1.bf16.xpose.msra.mxu0 0
        %1061 = vmatprep.subr.bf16.mxu0 0
        %1062 = vmatpush1.bf16.xpose.msra.mxu0 0
        %1063 = vmatprep.subr.bf16.mxu0 0
        %1064 = vmatpush1.bf16.xpose.msra.mxu0 0
        %1065 = vmatprep.subr.bf16.mxu0 0
        %1066 = vmatpush1.bf16.xpose.msra.mxu0 0
        %1067 = vmatprep.subr.bf16.mxu0 0
        %1068 = vmatpush1.bf16.xpose.msra.mxu0 0
        %1069 = vmatprep.mubr.bf16.mxu0 0
        %1070 = vmatmul.mubr.bf16.gmra.mrb[0].mxu0 %v1032
        %v1071 = vpop.f32.mrb[0].mxu0
        %v1072 = vadd.f32 %v506, %v1071
        %v1073 = vpop.f32.mrb[0].mxu0
        %v1074 = vpop.f32.mrb[0].mxu0
        %v1075 = vadd.f32 %v506, %v1074
        %v1076 = vpop.f32.mrb[0].mxu0
        %1077 = vdwg.mxu0
        %s1078 = scalar_lea.vmem [#allocation2], 48
        %v1079 = vld [vmem:[%s1078] sm:$0xff]
        %v1080 = vld [vmem:[%s1078 + $0x8] sm:$0x3]
        %v1081 = vsel %vm563, %v1072, -inf
        %1082 = vmax.xlane.f32.xlu0 %v1081
        %v1083 = vpop.xlane.xlu0 %1082
        %v1084 = vsel %vm567, %v1075, -inf
        %1085 = vmax.xlane.f32.xlu0 %v1084
        %v1086 = vpop.xlane.xlu0 %1085
        %v1087 = vmax.f32 %v1079, %v1083
        %v1088 = vmax.f32 %v1080, %v1086
        %v1089 = vsub.f32 %v1079, %v1087
        %v1090 = vsub.f32 %v1080, %v1088
        %v1091 = vmul.f32 %v1089, 1.442695
        %v1092 = vpow.pop %v1091
        %v1093 = vmul.f32 %v1090, 1.442695
        %v1094 = vpow.pop %v1093
        %1096 = vset.pattern.permute.xlu0 0
        %1097 = vperm.xlu0 %1096, %v1087
        %v1098 = vpop.permute.xlu0 %1097
        %1101 = vset.pattern.permute.xlu0 0
        %1102 = vperm.xlu0 %1101, %v1088
        %v1103 = vpop.permute.xlu0 %1102
        %v1105 = vsub.f32 %v1072, %v1098
        %v1106 = vsub.f32 %v1075, %v1103
        %v1107 = vmul.f32 %v1105, 1.442695
        %v1108 = vpow.pop %v1107
        %v1109 = vmul.f32 %v1106, 1.442695
        %v1110 = vpow.pop %v1109
        %s1111 = scalar_lea.vmem [#allocation3], 48
        %v1112 = vld [vmem:[%s1111] sm:$0xff]
        %v1113 = vld [vmem:[%s1111 + $0x8] sm:$0x3]
        %v1114 = vmul.f32 %v1092, %v1112
        %v1115 = vmul.f32 %v1094, %v1113
        %v1116 = vsel %vm563, %v1108, 0.0
        %1117 = vadd.xlane.f32.xlu0 %v1116
        %v1118 = vpop.xlane.xlu0 %1117
        %v1119 = vsel %vm567, %v1110, 0.0
        %1120 = vadd.xlane.f32.xlu0 %v1119
        %v1121 = vpop.xlane.xlu0 %1120
        %v1122 = vadd.f32 %v1114, %v1118
        %v1123 = vadd.f32 %v1115, %v1121
        %1124 = vst.msk [vmem:[%s1111] sm:$0xff] %vm607, %v1122
        %1125 = vst.msk [vmem:[%s1111 + $0x8] sm:$0x3] %vm609, %v1123
        %s1126 = scalar_lea.vmem [#allocation4], 48
        %v1127 = vld [vmem:[%s1126] sm:$0xff]
        %v1128 = vld [vmem:[%s1126 + $0x8] sm:$0x3]
        %1130 = vset.pattern.permute.xlu0 0
        %1131 = vperm.xlu0 %1130, %v1092
        %v1132 = vpop.permute.xlu0 %1131
        %1135 = vset.pattern.permute.xlu0 0
        %1136 = vperm.xlu0 %1135, %v1094
        %v1137 = vpop.permute.xlu0 %1136
        %v1139 = vmul.f32 %v1132, %v1127
        %v1140 = vmul.f32 %v1137, %v1128
        %v1141 = vpack.c.bf16 %v1110, %v1108
        %1142 = vrot.lane.b32.xlu0 %v630, 32
        %v1143 = vpop.permute.xlu0 %1142
        %v1145 = vsel %vm563, %v1141, 0
        %v1148 = vsel %vm634, %v1143, 0
        %1150 = vmatprep.subr.bf16.mxu0 0
        %1151 = vmatpush1.bf16.msra.mxu0 %v1148
        %1152 = vmatprep.subr.bf16.mxu0 0
        %1153 = vmatpush1.bf16.msra.mxu0 0
        %1154 = vmatprep.subr.bf16.mxu0 0
        %1155 = vmatpush1.bf16.msra.mxu0 0
        %1156 = vmatprep.subr.bf16.mxu0 0
        %1157 = vmatpush1.bf16.msra.mxu0 0
        %1158 = vmatprep.subr.bf16.mxu0 0
        %1159 = vmatpush1.bf16.msra.mxu0 0
        %1160 = vmatprep.subr.bf16.mxu0 0
        %1161 = vmatpush1.bf16.msra.mxu0 0
        %1162 = vmatprep.subr.bf16.mxu0 0
        %1163 = vmatpush1.bf16.msra.mxu0 0
        %1164 = vmatprep.subr.bf16.mxu0 0
        %1165 = vmatpush1.bf16.msra.mxu0 0
        %1166 = vmatprep.subr.bf16.mxu0 0
        %1167 = vmatpush1.bf16.msra.mxu0 0
        %1168 = vmatprep.subr.bf16.mxu0 0
        %1169 = vmatpush1.bf16.msra.mxu0 0
        %1170 = vmatprep.subr.bf16.mxu0 0
        %1171 = vmatpush1.bf16.msra.mxu0 0
        %1172 = vmatprep.subr.bf16.mxu0 0
        %1173 = vmatpush1.bf16.msra.mxu0 0
        %1174 = vmatprep.subr.bf16.mxu0 0
        %1175 = vmatpush1.bf16.msra.mxu0 0
        %1176 = vmatprep.subr.bf16.mxu0 0
        %1177 = vmatpush1.bf16.msra.mxu0 0
        %1178 = vmatprep.subr.bf16.mxu0 0
        %1179 = vmatpush1.bf16.msra.mxu0 0
        %1180 = vmatprep.subr.bf16.mxu0 0
        %1181 = vmatpush1.bf16.msra.mxu0 0
        %1182 = vmatprep.mubr.bf16.mxu0 0
        %1183 = vmatmul.mubr.bf16.gmra.mrb[0].mxu0 %v1145
        %v1184 = vpop.f32.mrb[0].mxu0
        %v1185 = vadd.f32 0.0, %v1184
        %v1186 = vpop.f32.mrb[0].mxu0
        %v1187 = vpop.f32.mrb[0].mxu0
        %v1188 = vadd.f32 0.0, %v1187
        %v1189 = vpop.f32.mrb[0].mxu0
        %1190 = vdwg.mxu0
        %v1191 = vadd.f32 %v1139, %v1185
        %v1192 = vadd.f32 %v1140, %v1188
        %1193 = vst.msk [vmem:[%s1126] sm:$0xff] %vm513, %v1191
        %1194 = vst.msk [vmem:[%s1126 + $0x8] sm:$0x3] %vm682, %v1192
        %1195 = vst.msk [vmem:[%s1078] sm:$0xff] %vm607, %v1087
        %1196 = vst.msk [vmem:[%s1078 + $0x8] sm:$0x3] %vm609, %v1088
        // Predicated region
        $region164: #{transformer_forward.32} parent=146 // pred_check
          %p1197 = pneg %p465
        $region165: #{transformer_forward.32} parent=146 // pred_check_branch
          %1199 = sbr.rel (%p1197) target = $region167
        $region166: #{transformer_forward.32} parent=146 // pred_region
          %v1200 = vld [vmem:[#allocation4] sm:$0xff]
          %v1201 = vld [vmem:[#allocation4 + $0x8] sm:$0x3]
          %v1202 = vld [vmem:[#allocation3] sm:$0xff]
          %v1203 = vld [vmem:[#allocation3 + $0x8] sm:$0x3]
          %v1204 = vrcp.pop %v1202
          %v1205 = vrcp.pop %v1203
          %1207 = vset.pattern.permute.xlu0 0
          %1208 = vperm.xlu0 %1207, %v1204
          %v1209 = vpop.permute.xlu0 %1208
          %1212 = vset.pattern.permute.xlu0 0
          %1213 = vperm.xlu0 %1212, %v1205
          %v1214 = vpop.permute.xlu0 %1213
          %v1216 = vmul.f32 %v1200, %v1209
          %v1217 = vmul.f32 %v1201, %v1214
          %v1218 = vld [vmem:[%s786] sm:$0xff]
          %v1219 = vld [vmem:[%s786 + $0x8] sm:$0x3]
          %v1220 = vld [vmem:[%s771] sm:$0xff]
          %v1221 = vld [vmem:[%s771 + $0x8] sm:$0x3]
          %v1222 = vrcp.pop %v1220
          %v1223 = vrcp.pop %v1221
          %1225 = vset.pattern.permute.xlu0 0
          %1226 = vperm.xlu0 %1225, %v1222
          %v1227 = vpop.permute.xlu0 %1226
          %1230 = vset.pattern.permute.xlu0 0
          %1231 = vperm.xlu0 %1230, %v1223
          %v1232 = vpop.permute.xlu0 %1231
          %v1234 = vmul.f32 %v1218, %v1227
          %v1235 = vmul.f32 %v1219, %v1232
          %v1236 = vld [vmem:[%s956] sm:$0xff]
          %v1237 = vld [vmem:[%s956 + $0x8] sm:$0x3]
          %v1238 = vld [vmem:[%s941] sm:$0xff]
          %v1239 = vld [vmem:[%s941 + $0x8] sm:$0x3]
          %v1240 = vrcp.pop %v1238
          %v1241 = vrcp.pop %v1239
          %1243 = vset.pattern.permute.xlu0 0
          %1244 = vperm.xlu0 %1243, %v1240
          %v1245 = vpop.permute.xlu0 %1244
          %1248 = vset.pattern.permute.xlu0 0
          %1249 = vperm.xlu0 %1248, %v1241
          %v1250 = vpop.permute.xlu0 %1249
          %v1252 = vmul.f32 %v1236, %v1245
          %v1253 = vmul.f32 %v1237, %v1250
          %v1254 = vld [vmem:[%s1126] sm:$0xff]
          %v1255 = vld [vmem:[%s1126 + $0x8] sm:$0x3]
          %v1256 = vld [vmem:[%s1111] sm:$0xff]
          %v1257 = vld [vmem:[%s1111 + $0x8] sm:$0x3]
          %v1258 = vrcp.pop %v1256
          %v1259 = vrcp.pop %v1257
          %1261 = vset.pattern.permute.xlu0 0
          %1262 = vperm.xlu0 %1261, %v1258
          %v1263 = vpop.permute.xlu0 %1262
          %1266 = vset.pattern.permute.xlu0 0
          %1267 = vperm.xlu0 %1266, %v1259
          %v1268 = vpop.permute.xlu0 %1267
          %v1270 = vmul.f32 %v1254, %v1263
          %v1271 = vmul.f32 %v1255, %v1268
          %1274 = vrot.lane.b32.xlu0 %v1234, 32
          %v1275 = vpop.permute.xlu0 %1274
          %1276 = vrot.lane.b32.xlu0 %v1235, 32
          %v1277 = vpop.permute.xlu0 %1276
          %1282 = vrot.lane.b32.xlu0 %v1252, 64
          %v1283 = vpop.permute.xlu0 %1282
          %1284 = vrot.lane.b32.xlu0 %v1253, 64
          %v1285 = vpop.permute.xlu0 %1284
          %1290 = vrot.lane.b32.xlu0 %v1270, 96
          %v1291 = vpop.permute.xlu0 %1290
          %1292 = vrot.lane.b32.xlu0 %v1271, 96
          %v1293 = vpop.permute.xlu0 %1292
          %v1296 = vsel %vm513, %v1216, %v1275
          %v1297 = vsel %vm513, %v1217, %v1277
          %vm1298 = vcmask 523264
          %v1299 = vsel %vm1298, %v1296, %v1283
          %v1300 = vsel %vm1298, %v1297, %v1285
          %vm1301 = vcmask 785408
          %v1302 = vsel %vm1301, %v1299, %v1291
          %v1303 = vsel %vm1301, %v1300, %v1293
          %v1304 = vpack.c.bf16 %v1303, %v1302
          %v1306 = vunpack.c.l.b16 %v1304
          %v1307 = vunpack.c.h.b16 %v1304
          %v1308 = vpack.c.b16 %v1306, %v1306
          %v1309 = vpack.c.b16 %v1307, %v1307
          %1312 = vst [vmem:[%s456] sm:$0xf] %v1308
          %1313 = vst [vmem:[%s456 + $0x4] sm:$0x1] %v1309
        $region167: #{transformer_forward.32} parent=146 // pred_fallthru
          _
        %p1314 = scmp.lt.s32.totalorder %s20, 1
        %s1315 = scalar_select %p1314, %s20, 1
        %p1316 = scmp.lt.s32.totalorder %s21, 0
        %s1317 = scalar_select %p1316, %s21, 0
        %s1318 = smul.addr %s1315, 2
        %s1319 = sadd.s32 %s1317, %s1318
        %s1320 = smul.addr %s1319, 4
        %s1321 = scalar_lea.vmem %s4, %s1320
        // Predicated region
        $region168: #{transformer_forward.32} parent=146 // pred_check
          %p1322 = pneg %p174
        $region169: #{transformer_forward.32} parent=146 // pred_check_branch
          %1324 = sbr.rel (%p1322) target = $region171
        $region170: #{transformer_forward.32} parent=146 // pred_region
          _
        $region171: #{transformer_forward.32} parent=146 // pred_fallthru
          _
      $region147: #{transformer_forward.32} parent=5 // pred_fallthru
        _
      %p1325 = scmp.le.s32.totalorder 2, %s10
      // Predicated region
      $region172: #{transformer_forward.32} parent=5 // pred_check
        %p1326 = pneg %p1325
      $region173: #{transformer_forward.32} parent=5 // pred_check_branch
        %1328 = sbr.rel (%p1326) target = $region175
      $region174: #{transformer_forward.32} parent=5 // pred_region
        %s1329 = ssub.s32 %s10, 2
        // Predicated region
        $region176: #{transformer_forward.32} parent=174 // pred_check
          %p1330 = pneg %p180
        $region177: #{transformer_forward.32} parent=174 // pred_check_branch
          %1332 = sbr.rel (%p1330) target = $region179
        $region178: #{transformer_forward.32} parent=174 // pred_region
          %p1333 = scmp.lt.s32.totalorder %s23, 1
          %s1334 = scalar_select %p1333, %s23, 1
          %p1335 = scmp.lt.s32.totalorder %s24, 0
          %s1336 = scalar_select %p1335, %s24, 0
          %s1337 = smul.addr %s1334, 2
          %s1338 = sadd.s32 %s1336, %s1337
          %s1339 = smul.addr %s1338, 4
          %s1340 = scalar_lea.vmem %s4, %s1339
        $region179: #{transformer_forward.32} parent=174 // pred_fallthru
          _
      $region175: #{transformer_forward.32} parent=5 // pred_fallthru
        _
    $region6: #{transformer_forward.32} parent=1 // loop_footer
      %s14 = sadd.s32 1, %s10
    $region7: #{transformer_forward.32} parent=1 // loop_footer_branch
      %9 = sbr.rel target = $region3
    $region8: #{transformer_forward.32} parent=1 // loop_exit
      _

// kernel: transformer_forward.31
$region0: #{transformer_forward.31}
  #allocation0 [shape = 'u32[]', space=smem, size = 0x4, offset = 0x4, fixed_abs, tag = 'smem constant byte address 0x4 - core index']
  #allocation1 [shape = 'u32[144,128]{1,0:T(1,128)}', space=vmem, size = 0x12000, scoped, tag = 'internal scratch']
  #allocation2 [shape = 'f32[20,384]{1,0:T(8,128)}', space=vmem, size = 0x9000, scoped, tag = 'scratch operand']
  %s0 = inlined_call_operand.vmem [shape: bf16[20,128], index: 0, kind: input, shape index: {}]
  %s1 = inlined_call_operand.vmem [shape: bf16[128,384], index: 1, kind: input, shape index: {}]
  %s2 = inlined_call_operand.vmem [shape: f32[1,384], index: 2, kind: input, shape index: {}]
  %s3 = inlined_call_operand.vmem [shape: bf16[20,384], index: 3, kind: output, shape index: {}]
  %s4 = sld [smem:[#allocation0]]
  $region30: #{transformer_forward.31} parent=0
    _
  %s6 = ssub.s32 1, %s4
  %s7 = scalar_select 0, %s6, %s4
  // Predicated region
  $region2: #{transformer_forward.31} parent=0 // pred_check
    _
  $region3: #{transformer_forward.31} parent=0 // pred_check_branch
    %9 = sbr.rel (0) target = $region5
  $region4: #{transformer_forward.31} parent=0 // pred_region
    _
  $region5: #{transformer_forward.31} parent=0 // pred_fallthru
    _
  // Predicated region
  $region6: #{transformer_forward.31} parent=0 // pred_check
    _
  $region7: #{transformer_forward.31} parent=0 // pred_check_branch
    %11 = sbr.rel (0) target = $region9
  $region8: #{transformer_forward.31} parent=0 // pred_region
    _
  $region9: #{transformer_forward.31} parent=0 // pred_fallthru
    _
  // Predicated region
  $region10: #{transformer_forward.31} parent=0 // pred_check
    _
  $region11: #{transformer_forward.31} parent=0 // pred_check_branch
    %13 = sbr.rel (0) target = $region13
  $region12: #{transformer_forward.31} parent=0 // pred_region
    _
  $region13: #{transformer_forward.31} parent=0 // pred_fallthru
    _
  %p15 = scmp.eq.s32.totalorder 0, 0
  // Predicated region
  $region14: #{transformer_forward.31} parent=0 // pred_check
    %p16 = pneg %p15
  $region15: #{transformer_forward.31} parent=0 // pred_check_branch
    %18 = sbr.rel (%p16) target = $region17
  $region16: #{transformer_forward.31} parent=0 // pred_region
    %19 = vst [vmem:[#allocation2] sm:$0xff] 0.0
    %20 = vst [vmem:[#allocation2 + $0x8] sm:$0xff] 0.0
    %21 = vst [vmem:[#allocation2 + $0x10] sm:$0xff] 0.0
    %22 = vst [vmem:[#allocation2 + $0x18] sm:$0xff] 0.0
    %23 = vst [vmem:[#allocation2 + $0x20] sm:$0xff] 0.0
    %24 = vst [vmem:[#allocation2 + $0x28] sm:$0xff] 0.0
    %25 = vst [vmem:[#allocation2 + $0x30] sm:$0xf] 0.0
    %26 = vst [vmem:[#allocation2 + $0x38] sm:$0xf] 0.0
    %27 = vst [vmem:[#allocation2 + $0x40] sm:$0xf] 0.0
  $region17: #{transformer_forward.31} parent=0 // pred_fallthru
    _
  %v28 = vld [vmem:[#allocation2] sm:$0xff]
  %v29 = vld [vmem:[#allocation2 + $0x8] sm:$0xff]
  %v30 = vld [vmem:[#allocation2 + $0x10] sm:$0xff]
  %v31 = vld [vmem:[#allocation2 + $0x18] sm:$0xff]
  %v32 = vld [vmem:[#allocation2 + $0x20] sm:$0xff]
  %v33 = vld [vmem:[#allocation2 + $0x28] sm:$0xff]
  %v34 = vld [vmem:[#allocation2 + $0x30] sm:$0xf]
  %v35 = vld [vmem:[#allocation2 + $0x38] sm:$0xf]
  %v36 = vld [vmem:[#allocation2 + $0x40] sm:$0xf]
  %v37 = vld [vmem:[%s0] sm:$0xf]
  %v38 = vld [vmem:[%s0 + $0x4] sm:$0xf]
  %v39 = vld [vmem:[%s0 + $0x8] sm:$0x3]
  %v40 = vld [vmem:[%s1] sm:$0xff]
  %v41 = vld [vmem:[%s1 + $0x8] sm:$0xf]
  %v42 = vld [vmem:[%s1 + $0xc] sm:$0xff]
  %v43 = vld [vmem:[%s1 + $0x14] sm:$0xf]
  %v44 = vld [vmem:[%s1 + $0x18] sm:$0xff]
  %v45 = vld [vmem:[%s1 + $0x20] sm:$0xf]
  %v46 = vld [vmem:[%s1 + $0x24] sm:$0xff]
  %v47 = vld [vmem:[%s1 + $0x2c] sm:$0xf]
  %v48 = vld [vmem:[%s1 + $0x30] sm:$0xff]
  %v49 = vld [vmem:[%s1 + $0x38] sm:$0xf]
  %v50 = vld [vmem:[%s1 + $0x3c] sm:$0xff]
  %v51 = vld [vmem:[%s1 + $0x44] sm:$0xf]
  %v52 = vld [vmem:[%s1 + $0x48] sm:$0xff]
  %v53 = vld [vmem:[%s1 + $0x50] sm:$0xf]
  %v54 = vld [vmem:[%s1 + $0x54] sm:$0xff]
  %v55 = vld [vmem:[%s1 + $0x5c] sm:$0xf]
  %v56 = vld [vmem:[%s1 + $0x60] sm:$0xff]
  %v57 = vld [vmem:[%s1 + $0x68] sm:$0xf]
  %v58 = vld [vmem:[%s1 + $0x6c] sm:$0xff]
  %v59 = vld [vmem:[%s1 + $0x74] sm:$0xf]
  %v60 = vld [vmem:[%s1 + $0x78] sm:$0xff]
  %v61 = vld [vmem:[%s1 + $0x80] sm:$0xf]
  %v62 = vld [vmem:[%s1 + $0x84] sm:$0xff]
  %v63 = vld [vmem:[%s1 + $0x8c] sm:$0xf]
  %v64 = vld [vmem:[%s1 + $0x90] sm:$0xff]
  %v65 = vld [vmem:[%s1 + $0x98] sm:$0xf]
  %v66 = vld [vmem:[%s1 + $0x9c] sm:$0xff]
  %v67 = vld [vmem:[%s1 + $0xa4] sm:$0xf]
  %v68 = vld [vmem:[%s1 + $0xa8] sm:$0xff]
  %v69 = vld [vmem:[%s1 + $0xb0] sm:$0xf]
  %v70 = vld [vmem:[%s1 + $0xb4] sm:$0xff]
  %v71 = vld [vmem:[%s1 + $0xbc] sm:$0xf]
  %v75 = vunpack.c.l.b16 %v37
  %v76 = vunpack.c.l.b16 %v38
  %v77 = vunpack.c.l.b16 %v39
  %v78 = vpack.c.b16 %v76, %v75
  %v79 = vpack.c.b16 %v77, %v77
  %v114 = vunpack.c.l.b16 %v40
  %v115 = vunpack.c.h.b16 %v40
  %v116 = vunpack.c.l.b16 %v41
  %v117 = vunpack.c.l.b16 %v42
  %v118 = vunpack.c.h.b16 %v42
  %v119 = vunpack.c.l.b16 %v43
  %v120 = vunpack.c.l.b16 %v44
  %v121 = vunpack.c.h.b16 %v44
  %v122 = vunpack.c.l.b16 %v45
  %v123 = vunpack.c.l.b16 %v46
  %v124 = vunpack.c.h.b16 %v46
  %v125 = vunpack.c.l.b16 %v47
  %v126 = vunpack.c.l.b16 %v48
  %v127 = vunpack.c.h.b16 %v48
  %v128 = vunpack.c.l.b16 %v49
  %v129 = vunpack.c.l.b16 %v50
  %v130 = vunpack.c.h.b16 %v50
  %v131 = vunpack.c.l.b16 %v51
  %v132 = vunpack.c.l.b16 %v52
  %v133 = vunpack.c.h.b16 %v52
  %v134 = vunpack.c.l.b16 %v53
  %v135 = vunpack.c.l.b16 %v54
  %v136 = vunpack.c.h.b16 %v54
  %v137 = vunpack.c.l.b16 %v55
  %v138 = vunpack.c.l.b16 %v56
  %v139 = vunpack.c.h.b16 %v56
  %v140 = vunpack.c.l.b16 %v57
  %v141 = vunpack.c.l.b16 %v58
  %v142 = vunpack.c.h.b16 %v58
  %v143 = vunpack.c.l.b16 %v59
  %v144 = vunpack.c.l.b16 %v60
  %v145 = vunpack.c.h.b16 %v60
  %v146 = vunpack.c.l.b16 %v61
  %v147 = vunpack.c.l.b16 %v62
  %v148 = vunpack.c.h.b16 %v62
  %v149 = vunpack.c.l.b16 %v63
  %v150 = vunpack.c.l.b16 %v64
  %v151 = vunpack.c.h.b16 %v64
  %v152 = vunpack.c.l.b16 %v65
  %v153 = vunpack.c.l.b16 %v66
  %v154 = vunpack.c.h.b16 %v66
  %v155 = vunpack.c.l.b16 %v67
  %v156 = vunpack.c.l.b16 %v68
  %v157 = vunpack.c.h.b16 %v68
  %v158 = vunpack.c.l.b16 %v69
  %v159 = vunpack.c.l.b16 %v70
  %v160 = vunpack.c.h.b16 %v70
  %v161 = vunpack.c.l.b16 %v71
  %v162 = vpack.c.b16 %v117, %v114
  %v163 = vpack.c.b16 %v118, %v115
  %v164 = vpack.c.b16 %v119, %v116
  %v165 = vpack.c.b16 %v123, %v120
  %v166 = vpack.c.b16 %v124, %v121
  %v167 = vpack.c.b16 %v125, %v122
  %v168 = vpack.c.b16 %v129, %v126
  %v169 = vpack.c.b16 %v130, %v127
  %v170 = vpack.c.b16 %v131, %v128
  %v171 = vpack.c.b16 %v135, %v132
  %v172 = vpack.c.b16 %v136, %v133
  %v173 = vpack.c.b16 %v137, %v134
  %v174 = vpack.c.b16 %v141, %v138
  %v175 = vpack.c.b16 %v142, %v139
  %v176 = vpack.c.b16 %v143, %v140
  %v177 = vpack.c.b16 %v147, %v144
  %v178 = vpack.c.b16 %v148, %v145
  %v179 = vpack.c.b16 %v149, %v146
  %v180 = vpack.c.b16 %v153, %v150
  %v181 = vpack.c.b16 %v154, %v151
  %v182 = vpack.c.b16 %v155, %v152
  %v183 = vpack.c.b16 %v159, %v156
  %v184 = vpack.c.b16 %v160, %v157
  %v185 = vpack.c.b16 %v161, %v158
  %210 = vmatprep.subr.bf16.mxu0 %v163
  %211 = vmatpush1.bf16.msra.mxu0 %v162
  %212 = vmatprep.subr.bf16.mxu0 %v166
  %213 = vmatpush1.bf16.msra.mxu0 %v165
  %214 = vmatprep.subr.bf16.mxu0 %v169
  %215 = vmatpush1.bf16.msra.mxu0 %v168
  %216 = vmatprep.subr.bf16.mxu0 %v172
  %217 = vmatpush1.bf16.msra.mxu0 %v171
  %218 = vmatprep.subr.bf16.mxu0 %v175
  %219 = vmatpush1.bf16.msra.mxu0 %v174
  %220 = vmatprep.subr.bf16.mxu0 %v178
  %221 = vmatpush1.bf16.msra.mxu0 %v177
  %222 = vmatprep.subr.bf16.mxu0 %v181
  %223 = vmatpush1.bf16.msra.mxu0 %v180
  %224 = vmatprep.subr.bf16.mxu0 %v184
  %225 = vmatpush1.bf16.msra.mxu0 %v183
  %226 = vmatprep.subr.bf16.mxu0 0
  %227 = vmatpush1.bf16.msra.mxu0 0
  %228 = vmatprep.subr.bf16.mxu0 0
  %229 = vmatpush1.bf16.msra.mxu0 0
  %230 = vmatprep.subr.bf16.mxu0 0
  %231 = vmatpush1.bf16.msra.mxu0 0
  %232 = vmatprep.subr.bf16.mxu0 0
  %233 = vmatpush1.bf16.msra.mxu0 0
  %234 = vmatprep.subr.bf16.mxu0 0
  %235 = vmatpush1.bf16.msra.mxu0 0
  %236 = vmatprep.subr.bf16.mxu0 0
  %237 = vmatpush1.bf16.msra.mxu0 0
  %238 = vmatprep.subr.bf16.mxu0 0
  %239 = vmatpush1.bf16.msra.mxu0 0
  %240 = vmatprep.subr.bf16.mxu0 0
  %241 = vmatpush1.bf16.msra.mxu0 0
  %242 = vmatprep.mubr.bf16.mxu0 0
  %243 = vmatmul.mubr.bf16.gmra.mrb[0].mxu0 %v78
  %v244 = vpop.f32.mrb[0].mxu0
  %v245 = vadd.f32 0.0, %v244
  %v246 = vpop.f32.mrb[0].mxu0
  %v247 = vadd.f32 0.0, %v246
  %v248 = vpop.f32.mrb[0].mxu0
  %v249 = vadd.f32 0.0, %v248
  %v250 = vpop.f32.mrb[0].mxu0
  %v251 = vadd.f32 0.0, %v250
  %252 = vmatprep.mubr.bf16.mxu0 0
  %253 = vmatmul.mubr.bf16.gmra.mrb[0].mxu0 %v79
  %v254 = vpop.f32.mrb[0].mxu0
  %v255 = vadd.f32 0.0, %v254
  %v256 = vpop.f32.mrb[0].mxu0
  %v257 = vadd.f32 0.0, %v256
  %v258 = vpop.f32.mrb[0].mxu0
  %v259 = vpop.f32.mrb[0].mxu0
  %260 = vdwg.mxu0
  %261 = vmatprep.subr.bf16.mxu0 0
  %262 = vmatpush1.bf16.msra.mxu0 %v164
  %263 = vmatprep.subr.bf16.mxu0 0
  %264 = vmatpush1.bf16.msra.mxu0 %v167
  %265 = vmatprep.subr.bf16.mxu0 0
  %266 = vmatpush1.bf16.msra.mxu0 %v170
  %267 = vmatprep.subr.bf16.mxu0 0
  %268 = vmatpush1.bf16.msra.mxu0 %v173
  %269 = vmatprep.subr.bf16.mxu0 0
  %270 = vmatpush1.bf16.msra.mxu0 %v176
  %271 = vmatprep.subr.bf16.mxu0 0
  %272 = vmatpush1.bf16.msra.mxu0 %v179
  %273 = vmatprep.subr.bf16.mxu0 0
  %274 = vmatpush1.bf16.msra.mxu0 %v182
  %275 = vmatprep.subr.bf16.mxu0 0
  %276 = vmatpush1.bf16.msra.mxu0 %v185
  %277 = vmatprep.subr.bf16.mxu0 0
  %278 = vmatpush1.bf16.msra.mxu0 0
  %279 = vmatprep.subr.bf16.mxu0 0
  %280 = vmatpush1.bf16.msra.mxu0 0
  %281 = vmatprep.subr.bf16.mxu0 0
  %282 = vmatpush1.bf16.msra.mxu0 0
  %283 = vmatprep.subr.bf16.mxu0 0
  %284 = vmatpush1.bf16.msra.mxu0 0
  %285 = vmatprep.subr.bf16.mxu0 0
  %286 = vmatpush1.bf16.msra.mxu0 0
  %287 = vmatprep.subr.bf16.mxu0 0
  %288 = vmatpush1.bf16.msra.mxu0 0
  %289 = vmatprep.subr.bf16.mxu0 0
  %290 = vmatpush1.bf16.msra.mxu0 0
  %291 = vmatprep.subr.bf16.mxu0 0
  %292 = vmatpush1.bf16.msra.mxu0 0
  %293 = vmatprep.mubr.bf16.mxu0 0
  %294 = vmatmul.mubr.bf16.gmra.mrb[0].mxu0 %v78
  %v295 = vpop.f32.mrb[0].mxu0
  %v296 = vadd.f32 0.0, %v295
  %v297 = vpop.f32.mrb[0].mxu0
  %v298 = vpop.f32.mrb[0].mxu0
  %v299 = vadd.f32 0.0, %v298
  %v300 = vpop.f32.mrb[0].mxu0
  %301 = vmatprep.mubr.bf16.mxu0 0
  %302 = vmatmul.mubr.bf16.gmra.mrb[0].mxu0 %v79
  %v303 = vpop.f32.mrb[0].mxu0
  %v304 = vadd.f32 0.0, %v303
  %v305 = vpop.f32.mrb[0].mxu0
  %v306 = vpop.f32.mrb[0].mxu0
  %v307 = vpop.f32.mrb[0].mxu0
  %308 = vdwg.mxu0
  %v309 = vadd.f32 %v28, %v245
  %v310 = vadd.f32 %v29, %v247
  %v311 = vadd.f32 %v30, %v296
  %v312 = vadd.f32 %v31, %v249
  %v313 = vadd.f32 %v32, %v251
  %v314 = vadd.f32 %v33, %v299
  %v315 = vadd.f32 %v34, %v255
  %v316 = vadd.f32 %v35, %v257
  %v317 = vadd.f32 %v36, %v304
  %318 = vst [vmem:[#allocation2] sm:$0xff] %v309
  %319 = vst [vmem:[#allocation2 + $0x8] sm:$0xff] %v310
  %320 = vst [vmem:[#allocation2 + $0x10] sm:$0xff] %v311
  %321 = vst [vmem:[#allocation2 + $0x18] sm:$0xff] %v312
  %322 = vst [vmem:[#allocation2 + $0x20] sm:$0xff] %v313
  %323 = vst [vmem:[#allocation2 + $0x28] sm:$0xff] %v314
  %324 = vst [vmem:[#allocation2 + $0x30] sm:$0xf] %v315
  %325 = vst [vmem:[#allocation2 + $0x38] sm:$0xf] %v316
  %326 = vst [vmem:[#allocation2 + $0x40] sm:$0xf] %v317
  // Predicated region
  $region18: #{transformer_forward.31} parent=0 // pred_check
    %p327 = pneg %p15
  $region19: #{transformer_forward.31} parent=0 // pred_check_branch
    %329 = sbr.rel (%p327) target = $region21
  $region20: #{transformer_forward.31} parent=0 // pred_region
    %v330 = vld [vmem:[#allocation2] sm:$0xff]
    %v331 = vld [vmem:[#allocation2 + $0x8] sm:$0xff]
    %v332 = vld [vmem:[#allocation2 + $0x10] sm:$0xff]
    %v333 = vld [vmem:[#allocation2 + $0x18] sm:$0xff]
    %v334 = vld [vmem:[#allocation2 + $0x20] sm:$0xff]
    %v335 = vld [vmem:[#allocation2 + $0x28] sm:$0xff]
    %v336 = vld [vmem:[#allocation2 + $0x30] sm:$0xf]
    %v337 = vld [vmem:[#allocation2 + $0x38] sm:$0xf]
    %v338 = vld [vmem:[#allocation2 + $0x40] sm:$0xf]
    %v339 = vld [vmem:[%s2] sm:$0x7]
    %v341 = vlaneseq
    %v342 = vshrl.u32 %v341, 7
    %v343 = vsub.s32 0, %v342
    %v344 = vrot.slane %v339, %v343
    %v345 = vlaneseq
    %v346 = vshrl.u32 %v345, 7
    %v347 = vsub.s32 1, %v346
    %v348 = vrot.slane %v339, %v347
    %v349 = vlaneseq
    %v350 = vshrl.u32 %v349, 7
    %v351 = vsub.s32 2, %v350
    %v352 = vrot.slane %v339, %v351
    %v356 = vadd.f32 %v330, %v344
    %v357 = vadd.f32 %v331, %v348
    %v358 = vadd.f32 %v332, %v352
    %v359 = vadd.f32 %v333, %v344
    %v360 = vadd.f32 %v334, %v348
    %v361 = vadd.f32 %v335, %v352
    %v362 = vadd.f32 %v336, %v344
    %v363 = vadd.f32 %v337, %v348
    %v364 = vadd.f32 %v338, %v352
    %v365 = vpack.c.bf16 %v359, %v356
    %v366 = vpack.c.bf16 %v360, %v357
    %v367 = vpack.c.bf16 %v361, %v358
    %v368 = vpack.c.bf16 %v362, %v362
    %v369 = vpack.c.bf16 %v363, %v363
    %v370 = vpack.c.bf16 %v364, %v364
    %v377 = vunpack.c.l.b16 %v365
    %v378 = vunpack.c.l.b16 %v366
    %v379 = vunpack.c.l.b16 %v367
    %v380 = vunpack.c.h.b16 %v365
    %v381 = vunpack.c.h.b16 %v366
    %v382 = vunpack.c.h.b16 %v367
    %v383 = vunpack.c.l.b16 %v368
    %v384 = vunpack.c.l.b16 %v369
    %v385 = vunpack.c.l.b16 %v370
    %v386 = vpack.c.b16 %v378, %v377
    %v387 = vpack.c.b16 %v379, %v379
    %v388 = vpack.c.b16 %v381, %v380
    %v389 = vpack.c.b16 %v382, %v382
    %v390 = vpack.c.b16 %v384, %v383
    %v391 = vpack.c.b16 %v385, %v385
    %398 = vst [vmem:[%s3] sm:$0xff] %v386
    %399 = vst [vmem:[%s3 + $0x8] sm:$0xf] %v387
    %400 = vst [vmem:[%s3 + $0xc] sm:$0xff] %v388
    %401 = vst [vmem:[%s3 + $0x14] sm:$0xf] %v389
    %402 = vst [vmem:[%s3 + $0x18] sm:$0x33] %v390
    %403 = vst [vmem:[%s3 + $0x20] sm:$0x3] %v391
  $region21: #{transformer_forward.31} parent=0 // pred_fallthru
    _
  // Predicated region
  $region22: #{transformer_forward.31} parent=0 // pred_check
    _
  $region23: #{transformer_forward.31} parent=0 // pred_check_branch
    %405 = sbr.rel (0) target = $region25
  $region24: #{transformer_forward.31} parent=0 // pred_region
    _
  $region25: #{transformer_forward.31} parent=0 // pred_fallthru
    _
  // Predicated region
  $region26: #{transformer_forward.31} parent=0 // pred_check
    _
  $region27: #{transformer_forward.31} parent=0 // pred_check_branch
    %407 = sbr.rel (0) target = $region29
  $region28: #{transformer_forward.31} parent=0 // pred_region
    _
  $region29: #{transformer_forward.31} parent=0 // pred_fallthru
    _

// kernel: transformer_forward.41
$region0: #{transformer_forward.41}
  #allocation0 [shape = 'u32[]', space=smem, size = 0x4, offset = 0x4, fixed_abs, tag = 'smem constant byte address 0x4 - core index']
  #allocation1 [shape = 'u32[144,128]{1,0:T(1,128)}', space=vmem, size = 0x12000, scoped, tag = 'internal scratch']
  %s0 = inlined_call_operand.vmem [shape: bf16[20,128], index: 0, kind: input, shape index: {}]
  %s1 = inlined_call_operand.vmem [shape: f32[1,128], index: 1, kind: input, shape index: {}]
  %s2 = inlined_call_operand.vmem [shape: f32[1,128], index: 2, kind: input, shape index: {}]
  %s3 = inlined_call_operand.vmem [shape: bf16[20,128], index: 3, kind: output, shape index: {}]
  %s4 = sld [smem:[#allocation0]]
  $region22: #{transformer_forward.41} parent=0
    _
  %s6 = ssub.s32 1, %s4
  %s7 = scalar_select 0, %s6, %s4
  // Predicated region
  $region2: #{transformer_forward.41} parent=0 // pred_check
    _
  $region3: #{transformer_forward.41} parent=0 // pred_check_branch
    %9 = sbr.rel (0) target = $region5
  $region4: #{transformer_forward.41} parent=0 // pred_region
    _
  $region5: #{transformer_forward.41} parent=0 // pred_fallthru
    _
  // Predicated region
  $region6: #{transformer_forward.41} parent=0 // pred_check
    _
  $region7: #{transformer_forward.41} parent=0 // pred_check_branch
    %11 = sbr.rel (0) target = $region9
  $region8: #{transformer_forward.41} parent=0 // pred_region
    _
  $region9: #{transformer_forward.41} parent=0 // pred_fallthru
    _
  // Predicated region
  $region10: #{transformer_forward.41} parent=0 // pred_check
    _
  $region11: #{transformer_forward.41} parent=0 // pred_check_branch
    %13 = sbr.rel (0) target = $region13
  $region12: #{transformer_forward.41} parent=0 // pred_region
    _
  $region13: #{transformer_forward.41} parent=0 // pred_fallthru
    _
  %v14 = vld [vmem:[%s0] sm:$0xf]
  %v15 = vld [vmem:[%s0 + $0x4] sm:$0xf]
  %v16 = vld [vmem:[%s0 + $0x8] sm:$0x3]
  %v17 = vunpack.c.l.bf16 %v14
  %v18 = vunpack.c.l.bf16 %v15
  %v19 = vunpack.c.l.bf16 %v16
  %20 = vadd.xlane.f32.xlu0 %v17
  %v21 = vpop.xlane.xlu0 %20
  %22 = vadd.xlane.f32.xlu0 %v18
  %v23 = vpop.xlane.xlu0 %22
  %vm24 = vcmask 1043456
  %v25 = vsel %vm24, %v19, 0.0
  %26 = vadd.xlane.f32.xlu0 %v25
  %v27 = vpop.xlane.xlu0 %26
  %v28 = vrcp.pop 128.0
  %v29 = vmul.f32 %v21, %v28
  %v30 = vmul.f32 %v23, %v28
  %v31 = vmul.f32 %v27, %v28
  %v32 = vsub.f32 %v17, %v29
  %v33 = vsub.f32 %v18, %v30
  %v34 = vsub.f32 %v19, %v31
  %v35 = vmul.f32 %v32, %v32
  %v36 = vmul.f32 %v33, %v33
  %v37 = vmul.f32 %v34, %v34
  %38 = vadd.xlane.f32.xlu0 %v35
  %v39 = vpop.xlane.xlu0 %38
  %40 = vadd.xlane.f32.xlu0 %v36
  %v41 = vpop.xlane.xlu0 %40
  %v42 = vsel %vm24, %v37, 0.0
  %43 = vadd.xlane.f32.xlu0 %v42
  %v44 = vpop.xlane.xlu0 %43
  %v45 = vmul.f32 %v39, %v28
  %v46 = vmul.f32 %v41, %v28
  %v47 = vmul.f32 %v44, %v28
  %v48 = vadd.f32 %v45, 1e-05
  %v49 = vadd.f32 %v46, 1e-05
  %v50 = vadd.f32 %v47, 1e-05
  %v51 = vrsqrt.pop %v48
  %v52 = vrsqrt.pop %v49
  %v53 = vrsqrt.pop %v50
  %v54 = vmul.f32 %v32, %v51
  %v55 = vmul.f32 %v33, %v52
  %v56 = vmul.f32 %v34, %v53
  %v57 = vld [vmem:[%s1] sm:$0x1]
  %v59 = vlaneseq
  %v60 = vshrl.u32 %v59, 7
  %v61 = vsub.s32 0, %v60
  %v62 = vrot.slane %v57, %v61
  %v64 = vmul.f32 %v54, %v62
  %v65 = vmul.f32 %v55, %v62
  %v66 = vmul.f32 %v56, %v62
  %v67 = vld [vmem:[%s2] sm:$0x1]
  %v69 = vlaneseq
  %v70 = vshrl.u32 %v69, 7
  %v71 = vsub.s32 0, %v70
  %v72 = vrot.slane %v67, %v71
  %v74 = vadd.f32 %v64, %v72
  %v75 = vadd.f32 %v65, %v72
  %v76 = vadd.f32 %v66, %v72
  %v77 = vpack.c.bf16 %v75, %v74
  %v78 = vpack.c.bf16 %v76, %v76
  %v81 = vunpack.c.l.b16 %v77
  %v82 = vunpack.c.h.b16 %v77
  %v83 = vunpack.c.l.b16 %v78
  %v84 = vpack.c.b16 %v81, %v81
  %v85 = vpack.c.b16 %v82, %v82
  %v86 = vpack.c.b16 %v83, %v83
  %90 = vst [vmem:[%s3] sm:$0xf] %v84
  %91 = vst [vmem:[%s3 + $0x4] sm:$0xf] %v85
  %92 = vst [vmem:[%s3 + $0x8] sm:$0x3] %v86
  // Predicated region
  $region14: #{transformer_forward.41} parent=0 // pred_check
    _
  $region15: #{transformer_forward.41} parent=0 // pred_check_branch
    %94 = sbr.rel (0) target = $region17
  $region16: #{transformer_forward.41} parent=0 // pred_region
    _
  $region17: #{transformer_forward.41} parent=0 // pred_fallthru
    _
  // Predicated region
  $region18: #{transformer_forward.41} parent=0 // pred_check
    _
  $region19: #{transformer_forward.41} parent=0 // pred_check_branch
    %96 = sbr.rel (0) target = $region21
  $region20: #{transformer_forward.41} parent=0 // pred_region
    _
  $region21: #{transformer_forward.41} parent=0 // pred_fallthru
    _

// kernel: transformer_forward.46
$region0: #{transformer_forward.46}
  #allocation0 [shape = 'u32[]', space=smem, size = 0x4, offset = 0x4, fixed_abs, tag = 'smem constant byte address 0x4 - core index']
  #allocation1 [shape = 'u32[144,128]{1,0:T(1,128)}', space=vmem, size = 0x12000, scoped, tag = 'internal scratch']
  #allocation2 [shape = 'f32[20,256]{1,0:T(8,128)}', space=vmem, size = 0x6000, scoped, tag = 'scratch operand']
  %s0 = inlined_call_operand.vmem [shape: bf16[20,128], index: 0, kind: input, shape index: {}]
  %s1 = inlined_call_operand.vmem [shape: bf16[128,256], index: 1, kind: input, shape index: {}]
  %s2 = inlined_call_operand.vmem [shape: f32[1,256], index: 2, kind: input, shape index: {}]
  %s3 = inlined_call_operand.vmem [shape: bf16[20,256], index: 3, kind: output, shape index: {}]
  %s4 = sld [smem:[#allocation0]]
  $region30: #{transformer_forward.46} parent=0
    _
  %s6 = ssub.s32 1, %s4
  %s7 = scalar_select 0, %s6, %s4
  // Predicated region
  $region2: #{transformer_forward.46} parent=0 // pred_check
    _
  $region3: #{transformer_forward.46} parent=0 // pred_check_branch
    %9 = sbr.rel (0) target = $region5
  $region4: #{transformer_forward.46} parent=0 // pred_region
    _
  $region5: #{transformer_forward.46} parent=0 // pred_fallthru
    _
  // Predicated region
  $region6: #{transformer_forward.46} parent=0 // pred_check
    _
  $region7: #{transformer_forward.46} parent=0 // pred_check_branch
    %11 = sbr.rel (0) target = $region9
  $region8: #{transformer_forward.46} parent=0 // pred_region
    _
  $region9: #{transformer_forward.46} parent=0 // pred_fallthru
    _
  // Predicated region
  $region10: #{transformer_forward.46} parent=0 // pred_check
    _
  $region11: #{transformer_forward.46} parent=0 // pred_check_branch
    %13 = sbr.rel (0) target = $region13
  $region12: #{transformer_forward.46} parent=0 // pred_region
    _
  $region13: #{transformer_forward.46} parent=0 // pred_fallthru
    _
  %p15 = scmp.eq.s32.totalorder 0, 0
  // Predicated region
  $region14: #{transformer_forward.46} parent=0 // pred_check
    %p16 = pneg %p15
  $region15: #{transformer_forward.46} parent=0 // pred_check_branch
    %18 = sbr.rel (%p16) target = $region17
  $region16: #{transformer_forward.46} parent=0 // pred_region
    %19 = vst [vmem:[#allocation2] sm:$0xff] 0.0
    %20 = vst [vmem:[#allocation2 + $0x8] sm:$0xff] 0.0
    %21 = vst [vmem:[#allocation2 + $0x10] sm:$0xff] 0.0
    %22 = vst [vmem:[#allocation2 + $0x18] sm:$0xff] 0.0
    %23 = vst [vmem:[#allocation2 + $0x20] sm:$0xf] 0.0
    %24 = vst [vmem:[#allocation2 + $0x28] sm:$0xf] 0.0
  $region17: #{transformer_forward.46} parent=0 // pred_fallthru
    _
  %v25 = vld [vmem:[#allocation2] sm:$0xff]
  %v26 = vld [vmem:[#allocation2 + $0x8] sm:$0xff]
  %v27 = vld [vmem:[#allocation2 + $0x10] sm:$0xff]
  %v28 = vld [vmem:[#allocation2 + $0x18] sm:$0xff]
  %v29 = vld [vmem:[#allocation2 + $0x20] sm:$0xf]
  %v30 = vld [vmem:[#allocation2 + $0x28] sm:$0xf]
  %v31 = vld [vmem:[%s0] sm:$0xf]
  %v32 = vld [vmem:[%s0 + $0x4] sm:$0xf]
  %v33 = vld [vmem:[%s0 + $0x8] sm:$0x3]
  %v34 = vld [vmem:[%s1] sm:$0xff]
  %v35 = vld [vmem:[%s1 + $0x8] sm:$0xff]
  %v36 = vld [vmem:[%s1 + $0x10] sm:$0xff]
  %v37 = vld [vmem:[%s1 + $0x18] sm:$0xff]
  %v38 = vld [vmem:[%s1 + $0x20] sm:$0xff]
  %v39 = vld [vmem:[%s1 + $0x28] sm:$0xff]
  %v40 = vld [vmem:[%s1 + $0x30] sm:$0xff]
  %v41 = vld [vmem:[%s1 + $0x38] sm:$0xff]
  %v42 = vld [vmem:[%s1 + $0x40] sm:$0xff]
  %v43 = vld [vmem:[%s1 + $0x48] sm:$0xff]
  %v44 = vld [vmem:[%s1 + $0x50] sm:$0xff]
  %v45 = vld [vmem:[%s1 + $0x58] sm:$0xff]
  %v46 = vld [vmem:[%s1 + $0x60] sm:$0xff]
  %v47 = vld [vmem:[%s1 + $0x68] sm:$0xff]
  %v48 = vld [vmem:[%s1 + $0x70] sm:$0xff]
  %v49 = vld [vmem:[%s1 + $0x78] sm:$0xff]
  %v53 = vunpack.c.l.b16 %v31
  %v54 = vunpack.c.l.b16 %v32
  %v55 = vunpack.c.l.b16 %v33
  %v56 = vpack.c.b16 %v54, %v53
  %v57 = vpack.c.b16 %v55, %v55
  %v76 = vunpack.c.l.b16 %v34
  %v77 = vunpack.c.h.b16 %v34
  %v78 = vunpack.c.l.b16 %v35
  %v79 = vunpack.c.h.b16 %v35
  %v80 = vunpack.c.l.b16 %v36
  %v81 = vunpack.c.h.b16 %v36
  %v82 = vunpack.c.l.b16 %v37
  %v83 = vunpack.c.h.b16 %v37
  %v84 = vunpack.c.l.b16 %v38
  %v85 = vunpack.c.h.b16 %v38
  %v86 = vunpack.c.l.b16 %v39
  %v87 = vunpack.c.h.b16 %v39
  %v88 = vunpack.c.l.b16 %v40
  %v89 = vunpack.c.h.b16 %v40
  %v90 = vunpack.c.l.b16 %v41
  %v91 = vunpack.c.h.b16 %v41
  %v92 = vunpack.c.l.b16 %v42
  %v93 = vunpack.c.h.b16 %v42
  %v94 = vunpack.c.l.b16 %v43
  %v95 = vunpack.c.h.b16 %v43
  %v96 = vunpack.c.l.b16 %v44
  %v97 = vunpack.c.h.b16 %v44
  %v98 = vunpack.c.l.b16 %v45
  %v99 = vunpack.c.h.b16 %v45
  %v100 = vunpack.c.l.b16 %v46
  %v101 = vunpack.c.h.b16 %v46
  %v102 = vunpack.c.l.b16 %v47
  %v103 = vunpack.c.h.b16 %v47
  %v104 = vunpack.c.l.b16 %v48
  %v105 = vunpack.c.h.b16 %v48
  %v106 = vunpack.c.l.b16 %v49
  %v107 = vunpack.c.h.b16 %v49
  %v108 = vpack.c.b16 %v78, %v76
  %v109 = vpack.c.b16 %v79, %v77
  %v110 = vpack.c.b16 %v82, %v80
  %v111 = vpack.c.b16 %v83, %v81
  %v112 = vpack.c.b16 %v86, %v84
  %v113 = vpack.c.b16 %v87, %v85
  %v114 = vpack.c.b16 %v90, %v88
  %v115 = vpack.c.b16 %v91, %v89
  %v116 = vpack.c.b16 %v94, %v92
  %v117 = vpack.c.b16 %v95, %v93
  %v118 = vpack.c.b16 %v98, %v96
  %v119 = vpack.c.b16 %v99, %v97
  %v120 = vpack.c.b16 %v102, %v100
  %v121 = vpack.c.b16 %v103, %v101
  %v122 = vpack.c.b16 %v106, %v104
  %v123 = vpack.c.b16 %v107, %v105
  %140 = vmatprep.subr.bf16.mxu0 %v109
  %141 = vmatpush1.bf16.msra.mxu0 %v108
  %142 = vmatprep.subr.bf16.mxu0 %v111
  %143 = vmatpush1.bf16.msra.mxu0 %v110
  %144 = vmatprep.subr.bf16.mxu0 %v113
  %145 = vmatpush1.bf16.msra.mxu0 %v112
  %146 = vmatprep.subr.bf16.mxu0 %v115
  %147 = vmatpush1.bf16.msra.mxu0 %v114
  %148 = vmatprep.subr.bf16.mxu0 %v117
  %149 = vmatpush1.bf16.msra.mxu0 %v116
  %150 = vmatprep.subr.bf16.mxu0 %v119
  %151 = vmatpush1.bf16.msra.mxu0 %v118
  %152 = vmatprep.subr.bf16.mxu0 %v121
  %153 = vmatpush1.bf16.msra.mxu0 %v120
  %154 = vmatprep.subr.bf16.mxu0 %v123
  %155 = vmatpush1.bf16.msra.mxu0 %v122
  %156 = vmatprep.subr.bf16.mxu0 0
  %157 = vmatpush1.bf16.msra.mxu0 0
  %158 = vmatprep.subr.bf16.mxu0 0
  %159 = vmatpush1.bf16.msra.mxu0 0
  %160 = vmatprep.subr.bf16.mxu0 0
  %161 = vmatpush1.bf16.msra.mxu0 0
  %162 = vmatprep.subr.bf16.mxu0 0
  %163 = vmatpush1.bf16.msra.mxu0 0
  %164 = vmatprep.subr.bf16.mxu0 0
  %165 = vmatpush1.bf16.msra.mxu0 0
  %166 = vmatprep.subr.bf16.mxu0 0
  %167 = vmatpush1.bf16.msra.mxu0 0
  %168 = vmatprep.subr.bf16.mxu0 0
  %169 = vmatpush1.bf16.msra.mxu0 0
  %170 = vmatprep.subr.bf16.mxu0 0
  %171 = vmatpush1.bf16.msra.mxu0 0
  %172 = vmatprep.mubr.bf16.mxu0 0
  %173 = vmatmul.mubr.bf16.gmra.mrb[0].mxu0 %v56
  %v174 = vpop.f32.mrb[0].mxu0
  %v175 = vadd.f32 0.0, %v174
  %v176 = vpop.f32.mrb[0].mxu0
  %v177 = vadd.f32 0.0, %v176
  %v178 = vpop.f32.mrb[0].mxu0
  %v179 = vadd.f32 0.0, %v178
  %v180 = vpop.f32.mrb[0].mxu0
  %v181 = vadd.f32 0.0, %v180
  %182 = vmatprep.mubr.bf16.mxu0 0
  %183 = vmatmul.mubr.bf16.gmra.mrb[0].mxu0 %v57
  %v184 = vpop.f32.mrb[0].mxu0
  %v185 = vadd.f32 0.0, %v184
  %v186 = vpop.f32.mrb[0].mxu0
  %v187 = vadd.f32 0.0, %v186
  %v188 = vpop.f32.mrb[0].mxu0
  %v189 = vpop.f32.mrb[0].mxu0
  %190 = vdwg.mxu0
  %v191 = vadd.f32 %v25, %v175
  %v192 = vadd.f32 %v26, %v177
  %v193 = vadd.f32 %v27, %v179
  %v194 = vadd.f32 %v28, %v181
  %v195 = vadd.f32 %v29, %v185
  %v196 = vadd.f32 %v30, %v187
  %197 = vst [vmem:[#allocation2] sm:$0xff] %v191
  %198 = vst [vmem:[#allocation2 + $0x8] sm:$0xff] %v192
  %199 = vst [vmem:[#allocation2 + $0x10] sm:$0xff] %v193
  %200 = vst [vmem:[#allocation2 + $0x18] sm:$0xff] %v194
  %201 = vst [vmem:[#allocation2 + $0x20] sm:$0xf] %v195
  %202 = vst [vmem:[#allocation2 + $0x28] sm:$0xf] %v196
  // Predicated region
  $region18: #{transformer_forward.46} parent=0 // pred_check
    %p203 = pneg %p15
  $region19: #{transformer_forward.46} parent=0 // pred_check_branch
    %205 = sbr.rel (%p203) target = $region21
  $region20: #{transformer_forward.46} parent=0 // pred_region
    %v206 = vld [vmem:[#allocation2] sm:$0xff]
    %v207 = vld [vmem:[#allocation2 + $0x8] sm:$0xff]
    %v208 = vld [vmem:[#allocation2 + $0x10] sm:$0xff]
    %v209 = vld [vmem:[#allocation2 + $0x18] sm:$0xff]
    %v210 = vld [vmem:[#allocation2 + $0x20] sm:$0xf]
    %v211 = vld [vmem:[#allocation2 + $0x28] sm:$0xf]
    %v212 = vld [vmem:[%s2] sm:$0x3]
    %v214 = vlaneseq
    %v215 = vshrl.u32 %v214, 7
    %v216 = vsub.s32 0, %v215
    %v217 = vrot.slane %v212, %v216
    %v218 = vlaneseq
    %v219 = vshrl.u32 %v218, 7
    %v220 = vsub.s32 1, %v219
    %v221 = vrot.slane %v212, %v220
    %v224 = vadd.f32 %v206, %v217
    %v225 = vadd.f32 %v207, %v221
    %v226 = vadd.f32 %v208, %v217
    %v227 = vadd.f32 %v209, %v221
    %v228 = vadd.f32 %v210, %v217
    %v229 = vadd.f32 %v211, %v221
    %v230 = vpack.c.bf16 %v226, %v224
    %v231 = vpack.c.bf16 %v227, %v225
    %v232 = vpack.c.bf16 %v228, %v228
    %v233 = vpack.c.bf16 %v229, %v229
    %v238 = vunpack.c.l.b16 %v230
    %v239 = vunpack.c.l.b16 %v231
    %v240 = vunpack.c.h.b16 %v230
    %v241 = vunpack.c.h.b16 %v231
    %v242 = vunpack.c.l.b16 %v232
    %v243 = vunpack.c.l.b16 %v233
    %v244 = vpack.c.b16 %v239, %v238
    %v245 = vpack.c.b16 %v241, %v240
    %v246 = vpack.c.b16 %v243, %v242
    %250 = vst [vmem:[%s3] sm:$0xff] %v244
    %251 = vst [vmem:[%s3 + $0x8] sm:$0xff] %v245
    %252 = vst [vmem:[%s3 + $0x10] sm:$0x33] %v246
  $region21: #{transformer_forward.46} parent=0 // pred_fallthru
    _
  // Predicated region
  $region22: #{transformer_forward.46} parent=0 // pred_check
    _
  $region23: #{transformer_forward.46} parent=0 // pred_check_branch
    %254 = sbr.rel (0) target = $region25
  $region24: #{transformer_forward.46} parent=0 // pred_region
    _
  $region25: #{transformer_forward.46} parent=0 // pred_fallthru
    _
  // Predicated region
  $region26: #{transformer_forward.46} parent=0 // pred_check
    _
  $region27: #{transformer_forward.46} parent=0 // pred_check_branch
    %256 = sbr.rel (0) target = $region29
  $region28: #{transformer_forward.46} parent=0 // pred_region
    _
  $region29: #{transformer_forward.46} parent=0 // pred_fallthru
    _

// kernel: transformer_forward.42
$region0: #{transformer_forward.42}
  #allocation0 [shape = 'u32[]', space=smem, size = 0x4, offset = 0x4, fixed_abs, tag = 'smem constant byte address 0x4 - core index']
  #allocation1 [shape = 'u32[144,128]{1,0:T(1,128)}', space=vmem, size = 0x12000, scoped, tag = 'internal scratch']
  #allocation2 [shape = 'f32[16,384]{1,0:T(8,128)}', space=vmem, size = 0x6000, scoped, tag = 'scratch operand']
  %s0 = inlined_call_operand.vmem [shape: bf16[16,128], index: 0, kind: input, shape index: {}]
  %s1 = inlined_call_operand.vmem [shape: bf16[128,384], index: 1, kind: input, shape index: {}]
  %s2 = inlined_call_operand.vmem [shape: f32[1,384], index: 2, kind: input, shape index: {}]
  %s3 = inlined_call_operand.vmem [shape: bf16[16,384], index: 3, kind: output, shape index: {}]
  %s4 = sld [smem:[#allocation0]]
  $region30: #{transformer_forward.42} parent=0
    _
  %s6 = ssub.s32 1, %s4
  %s7 = scalar_select 0, %s6, %s4
  // Predicated region
  $region2: #{transformer_forward.42} parent=0 // pred_check
    _
  $region3: #{transformer_forward.42} parent=0 // pred_check_branch
    %9 = sbr.rel (0) target = $region5
  $region4: #{transformer_forward.42} parent=0 // pred_region
    _
  $region5: #{transformer_forward.42} parent=0 // pred_fallthru
    _
  // Predicated region
  $region6: #{transformer_forward.42} parent=0 // pred_check
    _
  $region7: #{transformer_forward.42} parent=0 // pred_check_branch
    %11 = sbr.rel (0) target = $region9
  $region8: #{transformer_forward.42} parent=0 // pred_region
    _
  $region9: #{transformer_forward.42} parent=0 // pred_fallthru
    _
  // Predicated region
  $region10: #{transformer_forward.42} parent=0 // pred_check
    _
  $region11: #{transformer_forward.42} parent=0 // pred_check_branch
    %13 = sbr.rel (0) target = $region13
  $region12: #{transformer_forward.42} parent=0 // pred_region
    _
  $region13: #{transformer_forward.42} parent=0 // pred_fallthru
    _
  %p15 = scmp.eq.s32.totalorder 0, 0
  // Predicated region
  $region14: #{transformer_forward.42} parent=0 // pred_check
    %p16 = pneg %p15
  $region15: #{transformer_forward.42} parent=0 // pred_check_branch
    %18 = sbr.rel (%p16) target = $region17
  $region16: #{transformer_forward.42} parent=0 // pred_region
    %19 = vst [vmem:[#allocation2] sm:$0xff] 0.0
    %20 = vst [vmem:[#allocation2 + $0x8] sm:$0xff] 0.0
    %21 = vst [vmem:[#allocation2 + $0x10] sm:$0xff] 0.0
    %22 = vst [vmem:[#allocation2 + $0x18] sm:$0xff] 0.0
    %23 = vst [vmem:[#allocation2 + $0x20] sm:$0xff] 0.0
    %24 = vst [vmem:[#allocation2 + $0x28] sm:$0xff] 0.0
  $region17: #{transformer_forward.42} parent=0 // pred_fallthru
    _
  %v25 = vld [vmem:[#allocation2] sm:$0xff]
  %v26 = vld [vmem:[#allocation2 + $0x8] sm:$0xff]
  %v27 = vld [vmem:[#allocation2 + $0x10] sm:$0xff]
  %v28 = vld [vmem:[#allocation2 + $0x18] sm:$0xff]
  %v29 = vld [vmem:[#allocation2 + $0x20] sm:$0xff]
  %v30 = vld [vmem:[#allocation2 + $0x28] sm:$0xff]
  %v31 = vld [vmem:[%s0] sm:$0xf]
  %v32 = vld [vmem:[%s0 + $0x4] sm:$0xf]
  %v33 = vld [vmem:[%s1] sm:$0xff]
  %v34 = vld [vmem:[%s1 + $0x8] sm:$0xf]
  %v35 = vld [vmem:[%s1 + $0xc] sm:$0xff]
  %v36 = vld [vmem:[%s1 + $0x14] sm:$0xf]
  %v37 = vld [vmem:[%s1 + $0x18] sm:$0xff]
  %v38 = vld [vmem:[%s1 + $0x20] sm:$0xf]
  %v39 = vld [vmem:[%s1 + $0x24] sm:$0xff]
  %v40 = vld [vmem:[%s1 + $0x2c] sm:$0xf]
  %v41 = vld [vmem:[%s1 + $0x30] sm:$0xff]
  %v42 = vld [vmem:[%s1 + $0x38] sm:$0xf]
  %v43 = vld [vmem:[%s1 + $0x3c] sm:$0xff]
  %v44 = vld [vmem:[%s1 + $0x44] sm:$0xf]
  %v45 = vld [vmem:[%s1 + $0x48] sm:$0xff]
  %v46 = vld [vmem:[%s1 + $0x50] sm:$0xf]
  %v47 = vld [vmem:[%s1 + $0x54] sm:$0xff]
  %v48 = vld [vmem:[%s1 + $0x5c] sm:$0xf]
  %v49 = vld [vmem:[%s1 + $0x60] sm:$0xff]
  %v50 = vld [vmem:[%s1 + $0x68] sm:$0xf]
  %v51 = vld [vmem:[%s1 + $0x6c] sm:$0xff]
  %v52 = vld [vmem:[%s1 + $0x74] sm:$0xf]
  %v53 = vld [vmem:[%s1 + $0x78] sm:$0xff]
  %v54 = vld [vmem:[%s1 + $0x80] sm:$0xf]
  %v55 = vld [vmem:[%s1 + $0x84] sm:$0xff]
  %v56 = vld [vmem:[%s1 + $0x8c] sm:$0xf]
  %v57 = vld [vmem:[%s1 + $0x90] sm:$0xff]
  %v58 = vld [vmem:[%s1 + $0x98] sm:$0xf]
  %v59 = vld [vmem:[%s1 + $0x9c] sm:$0xff]
  %v60 = vld [vmem:[%s1 + $0xa4] sm:$0xf]
  %v61 = vld [vmem:[%s1 + $0xa8] sm:$0xff]
  %v62 = vld [vmem:[%s1 + $0xb0] sm:$0xf]
  %v63 = vld [vmem:[%s1 + $0xb4] sm:$0xff]
  %v64 = vld [vmem:[%s1 + $0xbc] sm:$0xf]
  %v67 = vunpack.c.l.b16 %v31
  %v68 = vunpack.c.l.b16 %v32
  %v69 = vpack.c.b16 %v68, %v67
  %v103 = vunpack.c.l.b16 %v33
  %v104 = vunpack.c.h.b16 %v33
  %v105 = vunpack.c.l.b16 %v34
  %v106 = vunpack.c.l.b16 %v35
  %v107 = vunpack.c.h.b16 %v35
  %v108 = vunpack.c.l.b16 %v36
  %v109 = vunpack.c.l.b16 %v37
  %v110 = vunpack.c.h.b16 %v37
  %v111 = vunpack.c.l.b16 %v38
  %v112 = vunpack.c.l.b16 %v39
  %v113 = vunpack.c.h.b16 %v39
  %v114 = vunpack.c.l.b16 %v40
  %v115 = vunpack.c.l.b16 %v41
  %v116 = vunpack.c.h.b16 %v41
  %v117 = vunpack.c.l.b16 %v42
  %v118 = vunpack.c.l.b16 %v43
  %v119 = vunpack.c.h.b16 %v43
  %v120 = vunpack.c.l.b16 %v44
  %v121 = vunpack.c.l.b16 %v45
  %v122 = vunpack.c.h.b16 %v45
  %v123 = vunpack.c.l.b16 %v46
  %v124 = vunpack.c.l.b16 %v47
  %v125 = vunpack.c.h.b16 %v47
  %v126 = vunpack.c.l.b16 %v48
  %v127 = vunpack.c.l.b16 %v49
  %v128 = vunpack.c.h.b16 %v49
  %v129 = vunpack.c.l.b16 %v50
  %v130 = vunpack.c.l.b16 %v51
  %v131 = vunpack.c.h.b16 %v51
  %v132 = vunpack.c.l.b16 %v52
  %v133 = vunpack.c.l.b16 %v53
  %v134 = vunpack.c.h.b16 %v53
  %v135 = vunpack.c.l.b16 %v54
  %v136 = vunpack.c.l.b16 %v55
  %v137 = vunpack.c.h.b16 %v55
  %v138 = vunpack.c.l.b16 %v56
  %v139 = vunpack.c.l.b16 %v57
  %v140 = vunpack.c.h.b16 %v57
  %v141 = vunpack.c.l.b16 %v58
  %v142 = vunpack.c.l.b16 %v59
  %v143 = vunpack.c.h.b16 %v59
  %v144 = vunpack.c.l.b16 %v60
  %v145 = vunpack.c.l.b16 %v61
  %v146 = vunpack.c.h.b16 %v61
  %v147 = vunpack.c.l.b16 %v62
  %v148 = vunpack.c.l.b16 %v63
  %v149 = vunpack.c.h.b16 %v63
  %v150 = vunpack.c.l.b16 %v64
  %v151 = vpack.c.b16 %v106, %v103
  %v152 = vpack.c.b16 %v107, %v104
  %v153 = vpack.c.b16 %v108, %v105
  %v154 = vpack.c.b16 %v112, %v109
  %v155 = vpack.c.b16 %v113, %v110
  %v156 = vpack.c.b16 %v114, %v111
  %v157 = vpack.c.b16 %v118, %v115
  %v158 = vpack.c.b16 %v119, %v116
  %v159 = vpack.c.b16 %v120, %v117
  %v160 = vpack.c.b16 %v124, %v121
  %v161 = vpack.c.b16 %v125, %v122
  %v162 = vpack.c.b16 %v126, %v123
  %v163 = vpack.c.b16 %v130, %v127
  %v164 = vpack.c.b16 %v131, %v128
  %v165 = vpack.c.b16 %v132, %v129
  %v166 = vpack.c.b16 %v136, %v133
  %v167 = vpack.c.b16 %v137, %v134
  %v168 = vpack.c.b16 %v138, %v135
  %v169 = vpack.c.b16 %v142, %v139
  %v170 = vpack.c.b16 %v143, %v140
  %v171 = vpack.c.b16 %v144, %v141
  %v172 = vpack.c.b16 %v148, %v145
  %v173 = vpack.c.b16 %v149, %v146
  %v174 = vpack.c.b16 %v150, %v147
  %199 = vmatprep.subr.bf16.mxu0 %v152
  %200 = vmatpush1.bf16.msra.mxu0 %v151
  %201 = vmatprep.subr.bf16.mxu0 %v155
  %202 = vmatpush1.bf16.msra.mxu0 %v154
  %203 = vmatprep.subr.bf16.mxu0 %v158
  %204 = vmatpush1.bf16.msra.mxu0 %v157
  %205 = vmatprep.subr.bf16.mxu0 %v161
  %206 = vmatpush1.bf16.msra.mxu0 %v160
  %207 = vmatprep.subr.bf16.mxu0 %v164
  %208 = vmatpush1.bf16.msra.mxu0 %v163
  %209 = vmatprep.subr.bf16.mxu0 %v167
  %210 = vmatpush1.bf16.msra.mxu0 %v166
  %211 = vmatprep.subr.bf16.mxu0 %v170
  %212 = vmatpush1.bf16.msra.mxu0 %v169
  %213 = vmatprep.subr.bf16.mxu0 %v173
  %214 = vmatpush1.bf16.msra.mxu0 %v172
  %215 = vmatprep.subr.bf16.mxu0 0
  %216 = vmatpush1.bf16.msra.mxu0 0
  %217 = vmatprep.subr.bf16.mxu0 0
  %218 = vmatpush1.bf16.msra.mxu0 0
  %219 = vmatprep.subr.bf16.mxu0 0
  %220 = vmatpush1.bf16.msra.mxu0 0
  %221 = vmatprep.subr.bf16.mxu0 0
  %222 = vmatpush1.bf16.msra.mxu0 0
  %223 = vmatprep.subr.bf16.mxu0 0
  %224 = vmatpush1.bf16.msra.mxu0 0
  %225 = vmatprep.subr.bf16.mxu0 0
  %226 = vmatpush1.bf16.msra.mxu0 0
  %227 = vmatprep.subr.bf16.mxu0 0
  %228 = vmatpush1.bf16.msra.mxu0 0
  %229 = vmatprep.subr.bf16.mxu0 0
  %230 = vmatpush1.bf16.msra.mxu0 0
  %231 = vmatprep.mubr.bf16.mxu0 0
  %232 = vmatmul.mubr.bf16.gmra.mrb[0].mxu0 %v69
  %v233 = vpop.f32.mrb[0].mxu0
  %v234 = vadd.f32 0.0, %v233
  %v235 = vpop.f32.mrb[0].mxu0
  %v236 = vadd.f32 0.0, %v235
  %v237 = vpop.f32.mrb[0].mxu0
  %v238 = vadd.f32 0.0, %v237
  %v239 = vpop.f32.mrb[0].mxu0
  %v240 = vadd.f32 0.0, %v239
  %241 = vdwg.mxu0
  %242 = vmatprep.subr.bf16.mxu0 0
  %243 = vmatpush1.bf16.msra.mxu0 %v153
  %244 = vmatprep.subr.bf16.mxu0 0
  %245 = vmatpush1.bf16.msra.mxu0 %v156
  %246 = vmatprep.subr.bf16.mxu0 0
  %247 = vmatpush1.bf16.msra.mxu0 %v159
  %248 = vmatprep.subr.bf16.mxu0 0
  %249 = vmatpush1.bf16.msra.mxu0 %v162
  %250 = vmatprep.subr.bf16.mxu0 0
  %251 = vmatpush1.bf16.msra.mxu0 %v165
  %252 = vmatprep.subr.bf16.mxu0 0
  %253 = vmatpush1.bf16.msra.mxu0 %v168
  %254 = vmatprep.subr.bf16.mxu0 0
  %255 = vmatpush1.bf16.msra.mxu0 %v171
  %256 = vmatprep.subr.bf16.mxu0 0
  %257 = vmatpush1.bf16.msra.mxu0 %v174
  %258 = vmatprep.subr.bf16.mxu0 0
  %259 = vmatpush1.bf16.msra.mxu0 0
  %260 = vmatprep.subr.bf16.mxu0 0
  %261 = vmatpush1.bf16.msra.mxu0 0
  %262 = vmatprep.subr.bf16.mxu0 0
  %263 = vmatpush1.bf16.msra.mxu0 0
  %264 = vmatprep.subr.bf16.mxu0 0
  %265 = vmatpush1.bf16.msra.mxu0 0
  %266 = vmatprep.subr.bf16.mxu0 0
  %267 = vmatpush1.bf16.msra.mxu0 0
  %268 = vmatprep.subr.bf16.mxu0 0
  %269 = vmatpush1.bf16.msra.mxu0 0
  %270 = vmatprep.subr.bf16.mxu0 0
  %271 = vmatpush1.bf16.msra.mxu0 0
  %272 = vmatprep.subr.bf16.mxu0 0
  %273 = vmatpush1.bf16.msra.mxu0 0
  %274 = vmatprep.mubr.bf16.mxu0 0
  %275 = vmatmul.mubr.bf16.gmra.mrb[0].mxu0 %v69
  %v276 = vpop.f32.mrb[0].mxu0
  %v277 = vadd.f32 0.0, %v276
  %v278 = vpop.f32.mrb[0].mxu0
  %v279 = vpop.f32.mrb[0].mxu0
  %v280 = vadd.f32 0.0, %v279
  %v281 = vpop.f32.mrb[0].mxu0
  %282 = vdwg.mxu0
  %v283 = vadd.f32 %v25, %v234
  %v284 = vadd.f32 %v26, %v236
  %v285 = vadd.f32 %v27, %v277
  %v286 = vadd.f32 %v28, %v238
  %v287 = vadd.f32 %v29, %v240
  %v288 = vadd.f32 %v30, %v280
  %289 = vst [vmem:[#allocation2] sm:$0xff] %v283
  %290 = vst [vmem:[#allocation2 + $0x8] sm:$0xff] %v284
  %291 = vst [vmem:[#allocation2 + $0x10] sm:$0xff] %v285
  %292 = vst [vmem:[#allocation2 + $0x18] sm:$0xff] %v286
  %293 = vst [vmem:[#allocation2 + $0x20] sm:$0xff] %v287
  %294 = vst [vmem:[#allocation2 + $0x28] sm:$0xff] %v288
  // Predicated region
  $region18: #{transformer_forward.42} parent=0 // pred_check
    %p295 = pneg %p15
  $region19: #{transformer_forward.42} parent=0 // pred_check_branch
    %297 = sbr.rel (%p295) target = $region21
  $region20: #{transformer_forward.42} parent=0 // pred_region
    %v298 = vld [vmem:[#allocation2] sm:$0xff]
    %v299 = vld [vmem:[#allocation2 + $0x8] sm:$0xff]
    %v300 = vld [vmem:[#allocation2 + $0x10] sm:$0xff]
    %v301 = vld [vmem:[#allocation2 + $0x18] sm:$0xff]
    %v302 = vld [vmem:[#allocation2 + $0x20] sm:$0xff]
    %v303 = vld [vmem:[#allocation2 + $0x28] sm:$0xff]
    %v304 = vld [vmem:[%s2] sm:$0x7]
    %v306 = vlaneseq
    %v307 = vshrl.u32 %v306, 7
    %v308 = vsub.s32 0, %v307
    %v309 = vrot.slane %v304, %v308
    %v310 = vlaneseq
    %v311 = vshrl.u32 %v310, 7
    %v312 = vsub.s32 1, %v311
    %v313 = vrot.slane %v304, %v312
    %v314 = vlaneseq
    %v315 = vshrl.u32 %v314, 7
    %v316 = vsub.s32 2, %v315
    %v317 = vrot.slane %v304, %v316
    %v321 = vadd.f32 %v298, %v309
    %v322 = vadd.f32 %v299, %v313
    %v323 = vadd.f32 %v300, %v317
    %v324 = vadd.f32 %v301, %v309
    %v325 = vadd.f32 %v302, %v313
    %v326 = vadd.f32 %v303, %v317
    %v327 = vpack.c.bf16 %v324, %v321
    %v328 = vpack.c.bf16 %v325, %v322
    %v329 = vpack.c.bf16 %v326, %v323
    %v333 = vunpack.c.l.b16 %v327
    %v334 = vunpack.c.l.b16 %v328
    %v335 = vunpack.c.l.b16 %v329
    %v336 = vunpack.c.h.b16 %v327
    %v337 = vunpack.c.h.b16 %v328
    %v338 = vunpack.c.h.b16 %v329
    %v339 = vpack.c.b16 %v334, %v333
    %v340 = vpack.c.b16 %v335, %v335
    %v341 = vpack.c.b16 %v337, %v336
    %v342 = vpack.c.b16 %v338, %v338
    %347 = vst [vmem:[%s3] sm:$0xff] %v339
    %348 = vst [vmem:[%s3 + $0x8] sm:$0xf] %v340
    %349 = vst [vmem:[%s3 + $0xc] sm:$0xff] %v341
    %350 = vst [vmem:[%s3 + $0x14] sm:$0xf] %v342
  $region21: #{transformer_forward.42} parent=0 // pred_fallthru
    _
  // Predicated region
  $region22: #{transformer_forward.42} parent=0 // pred_check
    _
  $region23: #{transformer_forward.42} parent=0 // pred_check_branch
    %352 = sbr.rel (0) target = $region25
  $region24: #{transformer_forward.42} parent=0 // pred_region
    _
  $region25: #{transformer_forward.42} parent=0 // pred_fallthru
    _
  // Predicated region
  $region26: #{transformer_forward.42} parent=0 // pred_check
    _
  $region27: #{transformer_forward.42} parent=0 // pred_check_branch
    %354 = sbr.rel (0) target = $region29
  $region28: #{transformer_forward.42} parent=0 // pred_region
    _
  $region29: #{transformer_forward.42} parent=0 // pred_fallthru
    _

// kernel: transformer_forward.43
$region0: #{transformer_forward.43}
  #allocation0 [shape = 'u32[]', space=smem, size = 0x4, offset = 0x4, fixed_abs, tag = 'smem constant byte address 0x4 - core index']
  #allocation1 [shape = 'u32[144,128]{1,0:T(1,128)}', space=vmem, size = 0x12000, scoped, tag = 'internal scratch']
  #allocation2 [shape = 'f32[4,8,1]{2,1,0:T(8,128)}', space=vmem, size = 0x4000, scoped, tag = 'scratch operand']
  #allocation3 [shape = 'f32[4,8,1]{2,1,0:T(8,128)}', space=vmem, size = 0x4000, scoped, tag = 'scratch operand']
  #allocation4 [shape = 'f32[4,8,32]{2,1,0:T(8,128)}', space=vmem, size = 0x4000, scoped, tag = 'scratch operand']
  %s0 = inlined_call_operand.vmem [shape: bf16[2,8,384], index: 0, kind: input, shape index: {}, may-alias: {0,1,2}]
  %s1 = inlined_call_operand.vmem [shape: bf16[2,8,384], index: 1, kind: input, shape index: {}, may-alias: {0,1,2}]
  %s2 = inlined_call_operand.vmem [shape: bf16[2,8,384], index: 2, kind: input, shape index: {}, may-alias: {0,1,2}]
  %s3 = inlined_call_operand.vmem [shape: bf16[2,8,128], index: 3, kind: output, shape index: {}]
  %s4 = sld [smem:[#allocation0]]
  $region53: #{transformer_forward.43} parent=0
    _
  %s6 = ssub.s32 1, %s4
  %s7 = scalar_select 0, %s6, %s4
  loop: start=0, step=1, limit=4
  $region2: #{transformer_forward.43} parent=0 // loop_pre_header
    _
  $region3: #{transformer_forward.43} parent=0 // loop_header
    %s9 = sphi 0, %s13
    %p10 = scmp.ge.s32.totalorder %s9, 4
    %s16 = sphi 0, %s35
    %s17 = sphi 0, %s31
    %s18 = sphi 0, %s27
    %s19 = sphi 0, %s16
    %s20 = sphi 0, %s17
    %s21 = sphi 0, %s18
    %s22 = sphi 0, %s19
    %s23 = sphi 0, %s20
    %s24 = sphi 0, %s21
    %s40 = sphi 0, %s42
    %s43 = sphi 0, %s40
    %s44 = sphi 0, %s43
    %s60 = sphi 0, %s44
    %s72 = sphi 0, %s74
    %s75 = sphi 0, %s72
    %s76 = sphi 0, %s75
    %s92 = sphi 0, %s76
    %s104 = sphi 0, %s106
    %s107 = sphi 0, %s104
    %s108 = sphi 0, %s107
    %s124 = sphi 0, %s108
    %s132 = sphi 0, %s134
    %s135 = sphi 0, %s132
    %s136 = sphi 0, %s135
    %s152 = sphi 0, %s136
  $region4: #{transformer_forward.43} parent=0 // loop_header_branch
    %12 = sbr.rel (%p10) target = $region8
  $region5: #{transformer_forward.43} parent=0 // loop_body
    %s14 = ssub.s32 %s9, 1
    %s15 = ssub.s32 %s9, 2
    %s25 = sadd.s32 1, %s18
    %p26 = scmp.ge.s32.totalorder %s25, 1
    %s27 = scalar_select %p26, 0, %s25
    %s28 = sadd.s32 1, %s17
    %s29 = scalar_select %p26, %s28, %s17
    %p30 = scmp.ge.s32.totalorder %s29, 1
    %s31 = scalar_select %p30, 0, %s29
    %s32 = sadd.s32 1, %s16
    %s33 = scalar_select %p30, %s32, %s16
    %p34 = scmp.ge.s32.totalorder %s33, 2
    %s35 = scalar_select %p34, 0, %s33
    %s36 = ssub.s32 %s16, %s35
    %s37 = ssub.s32 %s17, %s31
    %s38 = sor.u32 %s36, %s37
    %p39 = scmp.eq.s32.totalorder %s38, 0
    %s41 = sadd.s32 %s40, 1
    %s42 = scalar_select %p39, %s40, %s41
    %p45 = pneg %p39
    %p46 = scmp.eq.s32.totalorder %s9, 1
    %p47 = por %p45, %p46
    %p48 = scmp.ne.s32.totalorder %s40, %s43
    %p49 = scmp.eq.s32.totalorder %s9, 0
    %p50 = por %p48, %p49
    %p51 = scmp.ne.s32.totalorder %s40, %s43
    %p52 = scmp.eq.s32.totalorder %s14, 1
    %p53 = por %p51, %p52
    %p54 = scmp.ne.s32.totalorder %s43, %s44
    %p55 = scmp.eq.s32.totalorder %s14, 0
    %p56 = por %p54, %p55
    %p57 = scmp.ne.s32.totalorder %s43, %s44
    %p58 = scmp.eq.s32.totalorder %s15, 1
    %p59 = por %p57, %p58
    %p61 = scmp.ne.s32.totalorder %s44, %s60
    %p62 = scmp.eq.s32.totalorder %s15, 0
    %p63 = por %p61, %p62
    %s64 = sadd.s32 %s17, 1
    %s65 = sadd.s32 %s31, 1
    %s66 = ssub.s32 %s16, %s35
    %s67 = ssub.s32 %s18, %s27
    %s68 = sor.u32 %s66, %s67
    %s69 = ssub.s32 %s64, %s65
    %s70 = sor.u32 %s68, %s69
    %p71 = scmp.eq.s32.totalorder %s70, 0
    %s73 = sadd.s32 %s72, 1
    %s74 = scalar_select %p71, %s72, %s73
    %p77 = pneg %p71
    %p78 = scmp.eq.s32.totalorder %s9, 1
    %p79 = por %p77, %p78
    %p80 = scmp.ne.s32.totalorder %s72, %s75
    %p81 = scmp.eq.s32.totalorder %s9, 0
    %p82 = por %p80, %p81
    %p83 = scmp.ne.s32.totalorder %s72, %s75
    %p84 = scmp.eq.s32.totalorder %s14, 1
    %p85 = por %p83, %p84
    %p86 = scmp.ne.s32.totalorder %s75, %s76
    %p87 = scmp.eq.s32.totalorder %s14, 0
    %p88 = por %p86, %p87
    %p89 = scmp.ne.s32.totalorder %s75, %s76
    %p90 = scmp.eq.s32.totalorder %s15, 1
    %p91 = por %p89, %p90
    %p93 = scmp.ne.s32.totalorder %s76, %s92
    %p94 = scmp.eq.s32.totalorder %s15, 0
    %p95 = por %p93, %p94
    %s96 = sadd.s32 %s17, 2
    %s97 = sadd.s32 %s31, 2
    %s98 = ssub.s32 %s16, %s35
    %s99 = ssub.s32 %s18, %s27
    %s100 = sor.u32 %s98, %s99
    %s101 = ssub.s32 %s96, %s97
    %s102 = sor.u32 %s100, %s101
    %p103 = scmp.eq.s32.totalorder %s102, 0
    %s105 = sadd.s32 %s104, 1
    %s106 = scalar_select %p103, %s104, %s105
    %p109 = pneg %p103
    %p110 = scmp.eq.s32.totalorder %s9, 1
    %p111 = por %p109, %p110
    %p112 = scmp.ne.s32.totalorder %s104, %s107
    %p113 = scmp.eq.s32.totalorder %s9, 0
    %p114 = por %p112, %p113
    %p115 = scmp.ne.s32.totalorder %s104, %s107
    %p116 = scmp.eq.s32.totalorder %s14, 1
    %p117 = por %p115, %p116
    %p118 = scmp.ne.s32.totalorder %s107, %s108
    %p119 = scmp.eq.s32.totalorder %s14, 0
    %p120 = por %p118, %p119
    %p121 = scmp.ne.s32.totalorder %s107, %s108
    %p122 = scmp.eq.s32.totalorder %s15, 1
    %p123 = por %p121, %p122
    %p125 = scmp.ne.s32.totalorder %s108, %s124
    %p126 = scmp.eq.s32.totalorder %s15, 0
    %p127 = por %p125, %p126
    %s128 = ssub.s32 %s16, %s35
    %s129 = ssub.s32 %s17, %s31
    %s130 = sor.u32 %s128, %s129
    %p131 = scmp.eq.s32.totalorder %s130, 0
    %s133 = sadd.s32 %s132, 1
    %s134 = scalar_select %p131, %s132, %s133
    %p137 = pneg %p131
    %p138 = scmp.eq.s32.totalorder %s9, 1
    %p139 = por %p137, %p138
    %p140 = scmp.ne.s32.totalorder %s132, %s135
    %p141 = scmp.eq.s32.totalorder %s9, 0
    %p142 = por %p140, %p141
    %p143 = scmp.ne.s32.totalorder %s132, %s135
    %p144 = scmp.eq.s32.totalorder %s14, 1
    %p145 = por %p143, %p144
    %p146 = scmp.ne.s32.totalorder %s135, %s136
    %p147 = scmp.eq.s32.totalorder %s14, 0
    %p148 = por %p146, %p147
    %p149 = scmp.ne.s32.totalorder %s135, %s136
    %p150 = scmp.eq.s32.totalorder %s15, 1
    %p151 = por %p149, %p150
    %p153 = scmp.ne.s32.totalorder %s136, %s152
    %p154 = scmp.eq.s32.totalorder %s15, 0
    %p155 = por %p153, %p154
    %p156 = scmp.le.s32.totalorder 1, %s9
    %p157 = scmp.lt.s32.totalorder %s9, 3
    %p158 = pnand %p156, %p157
    %p159 = pneg %p158
    // Predicated region
    $region9: #{transformer_forward.43} parent=5 // pred_check
      _
    $region10: #{transformer_forward.43} parent=5 // pred_check_branch
      %161 = sbr.rel (%p158) target = $region12
    $region11: #{transformer_forward.43} parent=5 // pred_region
      %s162 = ssub.s32 %s9, 1
    $region12: #{transformer_forward.43} parent=5 // pred_fallthru
      _
    %p163 = scmp.lt.s32.totalorder %s9, 2
    // Predicated region
    $region13: #{transformer_forward.43} parent=5 // pred_check
      %p164 = pneg %p163
    $region14: #{transformer_forward.43} parent=5 // pred_check_branch
      %166 = sbr.rel (%p164) target = $region16
    $region15: #{transformer_forward.43} parent=5 // pred_region
      // Predicated region
      $region17: #{transformer_forward.43} parent=15 // pred_check
        %p167 = pneg %p50
      $region18: #{transformer_forward.43} parent=15 // pred_check_branch
        %169 = sbr.rel (%p167) target = $region20
      $region19: #{transformer_forward.43} parent=15 // pred_region
        %p170 = scmp.lt.s32.totalorder %s16, 1
        %s171 = scalar_select %p170, %s16, 1
        %p172 = scmp.lt.s32.totalorder %s17, 2
        %s173 = scalar_select %p172, %s17, 2
        %s174 = smul.addr %s171, 3
        %s175 = sadd.s32 %s173, %s174
        %s176 = smul.addr %s175, 4
        %s177 = scalar_lea.vmem %s0, %s176
      $region20: #{transformer_forward.43} parent=15 // pred_fallthru
        _
      // Predicated region
      $region21: #{transformer_forward.43} parent=15 // pred_check
        %p178 = pneg %p82
      $region22: #{transformer_forward.43} parent=15 // pred_check_branch
        %180 = sbr.rel (%p178) target = $region24
      $region23: #{transformer_forward.43} parent=15 // pred_region
        %s181 = sadd.s32 %s17, 1
        %p182 = scmp.lt.s32.totalorder %s16, 1
        %s183 = scalar_select %p182, %s16, 1
        %p184 = scmp.lt.s32.totalorder %s18, 0
        %s185 = scalar_select %p184, %s18, 0
        %p186 = scmp.lt.s32.totalorder %s181, 2
        %s187 = scalar_select %p186, %s181, 2
        %s188 = smul.addr %s185, 3
        %s189 = sadd.s32 %s187, %s188
        %s190 = smul.addr %s183, 3
        %s191 = sadd.s32 %s189, %s190
        %s192 = smul.addr %s191, 4
        %s193 = scalar_lea.vmem %s1, %s192
        %s194 = sadd.s32 %s17, 1
      $region24: #{transformer_forward.43} parent=15 // pred_fallthru
        _
      // Predicated region
      $region25: #{transformer_forward.43} parent=15 // pred_check
        %p195 = pneg %p114
      $region26: #{transformer_forward.43} parent=15 // pred_check_branch
        %197 = sbr.rel (%p195) target = $region28
      $region27: #{transformer_forward.43} parent=15 // pred_region
        %s198 = sadd.s32 %s17, 2
        %p199 = scmp.lt.s32.totalorder %s16, 1
        %s200 = scalar_select %p199, %s16, 1
        %p201 = scmp.lt.s32.totalorder %s18, 0
        %s202 = scalar_select %p201, %s18, 0
        %p203 = scmp.lt.s32.totalorder %s198, 2
        %s204 = scalar_select %p203, %s198, 2
        %s205 = smul.addr %s202, 3
        %s206 = sadd.s32 %s204, %s205
        %s207 = smul.addr %s200, 3
        %s208 = sadd.s32 %s206, %s207
        %s209 = smul.addr %s208, 4
        %s210 = scalar_lea.vmem %s2, %s209
        %s211 = sadd.s32 %s17, 2
      $region28: #{transformer_forward.43} parent=15 // pred_fallthru
        _
    $region16: #{transformer_forward.43} parent=5 // pred_fallthru
      _
    %p212 = scmp.le.s32.totalorder 1, %s9
    %p213 = scmp.lt.s32.totalorder %s9, 3
    %p214 = pnand %p212, %p213
    %p215 = pneg %p214
    // Predicated region
    $region29: #{transformer_forward.43} parent=5 // pred_check
      _
    $region30: #{transformer_forward.43} parent=5 // pred_check_branch
      %217 = sbr.rel (%p214) target = $region32
    $region31: #{transformer_forward.43} parent=5 // pred_region
      %s218 = ssub.s32 %s9, 1
      %p219 = scmp.lt.s32.totalorder %s19, 1
      %s220 = scalar_select %p219, %s19, 1
      %p221 = scmp.lt.s32.totalorder %s20, 2
      %s222 = scalar_select %p221, %s20, 2
      %s223 = smul.addr %s220, 3
      %s224 = sadd.s32 %s222, %s223
      %s225 = smul.addr %s224, 4
      %s226 = scalar_lea.vmem %s0, %s225
      %p227 = pneg %p56
      %p228 = pneg %p53
      %s229 = sadd.s32 %s20, 1
      %p230 = scmp.lt.s32.totalorder %s19, 1
      %s231 = scalar_select %p230, %s19, 1
      %p232 = scmp.lt.s32.totalorder %s21, 0
      %s233 = scalar_select %p232, %s21, 0
      %p234 = scmp.lt.s32.totalorder %s229, 2
      %s235 = scalar_select %p234, %s229, 2
      %s236 = smul.addr %s233, 3
      %s237 = sadd.s32 %s235, %s236
      %s238 = smul.addr %s231, 3
      %s239 = sadd.s32 %s237, %s238
      %s240 = smul.addr %s239, 4
      %s241 = scalar_lea.vmem %s1, %s240
      %p242 = pneg %p88
      %p243 = pneg %p85
      %s244 = sadd.s32 %s20, 2
      %p245 = scmp.lt.s32.totalorder %s19, 1
      %s246 = scalar_select %p245, %s19, 1
      %p247 = scmp.lt.s32.totalorder %s21, 0
      %s248 = scalar_select %p247, %s21, 0
      %p249 = scmp.lt.s32.totalorder %s244, 2
      %s250 = scalar_select %p249, %s244, 2
      %s251 = smul.addr %s248, 3
      %s252 = sadd.s32 %s250, %s251
      %s253 = smul.addr %s246, 3
      %s254 = sadd.s32 %s252, %s253
      %s255 = smul.addr %s254, 4
      %s256 = scalar_lea.vmem %s2, %s255
      %p257 = pneg %p120
      %p258 = pneg %p117
      %p259 = pneg %p148
      %p260 = pneg %p145
      %p261 = scmp.lt.s32.totalorder %s19, 1
      %s262 = scalar_select %p261, %s19, 1
      %p263 = scmp.lt.s32.totalorder %s20, 0
      %s264 = scalar_select %p263, %s20, 0
      %s265 = sadd.s32 %s264, %s262
      %s266 = smul.addr %s265, 4
      %s267 = scalar_lea.vmem %s3, %s266
      %p268 = scmp.lt.s32.totalorder %s19, 1
      %s269 = scalar_select %p268, %s19, 1
      %p270 = scmp.lt.s32.totalorder %s20, 2
      %s271 = scalar_select %p270, %s20, 2
      %s272 = smul.addr %s269, 3
      %s273 = sadd.s32 %s271, %s272
      %s274 = smul.addr %s273, 4
      %s275 = scalar_lea.vmem %s0, %s274
      %s276 = sadd.s32 %s20, 1
      %p277 = scmp.lt.s32.totalorder %s19, 1
      %s278 = scalar_select %p277, %s19, 1
      %p279 = scmp.lt.s32.totalorder %s21, 0
      %s280 = scalar_select %p279, %s21, 0
      %p281 = scmp.lt.s32.totalorder %s276, 2
      %s282 = scalar_select %p281, %s276, 2
      %s283 = smul.addr %s280, 3
      %s284 = sadd.s32 %s282, %s283
      %s285 = smul.addr %s278, 3
      %s286 = sadd.s32 %s284, %s285
      %s287 = smul.addr %s286, 4
      %s288 = scalar_lea.vmem %s1, %s287
      %s289 = sadd.s32 %s20, 1
      %s290 = sadd.s32 %s20, 2
      %p291 = scmp.lt.s32.totalorder %s19, 1
      %s292 = scalar_select %p291, %s19, 1
      %p293 = scmp.lt.s32.totalorder %s21, 0
      %s294 = scalar_select %p293, %s21, 0
      %p295 = scmp.lt.s32.totalorder %s290, 2
      %s296 = scalar_select %p295, %s290, 2
      %s297 = smul.addr %s294, 3
      %s298 = sadd.s32 %s296, %s297
      %s299 = smul.addr %s292, 3
      %s300 = sadd.s32 %s298, %s299
      %s301 = smul.addr %s300, 4
      %s302 = scalar_lea.vmem %s2, %s301
      %s303 = sadd.s32 %s20, 2
      %p304 = scmp.lt.s32.totalorder %s19, 1
      %s305 = scalar_select %p304, %s19, 1
      %p306 = scmp.lt.s32.totalorder %s20, 0
      %s307 = scalar_select %p306, %s20, 0
      %s308 = sadd.s32 %s307, %s305
      %s309 = smul.addr %s308, 4
      %s310 = scalar_lea.vmem %s3, %s309
      %v312 = vld [vmem:[%s275] sm:$0xf]
      %v313 = vld [vmem:[%s288] sm:$0xf]
      %v314 = vld [vmem:[%s302] sm:$0xf]
      %p315 = scmp.eq.s32.totalorder %s21, 0
      // Predicated region
      $region33: #{transformer_forward.43} parent=31 // pred_check
        %p316 = pneg %p315
      $region34: #{transformer_forward.43} parent=31 // pred_check_branch
        %318 = sbr.rel (%p316) target = $region36
      $region35: #{transformer_forward.43} parent=31 // pred_region
        %vm319 = vcmask 7168
        %320 = vst.msk [vmem:[#allocation2] sm:$0xff] %vm319, -inf
        %321 = vst.msk [vmem:[#allocation2 + $0x8] sm:$0xff] %vm319, -inf
        %322 = vst.msk [vmem:[#allocation2 + $0x10] sm:$0xff] %vm319, -inf
        %323 = vst.msk [vmem:[#allocation2 + $0x18] sm:$0xff] %vm319, -inf
        %324 = vst.msk [vmem:[#allocation3] sm:$0xff] %vm319, 0.0
        %325 = vst.msk [vmem:[#allocation3 + $0x8] sm:$0xff] %vm319, 0.0
        %326 = vst.msk [vmem:[#allocation3 + $0x10] sm:$0xff] %vm319, 0.0
        %327 = vst.msk [vmem:[#allocation3 + $0x18] sm:$0xff] %vm319, 0.0
        %vm328 = vcmask 261120
        %329 = vst.msk [vmem:[#allocation4] sm:$0xff] %vm328, 0.0
        %330 = vst.msk [vmem:[#allocation4 + $0x8] sm:$0xff] %vm328, 0.0
        %331 = vst.msk [vmem:[#allocation4 + $0x10] sm:$0xff] %vm328, 0.0
        %332 = vst.msk [vmem:[#allocation4 + $0x18] sm:$0xff] %vm328, 0.0
      $region36: #{transformer_forward.43} parent=31 // pred_fallthru
        _
      %v333 = vunpack.c.l.bf16 %v312
      %v334 = vmul.f32 %v333, 0.17677669
      %v335 = vpack.c.bf16 %v334, %v334
      %v336 = vlaneseq
      %v337 = vshrl.u32 %v336, 7
      %s338 = smul.u32 %s21, 8
      %v339 = vlaneseq
      %v340 = vand.u32 %v339, 127
      %v341 = vstv %s338
      %v342 = vadd.s32 %v341, %v340
      %vm343 = vcmp.le.s32.totalorder %v342, %v337
      %vm344 = vcmask 261120
      %v346 = vsel %vm344, %v335, 0
      %v349 = vsel %vm344, %v313, 0
      %351 = vmatprep.subr.bf16.mxu0 0
      %352 = vmatpush1.bf16.xpose.msra.mxu0 %v349
      %353 = vmatprep.subr.bf16.mxu0 0
      %354 = vmatpush1.bf16.xpose.msra.mxu0 0
      %355 = vmatprep.subr.bf16.mxu0 0
      %356 = vmatpush1.bf16.xpose.msra.mxu0 0
      %357 = vmatprep.subr.bf16.mxu0 0
      %358 = vmatpush1.bf16.xpose.msra.mxu0 0
      %359 = vmatprep.subr.bf16.mxu0 0
      %360 = vmatpush1.bf16.xpose.msra.mxu0 0
      %361 = vmatprep.subr.bf16.mxu0 0
      %362 = vmatpush1.bf16.xpose.msra.mxu0 0
      %363 = vmatprep.subr.bf16.mxu0 0
      %364 = vmatpush1.bf16.xpose.msra.mxu0 0
      %365 = vmatprep.subr.bf16.mxu0 0
      %366 = vmatpush1.bf16.xpose.msra.mxu0 0
      %367 = vmatprep.subr.bf16.mxu0 0
      %368 = vmatpush1.bf16.xpose.msra.mxu0 0
      %369 = vmatprep.subr.bf16.mxu0 0
      %370 = vmatpush1.bf16.xpose.msra.mxu0 0
      %371 = vmatprep.subr.bf16.mxu0 0
      %372 = vmatpush1.bf16.xpose.msra.mxu0 0
      %373 = vmatprep.subr.bf16.mxu0 0
      %374 = vmatpush1.bf16.xpose.msra.mxu0 0
      %375 = vmatprep.subr.bf16.mxu0 0
      %376 = vmatpush1.bf16.xpose.msra.mxu0 0
      %377 = vmatprep.subr.bf16.mxu0 0
      %378 = vmatpush1.bf16.xpose.msra.mxu0 0
      %379 = vmatprep.subr.bf16.mxu0 0
      %380 = vmatpush1.bf16.xpose.msra.mxu0 0
      %381 = vmatprep.subr.bf16.mxu0 0
      %382 = vmatpush1.bf16.xpose.msra.mxu0 0
      %383 = vmatprep.mubr.bf16.mxu0 0
      %384 = vmatmul.mubr.bf16.gmra.mrb[0].mxu0 %v346
      %v385 = vpop.f32.mrb[0].mxu0
      %v386 = vadd.f32 0.0, %v385
      %v387 = vpop.f32.mrb[0].mxu0
      %v388 = vpop.f32.mrb[0].mxu0
      %v389 = vpop.f32.mrb[0].mxu0
      %390 = vdwg.mxu0
      %v391 = vsel %vm343, %v386, -1e+09
      %v392 = vld [vmem:[#allocation2] sm:$0xff]
      %vm393 = vcmask 64512
      %v394 = vsel %vm393, %v391, -inf
      %395 = vmax.xlane.f32.xlu0 %v394
      %v396 = vpop.xlane.xlu0 %395
      %v397 = vmax.f32 %v392, %v396
      %v398 = vsub.f32 %v392, %v397
      %v399 = vmul.f32 %v398, 1.442695
      %v400 = vpow.pop %v399
      %402 = vset.pattern.permute.xlu0 0
      %403 = vperm.xlu0 %402, %v397
      %v404 = vpop.permute.xlu0 %403
      %v406 = vsub.f32 %v391, %v404
      %v407 = vmul.f32 %v406, 1.442695
      %v408 = vpow.pop %v407
      %v409 = vld [vmem:[#allocation3] sm:$0xff]
      %v410 = vmul.f32 %v400, %v409
      %v411 = vsel %vm393, %v408, 0.0
      %412 = vadd.xlane.f32.xlu0 %v411
      %v413 = vpop.xlane.xlu0 %412
      %v414 = vadd.f32 %v410, %v413
      %vm415 = vcmask 7168
      %416 = vst.msk [vmem:[#allocation3] sm:$0xff] %vm415, %v414
      %v417 = vld [vmem:[#allocation4] sm:$0xff]
      %419 = vset.pattern.permute.xlu0 0
      %420 = vperm.xlu0 %419, %v400
      %v421 = vpop.permute.xlu0 %420
      %v423 = vmul.f32 %v421, %v417
      %v424 = vpack.c.bf16 %v408, %v408
      %v426 = vsel %vm393, %v424, 0
      %vm428 = vcmask 1043456
      %v430 = vsel %vm428, %v314, 0
      %432 = vmatprep.subr.bf16.mxu0 0
      %433 = vmatpush1.bf16.msra.mxu0 %v430
      %434 = vmatprep.subr.bf16.mxu0 0
      %435 = vmatpush1.bf16.msra.mxu0 0
      %436 = vmatprep.subr.bf16.mxu0 0
      %437 = vmatpush1.bf16.msra.mxu0 0
      %438 = vmatprep.subr.bf16.mxu0 0
      %439 = vmatpush1.bf16.msra.mxu0 0
      %440 = vmatprep.subr.bf16.mxu0 0
      %441 = vmatpush1.bf16.msra.mxu0 0
      %442 = vmatprep.subr.bf16.mxu0 0
      %443 = vmatpush1.bf16.msra.mxu0 0
      %444 = vmatprep.subr.bf16.mxu0 0
      %445 = vmatpush1.bf16.msra.mxu0 0
      %446 = vmatprep.subr.bf16.mxu0 0
      %447 = vmatpush1.bf16.msra.mxu0 0
      %448 = vmatprep.subr.bf16.mxu0 0
      %449 = vmatpush1.bf16.msra.mxu0 0
      %450 = vmatprep.subr.bf16.mxu0 0
      %451 = vmatpush1.bf16.msra.mxu0 0
      %452 = vmatprep.subr.bf16.mxu0 0
      %453 = vmatpush1.bf16.msra.mxu0 0
      %454 = vmatprep.subr.bf16.mxu0 0
      %455 = vmatpush1.bf16.msra.mxu0 0
      %456 = vmatprep.subr.bf16.mxu0 0
      %457 = vmatpush1.bf16.msra.mxu0 0
      %458 = vmatprep.subr.bf16.mxu0 0
      %459 = vmatpush1.bf16.msra.mxu0 0
      %460 = vmatprep.subr.bf16.mxu0 0
      %461 = vmatpush1.bf16.msra.mxu0 0
      %462 = vmatprep.subr.bf16.mxu0 0
      %463 = vmatpush1.bf16.msra.mxu0 0
      %464 = vmatprep.mubr.bf16.mxu0 0
      %465 = vmatmul.mubr.bf16.gmra.mrb[0].mxu0 %v426
      %v466 = vpop.f32.mrb[0].mxu0
      %v467 = vadd.f32 0.0, %v466
      %v468 = vpop.f32.mrb[0].mxu0
      %v469 = vpop.f32.mrb[0].mxu0
      %v470 = vpop.f32.mrb[0].mxu0
      %471 = vdwg.mxu0
      %v472 = vadd.f32 %v423, %v467
      %473 = vst.msk [vmem:[#allocation4] sm:$0xff] %vm344, %v472
      %474 = vst.msk [vmem:[#allocation2] sm:$0xff] %vm415, %v397
      %476 = vrot.lane.b32.xlu0 %v335, 96
      %v477 = vpop.permute.xlu0 %476
      %v479 = vunpack.c.l.b16 %v313
      %v480 = vpack.c.b16 %v479, %v479
      %481 = vrot.lane.b32.xlu0 %v480, 96
      %v482 = vpop.permute.xlu0 %481
      %v484 = vsel %vm344, %v477, 0
      %v487 = vsel %vm344, %v482, 0
      %489 = vmatprep.subr.bf16.mxu0 0
      %490 = vmatpush1.bf16.xpose.msra.mxu0 %v487
      %491 = vmatprep.subr.bf16.mxu0 0
      %492 = vmatpush1.bf16.xpose.msra.mxu0 0
      %493 = vmatprep.subr.bf16.mxu0 0
      %494 = vmatpush1.bf16.xpose.msra.mxu0 0
      %495 = vmatprep.subr.bf16.mxu0 0
      %496 = vmatpush1.bf16.xpose.msra.mxu0 0
      %497 = vmatprep.subr.bf16.mxu0 0
      %498 = vmatpush1.bf16.xpose.msra.mxu0 0
      %499 = vmatprep.subr.bf16.mxu0 0
      %500 = vmatpush1.bf16.xpose.msra.mxu0 0
      %501 = vmatprep.subr.bf16.mxu0 0
      %502 = vmatpush1.bf16.xpose.msra.mxu0 0
      %503 = vmatprep.subr.bf16.mxu0 0
      %504 = vmatpush1.bf16.xpose.msra.mxu0 0
      %505 = vmatprep.subr.bf16.mxu0 0
      %506 = vmatpush1.bf16.xpose.msra.mxu0 0
      %507 = vmatprep.subr.bf16.mxu0 0
      %508 = vmatpush1.bf16.xpose.msra.mxu0 0
      %509 = vmatprep.subr.bf16.mxu0 0
      %510 = vmatpush1.bf16.xpose.msra.mxu0 0
      %511 = vmatprep.subr.bf16.mxu0 0
      %512 = vmatpush1.bf16.xpose.msra.mxu0 0
      %513 = vmatprep.subr.bf16.mxu0 0
      %514 = vmatpush1.bf16.xpose.msra.mxu0 0
      %515 = vmatprep.subr.bf16.mxu0 0
      %516 = vmatpush1.bf16.xpose.msra.mxu0 0
      %517 = vmatprep.subr.bf16.mxu0 0
      %518 = vmatpush1.bf16.xpose.msra.mxu0 0
      %519 = vmatprep.subr.bf16.mxu0 0
      %520 = vmatpush1.bf16.xpose.msra.mxu0 0
      %521 = vmatprep.mubr.bf16.mxu0 0
      %522 = vmatmul.mubr.bf16.gmra.mrb[0].mxu0 %v484
      %v523 = vpop.f32.mrb[0].mxu0
      %v524 = vadd.f32 0.0, %v523
      %v525 = vpop.f32.mrb[0].mxu0
      %v526 = vpop.f32.mrb[0].mxu0
      %v527 = vpop.f32.mrb[0].mxu0
      %528 = vdwg.mxu0
      %v529 = vsel %vm343, %v524, -1e+09
      %s530 = scalar_lea.vmem [#allocation2], 8
      %v531 = vld [vmem:[%s530] sm:$0xff]
      %v532 = vsel %vm393, %v529, -inf
      %533 = vmax.xlane.f32.xlu0 %v532
      %v534 = vpop.xlane.xlu0 %533
      %v535 = vmax.f32 %v531, %v534
      %v536 = vsub.f32 %v531, %v535
      %v537 = vmul.f32 %v536, 1.442695
      %v538 = vpow.pop %v537
      %540 = vset.pattern.permute.xlu0 0
      %541 = vperm.xlu0 %540, %v535
      %v542 = vpop.permute.xlu0 %541
      %v544 = vsub.f32 %v529, %v542
      %v545 = vmul.f32 %v544, 1.442695
      %v546 = vpow.pop %v545
      %s547 = scalar_lea.vmem [#allocation3], 8
      %v548 = vld [vmem:[%s547] sm:$0xff]
      %v549 = vmul.f32 %v538, %v548
      %v550 = vsel %vm393, %v546, 0.0
      %551 = vadd.xlane.f32.xlu0 %v550
      %v552 = vpop.xlane.xlu0 %551
      %v553 = vadd.f32 %v549, %v552
      %554 = vst.msk [vmem:[%s547] sm:$0xff] %vm415, %v553
      %s555 = scalar_lea.vmem [#allocation4], 8
      %v556 = vld [vmem:[%s555] sm:$0xff]
      %558 = vset.pattern.permute.xlu0 0
      %559 = vperm.xlu0 %558, %v538
      %v560 = vpop.permute.xlu0 %559
      %v562 = vmul.f32 %v560, %v556
      %v563 = vpack.c.bf16 %v546, %v546
      %v565 = vunpack.c.l.b16 %v314
      %v566 = vpack.c.b16 %v565, %v565
      %567 = vrot.lane.b32.xlu0 %v566, 96
      %v568 = vpop.permute.xlu0 %567
      %v570 = vsel %vm393, %v563, 0
      %v573 = vsel %vm428, %v568, 0
      %575 = vmatprep.subr.bf16.mxu0 0
      %576 = vmatpush1.bf16.msra.mxu0 %v573
      %577 = vmatprep.subr.bf16.mxu0 0
      %578 = vmatpush1.bf16.msra.mxu0 0
      %579 = vmatprep.subr.bf16.mxu0 0
      %580 = vmatpush1.bf16.msra.mxu0 0
      %581 = vmatprep.subr.bf16.mxu0 0
      %582 = vmatpush1.bf16.msra.mxu0 0
      %583 = vmatprep.subr.bf16.mxu0 0
      %584 = vmatpush1.bf16.msra.mxu0 0
      %585 = vmatprep.subr.bf16.mxu0 0
      %586 = vmatpush1.bf16.msra.mxu0 0
      %587 = vmatprep.subr.bf16.mxu0 0
      %588 = vmatpush1.bf16.msra.mxu0 0
      %589 = vmatprep.subr.bf16.mxu0 0
      %590 = vmatpush1.bf16.msra.mxu0 0
      %591 = vmatprep.subr.bf16.mxu0 0
      %592 = vmatpush1.bf16.msra.mxu0 0
      %593 = vmatprep.subr.bf16.mxu0 0
      %594 = vmatpush1.bf16.msra.mxu0 0
      %595 = vmatprep.subr.bf16.mxu0 0
      %596 = vmatpush1.bf16.msra.mxu0 0
      %597 = vmatprep.subr.bf16.mxu0 0
      %598 = vmatpush1.bf16.msra.mxu0 0
      %599 = vmatprep.subr.bf16.mxu0 0
      %600 = vmatpush1.bf16.msra.mxu0 0
      %601 = vmatprep.subr.bf16.mxu0 0
      %602 = vmatpush1.bf16.msra.mxu0 0
      %603 = vmatprep.subr.bf16.mxu0 0
      %604 = vmatpush1.bf16.msra.mxu0 0
      %605 = vmatprep.subr.bf16.mxu0 0
      %606 = vmatpush1.bf16.msra.mxu0 0
      %607 = vmatprep.mubr.bf16.mxu0 0
      %608 = vmatmul.mubr.bf16.gmra.mrb[0].mxu0 %v570
      %v609 = vpop.f32.mrb[0].mxu0
      %v610 = vadd.f32 0.0, %v609
      %v611 = vpop.f32.mrb[0].mxu0
      %v612 = vpop.f32.mrb[0].mxu0
      %v613 = vpop.f32.mrb[0].mxu0
      %614 = vdwg.mxu0
      %v615 = vadd.f32 %v562, %v610
      %616 = vst.msk [vmem:[%s555] sm:$0xff] %vm344, %v615
      %617 = vst.msk [vmem:[%s530] sm:$0xff] %vm415, %v535
      %618 = vrot.lane.b32.xlu0 %v335, 64
      %v619 = vpop.permute.xlu0 %618
      %620 = vrot.lane.b32.xlu0 %v480, 64
      %v621 = vpop.permute.xlu0 %620
      %v623 = vsel %vm344, %v619, 0
      %v626 = vsel %vm344, %v621, 0
      %628 = vmatprep.subr.bf16.mxu0 0
      %629 = vmatpush1.bf16.xpose.msra.mxu0 %v626
      %630 = vmatprep.subr.bf16.mxu0 0
      %631 = vmatpush1.bf16.xpose.msra.mxu0 0
      %632 = vmatprep.subr.bf16.mxu0 0
      %633 = vmatpush1.bf16.xpose.msra.mxu0 0
      %634 = vmatprep.subr.bf16.mxu0 0
      %635 = vmatpush1.bf16.xpose.msra.mxu0 0
      %636 = vmatprep.subr.bf16.mxu0 0
      %637 = vmatpush1.bf16.xpose.msra.mxu0 0
      %638 = vmatprep.subr.bf16.mxu0 0
      %639 = vmatpush1.bf16.xpose.msra.mxu0 0
      %640 = vmatprep.subr.bf16.mxu0 0
      %641 = vmatpush1.bf16.xpose.msra.mxu0 0
      %642 = vmatprep.subr.bf16.mxu0 0
      %643 = vmatpush1.bf16.xpose.msra.mxu0 0
      %644 = vmatprep.subr.bf16.mxu0 0
      %645 = vmatpush1.bf16.xpose.msra.mxu0 0
      %646 = vmatprep.subr.bf16.mxu0 0
      %647 = vmatpush1.bf16.xpose.msra.mxu0 0
      %648 = vmatprep.subr.bf16.mxu0 0
      %649 = vmatpush1.bf16.xpose.msra.mxu0 0
      %650 = vmatprep.subr.bf16.mxu0 0
      %651 = vmatpush1.bf16.xpose.msra.mxu0 0
      %652 = vmatprep.subr.bf16.mxu0 0
      %653 = vmatpush1.bf16.xpose.msra.mxu0 0
      %654 = vmatprep.subr.bf16.mxu0 0
      %655 = vmatpush1.bf16.xpose.msra.mxu0 0
      %656 = vmatprep.subr.bf16.mxu0 0
      %657 = vmatpush1.bf16.xpose.msra.mxu0 0
      %658 = vmatprep.subr.bf16.mxu0 0
      %659 = vmatpush1.bf16.xpose.msra.mxu0 0
      %660 = vmatprep.mubr.bf16.mxu0 0
      %661 = vmatmul.mubr.bf16.gmra.mrb[0].mxu0 %v623
      %v662 = vpop.f32.mrb[0].mxu0
      %v663 = vadd.f32 0.0, %v662
      %v664 = vpop.f32.mrb[0].mxu0
      %v665 = vpop.f32.mrb[0].mxu0
      %v666 = vpop.f32.mrb[0].mxu0
      %667 = vdwg.mxu0
      %v668 = vsel %vm343, %v663, -1e+09
      %s669 = scalar_lea.vmem [#allocation2], 16
      %v670 = vld [vmem:[%s669] sm:$0xff]
      %v671 = vsel %vm393, %v668, -inf
      %672 = vmax.xlane.f32.xlu0 %v671
      %v673 = vpop.xlane.xlu0 %672
      %v674 = vmax.f32 %v670, %v673
      %v675 = vsub.f32 %v670, %v674
      %v676 = vmul.f32 %v675, 1.442695
      %v677 = vpow.pop %v676
      %679 = vset.pattern.permute.xlu0 0
      %680 = vperm.xlu0 %679, %v674
      %v681 = vpop.permute.xlu0 %680
      %v683 = vsub.f32 %v668, %v681
      %v684 = vmul.f32 %v683, 1.442695
      %v685 = vpow.pop %v684
      %s686 = scalar_lea.vmem [#allocation3], 16
      %v687 = vld [vmem:[%s686] sm:$0xff]
      %v688 = vmul.f32 %v677, %v687
      %v689 = vsel %vm393, %v685, 0.0
      %690 = vadd.xlane.f32.xlu0 %v689
      %v691 = vpop.xlane.xlu0 %690
      %v692 = vadd.f32 %v688, %v691
      %693 = vst.msk [vmem:[%s686] sm:$0xff] %vm415, %v692
      %s694 = scalar_lea.vmem [#allocation4], 16
      %v695 = vld [vmem:[%s694] sm:$0xff]
      %697 = vset.pattern.permute.xlu0 0
      %698 = vperm.xlu0 %697, %v677
      %v699 = vpop.permute.xlu0 %698
      %v701 = vmul.f32 %v699, %v695
      %v702 = vpack.c.bf16 %v685, %v685
      %703 = vrot.lane.b32.xlu0 %v566, 64
      %v704 = vpop.permute.xlu0 %703
      %v706 = vsel %vm393, %v702, 0
      %v709 = vsel %vm428, %v704, 0
      %711 = vmatprep.subr.bf16.mxu0 0
      %712 = vmatpush1.bf16.msra.mxu0 %v709
      %713 = vmatprep.subr.bf16.mxu0 0
      %714 = vmatpush1.bf16.msra.mxu0 0
      %715 = vmatprep.subr.bf16.mxu0 0
      %716 = vmatpush1.bf16.msra.mxu0 0
      %717 = vmatprep.subr.bf16.mxu0 0
      %718 = vmatpush1.bf16.msra.mxu0 0
      %719 = vmatprep.subr.bf16.mxu0 0
      %720 = vmatpush1.bf16.msra.mxu0 0
      %721 = vmatprep.subr.bf16.mxu0 0
      %722 = vmatpush1.bf16.msra.mxu0 0
      %723 = vmatprep.subr.bf16.mxu0 0
      %724 = vmatpush1.bf16.msra.mxu0 0
      %725 = vmatprep.subr.bf16.mxu0 0
      %726 = vmatpush1.bf16.msra.mxu0 0
      %727 = vmatprep.subr.bf16.mxu0 0
      %728 = vmatpush1.bf16.msra.mxu0 0
      %729 = vmatprep.subr.bf16.mxu0 0
      %730 = vmatpush1.bf16.msra.mxu0 0
      %731 = vmatprep.subr.bf16.mxu0 0
      %732 = vmatpush1.bf16.msra.mxu0 0
      %733 = vmatprep.subr.bf16.mxu0 0
      %734 = vmatpush1.bf16.msra.mxu0 0
      %735 = vmatprep.subr.bf16.mxu0 0
      %736 = vmatpush1.bf16.msra.mxu0 0
      %737 = vmatprep.subr.bf16.mxu0 0
      %738 = vmatpush1.bf16.msra.mxu0 0
      %739 = vmatprep.subr.bf16.mxu0 0
      %740 = vmatpush1.bf16.msra.mxu0 0
      %741 = vmatprep.subr.bf16.mxu0 0
      %742 = vmatpush1.bf16.msra.mxu0 0
      %743 = vmatprep.mubr.bf16.mxu0 0
      %744 = vmatmul.mubr.bf16.gmra.mrb[0].mxu0 %v706
      %v745 = vpop.f32.mrb[0].mxu0
      %v746 = vadd.f32 0.0, %v745
      %v747 = vpop.f32.mrb[0].mxu0
      %v748 = vpop.f32.mrb[0].mxu0
      %v749 = vpop.f32.mrb[0].mxu0
      %750 = vdwg.mxu0
      %v751 = vadd.f32 %v701, %v746
      %752 = vst.msk [vmem:[%s694] sm:$0xff] %vm344, %v751
      %753 = vst.msk [vmem:[%s669] sm:$0xff] %vm415, %v674
      %754 = vrot.lane.b32.xlu0 %v335, 32
      %v755 = vpop.permute.xlu0 %754
      %756 = vrot.lane.b32.xlu0 %v480, 32
      %v757 = vpop.permute.xlu0 %756
      %v759 = vsel %vm344, %v755, 0
      %v762 = vsel %vm344, %v757, 0
      %764 = vmatprep.subr.bf16.mxu0 0
      %765 = vmatpush1.bf16.xpose.msra.mxu0 %v762
      %766 = vmatprep.subr.bf16.mxu0 0
      %767 = vmatpush1.bf16.xpose.msra.mxu0 0
      %768 = vmatprep.subr.bf16.mxu0 0
      %769 = vmatpush1.bf16.xpose.msra.mxu0 0
      %770 = vmatprep.subr.bf16.mxu0 0
      %771 = vmatpush1.bf16.xpose.msra.mxu0 0
      %772 = vmatprep.subr.bf16.mxu0 0
      %773 = vmatpush1.bf16.xpose.msra.mxu0 0
      %774 = vmatprep.subr.bf16.mxu0 0
      %775 = vmatpush1.bf16.xpose.msra.mxu0 0
      %776 = vmatprep.subr.bf16.mxu0 0
      %777 = vmatpush1.bf16.xpose.msra.mxu0 0
      %778 = vmatprep.subr.bf16.mxu0 0
      %779 = vmatpush1.bf16.xpose.msra.mxu0 0
      %780 = vmatprep.subr.bf16.mxu0 0
      %781 = vmatpush1.bf16.xpose.msra.mxu0 0
      %782 = vmatprep.subr.bf16.mxu0 0
      %783 = vmatpush1.bf16.xpose.msra.mxu0 0
      %784 = vmatprep.subr.bf16.mxu0 0
      %785 = vmatpush1.bf16.xpose.msra.mxu0 0
      %786 = vmatprep.subr.bf16.mxu0 0
      %787 = vmatpush1.bf16.xpose.msra.mxu0 0
      %788 = vmatprep.subr.bf16.mxu0 0
      %789 = vmatpush1.bf16.xpose.msra.mxu0 0
      %790 = vmatprep.subr.bf16.mxu0 0
      %791 = vmatpush1.bf16.xpose.msra.mxu0 0
      %792 = vmatprep.subr.bf16.mxu0 0
      %793 = vmatpush1.bf16.xpose.msra.mxu0 0
      %794 = vmatprep.subr.bf16.mxu0 0
      %795 = vmatpush1.bf16.xpose.msra.mxu0 0
      %796 = vmatprep.mubr.bf16.mxu0 0
      %797 = vmatmul.mubr.bf16.gmra.mrb[0].mxu0 %v759
      %v798 = vpop.f32.mrb[0].mxu0
      %v799 = vadd.f32 0.0, %v798
      %v800 = vpop.f32.mrb[0].mxu0
      %v801 = vpop.f32.mrb[0].mxu0
      %v802 = vpop.f32.mrb[0].mxu0
      %803 = vdwg.mxu0
      %v804 = vsel %vm343, %v799, -1e+09
      %s805 = scalar_lea.vmem [#allocation2], 24
      %v806 = vld [vmem:[%s805] sm:$0xff]
      %v807 = vsel %vm393, %v804, -inf
      %808 = vmax.xlane.f32.xlu0 %v807
      %v809 = vpop.xlane.xlu0 %808
      %v810 = vmax.f32 %v806, %v809
      %v811 = vsub.f32 %v806, %v810
      %v812 = vmul.f32 %v811, 1.442695
      %v813 = vpow.pop %v812
      %815 = vset.pattern.permute.xlu0 0
      %816 = vperm.xlu0 %815, %v810
      %v817 = vpop.permute.xlu0 %816
      %v819 = vsub.f32 %v804, %v817
      %v820 = vmul.f32 %v819, 1.442695
      %v821 = vpow.pop %v820
      %s822 = scalar_lea.vmem [#allocation3], 24
      %v823 = vld [vmem:[%s822] sm:$0xff]
      %v824 = vmul.f32 %v813, %v823
      %v825 = vsel %vm393, %v821, 0.0
      %826 = vadd.xlane.f32.xlu0 %v825
      %v827 = vpop.xlane.xlu0 %826
      %v828 = vadd.f32 %v824, %v827
      %829 = vst.msk [vmem:[%s822] sm:$0xff] %vm415, %v828
      %s830 = scalar_lea.vmem [#allocation4], 24
      %v831 = vld [vmem:[%s830] sm:$0xff]
      %833 = vset.pattern.permute.xlu0 0
      %834 = vperm.xlu0 %833, %v813
      %v835 = vpop.permute.xlu0 %834
      %v837 = vmul.f32 %v835, %v831
      %v838 = vpack.c.bf16 %v821, %v821
      %839 = vrot.lane.b32.xlu0 %v566, 32
      %v840 = vpop.permute.xlu0 %839
      %v842 = vsel %vm393, %v838, 0
      %v845 = vsel %vm428, %v840, 0
      %847 = vmatprep.subr.bf16.mxu0 0
      %848 = vmatpush1.bf16.msra.mxu0 %v845
      %849 = vmatprep.subr.bf16.mxu0 0
      %850 = vmatpush1.bf16.msra.mxu0 0
      %851 = vmatprep.subr.bf16.mxu0 0
      %852 = vmatpush1.bf16.msra.mxu0 0
      %853 = vmatprep.subr.bf16.mxu0 0
      %854 = vmatpush1.bf16.msra.mxu0 0
      %855 = vmatprep.subr.bf16.mxu0 0
      %856 = vmatpush1.bf16.msra.mxu0 0
      %857 = vmatprep.subr.bf16.mxu0 0
      %858 = vmatpush1.bf16.msra.mxu0 0
      %859 = vmatprep.subr.bf16.mxu0 0
      %860 = vmatpush1.bf16.msra.mxu0 0
      %861 = vmatprep.subr.bf16.mxu0 0
      %862 = vmatpush1.bf16.msra.mxu0 0
      %863 = vmatprep.subr.bf16.mxu0 0
      %864 = vmatpush1.bf16.msra.mxu0 0
      %865 = vmatprep.subr.bf16.mxu0 0
      %866 = vmatpush1.bf16.msra.mxu0 0
      %867 = vmatprep.subr.bf16.mxu0 0
      %868 = vmatpush1.bf16.msra.mxu0 0
      %869 = vmatprep.subr.bf16.mxu0 0
      %870 = vmatpush1.bf16.msra.mxu0 0
      %871 = vmatprep.subr.bf16.mxu0 0
      %872 = vmatpush1.bf16.msra.mxu0 0
      %873 = vmatprep.subr.bf16.mxu0 0
      %874 = vmatpush1.bf16.msra.mxu0 0
      %875 = vmatprep.subr.bf16.mxu0 0
      %876 = vmatpush1.bf16.msra.mxu0 0
      %877 = vmatprep.subr.bf16.mxu0 0
      %878 = vmatpush1.bf16.msra.mxu0 0
      %879 = vmatprep.mubr.bf16.mxu0 0
      %880 = vmatmul.mubr.bf16.gmra.mrb[0].mxu0 %v842
      %v881 = vpop.f32.mrb[0].mxu0
      %v882 = vadd.f32 0.0, %v881
      %v883 = vpop.f32.mrb[0].mxu0
      %v884 = vpop.f32.mrb[0].mxu0
      %v885 = vpop.f32.mrb[0].mxu0
      %886 = vdwg.mxu0
      %v887 = vadd.f32 %v837, %v882
      %888 = vst.msk [vmem:[%s830] sm:$0xff] %vm344, %v887
      %889 = vst.msk [vmem:[%s805] sm:$0xff] %vm415, %v810
      // Predicated region
      $region37: #{transformer_forward.43} parent=31 // pred_check
        %p890 = pneg %p315
      $region38: #{transformer_forward.43} parent=31 // pred_check_branch
        %892 = sbr.rel (%p890) target = $region40
      $region39: #{transformer_forward.43} parent=31 // pred_region
        %v893 = vld [vmem:[#allocation4] sm:$0xff]
        %v894 = vld [vmem:[#allocation3] sm:$0xff]
        %v895 = vrcp.pop %v894
        %897 = vset.pattern.permute.xlu0 0
        %898 = vperm.xlu0 %897, %v895
        %v899 = vpop.permute.xlu0 %898
        %v901 = vmul.f32 %v893, %v899
        %v902 = vld [vmem:[%s555] sm:$0xff]
        %v903 = vld [vmem:[%s547] sm:$0xff]
        %v904 = vrcp.pop %v903
        %906 = vset.pattern.permute.xlu0 0
        %907 = vperm.xlu0 %906, %v904
        %v908 = vpop.permute.xlu0 %907
        %v910 = vmul.f32 %v902, %v908
        %v911 = vld [vmem:[%s694] sm:$0xff]
        %v912 = vld [vmem:[%s686] sm:$0xff]
        %v913 = vrcp.pop %v912
        %915 = vset.pattern.permute.xlu0 0
        %916 = vperm.xlu0 %915, %v913
        %v917 = vpop.permute.xlu0 %916
        %v919 = vmul.f32 %v911, %v917
        %v920 = vld [vmem:[%s830] sm:$0xff]
        %v921 = vld [vmem:[%s822] sm:$0xff]
        %v922 = vrcp.pop %v921
        %924 = vset.pattern.permute.xlu0 0
        %925 = vperm.xlu0 %924, %v922
        %v926 = vpop.permute.xlu0 %925
        %v928 = vmul.f32 %v920, %v926
        %930 = vrot.lane.b32.xlu0 %v910, 32
        %v931 = vpop.permute.xlu0 %930
        %934 = vrot.lane.b32.xlu0 %v919, 64
        %v935 = vpop.permute.xlu0 %934
        %938 = vrot.lane.b32.xlu0 %v928, 96
        %v939 = vpop.permute.xlu0 %938
        %v941 = vsel %vm344, %v901, %v931
        %vm942 = vcmask 523264
        %v943 = vsel %vm942, %v941, %v935
        %vm944 = vcmask 785408
        %v945 = vsel %vm944, %v943, %v939
        %v946 = vpack.c.bf16 %v945, %v945
        %947 = vst [vmem:[%s310] sm:$0xf] %v946
      $region40: #{transformer_forward.43} parent=31 // pred_fallthru
        _
      %p948 = scmp.lt.s32.totalorder %s19, 1
      %s949 = scalar_select %p948, %s19, 1
      %p950 = scmp.lt.s32.totalorder %s20, 0
      %s951 = scalar_select %p950, %s20, 0
      %s952 = sadd.s32 %s951, %s949
      %s953 = smul.addr %s952, 4
      %s954 = scalar_lea.vmem %s3, %s953
      // Predicated region
      $region41: #{transformer_forward.43} parent=31 // pred_check
        %p955 = pneg %p145
      $region42: #{transformer_forward.43} parent=31 // pred_check_branch
        %957 = sbr.rel (%p955) target = $region44
      $region43: #{transformer_forward.43} parent=31 // pred_region
        _
      $region44: #{transformer_forward.43} parent=31 // pred_fallthru
        _
    $region32: #{transformer_forward.43} parent=5 // pred_fallthru
      _
    %p958 = scmp.le.s32.totalorder 2, %s9
    // Predicated region
    $region45: #{transformer_forward.43} parent=5 // pred_check
      %p959 = pneg %p958
    $region46: #{transformer_forward.43} parent=5 // pred_check_branch
      %961 = sbr.rel (%p959) target = $region48
    $region47: #{transformer_forward.43} parent=5 // pred_region
      %s962 = ssub.s32 %s9, 2
      // Predicated region
      $region49: #{transformer_forward.43} parent=47 // pred_check
        %p963 = pneg %p151
      $region50: #{transformer_forward.43} parent=47 // pred_check_branch
        %965 = sbr.rel (%p963) target = $region52
      $region51: #{transformer_forward.43} parent=47 // pred_region
        %p966 = scmp.lt.s32.totalorder %s22, 1
        %s967 = scalar_select %p966, %s22, 1
        %p968 = scmp.lt.s32.totalorder %s23, 0
        %s969 = scalar_select %p968, %s23, 0
        %s970 = sadd.s32 %s969, %s967
        %s971 = smul.addr %s970, 4
        %s972 = scalar_lea.vmem %s3, %s971
      $region52: #{transformer_forward.43} parent=47 // pred_fallthru
        _
    $region48: #{transformer_forward.43} parent=5 // pred_fallthru
      _
  $region6: #{transformer_forward.43} parent=0 // loop_footer
    %s13 = sadd.s32 1, %s9
  $region7: #{transformer_forward.43} parent=0 // loop_footer_branch
    %8 = sbr.rel target = $region3
  $region8: #{transformer_forward.43} parent=0 // loop_exit
    _

// kernel: transformer_forward.44
$region0: #{transformer_forward.44}
  #allocation0 [shape = 'u32[]', space=smem, size = 0x4, offset = 0x4, fixed_abs, tag = 'smem constant byte address 0x4 - core index']
  #allocation1 [shape = 'u32[144,128]{1,0:T(1,128)}', space=vmem, size = 0x12000, scoped, tag = 'internal scratch']
  #allocation2 [shape = 'f32[16,128]{1,0:T(8,128)}', space=vmem, size = 0x2000, scoped, tag = 'scratch operand']
  %s0 = inlined_call_operand.vmem [shape: bf16[16,128], index: 0, kind: input, shape index: {}]
  %s1 = inlined_call_operand.vmem [shape: bf16[128,128], index: 1, kind: input, shape index: {}]
  %s2 = inlined_call_operand.vmem [shape: f32[1,128], index: 2, kind: input, shape index: {}]
  %s3 = inlined_call_operand.vmem [shape: bf16[16,128], index: 3, kind: input, shape index: {}]
  %s4 = inlined_call_operand.vmem [shape: f32[1,128], index: 4, kind: input, shape index: {}]
  %s5 = inlined_call_operand.vmem [shape: f32[1,128], index: 5, kind: input, shape index: {}]
  %s6 = inlined_call_operand.vmem [shape: bf16[16,128], index: 6, kind: output, shape index: {}]
  %s7 = sld [smem:[#allocation0]]
  $region42: #{transformer_forward.44} parent=0
    _
  %s9 = ssub.s32 1, %s7
  %s10 = scalar_select 0, %s9, %s7
  // Predicated region
  $region2: #{transformer_forward.44} parent=0 // pred_check
    _
  $region3: #{transformer_forward.44} parent=0 // pred_check_branch
    %12 = sbr.rel (0) target = $region5
  $region4: #{transformer_forward.44} parent=0 // pred_region
    _
  $region5: #{transformer_forward.44} parent=0 // pred_fallthru
    _
  // Predicated region
  $region6: #{transformer_forward.44} parent=0 // pred_check
    _
  $region7: #{transformer_forward.44} parent=0 // pred_check_branch
    %14 = sbr.rel (0) target = $region9
  $region8: #{transformer_forward.44} parent=0 // pred_region
    _
  $region9: #{transformer_forward.44} parent=0 // pred_fallthru
    _
  // Predicated region
  $region10: #{transformer_forward.44} parent=0 // pred_check
    _
  $region11: #{transformer_forward.44} parent=0 // pred_check_branch
    %16 = sbr.rel (0) target = $region13
  $region12: #{transformer_forward.44} parent=0 // pred_region
    _
  $region13: #{transformer_forward.44} parent=0 // pred_fallthru
    _
  // Predicated region
  $region14: #{transformer_forward.44} parent=0 // pred_check
    _
  $region15: #{transformer_forward.44} parent=0 // pred_check_branch
    %18 = sbr.rel (0) target = $region17
  $region16: #{transformer_forward.44} parent=0 // pred_region
    _
  $region17: #{transformer_forward.44} parent=0 // pred_fallthru
    _
  // Predicated region
  $region18: #{transformer_forward.44} parent=0 // pred_check
    _
  $region19: #{transformer_forward.44} parent=0 // pred_check_branch
    %20 = sbr.rel (0) target = $region21
  $region20: #{transformer_forward.44} parent=0 // pred_region
    _
  $region21: #{transformer_forward.44} parent=0 // pred_fallthru
    _
  // Predicated region
  $region22: #{transformer_forward.44} parent=0 // pred_check
    _
  $region23: #{transformer_forward.44} parent=0 // pred_check_branch
    %22 = sbr.rel (0) target = $region25
  $region24: #{transformer_forward.44} parent=0 // pred_region
    _
  $region25: #{transformer_forward.44} parent=0 // pred_fallthru
    _
  %p24 = scmp.eq.s32.totalorder 0, 0
  // Predicated region
  $region26: #{transformer_forward.44} parent=0 // pred_check
    %p25 = pneg %p24
  $region27: #{transformer_forward.44} parent=0 // pred_check_branch
    %27 = sbr.rel (%p25) target = $region29
  $region28: #{transformer_forward.44} parent=0 // pred_region
    %28 = vst [vmem:[#allocation2] sm:$0xff] 0.0
    %29 = vst [vmem:[#allocation2 + $0x8] sm:$0xff] 0.0
  $region29: #{transformer_forward.44} parent=0 // pred_fallthru
    _
  %v30 = vld [vmem:[#allocation2] sm:$0xff]
  %v31 = vld [vmem:[#allocation2 + $0x8] sm:$0xff]
  %v32 = vld [vmem:[%s0] sm:$0xf]
  %v33 = vld [vmem:[%s0 + $0x4] sm:$0xf]
  %v34 = vld [vmem:[%s1] sm:$0xf]
  %v35 = vld [vmem:[%s1 + $0x4] sm:$0xf]
  %v36 = vld [vmem:[%s1 + $0x8] sm:$0xf]
  %v37 = vld [vmem:[%s1 + $0xc] sm:$0xf]
  %v38 = vld [vmem:[%s1 + $0x10] sm:$0xf]
  %v39 = vld [vmem:[%s1 + $0x14] sm:$0xf]
  %v40 = vld [vmem:[%s1 + $0x18] sm:$0xf]
  %v41 = vld [vmem:[%s1 + $0x1c] sm:$0xf]
  %v42 = vld [vmem:[%s1 + $0x20] sm:$0xf]
  %v43 = vld [vmem:[%s1 + $0x24] sm:$0xf]
  %v44 = vld [vmem:[%s1 + $0x28] sm:$0xf]
  %v45 = vld [vmem:[%s1 + $0x2c] sm:$0xf]
  %v46 = vld [vmem:[%s1 + $0x30] sm:$0xf]
  %v47 = vld [vmem:[%s1 + $0x34] sm:$0xf]
  %v48 = vld [vmem:[%s1 + $0x38] sm:$0xf]
  %v49 = vld [vmem:[%s1 + $0x3c] sm:$0xf]
  %v52 = vunpack.c.l.b16 %v32
  %v53 = vunpack.c.l.b16 %v33
  %v54 = vpack.c.b16 %v53, %v52
  %v72 = vunpack.c.l.b16 %v34
  %v73 = vunpack.c.l.b16 %v35
  %v74 = vunpack.c.l.b16 %v36
  %v75 = vunpack.c.l.b16 %v37
  %v76 = vunpack.c.l.b16 %v38
  %v77 = vunpack.c.l.b16 %v39
  %v78 = vunpack.c.l.b16 %v40
  %v79 = vunpack.c.l.b16 %v41
  %v80 = vunpack.c.l.b16 %v42
  %v81 = vunpack.c.l.b16 %v43
  %v82 = vunpack.c.l.b16 %v44
  %v83 = vunpack.c.l.b16 %v45
  %v84 = vunpack.c.l.b16 %v46
  %v85 = vunpack.c.l.b16 %v47
  %v86 = vunpack.c.l.b16 %v48
  %v87 = vunpack.c.l.b16 %v49
  %v88 = vpack.c.b16 %v73, %v72
  %v89 = vpack.c.b16 %v75, %v74
  %v90 = vpack.c.b16 %v77, %v76
  %v91 = vpack.c.b16 %v79, %v78
  %v92 = vpack.c.b16 %v81, %v80
  %v93 = vpack.c.b16 %v83, %v82
  %v94 = vpack.c.b16 %v85, %v84
  %v95 = vpack.c.b16 %v87, %v86
  %104 = vmatprep.subr.bf16.mxu0 0
  %105 = vmatpush1.bf16.msra.mxu0 %v88
  %106 = vmatprep.subr.bf16.mxu0 0
  %107 = vmatpush1.bf16.msra.mxu0 %v89
  %108 = vmatprep.subr.bf16.mxu0 0
  %109 = vmatpush1.bf16.msra.mxu0 %v90
  %110 = vmatprep.subr.bf16.mxu0 0
  %111 = vmatpush1.bf16.msra.mxu0 %v91
  %112 = vmatprep.subr.bf16.mxu0 0
  %113 = vmatpush1.bf16.msra.mxu0 %v92
  %114 = vmatprep.subr.bf16.mxu0 0
  %115 = vmatpush1.bf16.msra.mxu0 %v93
  %116 = vmatprep.subr.bf16.mxu0 0
  %117 = vmatpush1.bf16.msra.mxu0 %v94
  %118 = vmatprep.subr.bf16.mxu0 0
  %119 = vmatpush1.bf16.msra.mxu0 %v95
  %120 = vmatprep.subr.bf16.mxu0 0
  %121 = vmatpush1.bf16.msra.mxu0 0
  %122 = vmatprep.subr.bf16.mxu0 0
  %123 = vmatpush1.bf16.msra.mxu0 0
  %124 = vmatprep.subr.bf16.mxu0 0
  %125 = vmatpush1.bf16.msra.mxu0 0
  %126 = vmatprep.subr.bf16.mxu0 0
  %127 = vmatpush1.bf16.msra.mxu0 0
  %128 = vmatprep.subr.bf16.mxu0 0
  %129 = vmatpush1.bf16.msra.mxu0 0
  %130 = vmatprep.subr.bf16.mxu0 0
  %131 = vmatpush1.bf16.msra.mxu0 0
  %132 = vmatprep.subr.bf16.mxu0 0
  %133 = vmatpush1.bf16.msra.mxu0 0
  %134 = vmatprep.subr.bf16.mxu0 0
  %135 = vmatpush1.bf16.msra.mxu0 0
  %136 = vmatprep.mubr.bf16.mxu0 0
  %137 = vmatmul.mubr.bf16.gmra.mrb[0].mxu0 %v54
  %v138 = vpop.f32.mrb[0].mxu0
  %v139 = vadd.f32 0.0, %v138
  %v140 = vpop.f32.mrb[0].mxu0
  %v141 = vpop.f32.mrb[0].mxu0
  %v142 = vadd.f32 0.0, %v141
  %v143 = vpop.f32.mrb[0].mxu0
  %144 = vdwg.mxu0
  %v145 = vadd.f32 %v30, %v139
  %v146 = vadd.f32 %v31, %v142
  %147 = vst [vmem:[#allocation2] sm:$0xff] %v145
  %148 = vst [vmem:[#allocation2 + $0x8] sm:$0xff] %v146
  // Predicated region
  $region30: #{transformer_forward.44} parent=0 // pred_check
    %p149 = pneg %p24
  $region31: #{transformer_forward.44} parent=0 // pred_check_branch
    %151 = sbr.rel (%p149) target = $region33
  $region32: #{transformer_forward.44} parent=0 // pred_region
    %v152 = vld [vmem:[#allocation2] sm:$0xff]
    %v153 = vld [vmem:[#allocation2 + $0x8] sm:$0xff]
    %v154 = vld [vmem:[%s2] sm:$0x1]
    %v156 = vlaneseq
    %v157 = vshrl.u32 %v156, 7
    %v158 = vsub.s32 0, %v157
    %v159 = vrot.slane %v154, %v158
    %v161 = vadd.f32 %v152, %v159
    %v162 = vadd.f32 %v153, %v159
    %v163 = vld [vmem:[%s3] sm:$0xf]
    %v164 = vld [vmem:[%s3 + $0x4] sm:$0xf]
    %v165 = vunpack.c.l.bf16 %v163
    %v166 = vunpack.c.l.bf16 %v164
    %v167 = vadd.f32 %v161, %v165
    %v168 = vadd.f32 %v162, %v166
    %169 = vadd.xlane.f32.xlu0 %v167
    %v170 = vpop.xlane.xlu0 %169
    %171 = vadd.xlane.f32.xlu0 %v168
    %v172 = vpop.xlane.xlu0 %171
    %v173 = vrcp.pop 128.0
    %v174 = vmul.f32 %v170, %v173
    %v175 = vmul.f32 %v172, %v173
    %v176 = vsub.f32 %v167, %v174
    %v177 = vsub.f32 %v168, %v175
    %v178 = vmul.f32 %v176, %v176
    %v179 = vmul.f32 %v177, %v177
    %180 = vadd.xlane.f32.xlu0 %v178
    %v181 = vpop.xlane.xlu0 %180
    %182 = vadd.xlane.f32.xlu0 %v179
    %v183 = vpop.xlane.xlu0 %182
    %v184 = vmul.f32 %v181, %v173
    %v185 = vmul.f32 %v183, %v173
    %v186 = vadd.f32 %v184, 1e-05
    %v187 = vadd.f32 %v185, 1e-05
    %v188 = vrsqrt.pop %v186
    %v189 = vrsqrt.pop %v187
    %v190 = vmul.f32 %v176, %v188
    %v191 = vmul.f32 %v177, %v189
    %v192 = vld [vmem:[%s4] sm:$0x1]
    %v194 = vlaneseq
    %v195 = vshrl.u32 %v194, 7
    %v196 = vsub.s32 0, %v195
    %v197 = vrot.slane %v192, %v196
    %v199 = vmul.f32 %v190, %v197
    %v200 = vmul.f32 %v191, %v197
    %v201 = vld [vmem:[%s5] sm:$0x1]
    %v203 = vlaneseq
    %v204 = vshrl.u32 %v203, 7
    %v205 = vsub.s32 0, %v204
    %v206 = vrot.slane %v201, %v205
    %v208 = vadd.f32 %v199, %v206
    %v209 = vadd.f32 %v200, %v206
    %v210 = vpack.c.bf16 %v209, %v208
    %v212 = vunpack.c.l.b16 %v210
    %v213 = vunpack.c.h.b16 %v210
    %v214 = vpack.c.b16 %v212, %v212
    %v215 = vpack.c.b16 %v213, %v213
    %218 = vst [vmem:[%s6] sm:$0xf] %v214
    %219 = vst [vmem:[%s6 + $0x4] sm:$0xf] %v215
  $region33: #{transformer_forward.44} parent=0 // pred_fallthru
    _
  // Predicated region
  $region34: #{transformer_forward.44} parent=0 // pred_check
    _
  $region35: #{transformer_forward.44} parent=0 // pred_check_branch
    %221 = sbr.rel (0) target = $region37
  $region36: #{transformer_forward.44} parent=0 // pred_region
    _
  $region37: #{transformer_forward.44} parent=0 // pred_fallthru
    _
  // Predicated region
  $region38: #{transformer_forward.44} parent=0 // pred_check
    _
  $region39: #{transformer_forward.44} parent=0 // pred_check_branch
    %223 = sbr.rel (0) target = $region41
  $region40: #{transformer_forward.44} parent=0 // pred_region
    _
  $region41: #{transformer_forward.44} parent=0 // pred_fallthru
    _

// kernel: transformer_forward.45
$region0: #{transformer_forward.45}
  #allocation0 [shape = 'u32[]', space=smem, size = 0x4, offset = 0x4, fixed_abs, tag = 'smem constant byte address 0x4 - core index']
  #allocation1 [shape = 'u32[144,128]{1,0:T(1,128)}', space=vmem, size = 0x12000, scoped, tag = 'internal scratch']
  #allocation2 [shape = 'f32[16,128]{1,0:T(8,128)}', space=vmem, size = 0x2000, scoped, tag = 'scratch operand']
  %s0 = inlined_call_operand.vmem [shape: bf16[16,128], index: 0, kind: input, shape index: {}]
  %s1 = inlined_call_operand.vmem [shape: bf16[128,128], index: 1, kind: input, shape index: {}]
  %s2 = inlined_call_operand.vmem [shape: f32[1,128], index: 2, kind: input, shape index: {}]
  %s3 = inlined_call_operand.vmem [shape: bf16[16,128], index: 3, kind: output, shape index: {}]
  %s4 = sld [smem:[#allocation0]]
  $region30: #{transformer_forward.45} parent=0
    _
  %s6 = ssub.s32 1, %s4
  %s7 = scalar_select 0, %s6, %s4
  // Predicated region
  $region2: #{transformer_forward.45} parent=0 // pred_check
    _
  $region3: #{transformer_forward.45} parent=0 // pred_check_branch
    %9 = sbr.rel (0) target = $region5
  $region4: #{transformer_forward.45} parent=0 // pred_region
    _
  $region5: #{transformer_forward.45} parent=0 // pred_fallthru
    _
  // Predicated region
  $region6: #{transformer_forward.45} parent=0 // pred_check
    _
  $region7: #{transformer_forward.45} parent=0 // pred_check_branch
    %11 = sbr.rel (0) target = $region9
  $region8: #{transformer_forward.45} parent=0 // pred_region
    _
  $region9: #{transformer_forward.45} parent=0 // pred_fallthru
    _
  // Predicated region
  $region10: #{transformer_forward.45} parent=0 // pred_check
    _
  $region11: #{transformer_forward.45} parent=0 // pred_check_branch
    %13 = sbr.rel (0) target = $region13
  $region12: #{transformer_forward.45} parent=0 // pred_region
    _
  $region13: #{transformer_forward.45} parent=0 // pred_fallthru
    _
  %p15 = scmp.eq.s32.totalorder 0, 0
  // Predicated region
  $region14: #{transformer_forward.45} parent=0 // pred_check
    %p16 = pneg %p15
  $region15: #{transformer_forward.45} parent=0 // pred_check_branch
    %18 = sbr.rel (%p16) target = $region17
  $region16: #{transformer_forward.45} parent=0 // pred_region
    %19 = vst [vmem:[#allocation2] sm:$0xff] 0.0
    %20 = vst [vmem:[#allocation2 + $0x8] sm:$0xff] 0.0
  $region17: #{transformer_forward.45} parent=0 // pred_fallthru
    _
  %v21 = vld [vmem:[#allocation2] sm:$0xff]
  %v22 = vld [vmem:[#allocation2 + $0x8] sm:$0xff]
  %v23 = vld [vmem:[%s0] sm:$0xf]
  %v24 = vld [vmem:[%s0 + $0x4] sm:$0xf]
  %v25 = vld [vmem:[%s1] sm:$0xf]
  %v26 = vld [vmem:[%s1 + $0x4] sm:$0xf]
  %v27 = vld [vmem:[%s1 + $0x8] sm:$0xf]
  %v28 = vld [vmem:[%s1 + $0xc] sm:$0xf]
  %v29 = vld [vmem:[%s1 + $0x10] sm:$0xf]
  %v30 = vld [vmem:[%s1 + $0x14] sm:$0xf]
  %v31 = vld [vmem:[%s1 + $0x18] sm:$0xf]
  %v32 = vld [vmem:[%s1 + $0x1c] sm:$0xf]
  %v33 = vld [vmem:[%s1 + $0x20] sm:$0xf]
  %v34 = vld [vmem:[%s1 + $0x24] sm:$0xf]
  %v35 = vld [vmem:[%s1 + $0x28] sm:$0xf]
  %v36 = vld [vmem:[%s1 + $0x2c] sm:$0xf]
  %v37 = vld [vmem:[%s1 + $0x30] sm:$0xf]
  %v38 = vld [vmem:[%s1 + $0x34] sm:$0xf]
  %v39 = vld [vmem:[%s1 + $0x38] sm:$0xf]
  %v40 = vld [vmem:[%s1 + $0x3c] sm:$0xf]
  %v43 = vunpack.c.l.b16 %v23
  %v44 = vunpack.c.l.b16 %v24
  %v45 = vpack.c.b16 %v44, %v43
  %v63 = vunpack.c.l.b16 %v25
  %v64 = vunpack.c.l.b16 %v26
  %v65 = vunpack.c.l.b16 %v27
  %v66 = vunpack.c.l.b16 %v28
  %v67 = vunpack.c.l.b16 %v29
  %v68 = vunpack.c.l.b16 %v30
  %v69 = vunpack.c.l.b16 %v31
  %v70 = vunpack.c.l.b16 %v32
  %v71 = vunpack.c.l.b16 %v33
  %v72 = vunpack.c.l.b16 %v34
  %v73 = vunpack.c.l.b16 %v35
  %v74 = vunpack.c.l.b16 %v36
  %v75 = vunpack.c.l.b16 %v37
  %v76 = vunpack.c.l.b16 %v38
  %v77 = vunpack.c.l.b16 %v39
  %v78 = vunpack.c.l.b16 %v40
  %v79 = vpack.c.b16 %v64, %v63
  %v80 = vpack.c.b16 %v66, %v65
  %v81 = vpack.c.b16 %v68, %v67
  %v82 = vpack.c.b16 %v70, %v69
  %v83 = vpack.c.b16 %v72, %v71
  %v84 = vpack.c.b16 %v74, %v73
  %v85 = vpack.c.b16 %v76, %v75
  %v86 = vpack.c.b16 %v78, %v77
  %95 = vmatprep.subr.bf16.mxu0 0
  %96 = vmatpush1.bf16.msra.mxu0 %v79
  %97 = vmatprep.subr.bf16.mxu0 0
  %98 = vmatpush1.bf16.msra.mxu0 %v80
  %99 = vmatprep.subr.bf16.mxu0 0
  %100 = vmatpush1.bf16.msra.mxu0 %v81
  %101 = vmatprep.subr.bf16.mxu0 0
  %102 = vmatpush1.bf16.msra.mxu0 %v82
  %103 = vmatprep.subr.bf16.mxu0 0
  %104 = vmatpush1.bf16.msra.mxu0 %v83
  %105 = vmatprep.subr.bf16.mxu0 0
  %106 = vmatpush1.bf16.msra.mxu0 %v84
  %107 = vmatprep.subr.bf16.mxu0 0
  %108 = vmatpush1.bf16.msra.mxu0 %v85
  %109 = vmatprep.subr.bf16.mxu0 0
  %110 = vmatpush1.bf16.msra.mxu0 %v86
  %111 = vmatprep.subr.bf16.mxu0 0
  %112 = vmatpush1.bf16.msra.mxu0 0
  %113 = vmatprep.subr.bf16.mxu0 0
  %114 = vmatpush1.bf16.msra.mxu0 0
  %115 = vmatprep.subr.bf16.mxu0 0
  %116 = vmatpush1.bf16.msra.mxu0 0
  %117 = vmatprep.subr.bf16.mxu0 0
  %118 = vmatpush1.bf16.msra.mxu0 0
  %119 = vmatprep.subr.bf16.mxu0 0
  %120 = vmatpush1.bf16.msra.mxu0 0
  %121 = vmatprep.subr.bf16.mxu0 0
  %122 = vmatpush1.bf16.msra.mxu0 0
  %123 = vmatprep.subr.bf16.mxu0 0
  %124 = vmatpush1.bf16.msra.mxu0 0
  %125 = vmatprep.subr.bf16.mxu0 0
  %126 = vmatpush1.bf16.msra.mxu0 0
  %127 = vmatprep.mubr.bf16.mxu0 0
  %128 = vmatmul.mubr.bf16.gmra.mrb[0].mxu0 %v45
  %v129 = vpop.f32.mrb[0].mxu0
  %v130 = vadd.f32 0.0, %v129
  %v131 = vpop.f32.mrb[0].mxu0
  %v132 = vpop.f32.mrb[0].mxu0
  %v133 = vadd.f32 0.0, %v132
  %v134 = vpop.f32.mrb[0].mxu0
  %135 = vdwg.mxu0
  %v136 = vadd.f32 %v21, %v130
  %v137 = vadd.f32 %v22, %v133
  %138 = vst [vmem:[#allocation2] sm:$0xff] %v136
  %139 = vst [vmem:[#allocation2 + $0x8] sm:$0xff] %v137
  // Predicated region
  $region18: #{transformer_forward.45} parent=0 // pred_check
    %p140 = pneg %p15
  $region19: #{transformer_forward.45} parent=0 // pred_check_branch
    %142 = sbr.rel (%p140) target = $region21
  $region20: #{transformer_forward.45} parent=0 // pred_region
    %v143 = vld [vmem:[#allocation2] sm:$0xff]
    %v144 = vld [vmem:[#allocation2 + $0x8] sm:$0xff]
    %v145 = vld [vmem:[%s2] sm:$0x1]
    %v147 = vlaneseq
    %v148 = vshrl.u32 %v147, 7
    %v149 = vsub.s32 0, %v148
    %v150 = vrot.slane %v145, %v149
    %v152 = vadd.f32 %v143, %v150
    %v153 = vadd.f32 %v144, %v150
    %v154 = vpack.c.bf16 %v153, %v152
    %v156 = vunpack.c.l.b16 %v154
    %v157 = vunpack.c.h.b16 %v154
    %v158 = vpack.c.b16 %v156, %v156
    %v159 = vpack.c.b16 %v157, %v157
    %162 = vst [vmem:[%s3] sm:$0xf] %v158
    %163 = vst [vmem:[%s3 + $0x4] sm:$0xf] %v159
  $region21: #{transformer_forward.45} parent=0 // pred_fallthru
    _
  // Predicated region
  $region22: #{transformer_forward.45} parent=0 // pred_check
    _
  $region23: #{transformer_forward.45} parent=0 // pred_check_branch
    %165 = sbr.rel (0) target = $region25
  $region24: #{transformer_forward.45} parent=0 // pred_region
    _
  $region25: #{transformer_forward.45} parent=0 // pred_fallthru
    _
  // Predicated region
  $region26: #{transformer_forward.45} parent=0 // pred_check
    _
  $region27: #{transformer_forward.45} parent=0 // pred_check_branch
    %167 = sbr.rel (0) target = $region29
  $region28: #{transformer_forward.45} parent=0 // pred_region
    _
  $region29: #{transformer_forward.45} parent=0 // pred_fallthru
    _

// kernel: transformer_forward.47
$region0: #{transformer_forward.47}
  #allocation0 [shape = 'u32[]', space=smem, size = 0x4, offset = 0x4, fixed_abs, tag = 'smem constant byte address 0x4 - core index']
  #allocation1 [shape = 'u32[144,128]{1,0:T(1,128)}', space=vmem, size = 0x12000, scoped, tag = 'internal scratch']
  #allocation2 [shape = 'f32[4,8,1]{2,1,0:T(8,128)}', space=vmem, size = 0x4000, scoped, tag = 'scratch operand']
  #allocation3 [shape = 'f32[4,8,1]{2,1,0:T(8,128)}', space=vmem, size = 0x4000, scoped, tag = 'scratch operand']
  #allocation4 [shape = 'f32[4,8,32]{2,1,0:T(8,128)}', space=vmem, size = 0x4000, scoped, tag = 'scratch operand']
  %s0 = inlined_call_operand.vmem [shape: bf16[2,8,128], index: 0, kind: input, shape index: {}]
  %s1 = inlined_call_operand.vmem [shape: bf16[2,10,256], index: 1, kind: input, shape index: {}, may-alias: {1,2}]
  %s2 = inlined_call_operand.vmem [shape: bf16[2,10,256], index: 2, kind: input, shape index: {}, may-alias: {1,2}]
  %s3 = inlined_call_operand.vmem [shape: bf16[2,8,128], index: 3, kind: output, shape index: {}]
  %s4 = sld [smem:[#allocation0]]
  $region135: #{transformer_forward.47} parent=0
    _
  %s6 = ssub.s32 1, %s4
  %s7 = scalar_select 0, %s6, %s4
  $region1: #{transformer_forward.47} parent=0
    #allocation5 [shape = 'u8[8192]{0}', space=vmem, size = 0x2000, scoped, tag = 'input window, operand 1']
    #allocation6 [shape = 'u8[8192]{0}', space=vmem, size = 0x2000, scoped, tag = 'input window, operand 2']
    loop: start=0, step=1, limit=4
    $region2: #{transformer_forward.47} parent=1 // loop_pre_header
      _
    $region3: #{transformer_forward.47} parent=1 // loop_header
      %s9 = sphi 0, %s13
      %p10 = scmp.ge.s32.totalorder %s9, 4
      %s16 = sphi 0, %s35
      %s17 = sphi 0, %s31
      %s18 = sphi 0, %s27
      %s19 = sphi 0, %s16
      %s20 = sphi 0, %s17
      %s21 = sphi 0, %s18
      %s22 = sphi 0, %s19
      %s23 = sphi 0, %s20
      %s24 = sphi 0, %s21
      %s40 = sphi 0, %s42
      %s43 = sphi 0, %s40
      %s44 = sphi 0, %s43
      %s60 = sphi 0, %s44
      %s70 = sphi 0, %s72
      %s73 = sphi 0, %s70
      %s74 = sphi 0, %s73
      %s90 = sphi 0, %s74
      %s102 = sphi 0, %s104
      %s105 = sphi 0, %s102
      %s106 = sphi 0, %s105
      %s122 = sphi 0, %s106
      %s130 = sphi 0, %s132
      %s133 = sphi 0, %s130
      %s134 = sphi 0, %s133
      %s150 = sphi 0, %s134
    $region4: #{transformer_forward.47} parent=1 // loop_header_branch
      %12 = sbr.rel (%p10) target = $region8
    $region5: #{transformer_forward.47} parent=1 // loop_body
      %s14 = ssub.s32 %s9, 1
      %s15 = ssub.s32 %s9, 2
      %s25 = sadd.s32 1, %s18
      %p26 = scmp.ge.s32.totalorder %s25, 1
      %s27 = scalar_select %p26, 0, %s25
      %s28 = sadd.s32 1, %s17
      %s29 = scalar_select %p26, %s28, %s17
      %p30 = scmp.ge.s32.totalorder %s29, 1
      %s31 = scalar_select %p30, 0, %s29
      %s32 = sadd.s32 1, %s16
      %s33 = scalar_select %p30, %s32, %s16
      %p34 = scmp.ge.s32.totalorder %s33, 2
      %s35 = scalar_select %p34, 0, %s33
      %s36 = ssub.s32 %s16, %s35
      %s37 = ssub.s32 %s17, %s31
      %s38 = sor.u32 %s36, %s37
      %p39 = scmp.eq.s32.totalorder %s38, 0
      %s41 = sadd.s32 %s40, 1
      %s42 = scalar_select %p39, %s40, %s41
      %p45 = pneg %p39
      %p46 = scmp.eq.s32.totalorder %s9, 1
      %p47 = por %p45, %p46
      %p48 = scmp.ne.s32.totalorder %s40, %s43
      %p49 = scmp.eq.s32.totalorder %s9, 0
      %p50 = por %p48, %p49
      %p51 = scmp.ne.s32.totalorder %s40, %s43
      %p52 = scmp.eq.s32.totalorder %s14, 1
      %p53 = por %p51, %p52
      %p54 = scmp.ne.s32.totalorder %s43, %s44
      %p55 = scmp.eq.s32.totalorder %s14, 0
      %p56 = por %p54, %p55
      %p57 = scmp.ne.s32.totalorder %s43, %s44
      %p58 = scmp.eq.s32.totalorder %s15, 1
      %p59 = por %p57, %p58
      %p61 = scmp.ne.s32.totalorder %s44, %s60
      %p62 = scmp.eq.s32.totalorder %s15, 0
      %p63 = por %p61, %p62
      %s64 = ssub.s32 %s16, %s35
      %s65 = ssub.s32 %s18, %s27
      %s66 = sor.u32 %s64, %s65
      %s67 = ssub.s32 %s17, %s31
      %s68 = sor.u32 %s66, %s67
      %p69 = scmp.eq.s32.totalorder %s68, 0
      %s71 = sadd.s32 %s70, 1
      %s72 = scalar_select %p69, %s70, %s71
      %p75 = pneg %p69
      %p76 = scmp.eq.s32.totalorder %s9, 1
      %p77 = por %p75, %p76
      %p78 = scmp.ne.s32.totalorder %s70, %s73
      %p79 = scmp.eq.s32.totalorder %s9, 0
      %p80 = por %p78, %p79
      %p81 = scmp.ne.s32.totalorder %s70, %s73
      %p82 = scmp.eq.s32.totalorder %s14, 1
      %p83 = por %p81, %p82
      %p84 = scmp.ne.s32.totalorder %s73, %s74
      %p85 = scmp.eq.s32.totalorder %s14, 0
      %p86 = por %p84, %p85
      %p87 = scmp.ne.s32.totalorder %s73, %s74
      %p88 = scmp.eq.s32.totalorder %s15, 1
      %p89 = por %p87, %p88
      %p91 = scmp.ne.s32.totalorder %s74, %s90
      %p92 = scmp.eq.s32.totalorder %s15, 0
      %p93 = por %p91, %p92
      %s94 = sadd.s32 %s17, 1
      %s95 = sadd.s32 %s31, 1
      %s96 = ssub.s32 %s16, %s35
      %s97 = ssub.s32 %s18, %s27
      %s98 = sor.u32 %s96, %s97
      %s99 = ssub.s32 %s94, %s95
      %s100 = sor.u32 %s98, %s99
      %p101 = scmp.eq.s32.totalorder %s100, 0
      %s103 = sadd.s32 %s102, 1
      %s104 = scalar_select %p101, %s102, %s103
      %p107 = pneg %p101
      %p108 = scmp.eq.s32.totalorder %s9, 1
      %p109 = por %p107, %p108
      %p110 = scmp.ne.s32.totalorder %s102, %s105
      %p111 = scmp.eq.s32.totalorder %s9, 0
      %p112 = por %p110, %p111
      %p113 = scmp.ne.s32.totalorder %s102, %s105
      %p114 = scmp.eq.s32.totalorder %s14, 1
      %p115 = por %p113, %p114
      %p116 = scmp.ne.s32.totalorder %s105, %s106
      %p117 = scmp.eq.s32.totalorder %s14, 0
      %p118 = por %p116, %p117
      %p119 = scmp.ne.s32.totalorder %s105, %s106
      %p120 = scmp.eq.s32.totalorder %s15, 1
      %p121 = por %p119, %p120
      %p123 = scmp.ne.s32.totalorder %s106, %s122
      %p124 = scmp.eq.s32.totalorder %s15, 0
      %p125 = por %p123, %p124
      %s126 = ssub.s32 %s16, %s35
      %s127 = ssub.s32 %s17, %s31
      %s128 = sor.u32 %s126, %s127
      %p129 = scmp.eq.s32.totalorder %s128, 0
      %s131 = sadd.s32 %s130, 1
      %s132 = scalar_select %p129, %s130, %s131
      %p135 = pneg %p129
      %p136 = scmp.eq.s32.totalorder %s9, 1
      %p137 = por %p135, %p136
      %p138 = scmp.ne.s32.totalorder %s130, %s133
      %p139 = scmp.eq.s32.totalorder %s9, 0
      %p140 = por %p138, %p139
      %p141 = scmp.ne.s32.totalorder %s130, %s133
      %p142 = scmp.eq.s32.totalorder %s14, 1
      %p143 = por %p141, %p142
      %p144 = scmp.ne.s32.totalorder %s133, %s134
      %p145 = scmp.eq.s32.totalorder %s14, 0
      %p146 = por %p144, %p145
      %p147 = scmp.ne.s32.totalorder %s133, %s134
      %p148 = scmp.eq.s32.totalorder %s15, 1
      %p149 = por %p147, %p148
      %p151 = scmp.ne.s32.totalorder %s134, %s150
      %p152 = scmp.eq.s32.totalorder %s15, 0
      %p153 = por %p151, %p152
      %p154 = scmp.le.s32.totalorder 1, %s9
      %p155 = scmp.lt.s32.totalorder %s9, 3
      %p156 = pnand %p154, %p155
      %p157 = pneg %p156
      // Predicated region
      $region9: #{transformer_forward.47} parent=5 // pred_check
        _
      $region10: #{transformer_forward.47} parent=5 // pred_check_branch
        %159 = sbr.rel (%p156) target = $region12
      $region11: #{transformer_forward.47} parent=5 // pred_region
        %s160 = ssub.s32 %s9, 1
      $region12: #{transformer_forward.47} parent=5 // pred_fallthru
        _
      %p161 = scmp.lt.s32.totalorder %s9, 2
      // Predicated region
      $region13: #{transformer_forward.47} parent=5 // pred_check
        %p162 = pneg %p161
      $region14: #{transformer_forward.47} parent=5 // pred_check_branch
        %164 = sbr.rel (%p162) target = $region16
      $region15: #{transformer_forward.47} parent=5 // pred_region
        // Predicated region
        $region17: #{transformer_forward.47} parent=15 // pred_check
          %p165 = pneg %p50
        $region18: #{transformer_forward.47} parent=15 // pred_check_branch
          %167 = sbr.rel (%p165) target = $region20
        $region19: #{transformer_forward.47} parent=15 // pred_region
          %p168 = scmp.lt.s32.totalorder %s16, 1
          %s169 = scalar_select %p168, %s16, 1
          %p170 = scmp.lt.s32.totalorder %s17, 0
          %s171 = scalar_select %p170, %s17, 0
          %s172 = sadd.s32 %s171, %s169
          %s173 = smul.addr %s172, 4
          %s174 = scalar_lea.vmem %s0, %s173
        $region20: #{transformer_forward.47} parent=15 // pred_fallthru
          _
        // Predicated region
        $region21: #{transformer_forward.47} parent=15 // pred_check
          %p175 = pneg %p80
        $region22: #{transformer_forward.47} parent=15 // pred_check_branch
          %177 = sbr.rel (%p175) target = $region24
        $region23: #{transformer_forward.47} parent=15 // pred_region
          %s178 = sand.u32 %s70, 1
          %s179 = sand.u32 %s70, 1
          %s180 = smul.addr %s179, 8
          %s181 = scalar_lea.vmem [#allocation5], %s180
          %s182 = smul.u32 2, %s18
          %s183 = smul.addr %s182, 2
          %s184 = sadd.s32 %s17, %s183
          %s185 = smul.addr %s16, 4
          %s186 = sadd.s32 %s184, %s185
          %s187 = smul.addr %s186, 4
          %s188 = scalar_lea.vmem %s1, %s187
          // Predicated region
          $region25: #{transformer_forward.47} parent=23 // pred_check
            _
          $region26: #{transformer_forward.47} parent=23 // pred_check_branch
            %190 = sbr.rel (0) target = $region28
          $region27: #{transformer_forward.47} parent=23 // pred_region
            // Predicated region
            $region29: #{transformer_forward.47} parent=27 // pred_check
              _
            $region30: #{transformer_forward.47} parent=27 // pred_check_branch
              %192 = sbr.rel target = $region32
            $region31: #{transformer_forward.47} parent=27 // pred_region
              // Predicated region
              $region44: #{transformer_forward.47} parent=31 // pred_check
                _
              $region45: #{transformer_forward.47} parent=31 // pred_check_branch
                %209 = sbr.rel (0) target = $region47
              $region46: #{transformer_forward.47} parent=31 // pred_region
                loop: start=0, step=1, limit=1
                $region48: #{transformer_forward.47} parent=46 // loop_pre_header
                  _
                $region49: #{transformer_forward.47} parent=46 // loop_header
                  %s211 = sphi 0, %s215
                  %p212 = scmp.ge.s32.totalorder %s211, 1
                  %s216 = sphi %s188, %s188
                  %s217 = sphi %s181, %s181
                $region50: #{transformer_forward.47} parent=46 // loop_header_branch
                  %214 = sbr.rel (%p212) target = $region54
                $region51: #{transformer_forward.47} parent=46 // loop_body
                  _
                $region52: #{transformer_forward.47} parent=46 // loop_footer
                  %s215 = sadd.s32 1, %s211
                $region53: #{transformer_forward.47} parent=46 // loop_footer_branch
                  %210 = sbr.rel target = $region49
                $region54: #{transformer_forward.47} parent=46 // loop_exit
                  _
                loop: start=0, step=1, limit=1
                $region55: #{transformer_forward.47} parent=46 // loop_pre_header
                  _
                $region56: #{transformer_forward.47} parent=46 // loop_header
                  %s220 = sphi 0, %s224
                  %p221 = scmp.ge.s32.totalorder %s220, 1
                  %s225 = sphi %s188, %s188
                  %s226 = sphi %s181, %s181
                $region57: #{transformer_forward.47} parent=46 // loop_header_branch
                  %223 = sbr.rel (%p221) target = $region61
                $region58: #{transformer_forward.47} parent=46 // loop_body
                  %v227 = vld [vmem:[%s225] sm:$0xf]
                  %228 = vst [vmem:[%s226] sm:$0xf] %v227
                  %v229 = vld [vmem:[%s225 + $0x8] sm:$0xf]
                  %230 = vst [vmem:[%s226 + $0x4] sm:$0xf] %v229
                $region59: #{transformer_forward.47} parent=46 // loop_footer
                  %s224 = sadd.s32 1, %s220
                $region60: #{transformer_forward.47} parent=46 // loop_footer_branch
                  %219 = sbr.rel target = $region56
                $region61: #{transformer_forward.47} parent=46 // loop_exit
                  _
              $region47: #{transformer_forward.47} parent=31 // pred_fallthru
                _
            $region32: #{transformer_forward.47} parent=27 // pred_fallthru
              _
            // Predicated region
            $region33: #{transformer_forward.47} parent=27 // pred_check
              _
            $region34: #{transformer_forward.47} parent=27 // pred_check_branch
              %194 = sbr.rel (0) target = $region36
            $region35: #{transformer_forward.47} parent=27 // pred_region
              loop: start=0, step=1, limit=1
              $region37: #{transformer_forward.47} parent=35 // loop_pre_header
                _
              $region38: #{transformer_forward.47} parent=35 // loop_header
                %s197 = sphi 0, %s201
                %p198 = scmp.ge.s32.totalorder %s197, 1
                %s202 = sphi %s188, %s188
                %s203 = sphi %s181, %s181
              $region39: #{transformer_forward.47} parent=35 // loop_header_branch
                %200 = sbr.rel (%p198) target = $region43
              $region40: #{transformer_forward.47} parent=35 // loop_body
                %v204 = vld [vmem:[%s202] sm:$0xf]
                %205 = vst [vmem:[%s203] sm:$0xf] %v204
                %v206 = vld [vmem:[%s202 + $0x8] sm:$0xf]
                %207 = vst [vmem:[%s203 + $0x4] sm:$0xf] %v206
              $region41: #{transformer_forward.47} parent=35 // loop_footer
                %s201 = sadd.s32 1, %s197
              $region42: #{transformer_forward.47} parent=35 // loop_footer_branch
                %196 = sbr.rel target = $region38
              $region43: #{transformer_forward.47} parent=35 // loop_exit
                _
            $region36: #{transformer_forward.47} parent=27 // pred_fallthru
              _
          $region28: #{transformer_forward.47} parent=23 // pred_fallthru
            _
          %231 = vnop
        $region24: #{transformer_forward.47} parent=15 // pred_fallthru
          _
        // Predicated region
        $region62: #{transformer_forward.47} parent=15 // pred_check
          %p232 = pneg %p112
        $region63: #{transformer_forward.47} parent=15 // pred_check_branch
          %234 = sbr.rel (%p232) target = $region65
        $region64: #{transformer_forward.47} parent=15 // pred_region
          %s235 = sand.u32 %s102, 1
          %s236 = sand.u32 %s102, 1
          %s237 = smul.addr %s236, 8
          %s238 = scalar_lea.vmem [#allocation6], %s237
          %s239 = sadd.s32 %s17, 1
          %s240 = smul.u32 2, %s18
          %s241 = smul.addr %s240, 2
          %s242 = sadd.s32 %s239, %s241
          %s243 = smul.addr %s16, 4
          %s244 = sadd.s32 %s242, %s243
          %s245 = smul.addr %s244, 4
          %s246 = scalar_lea.vmem %s2, %s245
          // Predicated region
          $region66: #{transformer_forward.47} parent=64 // pred_check
            _
          $region67: #{transformer_forward.47} parent=64 // pred_check_branch
            %248 = sbr.rel (0) target = $region69
          $region68: #{transformer_forward.47} parent=64 // pred_region
            // Predicated region
            $region70: #{transformer_forward.47} parent=68 // pred_check
              _
            $region71: #{transformer_forward.47} parent=68 // pred_check_branch
              %250 = sbr.rel target = $region73
            $region72: #{transformer_forward.47} parent=68 // pred_region
              // Predicated region
              $region85: #{transformer_forward.47} parent=72 // pred_check
                _
              $region86: #{transformer_forward.47} parent=72 // pred_check_branch
                %267 = sbr.rel (0) target = $region88
              $region87: #{transformer_forward.47} parent=72 // pred_region
                loop: start=0, step=1, limit=1
                $region89: #{transformer_forward.47} parent=87 // loop_pre_header
                  _
                $region90: #{transformer_forward.47} parent=87 // loop_header
                  %s269 = sphi 0, %s273
                  %p270 = scmp.ge.s32.totalorder %s269, 1
                  %s274 = sphi %s246, %s246
                  %s275 = sphi %s238, %s238
                $region91: #{transformer_forward.47} parent=87 // loop_header_branch
                  %272 = sbr.rel (%p270) target = $region95
                $region92: #{transformer_forward.47} parent=87 // loop_body
                  _
                $region93: #{transformer_forward.47} parent=87 // loop_footer
                  %s273 = sadd.s32 1, %s269
                $region94: #{transformer_forward.47} parent=87 // loop_footer_branch
                  %268 = sbr.rel target = $region90
                $region95: #{transformer_forward.47} parent=87 // loop_exit
                  _
                loop: start=0, step=1, limit=1
                $region96: #{transformer_forward.47} parent=87 // loop_pre_header
                  _
                $region97: #{transformer_forward.47} parent=87 // loop_header
                  %s278 = sphi 0, %s282
                  %p279 = scmp.ge.s32.totalorder %s278, 1
                  %s283 = sphi %s246, %s246
                  %s284 = sphi %s238, %s238
                $region98: #{transformer_forward.47} parent=87 // loop_header_branch
                  %281 = sbr.rel (%p279) target = $region102
                $region99: #{transformer_forward.47} parent=87 // loop_body
                  %v285 = vld [vmem:[%s283] sm:$0xf]
                  %286 = vst [vmem:[%s284] sm:$0xf] %v285
                  %v287 = vld [vmem:[%s283 + $0x8] sm:$0xf]
                  %288 = vst [vmem:[%s284 + $0x4] sm:$0xf] %v287
                $region100: #{transformer_forward.47} parent=87 // loop_footer
                  %s282 = sadd.s32 1, %s278
                $region101: #{transformer_forward.47} parent=87 // loop_footer_branch
                  %277 = sbr.rel target = $region97
                $region102: #{transformer_forward.47} parent=87 // loop_exit
                  _
              $region88: #{transformer_forward.47} parent=72 // pred_fallthru
                _
            $region73: #{transformer_forward.47} parent=68 // pred_fallthru
              _
            // Predicated region
            $region74: #{transformer_forward.47} parent=68 // pred_check
              _
            $region75: #{transformer_forward.47} parent=68 // pred_check_branch
              %252 = sbr.rel (0) target = $region77
            $region76: #{transformer_forward.47} parent=68 // pred_region
              loop: start=0, step=1, limit=1
              $region78: #{transformer_forward.47} parent=76 // loop_pre_header
                _
              $region79: #{transformer_forward.47} parent=76 // loop_header
                %s255 = sphi 0, %s259
                %p256 = scmp.ge.s32.totalorder %s255, 1
                %s260 = sphi %s246, %s246
                %s261 = sphi %s238, %s238
              $region80: #{transformer_forward.47} parent=76 // loop_header_branch
                %258 = sbr.rel (%p256) target = $region84
              $region81: #{transformer_forward.47} parent=76 // loop_body
                %v262 = vld [vmem:[%s260] sm:$0xf]
                %263 = vst [vmem:[%s261] sm:$0xf] %v262
                %v264 = vld [vmem:[%s260 + $0x8] sm:$0xf]
                %265 = vst [vmem:[%s261 + $0x4] sm:$0xf] %v264
              $region82: #{transformer_forward.47} parent=76 // loop_footer
                %s259 = sadd.s32 1, %s255
              $region83: #{transformer_forward.47} parent=76 // loop_footer_branch
                %254 = sbr.rel target = $region79
              $region84: #{transformer_forward.47} parent=76 // loop_exit
                _
            $region77: #{transformer_forward.47} parent=68 // pred_fallthru
              _
          $region69: #{transformer_forward.47} parent=64 // pred_fallthru
            _
          %289 = vnop
        $region65: #{transformer_forward.47} parent=15 // pred_fallthru
          _
      $region16: #{transformer_forward.47} parent=5 // pred_fallthru
        _
      %p290 = scmp.le.s32.totalorder 1, %s9
      %p291 = scmp.lt.s32.totalorder %s9, 3
      %p292 = pnand %p290, %p291
      %p293 = pneg %p292
      // Predicated region
      $region103: #{transformer_forward.47} parent=5 // pred_check
        _
      $region104: #{transformer_forward.47} parent=5 // pred_check_branch
        %295 = sbr.rel (%p292) target = $region106
      $region105: #{transformer_forward.47} parent=5 // pred_region
        %s296 = ssub.s32 %s9, 1
        %s297 = sand.u32 %s73, 1
        %s298 = sand.u32 %s73, 1
        %s299 = smul.addr %s298, 8
        %s300 = scalar_lea.vmem [#allocation5], %s299
        // Predicated region
        $region107: #{transformer_forward.47} parent=105 // pred_check
          %p301 = pneg %p86
        $region108: #{transformer_forward.47} parent=105 // pred_check_branch
          %303 = sbr.rel (%p301) target = $region110
        $region109: #{transformer_forward.47} parent=105 // pred_region
          _
        $region110: #{transformer_forward.47} parent=105 // pred_fallthru
          _
        %s304 = sand.u32 %s105, 1
        %s305 = sand.u32 %s105, 1
        %s306 = smul.addr %s305, 8
        %s307 = scalar_lea.vmem [#allocation6], %s306
        // Predicated region
        $region111: #{transformer_forward.47} parent=105 // pred_check
          %p308 = pneg %p118
        $region112: #{transformer_forward.47} parent=105 // pred_check_branch
          %310 = sbr.rel (%p308) target = $region114
        $region113: #{transformer_forward.47} parent=105 // pred_region
          _
        $region114: #{transformer_forward.47} parent=105 // pred_fallthru
          _
        %p311 = scmp.lt.s32.totalorder %s19, 1
        %s312 = scalar_select %p311, %s19, 1
        %p313 = scmp.lt.s32.totalorder %s20, 0
        %s314 = scalar_select %p313, %s20, 0
        %s315 = sadd.s32 %s314, %s312
        %s316 = smul.addr %s315, 4
        %s317 = scalar_lea.vmem %s0, %s316
        %p318 = pneg %p56
        %p319 = pneg %p53
        %s320 = sand.u32 %s73, 1
        %s321 = sand.u32 %s73, 1
        %s322 = smul.addr %s321, 8
        %s323 = scalar_lea.vmem [#allocation5], %s322
        %p324 = pneg %p86
        %p325 = pneg %p83
        %s326 = sand.u32 %s105, 1
        %s327 = sand.u32 %s105, 1
        %s328 = smul.addr %s327, 8
        %s329 = scalar_lea.vmem [#allocation6], %s328
        %p330 = pneg %p118
        %p331 = pneg %p115
        %p332 = pneg %p146
        %p333 = pneg %p143
        %p334 = scmp.lt.s32.totalorder %s19, 1
        %s335 = scalar_select %p334, %s19, 1
        %p336 = scmp.lt.s32.totalorder %s20, 0
        %s337 = scalar_select %p336, %s20, 0
        %s338 = sadd.s32 %s337, %s335
        %s339 = smul.addr %s338, 4
        %s340 = scalar_lea.vmem %s3, %s339
        %p341 = scmp.lt.s32.totalorder %s19, 1
        %s342 = scalar_select %p341, %s19, 1
        %p343 = scmp.lt.s32.totalorder %s20, 0
        %s344 = scalar_select %p343, %s20, 0
        %s345 = sadd.s32 %s344, %s342
        %s346 = smul.addr %s345, 4
        %s347 = scalar_lea.vmem %s0, %s346
        %s348 = smul.u32 2, %s21
        %s349 = sadd.s32 %s20, 1
        %s350 = smul.u32 2, %s21
        %p351 = scmp.lt.s32.totalorder %s19, 1
        %s352 = scalar_select %p351, %s19, 1
        %p353 = scmp.lt.s32.totalorder %s20, 0
        %s354 = scalar_select %p353, %s20, 0
        %s355 = sadd.s32 %s354, %s352
        %s356 = smul.addr %s355, 4
        %s357 = scalar_lea.vmem %s3, %s356
        %v359 = vld [vmem:[%s347] sm:$0xf]
        %v360 = vld [vmem:[%s300] sm:$0xf]
        %v361 = vld [vmem:[%s300 + $0x4] sm:$0x1]
        %v362 = vld [vmem:[%s307] sm:$0xf]
        %v363 = vld [vmem:[%s307 + $0x4] sm:$0x1]
        %p364 = scmp.eq.s32.totalorder %s21, 0
        // Predicated region
        $region115: #{transformer_forward.47} parent=105 // pred_check
          %p365 = pneg %p364
        $region116: #{transformer_forward.47} parent=105 // pred_check_branch
          %367 = sbr.rel (%p365) target = $region118
        $region117: #{transformer_forward.47} parent=105 // pred_region
          %vm368 = vcmask 7168
          %369 = vst.msk [vmem:[#allocation2] sm:$0xff] %vm368, -inf
          %370 = vst.msk [vmem:[#allocation2 + $0x8] sm:$0xff] %vm368, -inf
          %371 = vst.msk [vmem:[#allocation2 + $0x10] sm:$0xff] %vm368, -inf
          %372 = vst.msk [vmem:[#allocation2 + $0x18] sm:$0xff] %vm368, -inf
          %373 = vst.msk [vmem:[#allocation3] sm:$0xff] %vm368, 0.0
          %374 = vst.msk [vmem:[#allocation3 + $0x8] sm:$0xff] %vm368, 0.0
          %375 = vst.msk [vmem:[#allocation3 + $0x10] sm:$0xff] %vm368, 0.0
          %376 = vst.msk [vmem:[#allocation3 + $0x18] sm:$0xff] %vm368, 0.0
          %vm377 = vcmask 261120
          %378 = vst.msk [vmem:[#allocation4] sm:$0xff] %vm377, 0.0
          %379 = vst.msk [vmem:[#allocation4 + $0x8] sm:$0xff] %vm377, 0.0
          %380 = vst.msk [vmem:[#allocation4 + $0x10] sm:$0xff] %vm377, 0.0
          %381 = vst.msk [vmem:[#allocation4 + $0x18] sm:$0xff] %vm377, 0.0
        $region118: #{transformer_forward.47} parent=105 // pred_fallthru
          _
        %v382 = vunpack.c.l.bf16 %v359
        %v383 = vmul.f32 %v382, 0.17677669
        %v384 = vpack.c.bf16 %v383, %v383
        %v387 = vunpack.c.l.b16 %v360
        %v388 = vunpack.c.l.b16 %v361
        %v389 = vpack.c.b16 %v388, %v387
        %vm390 = vcmask 261120
        %v392 = vsel %vm390, %v384, 0
        %v395 = vsel %vm390, %v389, 0
        %397 = vmatprep.subr.bf16.mxu0 0
        %398 = vmatpush1.bf16.xpose.msra.mxu0 %v395
        %399 = vmatprep.subr.bf16.mxu0 0
        %400 = vmatpush1.bf16.xpose.msra.mxu0 0
        %401 = vmatprep.subr.bf16.mxu0 0
        %402 = vmatpush1.bf16.xpose.msra.mxu0 0
        %403 = vmatprep.subr.bf16.mxu0 0
        %404 = vmatpush1.bf16.xpose.msra.mxu0 0
        %405 = vmatprep.subr.bf16.mxu0 0
        %406 = vmatpush1.bf16.xpose.msra.mxu0 0
        %407 = vmatprep.subr.bf16.mxu0 0
        %408 = vmatpush1.bf16.xpose.msra.mxu0 0
        %409 = vmatprep.subr.bf16.mxu0 0
        %410 = vmatpush1.bf16.xpose.msra.mxu0 0
        %411 = vmatprep.subr.bf16.mxu0 0
        %412 = vmatpush1.bf16.xpose.msra.mxu0 0
        %413 = vmatprep.subr.bf16.mxu0 0
        %414 = vmatpush1.bf16.xpose.msra.mxu0 0
        %415 = vmatprep.subr.bf16.mxu0 0
        %416 = vmatpush1.bf16.xpose.msra.mxu0 0
        %417 = vmatprep.subr.bf16.mxu0 0
        %418 = vmatpush1.bf16.xpose.msra.mxu0 0
        %419 = vmatprep.subr.bf16.mxu0 0
        %420 = vmatpush1.bf16.xpose.msra.mxu0 0
        %421 = vmatprep.subr.bf16.mxu0 0
        %422 = vmatpush1.bf16.xpose.msra.mxu0 0
        %423 = vmatprep.subr.bf16.mxu0 0
        %424 = vmatpush1.bf16.xpose.msra.mxu0 0
        %425 = vmatprep.subr.bf16.mxu0 0
        %426 = vmatpush1.bf16.xpose.msra.mxu0 0
        %427 = vmatprep.subr.bf16.mxu0 0
        %428 = vmatpush1.bf16.xpose.msra.mxu0 0
        %429 = vmatprep.mubr.bf16.mxu0 0
        %430 = vmatmul.mubr.bf16.gmra.mrb[0].mxu0 %v392
        %v431 = vpop.f32.mrb[0].mxu0
        %v432 = vadd.f32 0.0, %v431
        %v433 = vpop.f32.mrb[0].mxu0
        %v434 = vpop.f32.mrb[0].mxu0
        %v435 = vpop.f32.mrb[0].mxu0
        %436 = vdwg.mxu0
        %v437 = vld [vmem:[#allocation2] sm:$0xff]
        %vm438 = vcmask 80896
        %v439 = vsel %vm438, %v432, -inf
        %440 = vmax.xlane.f32.xlu0 %v439
        %v441 = vpop.xlane.xlu0 %440
        %v442 = vmax.f32 %v437, %v441
        %v443 = vsub.f32 %v437, %v442
        %v444 = vmul.f32 %v443, 1.442695
        %v445 = vpow.pop %v444
        %447 = vset.pattern.permute.xlu0 0
        %448 = vperm.xlu0 %447, %v442
        %v449 = vpop.permute.xlu0 %448
        %v451 = vsub.f32 %v432, %v449
        %v452 = vmul.f32 %v451, 1.442695
        %v453 = vpow.pop %v452
        %v454 = vld [vmem:[#allocation3] sm:$0xff]
        %v455 = vmul.f32 %v445, %v454
        %v456 = vsel %vm438, %v453, 0.0
        %457 = vadd.xlane.f32.xlu0 %v456
        %v458 = vpop.xlane.xlu0 %457
        %v459 = vadd.f32 %v455, %v458
        %vm460 = vcmask 7168
        %461 = vst.msk [vmem:[#allocation3] sm:$0xff] %vm460, %v459
        %v462 = vld [vmem:[#allocation4] sm:$0xff]
        %464 = vset.pattern.permute.xlu0 0
        %465 = vperm.xlu0 %464, %v445
        %v466 = vpop.permute.xlu0 %465
        %v468 = vmul.f32 %v466, %v462
        %v469 = vpack.c.bf16 %v453, %v453
        %v472 = vunpack.c.l.b16 %v362
        %v473 = vunpack.c.l.b16 %v363
        %v474 = vpack.c.b16 %v473, %v472
        %v476 = vsel %vm438, %v469, 0
        %vm478 = vcmask 1044480
        %v480 = vsel %vm478, %v474, 0
        %482 = vmatprep.subr.bf16.mxu0 0
        %483 = vmatpush1.bf16.msra.mxu0 %v480
        %484 = vmatprep.subr.bf16.mxu0 0
        %485 = vmatpush1.bf16.msra.mxu0 0
        %486 = vmatprep.subr.bf16.mxu0 0
        %487 = vmatpush1.bf16.msra.mxu0 0
        %488 = vmatprep.subr.bf16.mxu0 0
        %489 = vmatpush1.bf16.msra.mxu0 0
        %490 = vmatprep.subr.bf16.mxu0 0
        %491 = vmatpush1.bf16.msra.mxu0 0
        %492 = vmatprep.subr.bf16.mxu0 0
        %493 = vmatpush1.bf16.msra.mxu0 0
        %494 = vmatprep.subr.bf16.mxu0 0
        %495 = vmatpush1.bf16.msra.mxu0 0
        %496 = vmatprep.subr.bf16.mxu0 0
        %497 = vmatpush1.bf16.msra.mxu0 0
        %498 = vmatprep.subr.bf16.mxu0 0
        %499 = vmatpush1.bf16.msra.mxu0 0
        %500 = vmatprep.subr.bf16.mxu0 0
        %501 = vmatpush1.bf16.msra.mxu0 0
        %502 = vmatprep.subr.bf16.mxu0 0
        %503 = vmatpush1.bf16.msra.mxu0 0
        %504 = vmatprep.subr.bf16.mxu0 0
        %505 = vmatpush1.bf16.msra.mxu0 0
        %506 = vmatprep.subr.bf16.mxu0 0
        %507 = vmatpush1.bf16.msra.mxu0 0
        %508 = vmatprep.subr.bf16.mxu0 0
        %509 = vmatpush1.bf16.msra.mxu0 0
        %510 = vmatprep.subr.bf16.mxu0 0
        %511 = vmatpush1.bf16.msra.mxu0 0
        %512 = vmatprep.subr.bf16.mxu0 0
        %513 = vmatpush1.bf16.msra.mxu0 0
        %514 = vmatprep.mubr.bf16.mxu0 0
        %515 = vmatmul.mubr.bf16.gmra.mrb[0].mxu0 %v476
        %v516 = vpop.f32.mrb[0].mxu0
        %v517 = vadd.f32 0.0, %v516
        %v518 = vpop.f32.mrb[0].mxu0
        %v519 = vpop.f32.mrb[0].mxu0
        %v520 = vpop.f32.mrb[0].mxu0
        %521 = vdwg.mxu0
        %v522 = vadd.f32 %v468, %v517
        %523 = vst.msk [vmem:[#allocation4] sm:$0xff] %vm390, %v522
        %524 = vst.msk [vmem:[#allocation2] sm:$0xff] %vm460, %v442
        %526 = vrot.lane.b32.xlu0 %v384, 96
        %v527 = vpop.permute.xlu0 %526
        %528 = vrot.lane.b32.xlu0 %v389, 96
        %v529 = vpop.permute.xlu0 %528
        %v531 = vsel %vm390, %v527, 0
        %v534 = vsel %vm390, %v529, 0
        %536 = vmatprep.subr.bf16.mxu0 0
        %537 = vmatpush1.bf16.xpose.msra.mxu0 %v534
        %538 = vmatprep.subr.bf16.mxu0 0
        %539 = vmatpush1.bf16.xpose.msra.mxu0 0
        %540 = vmatprep.subr.bf16.mxu0 0
        %541 = vmatpush1.bf16.xpose.msra.mxu0 0
        %542 = vmatprep.subr.bf16.mxu0 0
        %543 = vmatpush1.bf16.xpose.msra.mxu0 0
        %544 = vmatprep.subr.bf16.mxu0 0
        %545 = vmatpush1.bf16.xpose.msra.mxu0 0
        %546 = vmatprep.subr.bf16.mxu0 0
        %547 = vmatpush1.bf16.xpose.msra.mxu0 0
        %548 = vmatprep.subr.bf16.mxu0 0
        %549 = vmatpush1.bf16.xpose.msra.mxu0 0
        %550 = vmatprep.subr.bf16.mxu0 0
        %551 = vmatpush1.bf16.xpose.msra.mxu0 0
        %552 = vmatprep.subr.bf16.mxu0 0
        %553 = vmatpush1.bf16.xpose.msra.mxu0 0
        %554 = vmatprep.subr.bf16.mxu0 0
        %555 = vmatpush1.bf16.xpose.msra.mxu0 0
        %556 = vmatprep.subr.bf16.mxu0 0
        %557 = vmatpush1.bf16.xpose.msra.mxu0 0
        %558 = vmatprep.subr.bf16.mxu0 0
        %559 = vmatpush1.bf16.xpose.msra.mxu0 0
        %560 = vmatprep.subr.bf16.mxu0 0
        %561 = vmatpush1.bf16.xpose.msra.mxu0 0
        %562 = vmatprep.subr.bf16.mxu0 0
        %563 = vmatpush1.bf16.xpose.msra.mxu0 0
        %564 = vmatprep.subr.bf16.mxu0 0
        %565 = vmatpush1.bf16.xpose.msra.mxu0 0
        %566 = vmatprep.subr.bf16.mxu0 0
        %567 = vmatpush1.bf16.xpose.msra.mxu0 0
        %568 = vmatprep.mubr.bf16.mxu0 0
        %569 = vmatmul.mubr.bf16.gmra.mrb[0].mxu0 %v531
        %v570 = vpop.f32.mrb[0].mxu0
        %v571 = vadd.f32 0.0, %v570
        %v572 = vpop.f32.mrb[0].mxu0
        %v573 = vpop.f32.mrb[0].mxu0
        %v574 = vpop.f32.mrb[0].mxu0
        %575 = vdwg.mxu0
        %s576 = scalar_lea.vmem [#allocation2], 8
        %v577 = vld [vmem:[%s576] sm:$0xff]
        %v578 = vsel %vm438, %v571, -inf
        %579 = vmax.xlane.f32.xlu0 %v578
        %v580 = vpop.xlane.xlu0 %579
        %v581 = vmax.f32 %v577, %v580
        %v582 = vsub.f32 %v577, %v581
        %v583 = vmul.f32 %v582, 1.442695
        %v584 = vpow.pop %v583
        %586 = vset.pattern.permute.xlu0 0
        %587 = vperm.xlu0 %586, %v581
        %v588 = vpop.permute.xlu0 %587
        %v590 = vsub.f32 %v571, %v588
        %v591 = vmul.f32 %v590, 1.442695
        %v592 = vpow.pop %v591
        %s593 = scalar_lea.vmem [#allocation3], 8
        %v594 = vld [vmem:[%s593] sm:$0xff]
        %v595 = vmul.f32 %v584, %v594
        %v596 = vsel %vm438, %v592, 0.0
        %597 = vadd.xlane.f32.xlu0 %v596
        %v598 = vpop.xlane.xlu0 %597
        %v599 = vadd.f32 %v595, %v598
        %600 = vst.msk [vmem:[%s593] sm:$0xff] %vm460, %v599
        %s601 = scalar_lea.vmem [#allocation4], 8
        %v602 = vld [vmem:[%s601] sm:$0xff]
        %604 = vset.pattern.permute.xlu0 0
        %605 = vperm.xlu0 %604, %v584
        %v606 = vpop.permute.xlu0 %605
        %v608 = vmul.f32 %v606, %v602
        %v609 = vpack.c.bf16 %v592, %v592
        %610 = vrot.lane.b32.xlu0 %v474, 96
        %v611 = vpop.permute.xlu0 %610
        %v613 = vsel %vm438, %v609, 0
        %v616 = vsel %vm478, %v611, 0
        %618 = vmatprep.subr.bf16.mxu0 0
        %619 = vmatpush1.bf16.msra.mxu0 %v616
        %620 = vmatprep.subr.bf16.mxu0 0
        %621 = vmatpush1.bf16.msra.mxu0 0
        %622 = vmatprep.subr.bf16.mxu0 0
        %623 = vmatpush1.bf16.msra.mxu0 0
        %624 = vmatprep.subr.bf16.mxu0 0
        %625 = vmatpush1.bf16.msra.mxu0 0
        %626 = vmatprep.subr.bf16.mxu0 0
        %627 = vmatpush1.bf16.msra.mxu0 0
        %628 = vmatprep.subr.bf16.mxu0 0
        %629 = vmatpush1.bf16.msra.mxu0 0
        %630 = vmatprep.subr.bf16.mxu0 0
        %631 = vmatpush1.bf16.msra.mxu0 0
        %632 = vmatprep.subr.bf16.mxu0 0
        %633 = vmatpush1.bf16.msra.mxu0 0
        %634 = vmatprep.subr.bf16.mxu0 0
        %635 = vmatpush1.bf16.msra.mxu0 0
        %636 = vmatprep.subr.bf16.mxu0 0
        %637 = vmatpush1.bf16.msra.mxu0 0
        %638 = vmatprep.subr.bf16.mxu0 0
        %639 = vmatpush1.bf16.msra.mxu0 0
        %640 = vmatprep.subr.bf16.mxu0 0
        %641 = vmatpush1.bf16.msra.mxu0 0
        %642 = vmatprep.subr.bf16.mxu0 0
        %643 = vmatpush1.bf16.msra.mxu0 0
        %644 = vmatprep.subr.bf16.mxu0 0
        %645 = vmatpush1.bf16.msra.mxu0 0
        %646 = vmatprep.subr.bf16.mxu0 0
        %647 = vmatpush1.bf16.msra.mxu0 0
        %648 = vmatprep.subr.bf16.mxu0 0
        %649 = vmatpush1.bf16.msra.mxu0 0
        %650 = vmatprep.mubr.bf16.mxu0 0
        %651 = vmatmul.mubr.bf16.gmra.mrb[0].mxu0 %v613
        %v652 = vpop.f32.mrb[0].mxu0
        %v653 = vadd.f32 0.0, %v652
        %v654 = vpop.f32.mrb[0].mxu0
        %v655 = vpop.f32.mrb[0].mxu0
        %v656 = vpop.f32.mrb[0].mxu0
        %657 = vdwg.mxu0
        %v658 = vadd.f32 %v608, %v653
        %659 = vst.msk [vmem:[%s601] sm:$0xff] %vm390, %v658
        %660 = vst.msk [vmem:[%s576] sm:$0xff] %vm460, %v581
        %661 = vrot.lane.b32.xlu0 %v384, 64
        %v662 = vpop.permute.xlu0 %661
        %663 = vrot.lane.b32.xlu0 %v389, 64
        %v664 = vpop.permute.xlu0 %663
        %v666 = vsel %vm390, %v662, 0
        %v669 = vsel %vm390, %v664, 0
        %671 = vmatprep.subr.bf16.mxu0 0
        %672 = vmatpush1.bf16.xpose.msra.mxu0 %v669
        %673 = vmatprep.subr.bf16.mxu0 0
        %674 = vmatpush1.bf16.xpose.msra.mxu0 0
        %675 = vmatprep.subr.bf16.mxu0 0
        %676 = vmatpush1.bf16.xpose.msra.mxu0 0
        %677 = vmatprep.subr.bf16.mxu0 0
        %678 = vmatpush1.bf16.xpose.msra.mxu0 0
        %679 = vmatprep.subr.bf16.mxu0 0
        %680 = vmatpush1.bf16.xpose.msra.mxu0 0
        %681 = vmatprep.subr.bf16.mxu0 0
        %682 = vmatpush1.bf16.xpose.msra.mxu0 0
        %683 = vmatprep.subr.bf16.mxu0 0
        %684 = vmatpush1.bf16.xpose.msra.mxu0 0
        %685 = vmatprep.subr.bf16.mxu0 0
        %686 = vmatpush1.bf16.xpose.msra.mxu0 0
        %687 = vmatprep.subr.bf16.mxu0 0
        %688 = vmatpush1.bf16.xpose.msra.mxu0 0
        %689 = vmatprep.subr.bf16.mxu0 0
        %690 = vmatpush1.bf16.xpose.msra.mxu0 0
        %691 = vmatprep.subr.bf16.mxu0 0
        %692 = vmatpush1.bf16.xpose.msra.mxu0 0
        %693 = vmatprep.subr.bf16.mxu0 0
        %694 = vmatpush1.bf16.xpose.msra.mxu0 0
        %695 = vmatprep.subr.bf16.mxu0 0
        %696 = vmatpush1.bf16.xpose.msra.mxu0 0
        %697 = vmatprep.subr.bf16.mxu0 0
        %698 = vmatpush1.bf16.xpose.msra.mxu0 0
        %699 = vmatprep.subr.bf16.mxu0 0
        %700 = vmatpush1.bf16.xpose.msra.mxu0 0
        %701 = vmatprep.subr.bf16.mxu0 0
        %702 = vmatpush1.bf16.xpose.msra.mxu0 0
        %703 = vmatprep.mubr.bf16.mxu0 0
        %704 = vmatmul.mubr.bf16.gmra.mrb[0].mxu0 %v666
        %v705 = vpop.f32.mrb[0].mxu0
        %v706 = vadd.f32 0.0, %v705
        %v707 = vpop.f32.mrb[0].mxu0
        %v708 = vpop.f32.mrb[0].mxu0
        %v709 = vpop.f32.mrb[0].mxu0
        %710 = vdwg.mxu0
        %s711 = scalar_lea.vmem [#allocation2], 16
        %v712 = vld [vmem:[%s711] sm:$0xff]
        %v713 = vsel %vm438, %v706, -inf
        %714 = vmax.xlane.f32.xlu0 %v713
        %v715 = vpop.xlane.xlu0 %714
        %v716 = vmax.f32 %v712, %v715
        %v717 = vsub.f32 %v712, %v716
        %v718 = vmul.f32 %v717, 1.442695
        %v719 = vpow.pop %v718
        %721 = vset.pattern.permute.xlu0 0
        %722 = vperm.xlu0 %721, %v716
        %v723 = vpop.permute.xlu0 %722
        %v725 = vsub.f32 %v706, %v723
        %v726 = vmul.f32 %v725, 1.442695
        %v727 = vpow.pop %v726
        %s728 = scalar_lea.vmem [#allocation3], 16
        %v729 = vld [vmem:[%s728] sm:$0xff]
        %v730 = vmul.f32 %v719, %v729
        %v731 = vsel %vm438, %v727, 0.0
        %732 = vadd.xlane.f32.xlu0 %v731
        %v733 = vpop.xlane.xlu0 %732
        %v734 = vadd.f32 %v730, %v733
        %735 = vst.msk [vmem:[%s728] sm:$0xff] %vm460, %v734
        %s736 = scalar_lea.vmem [#allocation4], 16
        %v737 = vld [vmem:[%s736] sm:$0xff]
        %739 = vset.pattern.permute.xlu0 0
        %740 = vperm.xlu0 %739, %v719
        %v741 = vpop.permute.xlu0 %740
        %v743 = vmul.f32 %v741, %v737
        %v744 = vpack.c.bf16 %v727, %v727
        %745 = vrot.lane.b32.xlu0 %v474, 64
        %v746 = vpop.permute.xlu0 %745
        %v748 = vsel %vm438, %v744, 0
        %v751 = vsel %vm478, %v746, 0
        %753 = vmatprep.subr.bf16.mxu0 0
        %754 = vmatpush1.bf16.msra.mxu0 %v751
        %755 = vmatprep.subr.bf16.mxu0 0
        %756 = vmatpush1.bf16.msra.mxu0 0
        %757 = vmatprep.subr.bf16.mxu0 0
        %758 = vmatpush1.bf16.msra.mxu0 0
        %759 = vmatprep.subr.bf16.mxu0 0
        %760 = vmatpush1.bf16.msra.mxu0 0
        %761 = vmatprep.subr.bf16.mxu0 0
        %762 = vmatpush1.bf16.msra.mxu0 0
        %763 = vmatprep.subr.bf16.mxu0 0
        %764 = vmatpush1.bf16.msra.mxu0 0
        %765 = vmatprep.subr.bf16.mxu0 0
        %766 = vmatpush1.bf16.msra.mxu0 0
        %767 = vmatprep.subr.bf16.mxu0 0
        %768 = vmatpush1.bf16.msra.mxu0 0
        %769 = vmatprep.subr.bf16.mxu0 0
        %770 = vmatpush1.bf16.msra.mxu0 0
        %771 = vmatprep.subr.bf16.mxu0 0
        %772 = vmatpush1.bf16.msra.mxu0 0
        %773 = vmatprep.subr.bf16.mxu0 0
        %774 = vmatpush1.bf16.msra.mxu0 0
        %775 = vmatprep.subr.bf16.mxu0 0
        %776 = vmatpush1.bf16.msra.mxu0 0
        %777 = vmatprep.subr.bf16.mxu0 0
        %778 = vmatpush1.bf16.msra.mxu0 0
        %779 = vmatprep.subr.bf16.mxu0 0
        %780 = vmatpush1.bf16.msra.mxu0 0
        %781 = vmatprep.subr.bf16.mxu0 0
        %782 = vmatpush1.bf16.msra.mxu0 0
        %783 = vmatprep.subr.bf16.mxu0 0
        %784 = vmatpush1.bf16.msra.mxu0 0
        %785 = vmatprep.mubr.bf16.mxu0 0
        %786 = vmatmul.mubr.bf16.gmra.mrb[0].mxu0 %v748
        %v787 = vpop.f32.mrb[0].mxu0
        %v788 = vadd.f32 0.0, %v787
        %v789 = vpop.f32.mrb[0].mxu0
        %v790 = vpop.f32.mrb[0].mxu0
        %v791 = vpop.f32.mrb[0].mxu0
        %792 = vdwg.mxu0
        %v793 = vadd.f32 %v743, %v788
        %794 = vst.msk [vmem:[%s736] sm:$0xff] %vm390, %v793
        %795 = vst.msk [vmem:[%s711] sm:$0xff] %vm460, %v716
        %796 = vrot.lane.b32.xlu0 %v384, 32
        %v797 = vpop.permute.xlu0 %796
        %798 = vrot.lane.b32.xlu0 %v389, 32
        %v799 = vpop.permute.xlu0 %798
        %v801 = vsel %vm390, %v797, 0
        %v804 = vsel %vm390, %v799, 0
        %806 = vmatprep.subr.bf16.mxu0 0
        %807 = vmatpush1.bf16.xpose.msra.mxu0 %v804
        %808 = vmatprep.subr.bf16.mxu0 0
        %809 = vmatpush1.bf16.xpose.msra.mxu0 0
        %810 = vmatprep.subr.bf16.mxu0 0
        %811 = vmatpush1.bf16.xpose.msra.mxu0 0
        %812 = vmatprep.subr.bf16.mxu0 0
        %813 = vmatpush1.bf16.xpose.msra.mxu0 0
        %814 = vmatprep.subr.bf16.mxu0 0
        %815 = vmatpush1.bf16.xpose.msra.mxu0 0
        %816 = vmatprep.subr.bf16.mxu0 0
        %817 = vmatpush1.bf16.xpose.msra.mxu0 0
        %818 = vmatprep.subr.bf16.mxu0 0
        %819 = vmatpush1.bf16.xpose.msra.mxu0 0
        %820 = vmatprep.subr.bf16.mxu0 0
        %821 = vmatpush1.bf16.xpose.msra.mxu0 0
        %822 = vmatprep.subr.bf16.mxu0 0
        %823 = vmatpush1.bf16.xpose.msra.mxu0 0
        %824 = vmatprep.subr.bf16.mxu0 0
        %825 = vmatpush1.bf16.xpose.msra.mxu0 0
        %826 = vmatprep.subr.bf16.mxu0 0
        %827 = vmatpush1.bf16.xpose.msra.mxu0 0
        %828 = vmatprep.subr.bf16.mxu0 0
        %829 = vmatpush1.bf16.xpose.msra.mxu0 0
        %830 = vmatprep.subr.bf16.mxu0 0
        %831 = vmatpush1.bf16.xpose.msra.mxu0 0
        %832 = vmatprep.subr.bf16.mxu0 0
        %833 = vmatpush1.bf16.xpose.msra.mxu0 0
        %834 = vmatprep.subr.bf16.mxu0 0
        %835 = vmatpush1.bf16.xpose.msra.mxu0 0
        %836 = vmatprep.subr.bf16.mxu0 0
        %837 = vmatpush1.bf16.xpose.msra.mxu0 0
        %838 = vmatprep.mubr.bf16.mxu0 0
        %839 = vmatmul.mubr.bf16.gmra.mrb[0].mxu0 %v801
        %v840 = vpop.f32.mrb[0].mxu0
        %v841 = vadd.f32 0.0, %v840
        %v842 = vpop.f32.mrb[0].mxu0
        %v843 = vpop.f32.mrb[0].mxu0
        %v844 = vpop.f32.mrb[0].mxu0
        %845 = vdwg.mxu0
        %s846 = scalar_lea.vmem [#allocation2], 24
        %v847 = vld [vmem:[%s846] sm:$0xff]
        %v848 = vsel %vm438, %v841, -inf
        %849 = vmax.xlane.f32.xlu0 %v848
        %v850 = vpop.xlane.xlu0 %849
        %v851 = vmax.f32 %v847, %v850
        %v852 = vsub.f32 %v847, %v851
        %v853 = vmul.f32 %v852, 1.442695
        %v854 = vpow.pop %v853
        %856 = vset.pattern.permute.xlu0 0
        %857 = vperm.xlu0 %856, %v851
        %v858 = vpop.permute.xlu0 %857
        %v860 = vsub.f32 %v841, %v858
        %v861 = vmul.f32 %v860, 1.442695
        %v862 = vpow.pop %v861
        %s863 = scalar_lea.vmem [#allocation3], 24
        %v864 = vld [vmem:[%s863] sm:$0xff]
        %v865 = vmul.f32 %v854, %v864
        %v866 = vsel %vm438, %v862, 0.0
        %867 = vadd.xlane.f32.xlu0 %v866
        %v868 = vpop.xlane.xlu0 %867
        %v869 = vadd.f32 %v865, %v868
        %870 = vst.msk [vmem:[%s863] sm:$0xff] %vm460, %v869
        %s871 = scalar_lea.vmem [#allocation4], 24
        %v872 = vld [vmem:[%s871] sm:$0xff]
        %874 = vset.pattern.permute.xlu0 0
        %875 = vperm.xlu0 %874, %v854
        %v876 = vpop.permute.xlu0 %875
        %v878 = vmul.f32 %v876, %v872
        %v879 = vpack.c.bf16 %v862, %v862
        %880 = vrot.lane.b32.xlu0 %v474, 32
        %v881 = vpop.permute.xlu0 %880
        %v883 = vsel %vm438, %v879, 0
        %v886 = vsel %vm478, %v881, 0
        %888 = vmatprep.subr.bf16.mxu0 0
        %889 = vmatpush1.bf16.msra.mxu0 %v886
        %890 = vmatprep.subr.bf16.mxu0 0
        %891 = vmatpush1.bf16.msra.mxu0 0
        %892 = vmatprep.subr.bf16.mxu0 0
        %893 = vmatpush1.bf16.msra.mxu0 0
        %894 = vmatprep.subr.bf16.mxu0 0
        %895 = vmatpush1.bf16.msra.mxu0 0
        %896 = vmatprep.subr.bf16.mxu0 0
        %897 = vmatpush1.bf16.msra.mxu0 0
        %898 = vmatprep.subr.bf16.mxu0 0
        %899 = vmatpush1.bf16.msra.mxu0 0
        %900 = vmatprep.subr.bf16.mxu0 0
        %901 = vmatpush1.bf16.msra.mxu0 0
        %902 = vmatprep.subr.bf16.mxu0 0
        %903 = vmatpush1.bf16.msra.mxu0 0
        %904 = vmatprep.subr.bf16.mxu0 0
        %905 = vmatpush1.bf16.msra.mxu0 0
        %906 = vmatprep.subr.bf16.mxu0 0
        %907 = vmatpush1.bf16.msra.mxu0 0
        %908 = vmatprep.subr.bf16.mxu0 0
        %909 = vmatpush1.bf16.msra.mxu0 0
        %910 = vmatprep.subr.bf16.mxu0 0
        %911 = vmatpush1.bf16.msra.mxu0 0
        %912 = vmatprep.subr.bf16.mxu0 0
        %913 = vmatpush1.bf16.msra.mxu0 0
        %914 = vmatprep.subr.bf16.mxu0 0
        %915 = vmatpush1.bf16.msra.mxu0 0
        %916 = vmatprep.subr.bf16.mxu0 0
        %917 = vmatpush1.bf16.msra.mxu0 0
        %918 = vmatprep.subr.bf16.mxu0 0
        %919 = vmatpush1.bf16.msra.mxu0 0
        %920 = vmatprep.mubr.bf16.mxu0 0
        %921 = vmatmul.mubr.bf16.gmra.mrb[0].mxu0 %v883
        %v922 = vpop.f32.mrb[0].mxu0
        %v923 = vadd.f32 0.0, %v922
        %v924 = vpop.f32.mrb[0].mxu0
        %v925 = vpop.f32.mrb[0].mxu0
        %v926 = vpop.f32.mrb[0].mxu0
        %927 = vdwg.mxu0
        %v928 = vadd.f32 %v878, %v923
        %929 = vst.msk [vmem:[%s871] sm:$0xff] %vm390, %v928
        %930 = vst.msk [vmem:[%s846] sm:$0xff] %vm460, %v851
        // Predicated region
        $region119: #{transformer_forward.47} parent=105 // pred_check
          %p931 = pneg %p364
        $region120: #{transformer_forward.47} parent=105 // pred_check_branch
          %933 = sbr.rel (%p931) target = $region122
        $region121: #{transformer_forward.47} parent=105 // pred_region
          %v934 = vld [vmem:[#allocation4] sm:$0xff]
          %v935 = vld [vmem:[#allocation3] sm:$0xff]
          %v936 = vrcp.pop %v935
          %938 = vset.pattern.permute.xlu0 0
          %939 = vperm.xlu0 %938, %v936
          %v940 = vpop.permute.xlu0 %939
          %v942 = vmul.f32 %v934, %v940
          %v943 = vld [vmem:[%s601] sm:$0xff]
          %v944 = vld [vmem:[%s593] sm:$0xff]
          %v945 = vrcp.pop %v944
          %947 = vset.pattern.permute.xlu0 0
          %948 = vperm.xlu0 %947, %v945
          %v949 = vpop.permute.xlu0 %948
          %v951 = vmul.f32 %v943, %v949
          %v952 = vld [vmem:[%s736] sm:$0xff]
          %v953 = vld [vmem:[%s728] sm:$0xff]
          %v954 = vrcp.pop %v953
          %956 = vset.pattern.permute.xlu0 0
          %957 = vperm.xlu0 %956, %v954
          %v958 = vpop.permute.xlu0 %957
          %v960 = vmul.f32 %v952, %v958
          %v961 = vld [vmem:[%s871] sm:$0xff]
          %v962 = vld [vmem:[%s863] sm:$0xff]
          %v963 = vrcp.pop %v962
          %965 = vset.pattern.permute.xlu0 0
          %966 = vperm.xlu0 %965, %v963
          %v967 = vpop.permute.xlu0 %966
          %v969 = vmul.f32 %v961, %v967
          %971 = vrot.lane.b32.xlu0 %v951, 32
          %v972 = vpop.permute.xlu0 %971
          %975 = vrot.lane.b32.xlu0 %v960, 64
          %v976 = vpop.permute.xlu0 %975
          %979 = vrot.lane.b32.xlu0 %v969, 96
          %v980 = vpop.permute.xlu0 %979
          %v982 = vsel %vm390, %v942, %v972
          %vm983 = vcmask 523264
          %v984 = vsel %vm983, %v982, %v976
          %vm985 = vcmask 785408
          %v986 = vsel %vm985, %v984, %v980
          %v987 = vpack.c.bf16 %v986, %v986
          %988 = vst [vmem:[%s357] sm:$0xf] %v987
        $region122: #{transformer_forward.47} parent=105 // pred_fallthru
          _
        %p989 = scmp.lt.s32.totalorder %s19, 1
        %s990 = scalar_select %p989, %s19, 1
        %p991 = scmp.lt.s32.totalorder %s20, 0
        %s992 = scalar_select %p991, %s20, 0
        %s993 = sadd.s32 %s992, %s990
        %s994 = smul.addr %s993, 4
        %s995 = scalar_lea.vmem %s3, %s994
        // Predicated region
        $region123: #{transformer_forward.47} parent=105 // pred_check
          %p996 = pneg %p143
        $region124: #{transformer_forward.47} parent=105 // pred_check_branch
          %998 = sbr.rel (%p996) target = $region126
        $region125: #{transformer_forward.47} parent=105 // pred_region
          _
        $region126: #{transformer_forward.47} parent=105 // pred_fallthru
          _
      $region106: #{transformer_forward.47} parent=5 // pred_fallthru
        _
      %p999 = scmp.le.s32.totalorder 2, %s9
      // Predicated region
      $region127: #{transformer_forward.47} parent=5 // pred_check
        %p1000 = pneg %p999
      $region128: #{transformer_forward.47} parent=5 // pred_check_branch
        %1002 = sbr.rel (%p1000) target = $region130
      $region129: #{transformer_forward.47} parent=5 // pred_region
        %s1003 = ssub.s32 %s9, 2
        // Predicated region
        $region131: #{transformer_forward.47} parent=129 // pred_check
          %p1004 = pneg %p149
        $region132: #{transformer_forward.47} parent=129 // pred_check_branch
          %1006 = sbr.rel (%p1004) target = $region134
        $region133: #{transformer_forward.47} parent=129 // pred_region
          %p1007 = scmp.lt.s32.totalorder %s22, 1
          %s1008 = scalar_select %p1007, %s22, 1
          %p1009 = scmp.lt.s32.totalorder %s23, 0
          %s1010 = scalar_select %p1009, %s23, 0
          %s1011 = sadd.s32 %s1010, %s1008
          %s1012 = smul.addr %s1011, 4
          %s1013 = scalar_lea.vmem %s3, %s1012
        $region134: #{transformer_forward.47} parent=129 // pred_fallthru
          _
      $region130: #{transformer_forward.47} parent=5 // pred_fallthru
        _
    $region6: #{transformer_forward.47} parent=1 // loop_footer
      %s13 = sadd.s32 1, %s9
    $region7: #{transformer_forward.47} parent=1 // loop_footer_branch
      %8 = sbr.rel target = $region3
    $region8: #{transformer_forward.47} parent=1 // loop_exit
      _

// kernel: transformer_forward.60
$region0: #{transformer_forward.60}
  #allocation0 [shape = 'u32[]', space=smem, size = 0x4, offset = 0x4, fixed_abs, tag = 'smem constant byte address 0x4 - core index']
  #allocation1 [shape = 'u32[144,128]{1,0:T(1,128)}', space=vmem, size = 0x12000, scoped, tag = 'internal scratch']
  %s0 = inlined_call_operand.vmem [shape: bf16[16,128], index: 0, kind: input, shape index: {}]
  %s1 = inlined_call_operand.vmem [shape: f32[1,128], index: 1, kind: input, shape index: {}]
  %s2 = inlined_call_operand.vmem [shape: f32[1,128], index: 2, kind: input, shape index: {}]
  %s3 = inlined_call_operand.vmem [shape: bf16[16,128], index: 3, kind: output, shape index: {}]
  %s4 = sld [smem:[#allocation0]]
  $region22: #{transformer_forward.60} parent=0
    _
  %s6 = ssub.s32 1, %s4
  %s7 = scalar_select 0, %s6, %s4
  // Predicated region
  $region2: #{transformer_forward.60} parent=0 // pred_check
    _
  $region3: #{transformer_forward.60} parent=0 // pred_check_branch
    %9 = sbr.rel (0) target = $region5
  $region4: #{transformer_forward.60} parent=0 // pred_region
    _
  $region5: #{transformer_forward.60} parent=0 // pred_fallthru
    _
  // Predicated region
  $region6: #{transformer_forward.60} parent=0 // pred_check
    _
  $region7: #{transformer_forward.60} parent=0 // pred_check_branch
    %11 = sbr.rel (0) target = $region9
  $region8: #{transformer_forward.60} parent=0 // pred_region
    _
  $region9: #{transformer_forward.60} parent=0 // pred_fallthru
    _
  // Predicated region
  $region10: #{transformer_forward.60} parent=0 // pred_check
    _
  $region11: #{transformer_forward.60} parent=0 // pred_check_branch
    %13 = sbr.rel (0) target = $region13
  $region12: #{transformer_forward.60} parent=0 // pred_region
    _
  $region13: #{transformer_forward.60} parent=0 // pred_fallthru
    _
  %v14 = vld [vmem:[%s0] sm:$0xf]
  %v15 = vld [vmem:[%s0 + $0x4] sm:$0xf]
  %v16 = vunpack.c.l.bf16 %v14
  %v17 = vunpack.c.l.bf16 %v15
  %18 = vadd.xlane.f32.xlu0 %v16
  %v19 = vpop.xlane.xlu0 %18
  %20 = vadd.xlane.f32.xlu0 %v17
  %v21 = vpop.xlane.xlu0 %20
  %v22 = vrcp.pop 128.0
  %v23 = vmul.f32 %v19, %v22
  %v24 = vmul.f32 %v21, %v22
  %v25 = vsub.f32 %v16, %v23
  %v26 = vsub.f32 %v17, %v24
  %v27 = vmul.f32 %v25, %v25
  %v28 = vmul.f32 %v26, %v26
  %29 = vadd.xlane.f32.xlu0 %v27
  %v30 = vpop.xlane.xlu0 %29
  %31 = vadd.xlane.f32.xlu0 %v28
  %v32 = vpop.xlane.xlu0 %31
  %v33 = vmul.f32 %v30, %v22
  %v34 = vmul.f32 %v32, %v22
  %v35 = vadd.f32 %v33, 1e-05
  %v36 = vadd.f32 %v34, 1e-05
  %v37 = vrsqrt.pop %v35
  %v38 = vrsqrt.pop %v36
  %v39 = vmul.f32 %v25, %v37
  %v40 = vmul.f32 %v26, %v38
  %v41 = vld [vmem:[%s1] sm:$0x1]
  %v43 = vlaneseq
  %v44 = vshrl.u32 %v43, 7
  %v45 = vsub.s32 0, %v44
  %v46 = vrot.slane %v41, %v45
  %v48 = vmul.f32 %v39, %v46
  %v49 = vmul.f32 %v40, %v46
  %v50 = vld [vmem:[%s2] sm:$0x1]
  %v52 = vlaneseq
  %v53 = vshrl.u32 %v52, 7
  %v54 = vsub.s32 0, %v53
  %v55 = vrot.slane %v50, %v54
  %v57 = vadd.f32 %v48, %v55
  %v58 = vadd.f32 %v49, %v55
  %v59 = vpack.c.bf16 %v58, %v57
  %v61 = vunpack.c.l.b16 %v59
  %v62 = vunpack.c.h.b16 %v59
  %v63 = vpack.c.b16 %v61, %v61
  %v64 = vpack.c.b16 %v62, %v62
  %67 = vst [vmem:[%s3] sm:$0xf] %v63
  %68 = vst [vmem:[%s3 + $0x4] sm:$0xf] %v64
  // Predicated region
  $region14: #{transformer_forward.60} parent=0 // pred_check
    _
  $region15: #{transformer_forward.60} parent=0 // pred_check_branch
    %70 = sbr.rel (0) target = $region17
  $region16: #{transformer_forward.60} parent=0 // pred_region
    _
  $region17: #{transformer_forward.60} parent=0 // pred_fallthru
    _
  // Predicated region
  $region18: #{transformer_forward.60} parent=0 // pred_check
    _
  $region19: #{transformer_forward.60} parent=0 // pred_check_branch
    %72 = sbr.rel (0) target = $region21
  $region20: #{transformer_forward.60} parent=0 // pred_region
    _
  $region21: #{transformer_forward.60} parent=0 // pred_fallthru
    _

// kernel: transformer_forward.49
$region0: #{transformer_forward.49}
  #allocation0 [shape = 'u32[]', space=smem, size = 0x4, offset = 0x4, fixed_abs, tag = 'smem constant byte address 0x4 - core index']
  #allocation1 [shape = 'u32[144,128]{1,0:T(1,128)}', space=vmem, size = 0x12000, scoped, tag = 'internal scratch']
  #allocation2 [shape = 'f32[16,128]{1,0:T(8,128)}', space=vmem, size = 0x2000, scoped, tag = 'scratch operand']
  %s0 = inlined_call_operand.vmem [shape: bf16[16,128], index: 0, kind: input, shape index: {}]
  %s1 = inlined_call_operand.vmem [shape: bf16[128,128], index: 1, kind: input, shape index: {}]
  %s2 = inlined_call_operand.vmem [shape: f32[1,128], index: 2, kind: input, shape index: {}]
  %s3 = inlined_call_operand.vmem [shape: bf16[16,128], index: 3, kind: output, shape index: {}]
  %s4 = sld [smem:[#allocation0]]
  $region30: #{transformer_forward.49} parent=0
    _
  %s6 = ssub.s32 1, %s4
  %s7 = scalar_select 0, %s6, %s4
  // Predicated region
  $region2: #{transformer_forward.49} parent=0 // pred_check
    _
  $region3: #{transformer_forward.49} parent=0 // pred_check_branch
    %9 = sbr.rel (0) target = $region5
  $region4: #{transformer_forward.49} parent=0 // pred_region
    _
  $region5: #{transformer_forward.49} parent=0 // pred_fallthru
    _
  // Predicated region
  $region6: #{transformer_forward.49} parent=0 // pred_check
    _
  $region7: #{transformer_forward.49} parent=0 // pred_check_branch
    %11 = sbr.rel (0) target = $region9
  $region8: #{transformer_forward.49} parent=0 // pred_region
    _
  $region9: #{transformer_forward.49} parent=0 // pred_fallthru
    _
  // Predicated region
  $region10: #{transformer_forward.49} parent=0 // pred_check
    _
  $region11: #{transformer_forward.49} parent=0 // pred_check_branch
    %13 = sbr.rel (0) target = $region13
  $region12: #{transformer_forward.49} parent=0 // pred_region
    _
  $region13: #{transformer_forward.49} parent=0 // pred_fallthru
    _
  %p15 = scmp.eq.s32.totalorder 0, 0
  // Predicated region
  $region14: #{transformer_forward.49} parent=0 // pred_check
    %p16 = pneg %p15
  $region15: #{transformer_forward.49} parent=0 // pred_check_branch
    %18 = sbr.rel (%p16) target = $region17
  $region16: #{transformer_forward.49} parent=0 // pred_region
    %19 = vst [vmem:[#allocation2] sm:$0xff] 0.0
    %20 = vst [vmem:[#allocation2 + $0x8] sm:$0xff] 0.0
  $region17: #{transformer_forward.49} parent=0 // pred_fallthru
    _
  %v21 = vld [vmem:[#allocation2] sm:$0xff]
  %v22 = vld [vmem:[#allocation2 + $0x8] sm:$0xff]
  %v23 = vld [vmem:[%s0] sm:$0xf]
  %v24 = vld [vmem:[%s0 + $0x4] sm:$0xf]
  %v25 = vld [vmem:[%s1] sm:$0xf]
  %v26 = vld [vmem:[%s1 + $0x4] sm:$0xf]
  %v27 = vld [vmem:[%s1 + $0x8] sm:$0xf]
  %v28 = vld [vmem:[%s1 + $0xc] sm:$0xf]
  %v29 = vld [vmem:[%s1 + $0x10] sm:$0xf]
  %v30 = vld [vmem:[%s1 + $0x14] sm:$0xf]
  %v31 = vld [vmem:[%s1 + $0x18] sm:$0xf]
  %v32 = vld [vmem:[%s1 + $0x1c] sm:$0xf]
  %v33 = vld [vmem:[%s1 + $0x20] sm:$0xf]
  %v34 = vld [vmem:[%s1 + $0x24] sm:$0xf]
  %v35 = vld [vmem:[%s1 + $0x28] sm:$0xf]
  %v36 = vld [vmem:[%s1 + $0x2c] sm:$0xf]
  %v37 = vld [vmem:[%s1 + $0x30] sm:$0xf]
  %v38 = vld [vmem:[%s1 + $0x34] sm:$0xf]
  %v39 = vld [vmem:[%s1 + $0x38] sm:$0xf]
  %v40 = vld [vmem:[%s1 + $0x3c] sm:$0xf]
  %v43 = vunpack.c.l.b16 %v23
  %v44 = vunpack.c.l.b16 %v24
  %v45 = vpack.c.b16 %v44, %v43
  %v63 = vunpack.c.l.b16 %v25
  %v64 = vunpack.c.l.b16 %v26
  %v65 = vunpack.c.l.b16 %v27
  %v66 = vunpack.c.l.b16 %v28
  %v67 = vunpack.c.l.b16 %v29
  %v68 = vunpack.c.l.b16 %v30
  %v69 = vunpack.c.l.b16 %v31
  %v70 = vunpack.c.l.b16 %v32
  %v71 = vunpack.c.l.b16 %v33
  %v72 = vunpack.c.l.b16 %v34
  %v73 = vunpack.c.l.b16 %v35
  %v74 = vunpack.c.l.b16 %v36
  %v75 = vunpack.c.l.b16 %v37
  %v76 = vunpack.c.l.b16 %v38
  %v77 = vunpack.c.l.b16 %v39
  %v78 = vunpack.c.l.b16 %v40
  %v79 = vpack.c.b16 %v64, %v63
  %v80 = vpack.c.b16 %v66, %v65
  %v81 = vpack.c.b16 %v68, %v67
  %v82 = vpack.c.b16 %v70, %v69
  %v83 = vpack.c.b16 %v72, %v71
  %v84 = vpack.c.b16 %v74, %v73
  %v85 = vpack.c.b16 %v76, %v75
  %v86 = vpack.c.b16 %v78, %v77
  %95 = vmatprep.subr.bf16.mxu0 0
  %96 = vmatpush1.bf16.msra.mxu0 %v79
  %97 = vmatprep.subr.bf16.mxu0 0
  %98 = vmatpush1.bf16.msra.mxu0 %v80
  %99 = vmatprep.subr.bf16.mxu0 0
  %100 = vmatpush1.bf16.msra.mxu0 %v81
  %101 = vmatprep.subr.bf16.mxu0 0
  %102 = vmatpush1.bf16.msra.mxu0 %v82
  %103 = vmatprep.subr.bf16.mxu0 0
  %104 = vmatpush1.bf16.msra.mxu0 %v83
  %105 = vmatprep.subr.bf16.mxu0 0
  %106 = vmatpush1.bf16.msra.mxu0 %v84
  %107 = vmatprep.subr.bf16.mxu0 0
  %108 = vmatpush1.bf16.msra.mxu0 %v85
  %109 = vmatprep.subr.bf16.mxu0 0
  %110 = vmatpush1.bf16.msra.mxu0 %v86
  %111 = vmatprep.subr.bf16.mxu0 0
  %112 = vmatpush1.bf16.msra.mxu0 0
  %113 = vmatprep.subr.bf16.mxu0 0
  %114 = vmatpush1.bf16.msra.mxu0 0
  %115 = vmatprep.subr.bf16.mxu0 0
  %116 = vmatpush1.bf16.msra.mxu0 0
  %117 = vmatprep.subr.bf16.mxu0 0
  %118 = vmatpush1.bf16.msra.mxu0 0
  %119 = vmatprep.subr.bf16.mxu0 0
  %120 = vmatpush1.bf16.msra.mxu0 0
  %121 = vmatprep.subr.bf16.mxu0 0
  %122 = vmatpush1.bf16.msra.mxu0 0
  %123 = vmatprep.subr.bf16.mxu0 0
  %124 = vmatpush1.bf16.msra.mxu0 0
  %125 = vmatprep.subr.bf16.mxu0 0
  %126 = vmatpush1.bf16.msra.mxu0 0
  %127 = vmatprep.mubr.bf16.mxu0 0
  %128 = vmatmul.mubr.bf16.gmra.mrb[0].mxu0 %v45
  %v129 = vpop.f32.mrb[0].mxu0
  %v130 = vadd.f32 0.0, %v129
  %v131 = vpop.f32.mrb[0].mxu0
  %v132 = vpop.f32.mrb[0].mxu0
  %v133 = vadd.f32 0.0, %v132
  %v134 = vpop.f32.mrb[0].mxu0
  %135 = vdwg.mxu0
  %v136 = vadd.f32 %v21, %v130
  %v137 = vadd.f32 %v22, %v133
  %138 = vst [vmem:[#allocation2] sm:$0xff] %v136
  %139 = vst [vmem:[#allocation2 + $0x8] sm:$0xff] %v137
  // Predicated region
  $region18: #{transformer_forward.49} parent=0 // pred_check
    %p140 = pneg %p15
  $region19: #{transformer_forward.49} parent=0 // pred_check_branch
    %142 = sbr.rel (%p140) target = $region21
  $region20: #{transformer_forward.49} parent=0 // pred_region
    %v143 = vld [vmem:[#allocation2] sm:$0xff]
    %v144 = vld [vmem:[#allocation2 + $0x8] sm:$0xff]
    %v145 = vld [vmem:[%s2] sm:$0x1]
    %v147 = vlaneseq
    %v148 = vshrl.u32 %v147, 7
    %v149 = vsub.s32 0, %v148
    %v150 = vrot.slane %v145, %v149
    %v152 = vadd.f32 %v143, %v150
    %v153 = vadd.f32 %v144, %v150
    %v154 = vmax.f32 %v152, 0.0
    %v155 = vmax.f32 %v153, 0.0
    %v156 = vpack.c.bf16 %v155, %v154
    %v158 = vunpack.c.l.b16 %v156
    %v159 = vunpack.c.h.b16 %v156
    %v160 = vpack.c.b16 %v158, %v158
    %v161 = vpack.c.b16 %v159, %v159
    %164 = vst [vmem:[%s3] sm:$0xf] %v160
    %165 = vst [vmem:[%s3 + $0x4] sm:$0xf] %v161
  $region21: #{transformer_forward.49} parent=0 // pred_fallthru
    _
  // Predicated region
  $region22: #{transformer_forward.49} parent=0 // pred_check
    _
  $region23: #{transformer_forward.49} parent=0 // pred_check_branch
    %167 = sbr.rel (0) target = $region25
  $region24: #{transformer_forward.49} parent=0 // pred_region
    _
  $region25: #{transformer_forward.49} parent=0 // pred_fallthru
    _
  // Predicated region
  $region26: #{transformer_forward.49} parent=0 // pred_check
    _
  $region27: #{transformer_forward.49} parent=0 // pred_check_branch
    %169 = sbr.rel (0) target = $region29
  $region28: #{transformer_forward.49} parent=0 // pred_region
    _
  $region29: #{transformer_forward.49} parent=0 // pred_fallthru
    _

// kernel: transformer_forward.61
$region0: #{transformer_forward.61}
  #allocation0 [shape = 'u32[]', space=smem, size = 0x4, offset = 0x4, fixed_abs, tag = 'smem constant byte address 0x4 - core index']
  #allocation1 [shape = 'u32[144,128]{1,0:T(1,128)}', space=vmem, size = 0x12000, scoped, tag = 'internal scratch']
  #allocation2 [shape = 'f32[16,128]{1,0:T(8,128)}', space=vmem, size = 0x2000, scoped, tag = 'scratch operand']
  %s0 = inlined_call_operand.vmem [shape: bf16[16,128], index: 0, kind: input, shape index: {}]
  %s1 = inlined_call_operand.vmem [shape: bf16[128,128], index: 1, kind: input, shape index: {}]
  %s2 = inlined_call_operand.vmem [shape: f32[1,128], index: 2, kind: input, shape index: {}]
  %s3 = inlined_call_operand.vmem [shape: f32[16,128], index: 3, kind: output, shape index: {}]
  %s4 = sld [smem:[#allocation0]]
  $region30: #{transformer_forward.61} parent=0
    _
  %s6 = ssub.s32 1, %s4
  %s7 = scalar_select 0, %s6, %s4
  // Predicated region
  $region2: #{transformer_forward.61} parent=0 // pred_check
    _
  $region3: #{transformer_forward.61} parent=0 // pred_check_branch
    %9 = sbr.rel (0) target = $region5
  $region4: #{transformer_forward.61} parent=0 // pred_region
    _
  $region5: #{transformer_forward.61} parent=0 // pred_fallthru
    _
  // Predicated region
  $region6: #{transformer_forward.61} parent=0 // pred_check
    _
  $region7: #{transformer_forward.61} parent=0 // pred_check_branch
    %11 = sbr.rel (0) target = $region9
  $region8: #{transformer_forward.61} parent=0 // pred_region
    _
  $region9: #{transformer_forward.61} parent=0 // pred_fallthru
    _
  // Predicated region
  $region10: #{transformer_forward.61} parent=0 // pred_check
    _
  $region11: #{transformer_forward.61} parent=0 // pred_check_branch
    %13 = sbr.rel (0) target = $region13
  $region12: #{transformer_forward.61} parent=0 // pred_region
    _
  $region13: #{transformer_forward.61} parent=0 // pred_fallthru
    _
  %p15 = scmp.eq.s32.totalorder 0, 0
  // Predicated region
  $region14: #{transformer_forward.61} parent=0 // pred_check
    %p16 = pneg %p15
  $region15: #{transformer_forward.61} parent=0 // pred_check_branch
    %18 = sbr.rel (%p16) target = $region17
  $region16: #{transformer_forward.61} parent=0 // pred_region
    %19 = vst [vmem:[#allocation2] sm:$0xff] 0.0
    %20 = vst [vmem:[#allocation2 + $0x8] sm:$0xff] 0.0
  $region17: #{transformer_forward.61} parent=0 // pred_fallthru
    _
  %v21 = vld [vmem:[#allocation2] sm:$0xff]
  %v22 = vld [vmem:[#allocation2 + $0x8] sm:$0xff]
  %v23 = vld [vmem:[%s0] sm:$0xf]
  %v24 = vld [vmem:[%s0 + $0x4] sm:$0xf]
  %v25 = vld [vmem:[%s1] sm:$0xf]
  %v26 = vld [vmem:[%s1 + $0x4] sm:$0xf]
  %v27 = vld [vmem:[%s1 + $0x8] sm:$0xf]
  %v28 = vld [vmem:[%s1 + $0xc] sm:$0xf]
  %v29 = vld [vmem:[%s1 + $0x10] sm:$0xf]
  %v30 = vld [vmem:[%s1 + $0x14] sm:$0xf]
  %v31 = vld [vmem:[%s1 + $0x18] sm:$0xf]
  %v32 = vld [vmem:[%s1 + $0x1c] sm:$0xf]
  %v33 = vld [vmem:[%s1 + $0x20] sm:$0xf]
  %v34 = vld [vmem:[%s1 + $0x24] sm:$0xf]
  %v35 = vld [vmem:[%s1 + $0x28] sm:$0xf]
  %v36 = vld [vmem:[%s1 + $0x2c] sm:$0xf]
  %v37 = vld [vmem:[%s1 + $0x30] sm:$0xf]
  %v38 = vld [vmem:[%s1 + $0x34] sm:$0xf]
  %v39 = vld [vmem:[%s1 + $0x38] sm:$0xf]
  %v40 = vld [vmem:[%s1 + $0x3c] sm:$0xf]
  %v43 = vunpack.c.l.b16 %v23
  %v44 = vunpack.c.l.b16 %v24
  %v45 = vpack.c.b16 %v44, %v43
  %v63 = vunpack.c.l.b16 %v25
  %v64 = vunpack.c.l.b16 %v26
  %v65 = vunpack.c.l.b16 %v27
  %v66 = vunpack.c.l.b16 %v28
  %v67 = vunpack.c.l.b16 %v29
  %v68 = vunpack.c.l.b16 %v30
  %v69 = vunpack.c.l.b16 %v31
  %v70 = vunpack.c.l.b16 %v32
  %v71 = vunpack.c.l.b16 %v33
  %v72 = vunpack.c.l.b16 %v34
  %v73 = vunpack.c.l.b16 %v35
  %v74 = vunpack.c.l.b16 %v36
  %v75 = vunpack.c.l.b16 %v37
  %v76 = vunpack.c.l.b16 %v38
  %v77 = vunpack.c.l.b16 %v39
  %v78 = vunpack.c.l.b16 %v40
  %v79 = vpack.c.b16 %v64, %v63
  %v80 = vpack.c.b16 %v66, %v65
  %v81 = vpack.c.b16 %v68, %v67
  %v82 = vpack.c.b16 %v70, %v69
  %v83 = vpack.c.b16 %v72, %v71
  %v84 = vpack.c.b16 %v74, %v73
  %v85 = vpack.c.b16 %v76, %v75
  %v86 = vpack.c.b16 %v78, %v77
  %95 = vmatprep.subr.bf16.mxu0 0
  %96 = vmatpush1.bf16.msra.mxu0 %v79
  %97 = vmatprep.subr.bf16.mxu0 0
  %98 = vmatpush1.bf16.msra.mxu0 %v80
  %99 = vmatprep.subr.bf16.mxu0 0
  %100 = vmatpush1.bf16.msra.mxu0 %v81
  %101 = vmatprep.subr.bf16.mxu0 0
  %102 = vmatpush1.bf16.msra.mxu0 %v82
  %103 = vmatprep.subr.bf16.mxu0 0
  %104 = vmatpush1.bf16.msra.mxu0 %v83
  %105 = vmatprep.subr.bf16.mxu0 0
  %106 = vmatpush1.bf16.msra.mxu0 %v84
  %107 = vmatprep.subr.bf16.mxu0 0
  %108 = vmatpush1.bf16.msra.mxu0 %v85
  %109 = vmatprep.subr.bf16.mxu0 0
  %110 = vmatpush1.bf16.msra.mxu0 %v86
  %111 = vmatprep.subr.bf16.mxu0 0
  %112 = vmatpush1.bf16.msra.mxu0 0
  %113 = vmatprep.subr.bf16.mxu0 0
  %114 = vmatpush1.bf16.msra.mxu0 0
  %115 = vmatprep.subr.bf16.mxu0 0
  %116 = vmatpush1.bf16.msra.mxu0 0
  %117 = vmatprep.subr.bf16.mxu0 0
  %118 = vmatpush1.bf16.msra.mxu0 0
  %119 = vmatprep.subr.bf16.mxu0 0
  %120 = vmatpush1.bf16.msra.mxu0 0
  %121 = vmatprep.subr.bf16.mxu0 0
  %122 = vmatpush1.bf16.msra.mxu0 0
  %123 = vmatprep.subr.bf16.mxu0 0
  %124 = vmatpush1.bf16.msra.mxu0 0
  %125 = vmatprep.subr.bf16.mxu0 0
  %126 = vmatpush1.bf16.msra.mxu0 0
  %127 = vmatprep.mubr.bf16.mxu0 0
  %128 = vmatmul.mubr.bf16.gmra.mrb[0].mxu0 %v45
  %v129 = vpop.f32.mrb[0].mxu0
  %v130 = vadd.f32 0.0, %v129
  %v131 = vpop.f32.mrb[0].mxu0
  %v132 = vpop.f32.mrb[0].mxu0
  %v133 = vadd.f32 0.0, %v132
  %v134 = vpop.f32.mrb[0].mxu0
  %135 = vdwg.mxu0
  %v136 = vadd.f32 %v21, %v130
  %v137 = vadd.f32 %v22, %v133
  %138 = vst [vmem:[#allocation2] sm:$0xff] %v136
  %139 = vst [vmem:[#allocation2 + $0x8] sm:$0xff] %v137
  // Predicated region
  $region18: #{transformer_forward.61} parent=0 // pred_check
    %p140 = pneg %p15
  $region19: #{transformer_forward.61} parent=0 // pred_check_branch
    %142 = sbr.rel (%p140) target = $region21
  $region20: #{transformer_forward.61} parent=0 // pred_region
    %v143 = vld [vmem:[#allocation2] sm:$0xff]
    %v144 = vld [vmem:[#allocation2 + $0x8] sm:$0xff]
    %v145 = vld [vmem:[%s2] sm:$0x1]
    %v147 = vlaneseq
    %v148 = vshrl.u32 %v147, 7
    %v149 = vsub.s32 0, %v148
    %v150 = vrot.slane %v145, %v149
    %v152 = vadd.f32 %v143, %v150
    %v153 = vadd.f32 %v144, %v150
    %154 = vst [vmem:[%s3] sm:$0xff] %v152
    %155 = vst [vmem:[%s3 + $0x8] sm:$0xff] %v153
  $region21: #{transformer_forward.61} parent=0 // pred_fallthru
    _
  // Predicated region
  $region22: #{transformer_forward.61} parent=0 // pred_check
    _
  $region23: #{transformer_forward.61} parent=0 // pred_check_branch
    %157 = sbr.rel (0) target = $region25
  $region24: #{transformer_forward.61} parent=0 // pred_region
    _
  $region25: #{transformer_forward.61} parent=0 // pred_fallthru
    _
  // Predicated region
  $region26: #{transformer_forward.61} parent=0 // pred_check
    _
  $region27: #{transformer_forward.61} parent=0 // pred_check_branch
    %159 = sbr.rel (0) target = $region29
  $region28: #{transformer_forward.61} parent=0 // pred_region
    _
  $region29: #{transformer_forward.61} parent=0 // pred_fallthru
    _

</llo_original>
